<compile_context>
chip_gen: v5e
topology: v5e:2x2
jax: 0.10.0
libtpu: 0.0.40
codegen_flags: <defaults>
</compile_context>

<pallas_src>
import functools

import numpy as np
import jax
import jax.numpy as jnp
from jax.experimental import pallas as pl
from jax.experimental.pallas import tpu as pltpu

EPS = 1e-5
LANES = 128

# ((dy, dx) input offset, (ky, kx) kernel tap) per transposed-conv output parity
_DEC_TAPS = {
    (0, 0): (((0, 0), (1, 1)),),
    (0, 1): (((0, 0), (1, 2)), ((0, 1), (1, 0))),
    (1, 0): (((0, 0), (2, 1)), ((1, 0), (0, 1))),
    (1, 1): (((0, 0), (2, 2)), ((0, 1), (2, 0)),
             ((1, 0), (0, 2)), ((1, 1), (0, 0))),
}


def _round_up(x, m):
    return (x + m - 1) // m * m


# ----------------------------------------------------------------------------
# Static geometry / constant tables (numpy, built at trace time)
# ----------------------------------------------------------------------------
def _make_geom(N, H0):
    kinds = ["enc", "enc", "enc", "dec", "dec", "dec"]
    geoms = []
    H = H0
    for kind in kinds:
        if kind == "enc":
            Hi, Ho = H, H // 2
            G = Ho + 1                      # phase-grid side (output + 1)
        else:
            Hi, Ho = H, H * 2
            G = Hi + 1                      # padded-input grid side
        Sf = G * G
        Ro = N * Sf
        Rf = _round_up(Ro + G + 1, 8)       # + max row shift, rounded to 8
        geoms.append(dict(kind=kind, Hi=Hi, Ho=Ho, G=G, Sf=Sf, Ro=Ro, Rf=Rf))
        H = Ho
    return geoms


def _prev_locator(gp):
    """Map an activation pixel (n, y, x) of a layer to (block, row) of its
    flattened kernel output."""
    G, Sf = gp["G"], gp["Sf"]
    if gp["kind"] == "enc":
        return lambda n, y, x: (0, n * Sf + y * G + x)
    return lambda n, y, x: (2 * (y & 1) + (x & 1),
                            n * Sf + (y >> 1) * G + (x >> 1))


def _build_sel(gp, g, N):
    """0/1 selection tensor building layer g's flattened operand rows from the
    previous layer's output blocks."""
    B = 1 if gp["kind"] == "enc" else 4
    loc = _prev_locator(gp)
    G, Sf, Rf, Hi = g["G"], g["Sf"], g["Rf"], g["Hi"]
    P = 4 if g["kind"] == "enc" else 1
    S = np.zeros((P, B, Rf, gp["Ro"]), np.float32)
    for p in range(P):
        py, px = p >> 1, p & 1
        for n in range(N):
            for a in range(G):
                for b in range(G):
                    rF = n * Sf + a * G + b
                    if g["kind"] == "enc":
                        y, x = 2 * a + py - 1, 2 * b + px - 1
                    else:
                        y, x = a, b
                    if 0 <= y < Hi and 0 <= x < Hi:
                        blk, src = loc(n, y, x)
                        S[p, blk, rF, src] = 1.0
    return S


def _build_mask(g, N):
    """1.0 on rows that correspond to real output pixels (BN statistics)."""
    G, Sf = g["G"], g["Sf"]
    V = g["Ho"] if g["kind"] == "enc" else g["Hi"]
    m = np.zeros((N * Sf, 1), np.float32)
    for n in range(N):
        for a in range(V):
            for b in range(V):
                m[n * Sf + a * G + b, 0] = 1.0
    return m


# ----------------------------------------------------------------------------
# Fused whole-network kernel
# ----------------------------------------------------------------------------
def _make_kernel(geoms, N):
    n_layers = len(geoms)
    n_in = 1
    for li in range(n_layers):
        n_in += 2
        if li < n_layers - 1:
            n_in += 3
        if li > 0:
            n_in += 1

    def apply_sel(sel_ref, prev_blocks, f_ref):
        P, B, Rf, _ = sel_ref.shape
        for p in range(P):
            f = jnp.zeros((Rf, LANES), jnp.float32)
            for b in range(B):
                f = f + jnp.dot(sel_ref[p, b], prev_blocks[b],
                                preferred_element_type=jnp.float32)
            f_ref[p] = f

    def enc_layer(f_ref, w_ref, b_ref, g_ref, bt_ref, m_ref, g):
        Gg, Ro = g["G"], g["Ro"]
        acc = jnp.zeros((Ro, LANES), jnp.float32)
        for kh in range(3):
            for kw in range(3):
                p = 2 * (kh & 1) + (kw & 1)
                shift = (kh >> 1) * Gg + (kw >> 1)
                slab = f_ref[p, pl.ds(shift, Ro), :].astype(jnp.bfloat16)
                acc = acc + jnp.dot(slab, w_ref[kh * 3 + kw],
                                    preferred_element_type=jnp.float32)
        y = acc + b_ref[...]
        mask = m_ref[...]
        cnt = float(N * g["Ho"] * g["Ho"])
        ym = y * mask
        mean = jnp.sum(ym, axis=0, keepdims=True) * (1.0 / cnt)
        var = jnp.sum(ym * y, axis=0, keepdims=True) * (1.0 / cnt) - mean * mean
        inv = jax.lax.rsqrt(jnp.maximum(var, 0.0) + EPS)
        y = (y - mean) * inv * g_ref[...] + bt_ref[...]
        return [jnp.maximum(y, 0.0)]

    def dec_layer(f_ref, w_ref, b_ref, g_ref, bt_ref, m_ref, g, last):
        Gg, Ro = g["G"], g["Ro"]
        bias = b_ref[...]
        outs = []
        for ry in (0, 1):
            for rx in (0, 1):
                acc = jnp.zeros((Ro, LANES), jnp.float32)
                for (dy, dx), (ky, kx) in _DEC_TAPS[(ry, rx)]:
                    shift = dy * Gg + dx
                    slab = f_ref[0, pl.ds(shift, Ro), :].astype(jnp.bfloat16)
                    acc = acc + jnp.dot(slab, w_ref[ky * 3 + kx],
                                        preferred_element_type=jnp.float32)
                outs.append(acc + bias)
        if last:
            return [jnp.tanh(o) for o in outs]
        mask = m_ref[...]
        cnt = float(4 * N * g["Hi"] * g["Hi"])
        s1 = jnp.zeros((1, LANES), jnp.float32)
        s2 = jnp.zeros((1, LANES), jnp.float32)
        for o in outs:
            om = o * mask
            s1 = s1 + jnp.sum(om, axis=0, keepdims=True)
            s2 = s2 + jnp.sum(om * o, axis=0, keepdims=True)
        mean = s1 * (1.0 / cnt)
        var = s2 * (1.0 / cnt) - mean * mean
        inv = jax.lax.rsqrt(jnp.maximum(var, 0.0) + EPS)
        gam, bet = g_ref[...], bt_ref[...]
        return [jnp.maximum((o - mean) * inv * gam + bet, 0.0) for o in outs]

    def kernel(*refs):
        ins = refs[:n_in]
        out_refs = refs[n_in:n_in + 4]
        scratch = refs[n_in + 4:]

        cur = 1
        prev_blocks = None
        for li, g in enumerate(geoms):
            last = li == n_layers - 1
            w_ref = ins[cur]; cur += 1
            b_ref = ins[cur]; cur += 1
            if not last:
                g_ref = ins[cur]; cur += 1
                bt_ref = ins[cur]; cur += 1
                m_ref = ins[cur]; cur += 1
            else:
                g_ref = bt_ref = m_ref = None
            if li == 0:
                f_ref = ins[0]
            else:
                sel_ref = ins[cur]; cur += 1
                f_ref = scratch[li - 1]
                apply_sel(sel_ref, prev_blocks, f_ref)

            if g["kind"] == "enc":
                blocks = enc_layer(f_ref, w_ref, b_ref, g_ref, bt_ref, m_ref, g)
            else:
                blocks = dec_layer(f_ref, w_ref, b_ref, g_ref, bt_ref, m_ref,
                                   g, last)

            if last:
                for q in range(4):
                    out_refs[q][...] = blocks[q]
            else:
                prev_blocks = [blk.astype(jnp.bfloat16) for blk in blocks]

    return kernel, n_in


# ----------------------------------------------------------------------------
# Parameter / operand preparation (plain JAX, runs once at trace time)
# ----------------------------------------------------------------------------
def _prep_conv_w(w_oihw):                      # Conv2d (Cout, Cin, 3, 3)
    Cout, Cin = w_oihw.shape[0], w_oihw.shape[1]
    Wt = jnp.zeros((9, LANES, LANES), jnp.float32)
    for kh in range(3):
        for kw in range(3):
            Wt = Wt.at[kh * 3 + kw, :Cin, :Cout].set(w_oihw[:, :, kh, kw].T)
    return Wt.astype(jnp.bfloat16)


def _prep_convT_w(w_iohw):                     # ConvTranspose2d (Cin, Cout, 3, 3)
    Cin, Cout = w_iohw.shape[0], w_iohw.shape[1]
    Wt = jnp.zeros((9, LANES, LANES), jnp.float32)
    for ky in range(3):
        for kx in range(3):
            Wt = Wt.at[ky * 3 + kx, :Cin, :Cout].set(w_iohw[:, :, ky, kx])
    return Wt.astype(jnp.bfloat16)


def _pad_vec(v, fill=0.0):
    out = jnp.full((1, LANES), fill, jnp.float32)
    return out.at[0, :v.shape[0]].set(v.astype(jnp.float32))


def _build_f0(x_nchw, g0):
    N, C = x_nchw.shape[0], x_nchw.shape[1]
    x = jnp.transpose(x_nchw, (0, 2, 3, 1)).astype(jnp.float32)
    x = jnp.pad(x, ((0, 0), (1, 1), (1, 1), (0, LANES - C)))
    Sf = g0["Sf"]
    phases = []
    for py in (0, 1):
        for px in (0, 1):
            ph = x[:, py::2, px::2, :]
            phases.append(ph.reshape(N * Sf, LANES))
    F0 = jnp.stack(phases, axis=0)
    F0 = jnp.pad(F0, ((0, 0), (0, g0["Rf"] - N * Sf), (0, 0)))
    return F0


# ----------------------------------------------------------------------------
# Forward pass
# ----------------------------------------------------------------------------
def encoder_decoder_forward(params, x_nchw):
    N, Cin, H, W = x_nchw.shape
    assert H == W and H % 8 == 0, "spatial size must be square, multiple of 8"
    assert params["enc3_w"].shape[0] <= LANES, "latent_dim must be <= 128"
    geoms = _make_geom(N, H)

    names = [("enc1", True), ("enc2", True), ("enc3", True),
             ("dec1", False), ("dec2", False), ("dec3", False)]
    W_list, B_list, G_list, BT_list, M_list, SEL_list = [], [], [], [], [], [None]
    for li, (nm, is_enc) in enumerate(names):
        w = params[nm + "_w"]
        W_list.append(_prep_conv_w(w) if is_enc else _prep_convT_w(w))
        B_list.append(_pad_vec(params[nm + "_b"]))
        if li < 5:
            G_list.append(_pad_vec(params[nm + "_g"], fill=1.0))
            BT_list.append(_pad_vec(params[nm + "_beta"]))
            M_list.append(jnp.asarray(_build_mask(geoms[li], N)))
        if li > 0:
            SEL_list.append(jnp.asarray(_build_sel(geoms[li - 1], geoms[li], N),
                                        dtype=jnp.bfloat16))

    F0 = _build_f0(x_nchw, geoms[0])

    ops = [F0]
    for li in range(6):
        last = li == 5
        ops += [W_list[li], B_list[li]]
        if not last:
            ops += [G_list[li], BT_list[li], M_list[li]]
        if li > 0:
            ops += [SEL_list[li]]

    kernel, n_in = _make_kernel(geoms, N)
    assert n_in == len(ops)

    scratch_shapes = []
    for li in range(1, 6):
        P = 4 if geoms[li]["kind"] == "enc" else 1
        scratch_shapes.append(pltpu.VMEM((P, geoms[li]["Rf"], LANES),
                                         jnp.float32))

    def full_spec(a):
        nd = a.ndim
        return pl.BlockSpec(a.shape, lambda i, _nd=nd: (0,) * _nd)

    Ro_out = geoms[-1]["Ro"]
    outs = pl.pallas_call(
        kernel,
        out_shape=[jax.ShapeDtypeStruct((Ro_out, LANES), jnp.float32)] * 4,
        grid=(1,),
        in_specs=[full_spec(a) for a in ops],
        out_specs=[pl.BlockSpec((Ro_out, LANES), lambda i: (0, 0))
                   for _ in range(4)],
        scratch_shapes=scratch_shapes,
        compiler_params=pltpu.CompilerParams(
            dimension_semantics=("arbitrary",)),
    )(*ops)

    # Assemble the 4 output-parity phases into the final NCHW image.
    g = geoms[-1]
    Gd, Hh = g["G"], g["Hi"]
    ph = [o.reshape(N, Gd, Gd, LANES)[:, :Hh, :Hh, :Cin] for o in outs]
    P = jnp.stack([jnp.stack([ph[0], ph[1]], axis=0),
                   jnp.stack([ph[2], ph[3]], axis=0)], axis=0)  # (ry,rx,N,r,s,C)
    A = jnp.transpose(P, (2, 3, 0, 4, 1, 5))                    # (N,r,ry,s,rx,C)
    y = A.reshape(N, 2 * Hh, 2 * Hh, Cin)
    return jnp.transpose(y, (0, 3, 1, 2))


# ----------------------------------------------------------------------------
# Parameters (PyTorch layouts) and a pure-JAX f32 reference for validation
# ----------------------------------------------------------------------------
def init_params(key, input_channels=3, latent_dim=128):
    ks = jax.random.split(key, 16)

    def cw(k, co, ci):
        return jax.random.normal(k, (co, ci, 3, 3), jnp.float32) * 0.1

    def ctw(k, ci, co):
        return jax.random.normal(k, (ci, co, 3, 3), jnp.float32) * 0.1

    def bv(k, c):
        return jax.random.normal(k, (c,), jnp.float32) * 0.01

    return {
        "enc1_w": cw(ks[0], 32, input_channels), "enc1_b": bv(ks[1], 32),
        "enc1_g": jnp.ones((32,), jnp.float32), "enc1_beta": jnp.zeros((32,), jnp.float32),
        "enc2_w": cw(ks[2], 64, 32), "enc2_b": bv(ks[3], 64),
        "enc2_g": jnp.ones((64,), jnp.float32), "enc2_beta": jnp.zeros((64,), jnp.float32),
        "enc3_w": cw(ks[4], latent_dim, 64), "enc3_b": bv(ks[5], latent_dim),
        "enc3_g": jnp.ones((latent_dim,), jnp.float32),
        "enc3_beta": jnp.zeros((latent_dim,), jnp.float32),
        "dec1_w": ctw(ks[6], latent_dim, 64), "dec1_b": bv(ks[7], 64),
        "dec1_g": jnp.ones((64,), jnp.float32), "dec1_beta": jnp.zeros((64,), jnp.float32),
        "dec2_w": ctw(ks[8], 64, 32), "dec2_b": bv(ks[9], 32),
        "dec2_g": jnp.ones((32,), jnp.float32), "dec2_beta": jnp.zeros((32,), jnp.float32),
        "dec3_w": ctw(ks[10], 32, input_channels), "dec3_b": bv(ks[11], input_channels),
    }


def _reference_forward(p, x):
    x = jnp.transpose(x, (0, 2, 3, 1)).astype(jnp.float32)

    def conv(x, w_oihw, b):
        w = jnp.transpose(w_oihw, (2, 3, 1, 0))
        y = jax.lax.conv_general_dilated(
            x, w, window_strides=(2, 2), padding=((1, 1), (1, 1)),
            dimension_numbers=("NHWC", "HWIO", "NHWC"))
        return y + b

    def convT(x, w_iohw, b):
        w = jnp.transpose(w_iohw[:, :, ::-1, ::-1], (2, 3, 0, 1))
        y = jax.lax.conv_general_dilated(
            x, w, window_strides=(1, 1), padding=((1, 2), (1, 2)),
            lhs_dilation=(2, 2), dimension_numbers=("NHWC", "HWIO", "NHWC"))
        return y + b

    def bn(y, g, bt):
        m = jnp.mean(y, axis=(0, 1, 2), keepdims=True)
        v = jnp.mean((y - m) ** 2, axis=(0, 1, 2), keepdims=True)
        return (y - m) * jax.lax.rsqrt(v + EPS) * g + bt

    x = jnp.maximum(bn(conv(x, p["enc1_w"], p["enc1_b"]), p["enc1_g"], p["enc1_beta"]), 0.0)
    x = jnp.maximum(bn(conv(x, p["enc2_w"], p["enc2_b"]), p["enc2_g"], p["enc2_beta"]), 0.0)
    x = jnp.maximum(bn(conv(x, p["enc3_w"], p["enc3_b"]), p["enc3_g"], p["enc3_beta"]), 0.0)
    x = jnp.maximum(bn(convT(x, p["dec1_w"], p["dec1_b"]), p["dec1_g"], p["dec1_beta"]), 0.0)
    x = jnp.maximum(bn(convT(x, p["dec2_w"], p["dec2_b"]), p["dec2_g"], p["dec2_beta"]), 0.0)
    x = jnp.tanh(convT(x, p["dec3_w"], p["dec3_b"]))
    return jnp.transpose(x, (0, 3, 1, 2))


if __name__ == "__main__":
    key = jax.random.PRNGKey(0)
    params = init_params(key, input_channels=3, latent_dim=128)
    x = jax.random.normal(jax.random.fold_in(key, 999), (2, 3, 16, 16), jnp.float32)

    fwd = jax.jit(lambda xx: encoder_decoder_forward(params, xx))
    y = fwd(x)
    jax.block_until_ready(y)

    assert y.shape == (2, 3, 16, 16), y.shape
    assert bool(jnp.all(jnp.isfinite(y)))
    assert bool(jnp.all(jnp.abs(y) <= 1.0 + 1e-5))   # tanh output range

    y_ref = _reference_forward(params, x)
    err = float(jnp.max(jnp.abs(y - y_ref)))
    assert err < 0.1, f"max abs error vs f32 reference: {err}"

    print("KERNEL_OK")
</pallas_src>

<mosaic_0001>
module attributes {stable_mosaic.version = 11 : i64} {
  func.func @kernel(%arg0: i32, %arg1: memref<4x176x128xf32, #tpu.memory_space<vmem>>, %arg2: memref<9x128x128xbf16, #tpu.memory_space<vmem>>, %arg3: memref<1x128xf32, #tpu.memory_space<vmem>>, %arg4: memref<1x128xf32, #tpu.memory_space<vmem>>, %arg5: memref<1x128xf32, #tpu.memory_space<vmem>>, %arg6: memref<162x1xf32, #tpu.memory_space<vmem>>, %arg7: memref<9x128x128xbf16, #tpu.memory_space<vmem>>, %arg8: memref<1x128xf32, #tpu.memory_space<vmem>>, %arg9: memref<1x128xf32, #tpu.memory_space<vmem>>, %arg10: memref<1x128xf32, #tpu.memory_space<vmem>>, %arg11: memref<50x1xf32, #tpu.memory_space<vmem>>, %arg12: memref<4x1x56x162xbf16, #tpu.memory_space<vmem>>, %arg13: memref<9x128x128xbf16, #tpu.memory_space<vmem>>, %arg14: memref<1x128xf32, #tpu.memory_space<vmem>>, %arg15: memref<1x128xf32, #tpu.memory_space<vmem>>, %arg16: memref<1x128xf32, #tpu.memory_space<vmem>>, %arg17: memref<18x1xf32, #tpu.memory_space<vmem>>, %arg18: memref<4x1x24x50xbf16, #tpu.memory_space<vmem>>, %arg19: memref<9x128x128xbf16, #tpu.memory_space<vmem>>, %arg20: memref<1x128xf32, #tpu.memory_space<vmem>>, %arg21: memref<1x128xf32, #tpu.memory_space<vmem>>, %arg22: memref<1x128xf32, #tpu.memory_space<vmem>>, %arg23: memref<18x1xf32, #tpu.memory_space<vmem>>, %arg24: memref<1x1x24x18xbf16, #tpu.memory_space<vmem>>, %arg25: memref<9x128x128xbf16, #tpu.memory_space<vmem>>, %arg26: memref<1x128xf32, #tpu.memory_space<vmem>>, %arg27: memref<1x128xf32, #tpu.memory_space<vmem>>, %arg28: memref<1x128xf32, #tpu.memory_space<vmem>>, %arg29: memref<50x1xf32, #tpu.memory_space<vmem>>, %arg30: memref<1x4x56x18xbf16, #tpu.memory_space<vmem>>, %arg31: memref<9x128x128xbf16, #tpu.memory_space<vmem>>, %arg32: memref<1x128xf32, #tpu.memory_space<vmem>>, %arg33: memref<1x4x176x50xbf16, #tpu.memory_space<vmem>>, %arg34: memref<162x128xf32, #tpu.memory_space<vmem>>, %arg35: memref<162x128xf32, #tpu.memory_space<vmem>>, %arg36: memref<162x128xf32, #tpu.memory_space<vmem>>, %arg37: memref<162x128xf32, #tpu.memory_space<vmem>>, %arg38: memref<4x56x128xf32, #tpu.memory_space<vmem>>, %arg39: memref<4x24x128xf32, #tpu.memory_space<vmem>>, %arg40: memref<1x24x128xf32, #tpu.memory_space<vmem>>, %arg41: memref<1x56x128xf32, #tpu.memory_space<vmem>>, %arg42: memref<1x176x128xf32, #tpu.memory_space<vmem>>) attributes {dimension_semantics = [#tpu.dimension_semantics<arbitrary>], iteration_bounds = array<i64: 1>, scalar_prefetch = 0 : i64, scratch_operands = 5 : i64, tpu.core_type = #tpu.core_type<tc>, window_params = [{pipeline_mode = #tpu.pipeline_mode<synchronous>, transform_indices = @transform_0, window_bounds = array<i64: 4, 176, 128>}, {pipeline_mode = #tpu.pipeline_mode<synchronous>, transform_indices = @transform_1, window_bounds = array<i64: 9, 128, 128>}, {pipeline_mode = #tpu.pipeline_mode<synchronous>, transform_indices = @transform_2, window_bounds = array<i64: 1, 128>}, {pipeline_mode = #tpu.pipeline_mode<synchronous>, transform_indices = @transform_3, window_bounds = array<i64: 1, 128>}, {pipeline_mode = #tpu.pipeline_mode<synchronous>, transform_indices = @transform_4, window_bounds = array<i64: 1, 128>}, {pipeline_mode = #tpu.pipeline_mode<synchronous>, transform_indices = @transform_5, window_bounds = array<i64: 162, 1>}, {pipeline_mode = #tpu.pipeline_mode<synchronous>, transform_indices = @transform_6, window_bounds = array<i64: 9, 128, 128>}, {pipeline_mode = #tpu.pipeline_mode<synchronous>, transform_indices = @transform_7, window_bounds = array<i64: 1, 128>}, {pipeline_mode = #tpu.pipeline_mode<synchronous>, transform_indices = @transform_8, window_bounds = array<i64: 1, 128>}, {pipeline_mode = #tpu.pipeline_mode<synchronous>, transform_indices = @transform_9, window_bounds = array<i64: 1, 128>}, {pipeline_mode = #tpu.pipeline_mode<synchronous>, transform_indices = @transform_10, window_bounds = array<i64: 50, 1>}, {pipeline_mode = #tpu.pipeline_mode<synchronous>, transform_indices = @transform_11, window_bounds = array<i64: 4, 1, 56, 162>}, {pipeline_mode = #tpu.pipeline_mode<synchronous>, transform_indices = @transform_12, window_bounds = array<i64: 9, 128, 128>}, {pipeline_mode = #tpu.pipeline_mode<synchronous>, transform_indices = @transform_13, window_bounds = array<i64: 1, 128>}, {pipeline_mode = #tpu.pipeline_mode<synchronous>, transform_indices = @transform_14, window_bounds = array<i64: 1, 128>}, {pipeline_mode = #tpu.pipeline_mode<synchronous>, transform_indices = @transform_15, window_bounds = array<i64: 1, 128>}, {pipeline_mode = #tpu.pipeline_mode<synchronous>, transform_indices = @transform_16, window_bounds = array<i64: 18, 1>}, {pipeline_mode = #tpu.pipeline_mode<synchronous>, transform_indices = @transform_17, window_bounds = array<i64: 4, 1, 24, 50>}, {pipeline_mode = #tpu.pipeline_mode<synchronous>, transform_indices = @transform_18, window_bounds = array<i64: 9, 128, 128>}, {pipeline_mode = #tpu.pipeline_mode<synchronous>, transform_indices = @transform_19, window_bounds = array<i64: 1, 128>}, {pipeline_mode = #tpu.pipeline_mode<synchronous>, transform_indices = @transform_20, window_bounds = array<i64: 1, 128>}, {pipeline_mode = #tpu.pipeline_mode<synchronous>, transform_indices = @transform_21, window_bounds = array<i64: 1, 128>}, {pipeline_mode = #tpu.pipeline_mode<synchronous>, transform_indices = @transform_22, window_bounds = array<i64: 18, 1>}, {pipeline_mode = #tpu.pipeline_mode<synchronous>, transform_indices = @transform_23, window_bounds = array<i64: 1, 1, 24, 18>}, {pipeline_mode = #tpu.pipeline_mode<synchronous>, transform_indices = @transform_24, window_bounds = array<i64: 9, 128, 128>}, {pipeline_mode = #tpu.pipeline_mode<synchronous>, transform_indices = @transform_25, window_bounds = array<i64: 1, 128>}, {pipeline_mode = #tpu.pipeline_mode<synchronous>, transform_indices = @transform_26, window_bounds = array<i64: 1, 128>}, {pipeline_mode = #tpu.pipeline_mode<synchronous>, transform_indices = @transform_27, window_bounds = array<i64: 1, 128>}, {pipeline_mode = #tpu.pipeline_mode<synchronous>, transform_indices = @transform_28, window_bounds = array<i64: 50, 1>}, {pipeline_mode = #tpu.pipeline_mode<synchronous>, transform_indices = @transform_29, window_bounds = array<i64: 1, 4, 56, 18>}, {pipeline_mode = #tpu.pipeline_mode<synchronous>, transform_indices = @transform_30, window_bounds = array<i64: 9, 128, 128>}, {pipeline_mode = #tpu.pipeline_mode<synchronous>, transform_indices = @transform_31, window_bounds = array<i64: 1, 128>}, {pipeline_mode = #tpu.pipeline_mode<synchronous>, transform_indices = @transform_32, window_bounds = array<i64: 1, 4, 176, 50>}, {pipeline_mode = #tpu.pipeline_mode<synchronous>, transform_indices = @transform_33, window_bounds = array<i64: 162, 128>}, {pipeline_mode = #tpu.pipeline_mode<synchronous>, transform_indices = @transform_34, window_bounds = array<i64: 162, 128>}, {pipeline_mode = #tpu.pipeline_mode<synchronous>, transform_indices = @transform_35, window_bounds = array<i64: 162, 128>}, {pipeline_mode = #tpu.pipeline_mode<synchronous>, transform_indices = @transform_36, window_bounds = array<i64: 162, 128>}]} {
    %cst = arith.constant 0.000000e+00 : f32
    %0 = vector.broadcast %cst : f32 to vector<162x128xf32>
    %c0 = arith.constant 0 : index
    %c0_0 = arith.constant 0 : index
    %c0_1 = arith.constant 0 : index
    %1 = vector.load %arg1[%c0, %c0_0, %c0_1] : memref<4x176x128xf32, #tpu.memory_space<vmem>>, vector<1x162x128xf32>
    %2 = vector.shape_cast %1 : vector<1x162x128xf32> to vector<162x128xf32>
    %3 = arith.truncf %2 : vector<162x128xf32> to vector<162x128xbf16>
    %c0_2 = arith.constant 0 : index
    %c0_3 = arith.constant 0 : index
    %c0_4 = arith.constant 0 : index
    %4 = vector.load %arg2[%c0_2, %c0_3, %c0_4] : memref<9x128x128xbf16, #tpu.memory_space<vmem>>, vector<1x128x128xbf16>
    %5 = vector.shape_cast %4 : vector<1x128x128xbf16> to vector<128x128xbf16>
    %cst_5 = arith.constant dense<0.000000e+00> : vector<162x128xf32>
    %6 = tpu.matmul %3, %5, %cst_5 {dimension_numbers = #tpu.dot_dimension_numbers<[1], [0], [0], [1], [0, 0, 1, 1], [], []>} : vector<162x128xbf16>, vector<128x128xbf16>, vector<162x128xf32> -> vector<162x128xf32>
    %7 = arith.addf %0, %6 : vector<162x128xf32>
    %c1 = arith.constant 1 : index
    %c0_6 = arith.constant 0 : index
    %c0_7 = arith.constant 0 : index
    %8 = vector.load %arg1[%c1, %c0_6, %c0_7] : memref<4x176x128xf32, #tpu.memory_space<vmem>>, vector<1x162x128xf32>
    %9 = vector.shape_cast %8 : vector<1x162x128xf32> to vector<162x128xf32>
    %10 = arith.truncf %9 : vector<162x128xf32> to vector<162x128xbf16>
    %c1_8 = arith.constant 1 : index
    %c0_9 = arith.constant 0 : index
    %c0_10 = arith.constant 0 : index
    %11 = vector.load %arg2[%c1_8, %c0_9, %c0_10] : memref<9x128x128xbf16, #tpu.memory_space<vmem>>, vector<1x128x128xbf16>
    %12 = vector.shape_cast %11 : vector<1x128x128xbf16> to vector<128x128xbf16>
    %cst_11 = arith.constant dense<0.000000e+00> : vector<162x128xf32>
    %13 = tpu.matmul %10, %12, %cst_11 {dimension_numbers = #tpu.dot_dimension_numbers<[1], [0], [0], [1], [0, 0, 1, 1], [], []>} : vector<162x128xbf16>, vector<128x128xbf16>, vector<162x128xf32> -> vector<162x128xf32>
    %14 = arith.addf %7, %13 : vector<162x128xf32>
    %c0_12 = arith.constant 0 : index
    %c1_13 = arith.constant 1 : index
    %c0_14 = arith.constant 0 : index
    %15 = vector.load %arg1[%c0_12, %c1_13, %c0_14] : memref<4x176x128xf32, #tpu.memory_space<vmem>>, vector<1x162x128xf32>
    %16 = vector.shape_cast %15 : vector<1x162x128xf32> to vector<162x128xf32>
    %17 = arith.truncf %16 : vector<162x128xf32> to vector<162x128xbf16>
    %c2 = arith.constant 2 : index
    %c0_15 = arith.constant 0 : index
    %c0_16 = arith.constant 0 : index
    %18 = vector.load %arg2[%c2, %c0_15, %c0_16] : memref<9x128x128xbf16, #tpu.memory_space<vmem>>, vector<1x128x128xbf16>
    %19 = vector.shape_cast %18 : vector<1x128x128xbf16> to vector<128x128xbf16>
    %cst_17 = arith.constant dense<0.000000e+00> : vector<162x128xf32>
    %20 = tpu.matmul %17, %19, %cst_17 {dimension_numbers = #tpu.dot_dimension_numbers<[1], [0], [0], [1], [0, 0, 1, 1], [], []>} : vector<162x128xbf16>, vector<128x128xbf16>, vector<162x128xf32> -> vector<162x128xf32>
    %21 = arith.addf %14, %20 : vector<162x128xf32>
    %c2_18 = arith.constant 2 : index
    %c0_19 = arith.constant 0 : index
    %c0_20 = arith.constant 0 : index
    %22 = vector.load %arg1[%c2_18, %c0_19, %c0_20] : memref<4x176x128xf32, #tpu.memory_space<vmem>>, vector<1x162x128xf32>
    %23 = vector.shape_cast %22 : vector<1x162x128xf32> to vector<162x128xf32>
    %24 = arith.truncf %23 : vector<162x128xf32> to vector<162x128xbf16>
    %c3 = arith.constant 3 : index
    %c0_21 = arith.constant 0 : index
    %c0_22 = arith.constant 0 : index
    %25 = vector.load %arg2[%c3, %c0_21, %c0_22] : memref<9x128x128xbf16, #tpu.memory_space<vmem>>, vector<1x128x128xbf16>
    %26 = vector.shape_cast %25 : vector<1x128x128xbf16> to vector<128x128xbf16>
    %cst_23 = arith.constant dense<0.000000e+00> : vector<162x128xf32>
    %27 = tpu.matmul %24, %26, %cst_23 {dimension_numbers = #tpu.dot_dimension_numbers<[1], [0], [0], [1], [0, 0, 1, 1], [], []>} : vector<162x128xbf16>, vector<128x128xbf16>, vector<162x128xf32> -> vector<162x128xf32>
    %28 = arith.addf %21, %27 : vector<162x128xf32>
    %c3_24 = arith.constant 3 : index
    %c0_25 = arith.constant 0 : index
    %c0_26 = arith.constant 0 : index
    %29 = vector.load %arg1[%c3_24, %c0_25, %c0_26] : memref<4x176x128xf32, #tpu.memory_space<vmem>>, vector<1x162x128xf32>
    %30 = vector.shape_cast %29 : vector<1x162x128xf32> to vector<162x128xf32>
    %31 = arith.truncf %30 : vector<162x128xf32> to vector<162x128xbf16>
    %c4 = arith.constant 4 : index
    %c0_27 = arith.constant 0 : index
    %c0_28 = arith.constant 0 : index
    %32 = vector.load %arg2[%c4, %c0_27, %c0_28] : memref<9x128x128xbf16, #tpu.memory_space<vmem>>, vector<1x128x128xbf16>
    %33 = vector.shape_cast %32 : vector<1x128x128xbf16> to vector<128x128xbf16>
    %cst_29 = arith.constant dense<0.000000e+00> : vector<162x128xf32>
    %34 = tpu.matmul %31, %33, %cst_29 {dimension_numbers = #tpu.dot_dimension_numbers<[1], [0], [0], [1], [0, 0, 1, 1], [], []>} : vector<162x128xbf16>, vector<128x128xbf16>, vector<162x128xf32> -> vector<162x128xf32>
    %35 = arith.addf %28, %34 : vector<162x128xf32>
    %c2_30 = arith.constant 2 : index
    %c1_31 = arith.constant 1 : index
    %c0_32 = arith.constant 0 : index
    %36 = vector.load %arg1[%c2_30, %c1_31, %c0_32] : memref<4x176x128xf32, #tpu.memory_space<vmem>>, vector<1x162x128xf32>
    %37 = vector.shape_cast %36 : vector<1x162x128xf32> to vector<162x128xf32>
    %38 = arith.truncf %37 : vector<162x128xf32> to vector<162x128xbf16>
    %c5 = arith.constant 5 : index
    %c0_33 = arith.constant 0 : index
    %c0_34 = arith.constant 0 : index
    %39 = vector.load %arg2[%c5, %c0_33, %c0_34] : memref<9x128x128xbf16, #tpu.memory_space<vmem>>, vector<1x128x128xbf16>
    %40 = vector.shape_cast %39 : vector<1x128x128xbf16> to vector<128x128xbf16>
    %cst_35 = arith.constant dense<0.000000e+00> : vector<162x128xf32>
    %41 = tpu.matmul %38, %40, %cst_35 {dimension_numbers = #tpu.dot_dimension_numbers<[1], [0], [0], [1], [0, 0, 1, 1], [], []>} : vector<162x128xbf16>, vector<128x128xbf16>, vector<162x128xf32> -> vector<162x128xf32>
    %42 = arith.addf %35, %41 : vector<162x128xf32>
    %c0_36 = arith.constant 0 : index
    %c9 = arith.constant 9 : index
    %c0_37 = arith.constant 0 : index
    %43 = vector.load %arg1[%c0_36, %c9, %c0_37] : memref<4x176x128xf32, #tpu.memory_space<vmem>>, vector<1x162x128xf32>
    %44 = vector.shape_cast %43 : vector<1x162x128xf32> to vector<162x128xf32>
    %45 = arith.truncf %44 : vector<162x128xf32> to vector<162x128xbf16>
    %c6 = arith.constant 6 : index
    %c0_38 = arith.constant 0 : index
    %c0_39 = arith.constant 0 : index
    %46 = vector.load %arg2[%c6, %c0_38, %c0_39] : memref<9x128x128xbf16, #tpu.memory_space<vmem>>, vector<1x128x128xbf16>
    %47 = vector.shape_cast %46 : vector<1x128x128xbf16> to vector<128x128xbf16>
    %cst_40 = arith.constant dense<0.000000e+00> : vector<162x128xf32>
    %48 = tpu.matmul %45, %47, %cst_40 {dimension_numbers = #tpu.dot_dimension_numbers<[1], [0], [0], [1], [0, 0, 1, 1], [], []>} : vector<162x128xbf16>, vector<128x128xbf16>, vector<162x128xf32> -> vector<162x128xf32>
    %49 = arith.addf %42, %48 : vector<162x128xf32>
    %c1_41 = arith.constant 1 : index
    %c9_42 = arith.constant 9 : index
    %c0_43 = arith.constant 0 : index
    %50 = vector.load %arg1[%c1_41, %c9_42, %c0_43] : memref<4x176x128xf32, #tpu.memory_space<vmem>>, vector<1x162x128xf32>
    %51 = vector.shape_cast %50 : vector<1x162x128xf32> to vector<162x128xf32>
    %52 = arith.truncf %51 : vector<162x128xf32> to vector<162x128xbf16>
    %c7 = arith.constant 7 : index
    %c0_44 = arith.constant 0 : index
    %c0_45 = arith.constant 0 : index
    %53 = vector.load %arg2[%c7, %c0_44, %c0_45] : memref<9x128x128xbf16, #tpu.memory_space<vmem>>, vector<1x128x128xbf16>
    %54 = vector.shape_cast %53 : vector<1x128x128xbf16> to vector<128x128xbf16>
    %cst_46 = arith.constant dense<0.000000e+00> : vector<162x128xf32>
    %55 = tpu.matmul %52, %54, %cst_46 {dimension_numbers = #tpu.dot_dimension_numbers<[1], [0], [0], [1], [0, 0, 1, 1], [], []>} : vector<162x128xbf16>, vector<128x128xbf16>, vector<162x128xf32> -> vector<162x128xf32>
    %56 = arith.addf %49, %55 : vector<162x128xf32>
    %c0_47 = arith.constant 0 : index
    %c10 = arith.constant 10 : index
    %c0_48 = arith.constant 0 : index
    %57 = vector.load %arg1[%c0_47, %c10, %c0_48] : memref<4x176x128xf32, #tpu.memory_space<vmem>>, vector<1x162x128xf32>
    %58 = vector.shape_cast %57 : vector<1x162x128xf32> to vector<162x128xf32>
    %59 = arith.truncf %58 : vector<162x128xf32> to vector<162x128xbf16>
    %c8 = arith.constant 8 : index
    %c0_49 = arith.constant 0 : index
    %c0_50 = arith.constant 0 : index
    %60 = vector.load %arg2[%c8, %c0_49, %c0_50] : memref<9x128x128xbf16, #tpu.memory_space<vmem>>, vector<1x128x128xbf16>
    %61 = vector.shape_cast %60 : vector<1x128x128xbf16> to vector<128x128xbf16>
    %cst_51 = arith.constant dense<0.000000e+00> : vector<162x128xf32>
    %62 = tpu.matmul %59, %61, %cst_51 {dimension_numbers = #tpu.dot_dimension_numbers<[1], [0], [0], [1], [0, 0, 1, 1], [], []>} : vector<162x128xbf16>, vector<128x128xbf16>, vector<162x128xf32> -> vector<162x128xf32>
    %63 = arith.addf %56, %62 : vector<162x128xf32>
    %c0_52 = arith.constant 0 : index
    %c0_53 = arith.constant 0 : index
    %64 = vector.load %arg3[%c0_52, %c0_53] : memref<1x128xf32, #tpu.memory_space<vmem>>, vector<1x128xf32>
    %65 = vector.broadcast %64 : vector<1x128xf32> to vector<162x128xf32>
    %66 = arith.addf %63, %65 : vector<162x128xf32>
    %c0_54 = arith.constant 0 : index
    %c0_55 = arith.constant 0 : index
    %67 = vector.load %arg6[%c0_54, %c0_55] : memref<162x1xf32, #tpu.memory_space<vmem>>, vector<162x1xf32>
    %68 = vector.broadcast %67 : vector<162x1xf32> to vector<162x128xf32>
    %69 = arith.mulf %66, %68 : vector<162x128xf32>
    %cst_56 = arith.constant dense<0.000000e+00> : vector<128xf32>
    %70 = vector.multi_reduction <add>, %69, %cst_56 [0] : vector<162x128xf32> to vector<128xf32>
    %71 = vector.shape_cast %70 : vector<128xf32> to vector<1x128xf32>
    %cst_57 = arith.constant 7.812500e-03 : f32
    %72 = vector.broadcast %cst_57 : f32 to vector<1x128xf32>
    %73 = arith.mulf %71, %72 : vector<1x128xf32>
    %74 = arith.mulf %69, %66 : vector<162x128xf32>
    %cst_58 = arith.constant dense<0.000000e+00> : vector<128xf32>
    %75 = vector.multi_reduction <add>, %74, %cst_58 [0] : vector<162x128xf32> to vector<128xf32>
    %76 = vector.shape_cast %75 : vector<128xf32> to vector<1x128xf32>
    %cst_59 = arith.constant 7.812500e-03 : f32
    %77 = vector.broadcast %cst_59 : f32 to vector<1x128xf32>
    %78 = arith.mulf %76, %77 : vector<1x128xf32>
    %79 = arith.mulf %73, %73 : vector<1x128xf32>
    %80 = arith.subf %78, %79 : vector<1x128xf32>
    %cst_60 = arith.constant 0.000000e+00 : f32
    %81 = vector.broadcast %cst_60 : f32 to vector<1x128xf32>
    %82 = arith.maximumf %80, %81 : vector<1x128xf32>
    %cst_61 = arith.constant 9.99999974E-6 : f32
    %83 = vector.broadcast %cst_61 : f32 to vector<1x128xf32>
    %84 = arith.addf %82, %83 : vector<1x128xf32>
    %85 = math.rsqrt %84 : vector<1x128xf32>
    %86 = vector.broadcast %73 : vector<1x128xf32> to vector<162x128xf32>
    %87 = arith.subf %66, %86 : vector<162x128xf32>
    %88 = vector.broadcast %85 : vector<1x128xf32> to vector<162x128xf32>
    %89 = arith.mulf %87, %88 : vector<162x128xf32>
    %c0_62 = arith.constant 0 : index
    %c0_63 = arith.constant 0 : index
    %90 = vector.load %arg4[%c0_62, %c0_63] : memref<1x128xf32, #tpu.memory_space<vmem>>, vector<1x128xf32>
    %91 = vector.broadcast %90 : vector<1x128xf32> to vector<162x128xf32>
    %92 = arith.mulf %89, %91 : vector<162x128xf32>
    %c0_64 = arith.constant 0 : index
    %c0_65 = arith.constant 0 : index
    %93 = vector.load %arg5[%c0_64, %c0_65] : memref<1x128xf32, #tpu.memory_space<vmem>>, vector<1x128xf32>
    %94 = vector.broadcast %93 : vector<1x128xf32> to vector<162x128xf32>
    %95 = arith.addf %92, %94 : vector<162x128xf32>
    %cst_66 = arith.constant 0.000000e+00 : f32
    %96 = vector.broadcast %cst_66 : f32 to vector<162x128xf32>
    %97 = arith.maximumf %95, %96 : vector<162x128xf32>
    %98 = arith.truncf %97 : vector<162x128xf32> to vector<162x128xbf16>
    %cst_67 = arith.constant 0.000000e+00 : f32
    %99 = vector.broadcast %cst_67 : f32 to vector<56x128xf32>
    %c0_68 = arith.constant 0 : index
    %c0_69 = arith.constant 0 : index
    %c0_70 = arith.constant 0 : index
    %c0_71 = arith.constant 0 : index
    %100 = vector.load %arg12[%c0_68, %c0_69, %c0_70, %c0_71] : memref<4x1x56x162xbf16, #tpu.memory_space<vmem>>, vector<1x1x56x162xbf16>
    %101 = vector.shape_cast %100 : vector<1x1x56x162xbf16> to vector<56x162xbf16>
    %cst_72 = arith.constant dense<0.000000e+00> : vector<56x128xf32>
    %102 = tpu.matmul %101, %98, %cst_72 {dimension_numbers = #tpu.dot_dimension_numbers<[1], [0], [0], [1], [0, 0, 1, 1], [], []>} : vector<56x162xbf16>, vector<162x128xbf16>, vector<56x128xf32> -> vector<56x128xf32>
    %103 = arith.addf %99, %102 : vector<56x128xf32>
    %c0_73 = arith.constant 0 : index
    %c0_74 = arith.constant 0 : index
    %c0_75 = arith.constant 0 : index
    %104 = vector.load %arg38[%c0_73, %c0_74, %c0_75] : memref<4x56x128xf32, #tpu.memory_space<vmem>>, vector<1x56x128xf32>
    %105 = vector.shape_cast %104 : vector<1x56x128xf32> to vector<56x128xf32>
    %106 = vector.shape_cast %103 : vector<56x128xf32> to vector<1x56x128xf32>
    tpu.vector_store %arg38[%c0_73, %c0_74, %c0_75], %106 {strides = array<i32>} : memref<4x56x128xf32, #tpu.memory_space<vmem>>, vector<1x56x128xf32>,
    %cst_76 = arith.constant 0.000000e+00 : f32
    %107 = vector.broadcast %cst_76 : f32 to vector<56x128xf32>
    %c1_77 = arith.constant 1 : index
    %c0_78 = arith.constant 0 : index
    %c0_79 = arith.constant 0 : index
    %c0_80 = arith.constant 0 : index
    %108 = vector.load %arg12[%c1_77, %c0_78, %c0_79, %c0_80] : memref<4x1x56x162xbf16, #tpu.memory_space<vmem>>, vector<1x1x56x162xbf16>
    %109 = vector.shape_cast %108 : vector<1x1x56x162xbf16> to vector<56x162xbf16>
    %cst_81 = arith.constant dense<0.000000e+00> : vector<56x128xf32>
    %110 = tpu.matmul %109, %98, %cst_81 {dimension_numbers = #tpu.dot_dimension_numbers<[1], [0], [0], [1], [0, 0, 1, 1], [], []>} : vector<56x162xbf16>, vector<162x128xbf16>, vector<56x128xf32> -> vector<56x128xf32>
    %111 = arith.addf %107, %110 : vector<56x128xf32>
    %c1_82 = arith.constant 1 : index
    %c0_83 = arith.constant 0 : index
    %c0_84 = arith.constant 0 : index
    %112 = vector.load %arg38[%c1_82, %c0_83, %c0_84] : memref<4x56x128xf32, #tpu.memory_space<vmem>>, vector<1x56x128xf32>
    %113 = vector.shape_cast %112 : vector<1x56x128xf32> to vector<56x128xf32>
    %114 = vector.shape_cast %111 : vector<56x128xf32> to vector<1x56x128xf32>
    tpu.vector_store %arg38[%c1_82, %c0_83, %c0_84], %114 {strides = array<i32>} : memref<4x56x128xf32, #tpu.memory_space<vmem>>, vector<1x56x128xf32>,
    %cst_85 = arith.constant 0.000000e+00 : f32
    %115 = vector.broadcast %cst_85 : f32 to vector<56x128xf32>
    %c2_86 = arith.constant 2 : index
    %c0_87 = arith.constant 0 : index
    %c0_88 = arith.constant 0 : index
    %c0_89 = arith.constant 0 : index
    %116 = vector.load %arg12[%c2_86, %c0_87, %c0_88, %c0_89] : memref<4x1x56x162xbf16, #tpu.memory_space<vmem>>, vector<1x1x56x162xbf16>
    %117 = vector.shape_cast %116 : vector<1x1x56x162xbf16> to vector<56x162xbf16>
    %cst_90 = arith.constant dense<0.000000e+00> : vector<56x128xf32>
    %118 = tpu.matmul %117, %98, %cst_90 {dimension_numbers = #tpu.dot_dimension_numbers<[1], [0], [0], [1], [0, 0, 1, 1], [], []>} : vector<56x162xbf16>, vector<162x128xbf16>, vector<56x128xf32> -> vector<56x128xf32>
    %119 = arith.addf %115, %118 : vector<56x128xf32>
    %c2_91 = arith.constant 2 : index
    %c0_92 = arith.constant 0 : index
    %c0_93 = arith.constant 0 : index
    %120 = vector.load %arg38[%c2_91, %c0_92, %c0_93] : memref<4x56x128xf32, #tpu.memory_space<vmem>>, vector<1x56x128xf32>
    %121 = vector.shape_cast %120 : vector<1x56x128xf32> to vector<56x128xf32>
    %122 = vector.shape_cast %119 : vector<56x128xf32> to vector<1x56x128xf32>
    tpu.vector_store %arg38[%c2_91, %c0_92, %c0_93], %122 {strides = array<i32>} : memref<4x56x128xf32, #tpu.memory_space<vmem>>, vector<1x56x128xf32>,
    %cst_94 = arith.constant 0.000000e+00 : f32
    %123 = vector.broadcast %cst_94 : f32 to vector<56x128xf32>
    %c3_95 = arith.constant 3 : index
    %c0_96 = arith.constant 0 : index
    %c0_97 = arith.constant 0 : index
    %c0_98 = arith.constant 0 : index
    %124 = vector.load %arg12[%c3_95, %c0_96, %c0_97, %c0_98] : memref<4x1x56x162xbf16, #tpu.memory_space<vmem>>, vector<1x1x56x162xbf16>
    %125 = vector.shape_cast %124 : vector<1x1x56x162xbf16> to vector<56x162xbf16>
    %cst_99 = arith.constant dense<0.000000e+00> : vector<56x128xf32>
    %126 = tpu.matmul %125, %98, %cst_99 {dimension_numbers = #tpu.dot_dimension_numbers<[1], [0], [0], [1], [0, 0, 1, 1], [], []>} : vector<56x162xbf16>, vector<162x128xbf16>, vector<56x128xf32> -> vector<56x128xf32>
    %127 = arith.addf %123, %126 : vector<56x128xf32>
    %c3_100 = arith.constant 3 : index
    %c0_101 = arith.constant 0 : index
    %c0_102 = arith.constant 0 : index
    %128 = vector.load %arg38[%c3_100, %c0_101, %c0_102] : memref<4x56x128xf32, #tpu.memory_space<vmem>>, vector<1x56x128xf32>
    %129 = vector.shape_cast %128 : vector<1x56x128xf32> to vector<56x128xf32>
    %130 = vector.shape_cast %127 : vector<56x128xf32> to vector<1x56x128xf32>
    tpu.vector_store %arg38[%c3_100, %c0_101, %c0_102], %130 {strides = array<i32>} : memref<4x56x128xf32, #tpu.memory_space<vmem>>, vector<1x56x128xf32>,
    %cst_103 = arith.constant 0.000000e+00 : f32
    %131 = vector.broadcast %cst_103 : f32 to vector<50x128xf32>
    %c0_104 = arith.constant 0 : index
    %c0_105 = arith.constant 0 : index
    %c0_106 = arith.constant 0 : index
    %132 = vector.load %arg38[%c0_104, %c0_105, %c0_106] : memref<4x56x128xf32, #tpu.memory_space<vmem>>, vector<1x50x128xf32>
    %133 = vector.shape_cast %132 : vector<1x50x128xf32> to vector<50x128xf32>
    %134 = arith.truncf %133 : vector<50x128xf32> to vector<50x128xbf16>
    %c0_107 = arith.constant 0 : index
    %c0_108 = arith.constant 0 : index
    %c0_109 = arith.constant 0 : index
    %135 = vector.load %arg7[%c0_107, %c0_108, %c0_109] : memref<9x128x128xbf16, #tpu.memory_space<vmem>>, vector<1x128x128xbf16>
    %136 = vector.shape_cast %135 : vector<1x128x128xbf16> to vector<128x128xbf16>
    %cst_110 = arith.constant dense<0.000000e+00> : vector<50x128xf32>
    %137 = tpu.matmul %134, %136, %cst_110 {dimension_numbers = #tpu.dot_dimension_numbers<[1], [0], [0], [1], [0, 0, 1, 1], [], []>} : vector<50x128xbf16>, vector<128x128xbf16>, vector<50x128xf32> -> vector<50x128xf32>
    %138 = arith.addf %131, %137 : vector<50x128xf32>
    %c1_111 = arith.constant 1 : index
    %c0_112 = arith.constant 0 : index
    %c0_113 = arith.constant 0 : index
    %139 = vector.load %arg38[%c1_111, %c0_112, %c0_113] : memref<4x56x128xf32, #tpu.memory_space<vmem>>, vector<1x50x128xf32>
    %140 = vector.shape_cast %139 : vector<1x50x128xf32> to vector<50x128xf32>
    %141 = arith.truncf %140 : vector<50x128xf32> to vector<50x128xbf16>
    %c1_114 = arith.constant 1 : index
    %c0_115 = arith.constant 0 : index
    %c0_116 = arith.constant 0 : index
    %142 = vector.load %arg7[%c1_114, %c0_115, %c0_116] : memref<9x128x128xbf16, #tpu.memory_space<vmem>>, vector<1x128x128xbf16>
    %143 = vector.shape_cast %142 : vector<1x128x128xbf16> to vector<128x128xbf16>
    %cst_117 = arith.constant dense<0.000000e+00> : vector<50x128xf32>
    %144 = tpu.matmul %141, %143, %cst_117 {dimension_numbers = #tpu.dot_dimension_numbers<[1], [0], [0], [1], [0, 0, 1, 1], [], []>} : vector<50x128xbf16>, vector<128x128xbf16>, vector<50x128xf32> -> vector<50x128xf32>
    %145 = arith.addf %138, %144 : vector<50x128xf32>
    %c0_118 = arith.constant 0 : index
    %c1_119 = arith.constant 1 : index
    %c0_120 = arith.constant 0 : index
    %146 = vector.load %arg38[%c0_118, %c1_119, %c0_120] : memref<4x56x128xf32, #tpu.memory_space<vmem>>, vector<1x50x128xf32>
    %147 = vector.shape_cast %146 : vector<1x50x128xf32> to vector<50x128xf32>
    %148 = arith.truncf %147 : vector<50x128xf32> to vector<50x128xbf16>
    %c2_121 = arith.constant 2 : index
    %c0_122 = arith.constant 0 : index
    %c0_123 = arith.constant 0 : index
    %149 = vector.load %arg7[%c2_121, %c0_122, %c0_123] : memref<9x128x128xbf16, #tpu.memory_space<vmem>>, vector<1x128x128xbf16>
    %150 = vector.shape_cast %149 : vector<1x128x128xbf16> to vector<128x128xbf16>
    %cst_124 = arith.constant dense<0.000000e+00> : vector<50x128xf32>
    %151 = tpu.matmul %148, %150, %cst_124 {dimension_numbers = #tpu.dot_dimension_numbers<[1], [0], [0], [1], [0, 0, 1, 1], [], []>} : vector<50x128xbf16>, vector<128x128xbf16>, vector<50x128xf32> -> vector<50x128xf32>
    %152 = arith.addf %145, %151 : vector<50x128xf32>
    %c2_125 = arith.constant 2 : index
    %c0_126 = arith.constant 0 : index
    %c0_127 = arith.constant 0 : index
    %153 = vector.load %arg38[%c2_125, %c0_126, %c0_127] : memref<4x56x128xf32, #tpu.memory_space<vmem>>, vector<1x50x128xf32>
    %154 = vector.shape_cast %153 : vector<1x50x128xf32> to vector<50x128xf32>
    %155 = arith.truncf %154 : vector<50x128xf32> to vector<50x128xbf16>
    %c3_128 = arith.constant 3 : index
    %c0_129 = arith.constant 0 : index
    %c0_130 = arith.constant 0 : index
    %156 = vector.load %arg7[%c3_128, %c0_129, %c0_130] : memref<9x128x128xbf16, #tpu.memory_space<vmem>>, vector<1x128x128xbf16>
    %157 = vector.shape_cast %156 : vector<1x128x128xbf16> to vector<128x128xbf16>
    %cst_131 = arith.constant dense<0.000000e+00> : vector<50x128xf32>
    %158 = tpu.matmul %155, %157, %cst_131 {dimension_numbers = #tpu.dot_dimension_numbers<[1], [0], [0], [1], [0, 0, 1, 1], [], []>} : vector<50x128xbf16>, vector<128x128xbf16>, vector<50x128xf32> -> vector<50x128xf32>
    %159 = arith.addf %152, %158 : vector<50x128xf32>
    %c3_132 = arith.constant 3 : index
    %c0_133 = arith.constant 0 : index
    %c0_134 = arith.constant 0 : index
    %160 = vector.load %arg38[%c3_132, %c0_133, %c0_134] : memref<4x56x128xf32, #tpu.memory_space<vmem>>, vector<1x50x128xf32>
    %161 = vector.shape_cast %160 : vector<1x50x128xf32> to vector<50x128xf32>
    %162 = arith.truncf %161 : vector<50x128xf32> to vector<50x128xbf16>
    %c4_135 = arith.constant 4 : index
    %c0_136 = arith.constant 0 : index
    %c0_137 = arith.constant 0 : index
    %163 = vector.load %arg7[%c4_135, %c0_136, %c0_137] : memref<9x128x128xbf16, #tpu.memory_space<vmem>>, vector<1x128x128xbf16>
    %164 = vector.shape_cast %163 : vector<1x128x128xbf16> to vector<128x128xbf16>
    %cst_138 = arith.constant dense<0.000000e+00> : vector<50x128xf32>
    %165 = tpu.matmul %162, %164, %cst_138 {dimension_numbers = #tpu.dot_dimension_numbers<[1], [0], [0], [1], [0, 0, 1, 1], [], []>} : vector<50x128xbf16>, vector<128x128xbf16>, vector<50x128xf32> -> vector<50x128xf32>
    %166 = arith.addf %159, %165 : vector<50x128xf32>
    %c2_139 = arith.constant 2 : index
    %c1_140 = arith.constant 1 : index
    %c0_141 = arith.constant 0 : index
    %167 = vector.load %arg38[%c2_139, %c1_140, %c0_141] : memref<4x56x128xf32, #tpu.memory_space<vmem>>, vector<1x50x128xf32>
    %168 = vector.shape_cast %167 : vector<1x50x128xf32> to vector<50x128xf32>
    %169 = arith.truncf %168 : vector<50x128xf32> to vector<50x128xbf16>
    %c5_142 = arith.constant 5 : index
    %c0_143 = arith.constant 0 : index
    %c0_144 = arith.constant 0 : index
    %170 = vector.load %arg7[%c5_142, %c0_143, %c0_144] : memref<9x128x128xbf16, #tpu.memory_space<vmem>>, vector<1x128x128xbf16>
    %171 = vector.shape_cast %170 : vector<1x128x128xbf16> to vector<128x128xbf16>
    %cst_145 = arith.constant dense<0.000000e+00> : vector<50x128xf32>
    %172 = tpu.matmul %169, %171, %cst_145 {dimension_numbers = #tpu.dot_dimension_numbers<[1], [0], [0], [1], [0, 0, 1, 1], [], []>} : vector<50x128xbf16>, vector<128x128xbf16>, vector<50x128xf32> -> vector<50x128xf32>
    %173 = arith.addf %166, %172 : vector<50x128xf32>
    %c0_146 = arith.constant 0 : index
    %c5_147 = arith.constant 5 : index
    %c0_148 = arith.constant 0 : index
    %174 = vector.load %arg38[%c0_146, %c5_147, %c0_148] : memref<4x56x128xf32, #tpu.memory_space<vmem>>, vector<1x50x128xf32>
    %175 = vector.shape_cast %174 : vector<1x50x128xf32> to vector<50x128xf32>
    %176 = arith.truncf %175 : vector<50x128xf32> to vector<50x128xbf16>
    %c6_149 = arith.constant 6 : index
    %c0_150 = arith.constant 0 : index
    %c0_151 = arith.constant 0 : index
    %177 = vector.load %arg7[%c6_149, %c0_150, %c0_151] : memref<9x128x128xbf16, #tpu.memory_space<vmem>>, vector<1x128x128xbf16>
    %178 = vector.shape_cast %177 : vector<1x128x128xbf16> to vector<128x128xbf16>
    %cst_152 = arith.constant dense<0.000000e+00> : vector<50x128xf32>
    %179 = tpu.matmul %176, %178, %cst_152 {dimension_numbers = #tpu.dot_dimension_numbers<[1], [0], [0], [1], [0, 0, 1, 1], [], []>} : vector<50x128xbf16>, vector<128x128xbf16>, vector<50x128xf32> -> vector<50x128xf32>
    %180 = arith.addf %173, %179 : vector<50x128xf32>
    %c1_153 = arith.constant 1 : index
    %c5_154 = arith.constant 5 : index
    %c0_155 = arith.constant 0 : index
    %181 = vector.load %arg38[%c1_153, %c5_154, %c0_155] : memref<4x56x128xf32, #tpu.memory_space<vmem>>, vector<1x50x128xf32>
    %182 = vector.shape_cast %181 : vector<1x50x128xf32> to vector<50x128xf32>
    %183 = arith.truncf %182 : vector<50x128xf32> to vector<50x128xbf16>
    %c7_156 = arith.constant 7 : index
    %c0_157 = arith.constant 0 : index
    %c0_158 = arith.constant 0 : index
    %184 = vector.load %arg7[%c7_156, %c0_157, %c0_158] : memref<9x128x128xbf16, #tpu.memory_space<vmem>>, vector<1x128x128xbf16>
    %185 = vector.shape_cast %184 : vector<1x128x128xbf16> to vector<128x128xbf16>
    %cst_159 = arith.constant dense<0.000000e+00> : vector<50x128xf32>
    %186 = tpu.matmul %183, %185, %cst_159 {dimension_numbers = #tpu.dot_dimension_numbers<[1], [0], [0], [1], [0, 0, 1, 1], [], []>} : vector<50x128xbf16>, vector<128x128xbf16>, vector<50x128xf32> -> vector<50x128xf32>
    %187 = arith.addf %180, %186 : vector<50x128xf32>
    %c0_160 = arith.constant 0 : index
    %c6_161 = arith.constant 6 : index
    %c0_162 = arith.constant 0 : index
    %188 = vector.load %arg38[%c0_160, %c6_161, %c0_162] : memref<4x56x128xf32, #tpu.memory_space<vmem>>, vector<1x50x128xf32>
    %189 = vector.shape_cast %188 : vector<1x50x128xf32> to vector<50x128xf32>
    %190 = arith.truncf %189 : vector<50x128xf32> to vector<50x128xbf16>
    %c8_163 = arith.constant 8 : index
    %c0_164 = arith.constant 0 : index
    %c0_165 = arith.constant 0 : index
    %191 = vector.load %arg7[%c8_163, %c0_164, %c0_165] : memref<9x128x128xbf16, #tpu.memory_space<vmem>>, vector<1x128x128xbf16>
    %192 = vector.shape_cast %191 : vector<1x128x128xbf16> to vector<128x128xbf16>
    %cst_166 = arith.constant dense<0.000000e+00> : vector<50x128xf32>
    %193 = tpu.matmul %190, %192, %cst_166 {dimension_numbers = #tpu.dot_dimension_numbers<[1], [0], [0], [1], [0, 0, 1, 1], [], []>} : vector<50x128xbf16>, vector<128x128xbf16>, vector<50x128xf32> -> vector<50x128xf32>
    %194 = arith.addf %187, %193 : vector<50x128xf32>
    %c0_167 = arith.constant 0 : index
    %c0_168 = arith.constant 0 : index
    %195 = vector.load %arg8[%c0_167, %c0_168] : memref<1x128xf32, #tpu.memory_space<vmem>>, vector<1x128xf32>
    %196 = vector.broadcast %195 : vector<1x128xf32> to vector<50x128xf32>
    %197 = arith.addf %194, %196 : vector<50x128xf32>
    %c0_169 = arith.constant 0 : index
    %c0_170 = arith.constant 0 : index
    %198 = vector.load %arg11[%c0_169, %c0_170] : memref<50x1xf32, #tpu.memory_space<vmem>>, vector<50x1xf32>
    %199 = vector.broadcast %198 : vector<50x1xf32> to vector<50x128xf32>
    %200 = arith.mulf %197, %199 : vector<50x128xf32>
    %cst_171 = arith.constant dense<0.000000e+00> : vector<128xf32>
    %201 = vector.multi_reduction <add>, %200, %cst_171 [0] : vector<50x128xf32> to vector<128xf32>
    %202 = vector.shape_cast %201 : vector<128xf32> to vector<1x128xf32>
    %cst_172 = arith.constant 3.125000e-02 : f32
    %203 = vector.broadcast %cst_172 : f32 to vector<1x128xf32>
    %204 = arith.mulf %202, %203 : vector<1x128xf32>
    %205 = arith.mulf %200, %197 : vector<50x128xf32>
    %cst_173 = arith.constant dense<0.000000e+00> : vector<128xf32>
    %206 = vector.multi_reduction <add>, %205, %cst_173 [0] : vector<50x128xf32> to vector<128xf32>
    %207 = vector.shape_cast %206 : vector<128xf32> to vector<1x128xf32>
    %cst_174 = arith.constant 3.125000e-02 : f32
    %208 = vector.broadcast %cst_174 : f32 to vector<1x128xf32>
    %209 = arith.mulf %207, %208 : vector<1x128xf32>
    %210 = arith.mulf %204, %204 : vector<1x128xf32>
    %211 = arith.subf %209, %210 : vector<1x128xf32>
    %cst_175 = arith.constant 0.000000e+00 : f32
    %212 = vector.broadcast %cst_175 : f32 to vector<1x128xf32>
    %213 = arith.maximumf %211, %212 : vector<1x128xf32>
    %cst_176 = arith.constant 9.99999974E-6 : f32
    %214 = vector.broadcast %cst_176 : f32 to vector<1x128xf32>
    %215 = arith.addf %213, %214 : vector<1x128xf32>
    %216 = math.rsqrt %215 : vector<1x128xf32>
    %217 = vector.broadcast %204 : vector<1x128xf32> to vector<50x128xf32>
    %218 = arith.subf %197, %217 : vector<50x128xf32>
    %219 = vector.broadcast %216 : vector<1x128xf32> to vector<50x128xf32>
    %220 = arith.mulf %218, %219 : vector<50x128xf32>
    %c0_177 = arith.constant 0 : index
    %c0_178 = arith.constant 0 : index
    %221 = vector.load %arg9[%c0_177, %c0_178] : memref<1x128xf32, #tpu.memory_space<vmem>>, vector<1x128xf32>
    %222 = vector.broadcast %221 : vector<1x128xf32> to vector<50x128xf32>
    %223 = arith.mulf %220, %222 : vector<50x128xf32>
    %c0_179 = arith.constant 0 : index
    %c0_180 = arith.constant 0 : index
    %224 = vector.load %arg10[%c0_179, %c0_180] : memref<1x128xf32, #tpu.memory_space<vmem>>, vector<1x128xf32>
    %225 = vector.broadcast %224 : vector<1x128xf32> to vector<50x128xf32>
    %226 = arith.addf %223, %225 : vector<50x128xf32>
    %cst_181 = arith.constant 0.000000e+00 : f32
    %227 = vector.broadcast %cst_181 : f32 to vector<50x128xf32>
    %228 = arith.maximumf %226, %227 : vector<50x128xf32>
    %229 = arith.truncf %228 : vector<50x128xf32> to vector<50x128xbf16>
    %cst_182 = arith.constant 0.000000e+00 : f32
    %230 = vector.broadcast %cst_182 : f32 to vector<24x128xf32>
    %c0_183 = arith.constant 0 : index
    %c0_184 = arith.constant 0 : index
    %c0_185 = arith.constant 0 : index
    %c0_186 = arith.constant 0 : index
    %231 = vector.load %arg18[%c0_183, %c0_184, %c0_185, %c0_186] : memref<4x1x24x50xbf16, #tpu.memory_space<vmem>>, vector<1x1x24x50xbf16>
    %232 = vector.shape_cast %231 : vector<1x1x24x50xbf16> to vector<24x50xbf16>
    %cst_187 = arith.constant dense<0.000000e+00> : vector<24x128xf32>
    %233 = tpu.matmul %232, %229, %cst_187 {dimension_numbers = #tpu.dot_dimension_numbers<[1], [0], [0], [1], [0, 0, 1, 1], [], []>} : vector<24x50xbf16>, vector<50x128xbf16>, vector<24x128xf32> -> vector<24x128xf32>
    %234 = arith.addf %230, %233 : vector<24x128xf32>
    %c0_188 = arith.constant 0 : index
    %c0_189 = arith.constant 0 : index
    %c0_190 = arith.constant 0 : index
    %235 = vector.load %arg39[%c0_188, %c0_189, %c0_190] : memref<4x24x128xf32, #tpu.memory_space<vmem>>, vector<1x24x128xf32>
    %236 = vector.shape_cast %235 : vector<1x24x128xf32> to vector<24x128xf32>
    %237 = vector.shape_cast %234 : vector<24x128xf32> to vector<1x24x128xf32>
    tpu.vector_store %arg39[%c0_188, %c0_189, %c0_190], %237 {strides = array<i32>} : memref<4x24x128xf32, #tpu.memory_space<vmem>>, vector<1x24x128xf32>,
    %cst_191 = arith.constant 0.000000e+00 : f32
    %238 = vector.broadcast %cst_191 : f32 to vector<24x128xf32>
    %c1_192 = arith.constant 1 : index
    %c0_193 = arith.constant 0 : index
    %c0_194 = arith.constant 0 : index
    %c0_195 = arith.constant 0 : index
    %239 = vector.load %arg18[%c1_192, %c0_193, %c0_194, %c0_195] : memref<4x1x24x50xbf16, #tpu.memory_space<vmem>>, vector<1x1x24x50xbf16>
    %240 = vector.shape_cast %239 : vector<1x1x24x50xbf16> to vector<24x50xbf16>
    %cst_196 = arith.constant dense<0.000000e+00> : vector<24x128xf32>
    %241 = tpu.matmul %240, %229, %cst_196 {dimension_numbers = #tpu.dot_dimension_numbers<[1], [0], [0], [1], [0, 0, 1, 1], [], []>} : vector<24x50xbf16>, vector<50x128xbf16>, vector<24x128xf32> -> vector<24x128xf32>
    %242 = arith.addf %238, %241 : vector<24x128xf32>
    %c1_197 = arith.constant 1 : index
    %c0_198 = arith.constant 0 : index
    %c0_199 = arith.constant 0 : index
    %243 = vector.load %arg39[%c1_197, %c0_198, %c0_199] : memref<4x24x128xf32, #tpu.memory_space<vmem>>, vector<1x24x128xf32>
    %244 = vector.shape_cast %243 : vector<1x24x128xf32> to vector<24x128xf32>
    %245 = vector.shape_cast %242 : vector<24x128xf32> to vector<1x24x128xf32>
    tpu.vector_store %arg39[%c1_197, %c0_198, %c0_199], %245 {strides = array<i32>} : memref<4x24x128xf32, #tpu.memory_space<vmem>>, vector<1x24x128xf32>,
    %cst_200 = arith.constant 0.000000e+00 : f32
    %246 = vector.broadcast %cst_200 : f32 to vector<24x128xf32>
    %c2_201 = arith.constant 2 : index
    %c0_202 = arith.constant 0 : index
    %c0_203 = arith.constant 0 : index
    %c0_204 = arith.constant 0 : index
    %247 = vector.load %arg18[%c2_201, %c0_202, %c0_203, %c0_204] : memref<4x1x24x50xbf16, #tpu.memory_space<vmem>>, vector<1x1x24x50xbf16>
    %248 = vector.shape_cast %247 : vector<1x1x24x50xbf16> to vector<24x50xbf16>
    %cst_205 = arith.constant dense<0.000000e+00> : vector<24x128xf32>
    %249 = tpu.matmul %248, %229, %cst_205 {dimension_numbers = #tpu.dot_dimension_numbers<[1], [0], [0], [1], [0, 0, 1, 1], [], []>} : vector<24x50xbf16>, vector<50x128xbf16>, vector<24x128xf32> -> vector<24x128xf32>
    %250 = arith.addf %246, %249 : vector<24x128xf32>
    %c2_206 = arith.constant 2 : index
    %c0_207 = arith.constant 0 : index
    %c0_208 = arith.constant 0 : index
    %251 = vector.load %arg39[%c2_206, %c0_207, %c0_208] : memref<4x24x128xf32, #tpu.memory_space<vmem>>, vector<1x24x128xf32>
    %252 = vector.shape_cast %251 : vector<1x24x128xf32> to vector<24x128xf32>
    %253 = vector.shape_cast %250 : vector<24x128xf32> to vector<1x24x128xf32>
    tpu.vector_store %arg39[%c2_206, %c0_207, %c0_208], %253 {strides = array<i32>} : memref<4x24x128xf32, #tpu.memory_space<vmem>>, vector<1x24x128xf32>,
    %cst_209 = arith.constant 0.000000e+00 : f32
    %254 = vector.broadcast %cst_209 : f32 to vector<24x128xf32>
    %c3_210 = arith.constant 3 : index
    %c0_211 = arith.constant 0 : index
    %c0_212 = arith.constant 0 : index
    %c0_213 = arith.constant 0 : index
    %255 = vector.load %arg18[%c3_210, %c0_211, %c0_212, %c0_213] : memref<4x1x24x50xbf16, #tpu.memory_space<vmem>>, vector<1x1x24x50xbf16>
    %256 = vector.shape_cast %255 : vector<1x1x24x50xbf16> to vector<24x50xbf16>
    %cst_214 = arith.constant dense<0.000000e+00> : vector<24x128xf32>
    %257 = tpu.matmul %256, %229, %cst_214 {dimension_numbers = #tpu.dot_dimension_numbers<[1], [0], [0], [1], [0, 0, 1, 1], [], []>} : vector<24x50xbf16>, vector<50x128xbf16>, vector<24x128xf32> -> vector<24x128xf32>
    %258 = arith.addf %254, %257 : vector<24x128xf32>
    %c3_215 = arith.constant 3 : index
    %c0_216 = arith.constant 0 : index
    %c0_217 = arith.constant 0 : index
    %259 = vector.load %arg39[%c3_215, %c0_216, %c0_217] : memref<4x24x128xf32, #tpu.memory_space<vmem>>, vector<1x24x128xf32>
    %260 = vector.shape_cast %259 : vector<1x24x128xf32> to vector<24x128xf32>
    %261 = vector.shape_cast %258 : vector<24x128xf32> to vector<1x24x128xf32>
    tpu.vector_store %arg39[%c3_215, %c0_216, %c0_217], %261 {strides = array<i32>} : memref<4x24x128xf32, #tpu.memory_space<vmem>>, vector<1x24x128xf32>,
    %cst_218 = arith.constant 0.000000e+00 : f32
    %262 = vector.broadcast %cst_218 : f32 to vector<18x128xf32>
    %c0_219 = arith.constant 0 : index
    %c0_220 = arith.constant 0 : index
    %c0_221 = arith.constant 0 : index
    %263 = vector.load %arg39[%c0_219, %c0_220, %c0_221] : memref<4x24x128xf32, #tpu.memory_space<vmem>>, vector<1x18x128xf32>
    %264 = vector.shape_cast %263 : vector<1x18x128xf32> to vector<18x128xf32>
    %265 = arith.truncf %264 : vector<18x128xf32> to vector<18x128xbf16>
    %c0_222 = arith.constant 0 : index
    %c0_223 = arith.constant 0 : index
    %c0_224 = arith.constant 0 : index
    %266 = vector.load %arg13[%c0_222, %c0_223, %c0_224] : memref<9x128x128xbf16, #tpu.memory_space<vmem>>, vector<1x128x128xbf16>
    %267 = vector.shape_cast %266 : vector<1x128x128xbf16> to vector<128x128xbf16>
    %cst_225 = arith.constant dense<0.000000e+00> : vector<18x128xf32>
    %268 = tpu.matmul %265, %267, %cst_225 {dimension_numbers = #tpu.dot_dimension_numbers<[1], [0], [0], [1], [0, 0, 1, 1], [], []>} : vector<18x128xbf16>, vector<128x128xbf16>, vector<18x128xf32> -> vector<18x128xf32>
    %269 = arith.addf %262, %268 : vector<18x128xf32>
    %c1_226 = arith.constant 1 : index
    %c0_227 = arith.constant 0 : index
    %c0_228 = arith.constant 0 : index
    %270 = vector.load %arg39[%c1_226, %c0_227, %c0_228] : memref<4x24x128xf32, #tpu.memory_space<vmem>>, vector<1x18x128xf32>
    %271 = vector.shape_cast %270 : vector<1x18x128xf32> to vector<18x128xf32>
    %272 = arith.truncf %271 : vector<18x128xf32> to vector<18x128xbf16>
    %c1_229 = arith.constant 1 : index
    %c0_230 = arith.constant 0 : index
    %c0_231 = arith.constant 0 : index
    %273 = vector.load %arg13[%c1_229, %c0_230, %c0_231] : memref<9x128x128xbf16, #tpu.memory_space<vmem>>, vector<1x128x128xbf16>
    %274 = vector.shape_cast %273 : vector<1x128x128xbf16> to vector<128x128xbf16>
    %cst_232 = arith.constant dense<0.000000e+00> : vector<18x128xf32>
    %275 = tpu.matmul %272, %274, %cst_232 {dimension_numbers = #tpu.dot_dimension_numbers<[1], [0], [0], [1], [0, 0, 1, 1], [], []>} : vector<18x128xbf16>, vector<128x128xbf16>, vector<18x128xf32> -> vector<18x128xf32>
    %276 = arith.addf %269, %275 : vector<18x128xf32>
    %c0_233 = arith.constant 0 : index
    %c1_234 = arith.constant 1 : index
    %c0_235 = arith.constant 0 : index
    %277 = vector.load %arg39[%c0_233, %c1_234, %c0_235] : memref<4x24x128xf32, #tpu.memory_space<vmem>>, vector<1x18x128xf32>
    %278 = vector.shape_cast %277 : vector<1x18x128xf32> to vector<18x128xf32>
    %279 = arith.truncf %278 : vector<18x128xf32> to vector<18x128xbf16>
    %c2_236 = arith.constant 2 : index
    %c0_237 = arith.constant 0 : index
    %c0_238 = arith.constant 0 : index
    %280 = vector.load %arg13[%c2_236, %c0_237, %c0_238] : memref<9x128x128xbf16, #tpu.memory_space<vmem>>, vector<1x128x128xbf16>
    %281 = vector.shape_cast %280 : vector<1x128x128xbf16> to vector<128x128xbf16>
    %cst_239 = arith.constant dense<0.000000e+00> : vector<18x128xf32>
    %282 = tpu.matmul %279, %281, %cst_239 {dimension_numbers = #tpu.dot_dimension_numbers<[1], [0], [0], [1], [0, 0, 1, 1], [], []>} : vector<18x128xbf16>, vector<128x128xbf16>, vector<18x128xf32> -> vector<18x128xf32>
    %283 = arith.addf %276, %282 : vector<18x128xf32>
    %c2_240 = arith.constant 2 : index
    %c0_241 = arith.constant 0 : index
    %c0_242 = arith.constant 0 : index
    %284 = vector.load %arg39[%c2_240, %c0_241, %c0_242] : memref<4x24x128xf32, #tpu.memory_space<vmem>>, vector<1x18x128xf32>
    %285 = vector.shape_cast %284 : vector<1x18x128xf32> to vector<18x128xf32>
    %286 = arith.truncf %285 : vector<18x128xf32> to vector<18x128xbf16>
    %c3_243 = arith.constant 3 : index
    %c0_244 = arith.constant 0 : index
    %c0_245 = arith.constant 0 : index
    %287 = vector.load %arg13[%c3_243, %c0_244, %c0_245] : memref<9x128x128xbf16, #tpu.memory_space<vmem>>, vector<1x128x128xbf16>
    %288 = vector.shape_cast %287 : vector<1x128x128xbf16> to vector<128x128xbf16>
    %cst_246 = arith.constant dense<0.000000e+00> : vector<18x128xf32>
    %289 = tpu.matmul %286, %288, %cst_246 {dimension_numbers = #tpu.dot_dimension_numbers<[1], [0], [0], [1], [0, 0, 1, 1], [], []>} : vector<18x128xbf16>, vector<128x128xbf16>, vector<18x128xf32> -> vector<18x128xf32>
    %290 = arith.addf %283, %289 : vector<18x128xf32>
    %c3_247 = arith.constant 3 : index
    %c0_248 = arith.constant 0 : index
    %c0_249 = arith.constant 0 : index
    %291 = vector.load %arg39[%c3_247, %c0_248, %c0_249] : memref<4x24x128xf32, #tpu.memory_space<vmem>>, vector<1x18x128xf32>
    %292 = vector.shape_cast %291 : vector<1x18x128xf32> to vector<18x128xf32>
    %293 = arith.truncf %292 : vector<18x128xf32> to vector<18x128xbf16>
    %c4_250 = arith.constant 4 : index
    %c0_251 = arith.constant 0 : index
    %c0_252 = arith.constant 0 : index
    %294 = vector.load %arg13[%c4_250, %c0_251, %c0_252] : memref<9x128x128xbf16, #tpu.memory_space<vmem>>, vector<1x128x128xbf16>
    %295 = vector.shape_cast %294 : vector<1x128x128xbf16> to vector<128x128xbf16>
    %cst_253 = arith.constant dense<0.000000e+00> : vector<18x128xf32>
    %296 = tpu.matmul %293, %295, %cst_253 {dimension_numbers = #tpu.dot_dimension_numbers<[1], [0], [0], [1], [0, 0, 1, 1], [], []>} : vector<18x128xbf16>, vector<128x128xbf16>, vector<18x128xf32> -> vector<18x128xf32>
    %297 = arith.addf %290, %296 : vector<18x128xf32>
    %c2_254 = arith.constant 2 : index
    %c1_255 = arith.constant 1 : index
    %c0_256 = arith.constant 0 : index
    %298 = vector.load %arg39[%c2_254, %c1_255, %c0_256] : memref<4x24x128xf32, #tpu.memory_space<vmem>>, vector<1x18x128xf32>
    %299 = vector.shape_cast %298 : vector<1x18x128xf32> to vector<18x128xf32>
    %300 = arith.truncf %299 : vector<18x128xf32> to vector<18x128xbf16>
    %c5_257 = arith.constant 5 : index
    %c0_258 = arith.constant 0 : index
    %c0_259 = arith.constant 0 : index
    %301 = vector.load %arg13[%c5_257, %c0_258, %c0_259] : memref<9x128x128xbf16, #tpu.memory_space<vmem>>, vector<1x128x128xbf16>
    %302 = vector.shape_cast %301 : vector<1x128x128xbf16> to vector<128x128xbf16>
    %cst_260 = arith.constant dense<0.000000e+00> : vector<18x128xf32>
    %303 = tpu.matmul %300, %302, %cst_260 {dimension_numbers = #tpu.dot_dimension_numbers<[1], [0], [0], [1], [0, 0, 1, 1], [], []>} : vector<18x128xbf16>, vector<128x128xbf16>, vector<18x128xf32> -> vector<18x128xf32>
    %304 = arith.addf %297, %303 : vector<18x128xf32>
    %c0_261 = arith.constant 0 : index
    %c3_262 = arith.constant 3 : index
    %c0_263 = arith.constant 0 : index
    %305 = vector.load %arg39[%c0_261, %c3_262, %c0_263] : memref<4x24x128xf32, #tpu.memory_space<vmem>>, vector<1x18x128xf32>
    %306 = vector.shape_cast %305 : vector<1x18x128xf32> to vector<18x128xf32>
    %307 = arith.truncf %306 : vector<18x128xf32> to vector<18x128xbf16>
    %c6_264 = arith.constant 6 : index
    %c0_265 = arith.constant 0 : index
    %c0_266 = arith.constant 0 : index
    %308 = vector.load %arg13[%c6_264, %c0_265, %c0_266] : memref<9x128x128xbf16, #tpu.memory_space<vmem>>, vector<1x128x128xbf16>
    %309 = vector.shape_cast %308 : vector<1x128x128xbf16> to vector<128x128xbf16>
    %cst_267 = arith.constant dense<0.000000e+00> : vector<18x128xf32>
    %310 = tpu.matmul %307, %309, %cst_267 {dimension_numbers = #tpu.dot_dimension_numbers<[1], [0], [0], [1], [0, 0, 1, 1], [], []>} : vector<18x128xbf16>, vector<128x128xbf16>, vector<18x128xf32> -> vector<18x128xf32>
    %311 = arith.addf %304, %310 : vector<18x128xf32>
    %c1_268 = arith.constant 1 : index
    %c3_269 = arith.constant 3 : index
    %c0_270 = arith.constant 0 : index
    %312 = vector.load %arg39[%c1_268, %c3_269, %c0_270] : memref<4x24x128xf32, #tpu.memory_space<vmem>>, vector<1x18x128xf32>
    %313 = vector.shape_cast %312 : vector<1x18x128xf32> to vector<18x128xf32>
    %314 = arith.truncf %313 : vector<18x128xf32> to vector<18x128xbf16>
    %c7_271 = arith.constant 7 : index
    %c0_272 = arith.constant 0 : index
    %c0_273 = arith.constant 0 : index
    %315 = vector.load %arg13[%c7_271, %c0_272, %c0_273] : memref<9x128x128xbf16, #tpu.memory_space<vmem>>, vector<1x128x128xbf16>
    %316 = vector.shape_cast %315 : vector<1x128x128xbf16> to vector<128x128xbf16>
    %cst_274 = arith.constant dense<0.000000e+00> : vector<18x128xf32>
    %317 = tpu.matmul %314, %316, %cst_274 {dimension_numbers = #tpu.dot_dimension_numbers<[1], [0], [0], [1], [0, 0, 1, 1], [], []>} : vector<18x128xbf16>, vector<128x128xbf16>, vector<18x128xf32> -> vector<18x128xf32>
    %318 = arith.addf %311, %317 : vector<18x128xf32>
    %c0_275 = arith.constant 0 : index
    %c4_276 = arith.constant 4 : index
    %c0_277 = arith.constant 0 : index
    %319 = vector.load %arg39[%c0_275, %c4_276, %c0_277] : memref<4x24x128xf32, #tpu.memory_space<vmem>>, vector<1x18x128xf32>
    %320 = vector.shape_cast %319 : vector<1x18x128xf32> to vector<18x128xf32>
    %321 = arith.truncf %320 : vector<18x128xf32> to vector<18x128xbf16>
    %c8_278 = arith.constant 8 : index
    %c0_279 = arith.constant 0 : index
    %c0_280 = arith.constant 0 : index
    %322 = vector.load %arg13[%c8_278, %c0_279, %c0_280] : memref<9x128x128xbf16, #tpu.memory_space<vmem>>, vector<1x128x128xbf16>
    %323 = vector.shape_cast %322 : vector<1x128x128xbf16> to vector<128x128xbf16>
    %cst_281 = arith.constant dense<0.000000e+00> : vector<18x128xf32>
    %324 = tpu.matmul %321, %323, %cst_281 {dimension_numbers = #tpu.dot_dimension_numbers<[1], [0], [0], [1], [0, 0, 1, 1], [], []>} : vector<18x128xbf16>, vector<128x128xbf16>, vector<18x128xf32> -> vector<18x128xf32>
    %325 = arith.addf %318, %324 : vector<18x128xf32>
    %c0_282 = arith.constant 0 : index
    %c0_283 = arith.constant 0 : index
    %326 = vector.load %arg14[%c0_282, %c0_283] : memref<1x128xf32, #tpu.memory_space<vmem>>, vector<1x128xf32>
    %327 = vector.broadcast %326 : vector<1x128xf32> to vector<18x128xf32>
    %328 = arith.addf %325, %327 : vector<18x128xf32>
    %c0_284 = arith.constant 0 : index
    %c0_285 = arith.constant 0 : index
    %329 = vector.load %arg17[%c0_284, %c0_285] : memref<18x1xf32, #tpu.memory_space<vmem>>, vector<18x1xf32>
    %330 = vector.broadcast %329 : vector<18x1xf32> to vector<18x128xf32>
    %331 = arith.mulf %328, %330 : vector<18x128xf32>
    %cst_286 = arith.constant dense<0.000000e+00> : vector<128xf32>
    %332 = vector.multi_reduction <add>, %331, %cst_286 [0] : vector<18x128xf32> to vector<128xf32>
    %333 = vector.shape_cast %332 : vector<128xf32> to vector<1x128xf32>
    %cst_287 = arith.constant 1.250000e-01 : f32
    %334 = vector.broadcast %cst_287 : f32 to vector<1x128xf32>
    %335 = arith.mulf %333, %334 : vector<1x128xf32>
    %336 = arith.mulf %331, %328 : vector<18x128xf32>
    %cst_288 = arith.constant dense<0.000000e+00> : vector<128xf32>
    %337 = vector.multi_reduction <add>, %336, %cst_288 [0] : vector<18x128xf32> to vector<128xf32>
    %338 = vector.shape_cast %337 : vector<128xf32> to vector<1x128xf32>
    %cst_289 = arith.constant 1.250000e-01 : f32
    %339 = vector.broadcast %cst_289 : f32 to vector<1x128xf32>
    %340 = arith.mulf %338, %339 : vector<1x128xf32>
    %341 = arith.mulf %335, %335 : vector<1x128xf32>
    %342 = arith.subf %340, %341 : vector<1x128xf32>
    %cst_290 = arith.constant 0.000000e+00 : f32
    %343 = vector.broadcast %cst_290 : f32 to vector<1x128xf32>
    %344 = arith.maximumf %342, %343 : vector<1x128xf32>
    %cst_291 = arith.constant 9.99999974E-6 : f32
    %345 = vector.broadcast %cst_291 : f32 to vector<1x128xf32>
    %346 = arith.addf %344, %345 : vector<1x128xf32>
    %347 = math.rsqrt %346 : vector<1x128xf32>
    %348 = vector.broadcast %335 : vector<1x128xf32> to vector<18x128xf32>
    %349 = arith.subf %328, %348 : vector<18x128xf32>
    %350 = vector.broadcast %347 : vector<1x128xf32> to vector<18x128xf32>
    %351 = arith.mulf %349, %350 : vector<18x128xf32>
    %c0_292 = arith.constant 0 : index
    %c0_293 = arith.constant 0 : index
    %352 = vector.load %arg15[%c0_292, %c0_293] : memref<1x128xf32, #tpu.memory_space<vmem>>, vector<1x128xf32>
    %353 = vector.broadcast %352 : vector<1x128xf32> to vector<18x128xf32>
    %354 = arith.mulf %351, %353 : vector<18x128xf32>
    %c0_294 = arith.constant 0 : index
    %c0_295 = arith.constant 0 : index
    %355 = vector.load %arg16[%c0_294, %c0_295] : memref<1x128xf32, #tpu.memory_space<vmem>>, vector<1x128xf32>
    %356 = vector.broadcast %355 : vector<1x128xf32> to vector<18x128xf32>
    %357 = arith.addf %354, %356 : vector<18x128xf32>
    %cst_296 = arith.constant 0.000000e+00 : f32
    %358 = vector.broadcast %cst_296 : f32 to vector<18x128xf32>
    %359 = arith.maximumf %357, %358 : vector<18x128xf32>
    %360 = arith.truncf %359 : vector<18x128xf32> to vector<18x128xbf16>
    %cst_297 = arith.constant 0.000000e+00 : f32
    %361 = vector.broadcast %cst_297 : f32 to vector<24x128xf32>
    %c0_298 = arith.constant 0 : index
    %c0_299 = arith.constant 0 : index
    %c0_300 = arith.constant 0 : index
    %c0_301 = arith.constant 0 : index
    %362 = vector.load %arg24[%c0_298, %c0_299, %c0_300, %c0_301] : memref<1x1x24x18xbf16, #tpu.memory_space<vmem>>, vector<1x1x24x18xbf16>
    %363 = vector.shape_cast %362 : vector<1x1x24x18xbf16> to vector<24x18xbf16>
    %cst_302 = arith.constant dense<0.000000e+00> : vector<24x128xf32>
    %364 = tpu.matmul %363, %360, %cst_302 {dimension_numbers = #tpu.dot_dimension_numbers<[1], [0], [0], [1], [0, 0, 1, 1], [], []>} : vector<24x18xbf16>, vector<18x128xbf16>, vector<24x128xf32> -> vector<24x128xf32>
    %365 = arith.addf %361, %364 : vector<24x128xf32>
    %c0_303 = arith.constant 0 : index
    %c0_304 = arith.constant 0 : index
    %c0_305 = arith.constant 0 : index
    %366 = vector.load %arg40[%c0_303, %c0_304, %c0_305] : memref<1x24x128xf32, #tpu.memory_space<vmem>>, vector<1x24x128xf32>
    %367 = vector.shape_cast %366 : vector<1x24x128xf32> to vector<24x128xf32>
    %368 = vector.shape_cast %365 : vector<24x128xf32> to vector<1x24x128xf32>
    tpu.vector_store %arg40[%c0_303, %c0_304, %c0_305], %368 {strides = array<i32>} : memref<1x24x128xf32, #tpu.memory_space<vmem>>, vector<1x24x128xf32>,
    %c0_306 = arith.constant 0 : index
    %c0_307 = arith.constant 0 : index
    %369 = vector.load %arg20[%c0_306, %c0_307] : memref<1x128xf32, #tpu.memory_space<vmem>>, vector<1x128xf32>
    %cst_308 = arith.constant 0.000000e+00 : f32
    %370 = vector.broadcast %cst_308 : f32 to vector<18x128xf32>
    %c0_309 = arith.constant 0 : index
    %c0_310 = arith.constant 0 : index
    %c0_311 = arith.constant 0 : index
    %371 = vector.load %arg40[%c0_309, %c0_310, %c0_311] : memref<1x24x128xf32, #tpu.memory_space<vmem>>, vector<1x18x128xf32>
    %372 = vector.shape_cast %371 : vector<1x18x128xf32> to vector<18x128xf32>
    %373 = arith.truncf %372 : vector<18x128xf32> to vector<18x128xbf16>
    %c4_312 = arith.constant 4 : index
    %c0_313 = arith.constant 0 : index
    %c0_314 = arith.constant 0 : index
    %374 = vector.load %arg19[%c4_312, %c0_313, %c0_314] : memref<9x128x128xbf16, #tpu.memory_space<vmem>>, vector<1x128x128xbf16>
    %375 = vector.shape_cast %374 : vector<1x128x128xbf16> to vector<128x128xbf16>
    %cst_315 = arith.constant dense<0.000000e+00> : vector<18x128xf32>
    %376 = tpu.matmul %373, %375, %cst_315 {dimension_numbers = #tpu.dot_dimension_numbers<[1], [0], [0], [1], [0, 0, 1, 1], [], []>} : vector<18x128xbf16>, vector<128x128xbf16>, vector<18x128xf32> -> vector<18x128xf32>
    %377 = arith.addf %370, %376 : vector<18x128xf32>
    %378 = vector.broadcast %369 : vector<1x128xf32> to vector<18x128xf32>
    %379 = arith.addf %377, %378 : vector<18x128xf32>
    %cst_316 = arith.constant 0.000000e+00 : f32
    %380 = vector.broadcast %cst_316 : f32 to vector<18x128xf32>
    %c0_317 = arith.constant 0 : index
    %c0_318 = arith.constant 0 : index
    %c0_319 = arith.constant 0 : index
    %381 = vector.load %arg40[%c0_317, %c0_318, %c0_319] : memref<1x24x128xf32, #tpu.memory_space<vmem>>, vector<1x18x128xf32>
    %382 = vector.shape_cast %381 : vector<1x18x128xf32> to vector<18x128xf32>
    %383 = arith.truncf %382 : vector<18x128xf32> to vector<18x128xbf16>
    %c5_320 = arith.constant 5 : index
    %c0_321 = arith.constant 0 : index
    %c0_322 = arith.constant 0 : index
    %384 = vector.load %arg19[%c5_320, %c0_321, %c0_322] : memref<9x128x128xbf16, #tpu.memory_space<vmem>>, vector<1x128x128xbf16>
    %385 = vector.shape_cast %384 : vector<1x128x128xbf16> to vector<128x128xbf16>
    %cst_323 = arith.constant dense<0.000000e+00> : vector<18x128xf32>
    %386 = tpu.matmul %383, %385, %cst_323 {dimension_numbers = #tpu.dot_dimension_numbers<[1], [0], [0], [1], [0, 0, 1, 1], [], []>} : vector<18x128xbf16>, vector<128x128xbf16>, vector<18x128xf32> -> vector<18x128xf32>
    %387 = arith.addf %380, %386 : vector<18x128xf32>
    %c0_324 = arith.constant 0 : index
    %c1_325 = arith.constant 1 : index
    %c0_326 = arith.constant 0 : index
    %388 = vector.load %arg40[%c0_324, %c1_325, %c0_326] : memref<1x24x128xf32, #tpu.memory_space<vmem>>, vector<1x18x128xf32>
    %389 = vector.shape_cast %388 : vector<1x18x128xf32> to vector<18x128xf32>
    %390 = arith.truncf %389 : vector<18x128xf32> to vector<18x128xbf16>
    %c3_327 = arith.constant 3 : index
    %c0_328 = arith.constant 0 : index
    %c0_329 = arith.constant 0 : index
    %391 = vector.load %arg19[%c3_327, %c0_328, %c0_329] : memref<9x128x128xbf16, #tpu.memory_space<vmem>>, vector<1x128x128xbf16>
    %392 = vector.shape_cast %391 : vector<1x128x128xbf16> to vector<128x128xbf16>
    %cst_330 = arith.constant dense<0.000000e+00> : vector<18x128xf32>
    %393 = tpu.matmul %390, %392, %cst_330 {dimension_numbers = #tpu.dot_dimension_numbers<[1], [0], [0], [1], [0, 0, 1, 1], [], []>} : vector<18x128xbf16>, vector<128x128xbf16>, vector<18x128xf32> -> vector<18x128xf32>
    %394 = arith.addf %387, %393 : vector<18x128xf32>
    %395 = vector.broadcast %369 : vector<1x128xf32> to vector<18x128xf32>
    %396 = arith.addf %394, %395 : vector<18x128xf32>
    %cst_331 = arith.constant 0.000000e+00 : f32
    %397 = vector.broadcast %cst_331 : f32 to vector<18x128xf32>
    %c0_332 = arith.constant 0 : index
    %c0_333 = arith.constant 0 : index
    %c0_334 = arith.constant 0 : index
    %398 = vector.load %arg40[%c0_332, %c0_333, %c0_334] : memref<1x24x128xf32, #tpu.memory_space<vmem>>, vector<1x18x128xf32>
    %399 = vector.shape_cast %398 : vector<1x18x128xf32> to vector<18x128xf32>
    %400 = arith.truncf %399 : vector<18x128xf32> to vector<18x128xbf16>
    %c7_335 = arith.constant 7 : index
    %c0_336 = arith.constant 0 : index
    %c0_337 = arith.constant 0 : index
    %401 = vector.load %arg19[%c7_335, %c0_336, %c0_337] : memref<9x128x128xbf16, #tpu.memory_space<vmem>>, vector<1x128x128xbf16>
    %402 = vector.shape_cast %401 : vector<1x128x128xbf16> to vector<128x128xbf16>
    %cst_338 = arith.constant dense<0.000000e+00> : vector<18x128xf32>
    %403 = tpu.matmul %400, %402, %cst_338 {dimension_numbers = #tpu.dot_dimension_numbers<[1], [0], [0], [1], [0, 0, 1, 1], [], []>} : vector<18x128xbf16>, vector<128x128xbf16>, vector<18x128xf32> -> vector<18x128xf32>
    %404 = arith.addf %397, %403 : vector<18x128xf32>
    %c0_339 = arith.constant 0 : index
    %c3_340 = arith.constant 3 : index
    %c0_341 = arith.constant 0 : index
    %405 = vector.load %arg40[%c0_339, %c3_340, %c0_341] : memref<1x24x128xf32, #tpu.memory_space<vmem>>, vector<1x18x128xf32>
    %406 = vector.shape_cast %405 : vector<1x18x128xf32> to vector<18x128xf32>
    %407 = arith.truncf %406 : vector<18x128xf32> to vector<18x128xbf16>
    %c1_342 = arith.constant 1 : index
    %c0_343 = arith.constant 0 : index
    %c0_344 = arith.constant 0 : index
    %408 = vector.load %arg19[%c1_342, %c0_343, %c0_344] : memref<9x128x128xbf16, #tpu.memory_space<vmem>>, vector<1x128x128xbf16>
    %409 = vector.shape_cast %408 : vector<1x128x128xbf16> to vector<128x128xbf16>
    %cst_345 = arith.constant dense<0.000000e+00> : vector<18x128xf32>
    %410 = tpu.matmul %407, %409, %cst_345 {dimension_numbers = #tpu.dot_dimension_numbers<[1], [0], [0], [1], [0, 0, 1, 1], [], []>} : vector<18x128xbf16>, vector<128x128xbf16>, vector<18x128xf32> -> vector<18x128xf32>
    %411 = arith.addf %404, %410 : vector<18x128xf32>
    %412 = vector.broadcast %369 : vector<1x128xf32> to vector<18x128xf32>
    %413 = arith.addf %411, %412 : vector<18x128xf32>
    %cst_346 = arith.constant 0.000000e+00 : f32
    %414 = vector.broadcast %cst_346 : f32 to vector<18x128xf32>
    %c0_347 = arith.constant 0 : index
    %c0_348 = arith.constant 0 : index
    %c0_349 = arith.constant 0 : index
    %415 = vector.load %arg40[%c0_347, %c0_348, %c0_349] : memref<1x24x128xf32, #tpu.memory_space<vmem>>, vector<1x18x128xf32>
    %416 = vector.shape_cast %415 : vector<1x18x128xf32> to vector<18x128xf32>
    %417 = arith.truncf %416 : vector<18x128xf32> to vector<18x128xbf16>
    %c8_350 = arith.constant 8 : index
    %c0_351 = arith.constant 0 : index
    %c0_352 = arith.constant 0 : index
    %418 = vector.load %arg19[%c8_350, %c0_351, %c0_352] : memref<9x128x128xbf16, #tpu.memory_space<vmem>>, vector<1x128x128xbf16>
    %419 = vector.shape_cast %418 : vector<1x128x128xbf16> to vector<128x128xbf16>
    %cst_353 = arith.constant dense<0.000000e+00> : vector<18x128xf32>
    %420 = tpu.matmul %417, %419, %cst_353 {dimension_numbers = #tpu.dot_dimension_numbers<[1], [0], [0], [1], [0, 0, 1, 1], [], []>} : vector<18x128xbf16>, vector<128x128xbf16>, vector<18x128xf32> -> vector<18x128xf32>
    %421 = arith.addf %414, %420 : vector<18x128xf32>
    %c0_354 = arith.constant 0 : index
    %c1_355 = arith.constant 1 : index
    %c0_356 = arith.constant 0 : index
    %422 = vector.load %arg40[%c0_354, %c1_355, %c0_356] : memref<1x24x128xf32, #tpu.memory_space<vmem>>, vector<1x18x128xf32>
    %423 = vector.shape_cast %422 : vector<1x18x128xf32> to vector<18x128xf32>
    %424 = arith.truncf %423 : vector<18x128xf32> to vector<18x128xbf16>
    %c6_357 = arith.constant 6 : index
    %c0_358 = arith.constant 0 : index
    %c0_359 = arith.constant 0 : index
    %425 = vector.load %arg19[%c6_357, %c0_358, %c0_359] : memref<9x128x128xbf16, #tpu.memory_space<vmem>>, vector<1x128x128xbf16>
    %426 = vector.shape_cast %425 : vector<1x128x128xbf16> to vector<128x128xbf16>
    %cst_360 = arith.constant dense<0.000000e+00> : vector<18x128xf32>
    %427 = tpu.matmul %424, %426, %cst_360 {dimension_numbers = #tpu.dot_dimension_numbers<[1], [0], [0], [1], [0, 0, 1, 1], [], []>} : vector<18x128xbf16>, vector<128x128xbf16>, vector<18x128xf32> -> vector<18x128xf32>
    %428 = arith.addf %421, %427 : vector<18x128xf32>
    %c0_361 = arith.constant 0 : index
    %c3_362 = arith.constant 3 : index
    %c0_363 = arith.constant 0 : index
    %429 = vector.load %arg40[%c0_361, %c3_362, %c0_363] : memref<1x24x128xf32, #tpu.memory_space<vmem>>, vector<1x18x128xf32>
    %430 = vector.shape_cast %429 : vector<1x18x128xf32> to vector<18x128xf32>
    %431 = arith.truncf %430 : vector<18x128xf32> to vector<18x128xbf16>
    %c2_364 = arith.constant 2 : index
    %c0_365 = arith.constant 0 : index
    %c0_366 = arith.constant 0 : index
    %432 = vector.load %arg19[%c2_364, %c0_365, %c0_366] : memref<9x128x128xbf16, #tpu.memory_space<vmem>>, vector<1x128x128xbf16>
    %433 = vector.shape_cast %432 : vector<1x128x128xbf16> to vector<128x128xbf16>
    %cst_367 = arith.constant dense<0.000000e+00> : vector<18x128xf32>
    %434 = tpu.matmul %431, %433, %cst_367 {dimension_numbers = #tpu.dot_dimension_numbers<[1], [0], [0], [1], [0, 0, 1, 1], [], []>} : vector<18x128xbf16>, vector<128x128xbf16>, vector<18x128xf32> -> vector<18x128xf32>
    %435 = arith.addf %428, %434 : vector<18x128xf32>
    %c0_368 = arith.constant 0 : index
    %c4_369 = arith.constant 4 : index
    %c0_370 = arith.constant 0 : index
    %436 = vector.load %arg40[%c0_368, %c4_369, %c0_370] : memref<1x24x128xf32, #tpu.memory_space<vmem>>, vector<1x18x128xf32>
    %437 = vector.shape_cast %436 : vector<1x18x128xf32> to vector<18x128xf32>
    %438 = arith.truncf %437 : vector<18x128xf32> to vector<18x128xbf16>
    %c0_371 = arith.constant 0 : index
    %c0_372 = arith.constant 0 : index
    %c0_373 = arith.constant 0 : index
    %439 = vector.load %arg19[%c0_371, %c0_372, %c0_373] : memref<9x128x128xbf16, #tpu.memory_space<vmem>>, vector<1x128x128xbf16>
    %440 = vector.shape_cast %439 : vector<1x128x128xbf16> to vector<128x128xbf16>
    %cst_374 = arith.constant dense<0.000000e+00> : vector<18x128xf32>
    %441 = tpu.matmul %438, %440, %cst_374 {dimension_numbers = #tpu.dot_dimension_numbers<[1], [0], [0], [1], [0, 0, 1, 1], [], []>} : vector<18x128xbf16>, vector<128x128xbf16>, vector<18x128xf32> -> vector<18x128xf32>
    %442 = arith.addf %435, %441 : vector<18x128xf32>
    %443 = vector.broadcast %369 : vector<1x128xf32> to vector<18x128xf32>
    %444 = arith.addf %442, %443 : vector<18x128xf32>
    %c0_375 = arith.constant 0 : index
    %c0_376 = arith.constant 0 : index
    %445 = vector.load %arg23[%c0_375, %c0_376] : memref<18x1xf32, #tpu.memory_space<vmem>>, vector<18x1xf32>
    %cst_377 = arith.constant 0.000000e+00 : f32
    %446 = vector.broadcast %cst_377 : f32 to vector<1x128xf32>
    %cst_378 = arith.constant 0.000000e+00 : f32
    %447 = vector.broadcast %cst_378 : f32 to vector<1x128xf32>
    %448 = vector.broadcast %445 : vector<18x1xf32> to vector<18x128xf32>
    %449 = arith.mulf %379, %448 : vector<18x128xf32>
    %cst_379 = arith.constant dense<0.000000e+00> : vector<128xf32>
    %450 = vector.multi_reduction <add>, %449, %cst_379 [0] : vector<18x128xf32> to vector<128xf32>
    %451 = vector.shape_cast %450 : vector<128xf32> to vector<1x128xf32>
    %452 = arith.addf %446, %451 : vector<1x128xf32>
    %453 = arith.mulf %449, %379 : vector<18x128xf32>
    %cst_380 = arith.constant dense<0.000000e+00> : vector<128xf32>
    %454 = vector.multi_reduction <add>, %453, %cst_380 [0] : vector<18x128xf32> to vector<128xf32>
    %455 = vector.shape_cast %454 : vector<128xf32> to vector<1x128xf32>
    %456 = arith.addf %447, %455 : vector<1x128xf32>
    %457 = vector.broadcast %445 : vector<18x1xf32> to vector<18x128xf32>
    %458 = arith.mulf %396, %457 : vector<18x128xf32>
    %cst_381 = arith.constant dense<0.000000e+00> : vector<128xf32>
    %459 = vector.multi_reduction <add>, %458, %cst_381 [0] : vector<18x128xf32> to vector<128xf32>
    %460 = vector.shape_cast %459 : vector<128xf32> to vector<1x128xf32>
    %461 = arith.addf %452, %460 : vector<1x128xf32>
    %462 = arith.mulf %458, %396 : vector<18x128xf32>
    %cst_382 = arith.constant dense<0.000000e+00> : vector<128xf32>
    %463 = vector.multi_reduction <add>, %462, %cst_382 [0] : vector<18x128xf32> to vector<128xf32>
    %464 = vector.shape_cast %463 : vector<128xf32> to vector<1x128xf32>
    %465 = arith.addf %456, %464 : vector<1x128xf32>
    %466 = vector.broadcast %445 : vector<18x1xf32> to vector<18x128xf32>
    %467 = arith.mulf %413, %466 : vector<18x128xf32>
    %cst_383 = arith.constant dense<0.000000e+00> : vector<128xf32>
    %468 = vector.multi_reduction <add>, %467, %cst_383 [0] : vector<18x128xf32> to vector<128xf32>
    %469 = vector.shape_cast %468 : vector<128xf32> to vector<1x128xf32>
    %470 = arith.addf %461, %469 : vector<1x128xf32>
    %471 = arith.mulf %467, %413 : vector<18x128xf32>
    %cst_384 = arith.constant dense<0.000000e+00> : vector<128xf32>
    %472 = vector.multi_reduction <add>, %471, %cst_384 [0] : vector<18x128xf32> to vector<128xf32>
    %473 = vector.shape_cast %472 : vector<128xf32> to vector<1x128xf32>
    %474 = arith.addf %465, %473 : vector<1x128xf32>
    %475 = vector.broadcast %445 : vector<18x1xf32> to vector<18x128xf32>
    %476 = arith.mulf %444, %475 : vector<18x128xf32>
    %cst_385 = arith.constant dense<0.000000e+00> : vector<128xf32>
    %477 = vector.multi_reduction <add>, %476, %cst_385 [0] : vector<18x128xf32> to vector<128xf32>
    %478 = vector.shape_cast %477 : vector<128xf32> to vector<1x128xf32>
    %479 = arith.addf %470, %478 : vector<1x128xf32>
    %480 = arith.mulf %476, %444 : vector<18x128xf32>
    %cst_386 = arith.constant dense<0.000000e+00> : vector<128xf32>
    %481 = vector.multi_reduction <add>, %480, %cst_386 [0] : vector<18x128xf32> to vector<128xf32>
    %482 = vector.shape_cast %481 : vector<128xf32> to vector<1x128xf32>
    %483 = arith.addf %474, %482 : vector<1x128xf32>
    %cst_387 = arith.constant 3.125000e-02 : f32
    %484 = vector.broadcast %cst_387 : f32 to vector<1x128xf32>
    %485 = arith.mulf %479, %484 : vector<1x128xf32>
    %cst_388 = arith.constant 3.125000e-02 : f32
    %486 = vector.broadcast %cst_388 : f32 to vector<1x128xf32>
    %487 = arith.mulf %483, %486 : vector<1x128xf32>
    %488 = arith.mulf %485, %485 : vector<1x128xf32>
    %489 = arith.subf %487, %488 : vector<1x128xf32>
    %cst_389 = arith.constant 0.000000e+00 : f32
    %490 = vector.broadcast %cst_389 : f32 to vector<1x128xf32>
    %491 = arith.maximumf %489, %490 : vector<1x128xf32>
    %cst_390 = arith.constant 9.99999974E-6 : f32
    %492 = vector.broadcast %cst_390 : f32 to vector<1x128xf32>
    %493 = arith.addf %491, %492 : vector<1x128xf32>
    %494 = math.rsqrt %493 : vector<1x128xf32>
    %c0_391 = arith.constant 0 : index
    %c0_392 = arith.constant 0 : index
    %495 = vector.load %arg21[%c0_391, %c0_392] : memref<1x128xf32, #tpu.memory_space<vmem>>, vector<1x128xf32>
    %c0_393 = arith.constant 0 : index
    %c0_394 = arith.constant 0 : index
    %496 = vector.load %arg22[%c0_393, %c0_394] : memref<1x128xf32, #tpu.memory_space<vmem>>, vector<1x128xf32>
    %497 = vector.broadcast %485 : vector<1x128xf32> to vector<18x128xf32>
    %498 = arith.subf %379, %497 : vector<18x128xf32>
    %499 = vector.broadcast %494 : vector<1x128xf32> to vector<18x128xf32>
    %500 = arith.mulf %498, %499 : vector<18x128xf32>
    %501 = vector.broadcast %495 : vector<1x128xf32> to vector<18x128xf32>
    %502 = arith.mulf %500, %501 : vector<18x128xf32>
    %503 = vector.broadcast %496 : vector<1x128xf32> to vector<18x128xf32>
    %504 = arith.addf %502, %503 : vector<18x128xf32>
    %cst_395 = arith.constant 0.000000e+00 : f32
    %505 = vector.broadcast %cst_395 : f32 to vector<18x128xf32>
    %506 = arith.maximumf %504, %505 : vector<18x128xf32>
    %507 = vector.broadcast %485 : vector<1x128xf32> to vector<18x128xf32>
    %508 = arith.subf %396, %507 : vector<18x128xf32>
    %509 = vector.broadcast %494 : vector<1x128xf32> to vector<18x128xf32>
    %510 = arith.mulf %508, %509 : vector<18x128xf32>
    %511 = vector.broadcast %495 : vector<1x128xf32> to vector<18x128xf32>
    %512 = arith.mulf %510, %511 : vector<18x128xf32>
    %513 = vector.broadcast %496 : vector<1x128xf32> to vector<18x128xf32>
    %514 = arith.addf %512, %513 : vector<18x128xf32>
    %cst_396 = arith.constant 0.000000e+00 : f32
    %515 = vector.broadcast %cst_396 : f32 to vector<18x128xf32>
    %516 = arith.maximumf %514, %515 : vector<18x128xf32>
    %517 = vector.broadcast %485 : vector<1x128xf32> to vector<18x128xf32>
    %518 = arith.subf %413, %517 : vector<18x128xf32>
    %519 = vector.broadcast %494 : vector<1x128xf32> to vector<18x128xf32>
    %520 = arith.mulf %518, %519 : vector<18x128xf32>
    %521 = vector.broadcast %495 : vector<1x128xf32> to vector<18x128xf32>
    %522 = arith.mulf %520, %521 : vector<18x128xf32>
    %523 = vector.broadcast %496 : vector<1x128xf32> to vector<18x128xf32>
    %524 = arith.addf %522, %523 : vector<18x128xf32>
    %cst_397 = arith.constant 0.000000e+00 : f32
    %525 = vector.broadcast %cst_397 : f32 to vector<18x128xf32>
    %526 = arith.maximumf %524, %525 : vector<18x128xf32>
    %527 = vector.broadcast %485 : vector<1x128xf32> to vector<18x128xf32>
    %528 = arith.subf %444, %527 : vector<18x128xf32>
    %529 = vector.broadcast %494 : vector<1x128xf32> to vector<18x128xf32>
    %530 = arith.mulf %528, %529 : vector<18x128xf32>
    %531 = vector.broadcast %495 : vector<1x128xf32> to vector<18x128xf32>
    %532 = arith.mulf %530, %531 : vector<18x128xf32>
    %533 = vector.broadcast %496 : vector<1x128xf32> to vector<18x128xf32>
    %534 = arith.addf %532, %533 : vector<18x128xf32>
    %cst_398 = arith.constant 0.000000e+00 : f32
    %535 = vector.broadcast %cst_398 : f32 to vector<18x128xf32>
    %536 = arith.maximumf %534, %535 : vector<18x128xf32>
    %537 = arith.truncf %506 : vector<18x128xf32> to vector<18x128xbf16>
    %538 = arith.truncf %516 : vector<18x128xf32> to vector<18x128xbf16>
    %539 = arith.truncf %526 : vector<18x128xf32> to vector<18x128xbf16>
    %540 = arith.truncf %536 : vector<18x128xf32> to vector<18x128xbf16>
    %cst_399 = arith.constant 0.000000e+00 : f32
    %541 = vector.broadcast %cst_399 : f32 to vector<56x128xf32>
    %c0_400 = arith.constant 0 : index
    %c0_401 = arith.constant 0 : index
    %c0_402 = arith.constant 0 : index
    %c0_403 = arith.constant 0 : index
    %542 = vector.load %arg30[%c0_400, %c0_401, %c0_402, %c0_403] : memref<1x4x56x18xbf16, #tpu.memory_space<vmem>>, vector<1x1x56x18xbf16>
    %543 = vector.shape_cast %542 : vector<1x1x56x18xbf16> to vector<56x18xbf16>
    %cst_404 = arith.constant dense<0.000000e+00> : vector<56x128xf32>
    %544 = tpu.matmul %543, %537, %cst_404 {dimension_numbers = #tpu.dot_dimension_numbers<[1], [0], [0], [1], [0, 0, 1, 1], [], []>} : vector<56x18xbf16>, vector<18x128xbf16>, vector<56x128xf32> -> vector<56x128xf32>
    %545 = arith.addf %541, %544 : vector<56x128xf32>
    %c0_405 = arith.constant 0 : index
    %c1_406 = arith.constant 1 : index
    %c0_407 = arith.constant 0 : index
    %c0_408 = arith.constant 0 : index
    %546 = vector.load %arg30[%c0_405, %c1_406, %c0_407, %c0_408] : memref<1x4x56x18xbf16, #tpu.memory_space<vmem>>, vector<1x1x56x18xbf16>
    %547 = vector.shape_cast %546 : vector<1x1x56x18xbf16> to vector<56x18xbf16>
    %cst_409 = arith.constant dense<0.000000e+00> : vector<56x128xf32>
    %548 = tpu.matmul %547, %538, %cst_409 {dimension_numbers = #tpu.dot_dimension_numbers<[1], [0], [0], [1], [0, 0, 1, 1], [], []>} : vector<56x18xbf16>, vector<18x128xbf16>, vector<56x128xf32> -> vector<56x128xf32>
    %549 = arith.addf %545, %548 : vector<56x128xf32>
    %c0_410 = arith.constant 0 : index
    %c2_411 = arith.constant 2 : index
    %c0_412 = arith.constant 0 : index
    %c0_413 = arith.constant 0 : index
    %550 = vector.load %arg30[%c0_410, %c2_411, %c0_412, %c0_413] : memref<1x4x56x18xbf16, #tpu.memory_space<vmem>>, vector<1x1x56x18xbf16>
    %551 = vector.shape_cast %550 : vector<1x1x56x18xbf16> to vector<56x18xbf16>
    %cst_414 = arith.constant dense<0.000000e+00> : vector<56x128xf32>
    %552 = tpu.matmul %551, %539, %cst_414 {dimension_numbers = #tpu.dot_dimension_numbers<[1], [0], [0], [1], [0, 0, 1, 1], [], []>} : vector<56x18xbf16>, vector<18x128xbf16>, vector<56x128xf32> -> vector<56x128xf32>
    %553 = arith.addf %549, %552 : vector<56x128xf32>
    %c0_415 = arith.constant 0 : index
    %c3_416 = arith.constant 3 : index
    %c0_417 = arith.constant 0 : index
    %c0_418 = arith.constant 0 : index
    %554 = vector.load %arg30[%c0_415, %c3_416, %c0_417, %c0_418] : memref<1x4x56x18xbf16, #tpu.memory_space<vmem>>, vector<1x1x56x18xbf16>
    %555 = vector.shape_cast %554 : vector<1x1x56x18xbf16> to vector<56x18xbf16>
    %cst_419 = arith.constant dense<0.000000e+00> : vector<56x128xf32>
    %556 = tpu.matmul %555, %540, %cst_419 {dimension_numbers = #tpu.dot_dimension_numbers<[1], [0], [0], [1], [0, 0, 1, 1], [], []>} : vector<56x18xbf16>, vector<18x128xbf16>, vector<56x128xf32> -> vector<56x128xf32>
    %557 = arith.addf %553, %556 : vector<56x128xf32>
    %c0_420 = arith.constant 0 : index
    %c0_421 = arith.constant 0 : index
    %c0_422 = arith.constant 0 : index
    %558 = vector.load %arg41[%c0_420, %c0_421, %c0_422] : memref<1x56x128xf32, #tpu.memory_space<vmem>>, vector<1x56x128xf32>
    %559 = vector.shape_cast %558 : vector<1x56x128xf32> to vector<56x128xf32>
    %560 = vector.shape_cast %557 : vector<56x128xf32> to vector<1x56x128xf32>
    tpu.vector_store %arg41[%c0_420, %c0_421, %c0_422], %560 {strides = array<i32>} : memref<1x56x128xf32, #tpu.memory_space<vmem>>, vector<1x56x128xf32>,
    %c0_423 = arith.constant 0 : index
    %c0_424 = arith.constant 0 : index
    %561 = vector.load %arg26[%c0_423, %c0_424] : memref<1x128xf32, #tpu.memory_space<vmem>>, vector<1x128xf32>
    %cst_425 = arith.constant 0.000000e+00 : f32
    %562 = vector.broadcast %cst_425 : f32 to vector<50x128xf32>
    %c0_426 = arith.constant 0 : index
    %c0_427 = arith.constant 0 : index
    %c0_428 = arith.constant 0 : index
    %563 = vector.load %arg41[%c0_426, %c0_427, %c0_428] : memref<1x56x128xf32, #tpu.memory_space<vmem>>, vector<1x50x128xf32>
    %564 = vector.shape_cast %563 : vector<1x50x128xf32> to vector<50x128xf32>
    %565 = arith.truncf %564 : vector<50x128xf32> to vector<50x128xbf16>
    %c4_429 = arith.constant 4 : index
    %c0_430 = arith.constant 0 : index
    %c0_431 = arith.constant 0 : index
    %566 = vector.load %arg25[%c4_429, %c0_430, %c0_431] : memref<9x128x128xbf16, #tpu.memory_space<vmem>>, vector<1x128x128xbf16>
    %567 = vector.shape_cast %566 : vector<1x128x128xbf16> to vector<128x128xbf16>
    %cst_432 = arith.constant dense<0.000000e+00> : vector<50x128xf32>
    %568 = tpu.matmul %565, %567, %cst_432 {dimension_numbers = #tpu.dot_dimension_numbers<[1], [0], [0], [1], [0, 0, 1, 1], [], []>} : vector<50x128xbf16>, vector<128x128xbf16>, vector<50x128xf32> -> vector<50x128xf32>
    %569 = arith.addf %562, %568 : vector<50x128xf32>
    %570 = vector.broadcast %561 : vector<1x128xf32> to vector<50x128xf32>
    %571 = arith.addf %569, %570 : vector<50x128xf32>
    %cst_433 = arith.constant 0.000000e+00 : f32
    %572 = vector.broadcast %cst_433 : f32 to vector<50x128xf32>
    %c0_434 = arith.constant 0 : index
    %c0_435 = arith.constant 0 : index
    %c0_436 = arith.constant 0 : index
    %573 = vector.load %arg41[%c0_434, %c0_435, %c0_436] : memref<1x56x128xf32, #tpu.memory_space<vmem>>, vector<1x50x128xf32>
    %574 = vector.shape_cast %573 : vector<1x50x128xf32> to vector<50x128xf32>
    %575 = arith.truncf %574 : vector<50x128xf32> to vector<50x128xbf16>
    %c5_437 = arith.constant 5 : index
    %c0_438 = arith.constant 0 : index
    %c0_439 = arith.constant 0 : index
    %576 = vector.load %arg25[%c5_437, %c0_438, %c0_439] : memref<9x128x128xbf16, #tpu.memory_space<vmem>>, vector<1x128x128xbf16>
    %577 = vector.shape_cast %576 : vector<1x128x128xbf16> to vector<128x128xbf16>
    %cst_440 = arith.constant dense<0.000000e+00> : vector<50x128xf32>
    %578 = tpu.matmul %575, %577, %cst_440 {dimension_numbers = #tpu.dot_dimension_numbers<[1], [0], [0], [1], [0, 0, 1, 1], [], []>} : vector<50x128xbf16>, vector<128x128xbf16>, vector<50x128xf32> -> vector<50x128xf32>
    %579 = arith.addf %572, %578 : vector<50x128xf32>
    %c0_441 = arith.constant 0 : index
    %c1_442 = arith.constant 1 : index
    %c0_443 = arith.constant 0 : index
    %580 = vector.load %arg41[%c0_441, %c1_442, %c0_443] : memref<1x56x128xf32, #tpu.memory_space<vmem>>, vector<1x50x128xf32>
    %581 = vector.shape_cast %580 : vector<1x50x128xf32> to vector<50x128xf32>
    %582 = arith.truncf %581 : vector<50x128xf32> to vector<50x128xbf16>
    %c3_444 = arith.constant 3 : index
    %c0_445 = arith.constant 0 : index
    %c0_446 = arith.constant 0 : index
    %583 = vector.load %arg25[%c3_444, %c0_445, %c0_446] : memref<9x128x128xbf16, #tpu.memory_space<vmem>>, vector<1x128x128xbf16>
    %584 = vector.shape_cast %583 : vector<1x128x128xbf16> to vector<128x128xbf16>
    %cst_447 = arith.constant dense<0.000000e+00> : vector<50x128xf32>
    %585 = tpu.matmul %582, %584, %cst_447 {dimension_numbers = #tpu.dot_dimension_numbers<[1], [0], [0], [1], [0, 0, 1, 1], [], []>} : vector<50x128xbf16>, vector<128x128xbf16>, vector<50x128xf32> -> vector<50x128xf32>
    %586 = arith.addf %579, %585 : vector<50x128xf32>
    %587 = vector.broadcast %561 : vector<1x128xf32> to vector<50x128xf32>
    %588 = arith.addf %586, %587 : vector<50x128xf32>
    %cst_448 = arith.constant 0.000000e+00 : f32
    %589 = vector.broadcast %cst_448 : f32 to vector<50x128xf32>
    %c0_449 = arith.constant 0 : index
    %c0_450 = arith.constant 0 : index
    %c0_451 = arith.constant 0 : index
    %590 = vector.load %arg41[%c0_449, %c0_450, %c0_451] : memref<1x56x128xf32, #tpu.memory_space<vmem>>, vector<1x50x128xf32>
    %591 = vector.shape_cast %590 : vector<1x50x128xf32> to vector<50x128xf32>
    %592 = arith.truncf %591 : vector<50x128xf32> to vector<50x128xbf16>
    %c7_452 = arith.constant 7 : index
    %c0_453 = arith.constant 0 : index
    %c0_454 = arith.constant 0 : index
    %593 = vector.load %arg25[%c7_452, %c0_453, %c0_454] : memref<9x128x128xbf16, #tpu.memory_space<vmem>>, vector<1x128x128xbf16>
    %594 = vector.shape_cast %593 : vector<1x128x128xbf16> to vector<128x128xbf16>
    %cst_455 = arith.constant dense<0.000000e+00> : vector<50x128xf32>
    %595 = tpu.matmul %592, %594, %cst_455 {dimension_numbers = #tpu.dot_dimension_numbers<[1], [0], [0], [1], [0, 0, 1, 1], [], []>} : vector<50x128xbf16>, vector<128x128xbf16>, vector<50x128xf32> -> vector<50x128xf32>
    %596 = arith.addf %589, %595 : vector<50x128xf32>
    %c0_456 = arith.constant 0 : index
    %c5_457 = arith.constant 5 : index
    %c0_458 = arith.constant 0 : index
    %597 = vector.load %arg41[%c0_456, %c5_457, %c0_458] : memref<1x56x128xf32, #tpu.memory_space<vmem>>, vector<1x50x128xf32>
    %598 = vector.shape_cast %597 : vector<1x50x128xf32> to vector<50x128xf32>
    %599 = arith.truncf %598 : vector<50x128xf32> to vector<50x128xbf16>
    %c1_459 = arith.constant 1 : index
    %c0_460 = arith.constant 0 : index
    %c0_461 = arith.constant 0 : index
    %600 = vector.load %arg25[%c1_459, %c0_460, %c0_461] : memref<9x128x128xbf16, #tpu.memory_space<vmem>>, vector<1x128x128xbf16>
    %601 = vector.shape_cast %600 : vector<1x128x128xbf16> to vector<128x128xbf16>
    %cst_462 = arith.constant dense<0.000000e+00> : vector<50x128xf32>
    %602 = tpu.matmul %599, %601, %cst_462 {dimension_numbers = #tpu.dot_dimension_numbers<[1], [0], [0], [1], [0, 0, 1, 1], [], []>} : vector<50x128xbf16>, vector<128x128xbf16>, vector<50x128xf32> -> vector<50x128xf32>
    %603 = arith.addf %596, %602 : vector<50x128xf32>
    %604 = vector.broadcast %561 : vector<1x128xf32> to vector<50x128xf32>
    %605 = arith.addf %603, %604 : vector<50x128xf32>
    %cst_463 = arith.constant 0.000000e+00 : f32
    %606 = vector.broadcast %cst_463 : f32 to vector<50x128xf32>
    %c0_464 = arith.constant 0 : index
    %c0_465 = arith.constant 0 : index
    %c0_466 = arith.constant 0 : index
    %607 = vector.load %arg41[%c0_464, %c0_465, %c0_466] : memref<1x56x128xf32, #tpu.memory_space<vmem>>, vector<1x50x128xf32>
    %608 = vector.shape_cast %607 : vector<1x50x128xf32> to vector<50x128xf32>
    %609 = arith.truncf %608 : vector<50x128xf32> to vector<50x128xbf16>
    %c8_467 = arith.constant 8 : index
    %c0_468 = arith.constant 0 : index
    %c0_469 = arith.constant 0 : index
    %610 = vector.load %arg25[%c8_467, %c0_468, %c0_469] : memref<9x128x128xbf16, #tpu.memory_space<vmem>>, vector<1x128x128xbf16>
    %611 = vector.shape_cast %610 : vector<1x128x128xbf16> to vector<128x128xbf16>
    %cst_470 = arith.constant dense<0.000000e+00> : vector<50x128xf32>
    %612 = tpu.matmul %609, %611, %cst_470 {dimension_numbers = #tpu.dot_dimension_numbers<[1], [0], [0], [1], [0, 0, 1, 1], [], []>} : vector<50x128xbf16>, vector<128x128xbf16>, vector<50x128xf32> -> vector<50x128xf32>
    %613 = arith.addf %606, %612 : vector<50x128xf32>
    %c0_471 = arith.constant 0 : index
    %c1_472 = arith.constant 1 : index
    %c0_473 = arith.constant 0 : index
    %614 = vector.load %arg41[%c0_471, %c1_472, %c0_473] : memref<1x56x128xf32, #tpu.memory_space<vmem>>, vector<1x50x128xf32>
    %615 = vector.shape_cast %614 : vector<1x50x128xf32> to vector<50x128xf32>
    %616 = arith.truncf %615 : vector<50x128xf32> to vector<50x128xbf16>
    %c6_474 = arith.constant 6 : index
    %c0_475 = arith.constant 0 : index
    %c0_476 = arith.constant 0 : index
    %617 = vector.load %arg25[%c6_474, %c0_475, %c0_476] : memref<9x128x128xbf16, #tpu.memory_space<vmem>>, vector<1x128x128xbf16>
    %618 = vector.shape_cast %617 : vector<1x128x128xbf16> to vector<128x128xbf16>
    %cst_477 = arith.constant dense<0.000000e+00> : vector<50x128xf32>
    %619 = tpu.matmul %616, %618, %cst_477 {dimension_numbers = #tpu.dot_dimension_numbers<[1], [0], [0], [1], [0, 0, 1, 1], [], []>} : vector<50x128xbf16>, vector<128x128xbf16>, vector<50x128xf32> -> vector<50x128xf32>
    %620 = arith.addf %613, %619 : vector<50x128xf32>
    %c0_478 = arith.constant 0 : index
    %c5_479 = arith.constant 5 : index
    %c0_480 = arith.constant 0 : index
    %621 = vector.load %arg41[%c0_478, %c5_479, %c0_480] : memref<1x56x128xf32, #tpu.memory_space<vmem>>, vector<1x50x128xf32>
    %622 = vector.shape_cast %621 : vector<1x50x128xf32> to vector<50x128xf32>
    %623 = arith.truncf %622 : vector<50x128xf32> to vector<50x128xbf16>
    %c2_481 = arith.constant 2 : index
    %c0_482 = arith.constant 0 : index
    %c0_483 = arith.constant 0 : index
    %624 = vector.load %arg25[%c2_481, %c0_482, %c0_483] : memref<9x128x128xbf16, #tpu.memory_space<vmem>>, vector<1x128x128xbf16>
    %625 = vector.shape_cast %624 : vector<1x128x128xbf16> to vector<128x128xbf16>
    %cst_484 = arith.constant dense<0.000000e+00> : vector<50x128xf32>
    %626 = tpu.matmul %623, %625, %cst_484 {dimension_numbers = #tpu.dot_dimension_numbers<[1], [0], [0], [1], [0, 0, 1, 1], [], []>} : vector<50x128xbf16>, vector<128x128xbf16>, vector<50x128xf32> -> vector<50x128xf32>
    %627 = arith.addf %620, %626 : vector<50x128xf32>
    %c0_485 = arith.constant 0 : index
    %c6_486 = arith.constant 6 : index
    %c0_487 = arith.constant 0 : index
    %628 = vector.load %arg41[%c0_485, %c6_486, %c0_487] : memref<1x56x128xf32, #tpu.memory_space<vmem>>, vector<1x50x128xf32>
    %629 = vector.shape_cast %628 : vector<1x50x128xf32> to vector<50x128xf32>
    %630 = arith.truncf %629 : vector<50x128xf32> to vector<50x128xbf16>
    %c0_488 = arith.constant 0 : index
    %c0_489 = arith.constant 0 : index
    %c0_490 = arith.constant 0 : index
    %631 = vector.load %arg25[%c0_488, %c0_489, %c0_490] : memref<9x128x128xbf16, #tpu.memory_space<vmem>>, vector<1x128x128xbf16>
    %632 = vector.shape_cast %631 : vector<1x128x128xbf16> to vector<128x128xbf16>
    %cst_491 = arith.constant dense<0.000000e+00> : vector<50x128xf32>
    %633 = tpu.matmul %630, %632, %cst_491 {dimension_numbers = #tpu.dot_dimension_numbers<[1], [0], [0], [1], [0, 0, 1, 1], [], []>} : vector<50x128xbf16>, vector<128x128xbf16>, vector<50x128xf32> -> vector<50x128xf32>
    %634 = arith.addf %627, %633 : vector<50x128xf32>
    %635 = vector.broadcast %561 : vector<1x128xf32> to vector<50x128xf32>
    %636 = arith.addf %634, %635 : vector<50x128xf32>
    %c0_492 = arith.constant 0 : index
    %c0_493 = arith.constant 0 : index
    %637 = vector.load %arg29[%c0_492, %c0_493] : memref<50x1xf32, #tpu.memory_space<vmem>>, vector<50x1xf32>
    %cst_494 = arith.constant 0.000000e+00 : f32
    %638 = vector.broadcast %cst_494 : f32 to vector<1x128xf32>
    %cst_495 = arith.constant 0.000000e+00 : f32
    %639 = vector.broadcast %cst_495 : f32 to vector<1x128xf32>
    %640 = vector.broadcast %637 : vector<50x1xf32> to vector<50x128xf32>
    %641 = arith.mulf %571, %640 : vector<50x128xf32>
    %cst_496 = arith.constant dense<0.000000e+00> : vector<128xf32>
    %642 = vector.multi_reduction <add>, %641, %cst_496 [0] : vector<50x128xf32> to vector<128xf32>
    %643 = vector.shape_cast %642 : vector<128xf32> to vector<1x128xf32>
    %644 = arith.addf %638, %643 : vector<1x128xf32>
    %645 = arith.mulf %641, %571 : vector<50x128xf32>
    %cst_497 = arith.constant dense<0.000000e+00> : vector<128xf32>
    %646 = vector.multi_reduction <add>, %645, %cst_497 [0] : vector<50x128xf32> to vector<128xf32>
    %647 = vector.shape_cast %646 : vector<128xf32> to vector<1x128xf32>
    %648 = arith.addf %639, %647 : vector<1x128xf32>
    %649 = vector.broadcast %637 : vector<50x1xf32> to vector<50x128xf32>
    %650 = arith.mulf %588, %649 : vector<50x128xf32>
    %cst_498 = arith.constant dense<0.000000e+00> : vector<128xf32>
    %651 = vector.multi_reduction <add>, %650, %cst_498 [0] : vector<50x128xf32> to vector<128xf32>
    %652 = vector.shape_cast %651 : vector<128xf32> to vector<1x128xf32>
    %653 = arith.addf %644, %652 : vector<1x128xf32>
    %654 = arith.mulf %650, %588 : vector<50x128xf32>
    %cst_499 = arith.constant dense<0.000000e+00> : vector<128xf32>
    %655 = vector.multi_reduction <add>, %654, %cst_499 [0] : vector<50x128xf32> to vector<128xf32>
    %656 = vector.shape_cast %655 : vector<128xf32> to vector<1x128xf32>
    %657 = arith.addf %648, %656 : vector<1x128xf32>
    %658 = vector.broadcast %637 : vector<50x1xf32> to vector<50x128xf32>
    %659 = arith.mulf %605, %658 : vector<50x128xf32>
    %cst_500 = arith.constant dense<0.000000e+00> : vector<128xf32>
    %660 = vector.multi_reduction <add>, %659, %cst_500 [0] : vector<50x128xf32> to vector<128xf32>
    %661 = vector.shape_cast %660 : vector<128xf32> to vector<1x128xf32>
    %662 = arith.addf %653, %661 : vector<1x128xf32>
    %663 = arith.mulf %659, %605 : vector<50x128xf32>
    %cst_501 = arith.constant dense<0.000000e+00> : vector<128xf32>
    %664 = vector.multi_reduction <add>, %663, %cst_501 [0] : vector<50x128xf32> to vector<128xf32>
    %665 = vector.shape_cast %664 : vector<128xf32> to vector<1x128xf32>
    %666 = arith.addf %657, %665 : vector<1x128xf32>
    %667 = vector.broadcast %637 : vector<50x1xf32> to vector<50x128xf32>
    %668 = arith.mulf %636, %667 : vector<50x128xf32>
    %cst_502 = arith.constant dense<0.000000e+00> : vector<128xf32>
    %669 = vector.multi_reduction <add>, %668, %cst_502 [0] : vector<50x128xf32> to vector<128xf32>
    %670 = vector.shape_cast %669 : vector<128xf32> to vector<1x128xf32>
    %671 = arith.addf %662, %670 : vector<1x128xf32>
    %672 = arith.mulf %668, %636 : vector<50x128xf32>
    %cst_503 = arith.constant dense<0.000000e+00> : vector<128xf32>
    %673 = vector.multi_reduction <add>, %672, %cst_503 [0] : vector<50x128xf32> to vector<128xf32>
    %674 = vector.shape_cast %673 : vector<128xf32> to vector<1x128xf32>
    %675 = arith.addf %666, %674 : vector<1x128xf32>
    %cst_504 = arith.constant 7.812500e-03 : f32
    %676 = vector.broadcast %cst_504 : f32 to vector<1x128xf32>
    %677 = arith.mulf %671, %676 : vector<1x128xf32>
    %cst_505 = arith.constant 7.812500e-03 : f32
    %678 = vector.broadcast %cst_505 : f32 to vector<1x128xf32>
    %679 = arith.mulf %675, %678 : vector<1x128xf32>
    %680 = arith.mulf %677, %677 : vector<1x128xf32>
    %681 = arith.subf %679, %680 : vector<1x128xf32>
    %cst_506 = arith.constant 0.000000e+00 : f32
    %682 = vector.broadcast %cst_506 : f32 to vector<1x128xf32>
    %683 = arith.maximumf %681, %682 : vector<1x128xf32>
    %cst_507 = arith.constant 9.99999974E-6 : f32
    %684 = vector.broadcast %cst_507 : f32 to vector<1x128xf32>
    %685 = arith.addf %683, %684 : vector<1x128xf32>
    %686 = math.rsqrt %685 : vector<1x128xf32>
    %c0_508 = arith.constant 0 : index
    %c0_509 = arith.constant 0 : index
    %687 = vector.load %arg27[%c0_508, %c0_509] : memref<1x128xf32, #tpu.memory_space<vmem>>, vector<1x128xf32>
    %c0_510 = arith.constant 0 : index
    %c0_511 = arith.constant 0 : index
    %688 = vector.load %arg28[%c0_510, %c0_511] : memref<1x128xf32, #tpu.memory_space<vmem>>, vector<1x128xf32>
    %689 = vector.broadcast %677 : vector<1x128xf32> to vector<50x128xf32>
    %690 = arith.subf %571, %689 : vector<50x128xf32>
    %691 = vector.broadcast %686 : vector<1x128xf32> to vector<50x128xf32>
    %692 = arith.mulf %690, %691 : vector<50x128xf32>
    %693 = vector.broadcast %687 : vector<1x128xf32> to vector<50x128xf32>
    %694 = arith.mulf %692, %693 : vector<50x128xf32>
    %695 = vector.broadcast %688 : vector<1x128xf32> to vector<50x128xf32>
    %696 = arith.addf %694, %695 : vector<50x128xf32>
    %cst_512 = arith.constant 0.000000e+00 : f32
    %697 = vector.broadcast %cst_512 : f32 to vector<50x128xf32>
    %698 = arith.maximumf %696, %697 : vector<50x128xf32>
    %699 = vector.broadcast %677 : vector<1x128xf32> to vector<50x128xf32>
    %700 = arith.subf %588, %699 : vector<50x128xf32>
    %701 = vector.broadcast %686 : vector<1x128xf32> to vector<50x128xf32>
    %702 = arith.mulf %700, %701 : vector<50x128xf32>
    %703 = vector.broadcast %687 : vector<1x128xf32> to vector<50x128xf32>
    %704 = arith.mulf %702, %703 : vector<50x128xf32>
    %705 = vector.broadcast %688 : vector<1x128xf32> to vector<50x128xf32>
    %706 = arith.addf %704, %705 : vector<50x128xf32>
    %cst_513 = arith.constant 0.000000e+00 : f32
    %707 = vector.broadcast %cst_513 : f32 to vector<50x128xf32>
    %708 = arith.maximumf %706, %707 : vector<50x128xf32>
    %709 = vector.broadcast %677 : vector<1x128xf32> to vector<50x128xf32>
    %710 = arith.subf %605, %709 : vector<50x128xf32>
    %711 = vector.broadcast %686 : vector<1x128xf32> to vector<50x128xf32>
    %712 = arith.mulf %710, %711 : vector<50x128xf32>
    %713 = vector.broadcast %687 : vector<1x128xf32> to vector<50x128xf32>
    %714 = arith.mulf %712, %713 : vector<50x128xf32>
    %715 = vector.broadcast %688 : vector<1x128xf32> to vector<50x128xf32>
    %716 = arith.addf %714, %715 : vector<50x128xf32>
    %cst_514 = arith.constant 0.000000e+00 : f32
    %717 = vector.broadcast %cst_514 : f32 to vector<50x128xf32>
    %718 = arith.maximumf %716, %717 : vector<50x128xf32>
    %719 = vector.broadcast %677 : vector<1x128xf32> to vector<50x128xf32>
    %720 = arith.subf %636, %719 : vector<50x128xf32>
    %721 = vector.broadcast %686 : vector<1x128xf32> to vector<50x128xf32>
    %722 = arith.mulf %720, %721 : vector<50x128xf32>
    %723 = vector.broadcast %687 : vector<1x128xf32> to vector<50x128xf32>
    %724 = arith.mulf %722, %723 : vector<50x128xf32>
    %725 = vector.broadcast %688 : vector<1x128xf32> to vector<50x128xf32>
    %726 = arith.addf %724, %725 : vector<50x128xf32>
    %cst_515 = arith.constant 0.000000e+00 : f32
    %727 = vector.broadcast %cst_515 : f32 to vector<50x128xf32>
    %728 = arith.maximumf %726, %727 : vector<50x128xf32>
    %729 = arith.truncf %698 : vector<50x128xf32> to vector<50x128xbf16>
    %730 = arith.truncf %708 : vector<50x128xf32> to vector<50x128xbf16>
    %731 = arith.truncf %718 : vector<50x128xf32> to vector<50x128xbf16>
    %732 = arith.truncf %728 : vector<50x128xf32> to vector<50x128xbf16>
    %cst_516 = arith.constant 0.000000e+00 : f32
    %733 = vector.broadcast %cst_516 : f32 to vector<176x128xf32>
    %c0_517 = arith.constant 0 : index
    %c0_518 = arith.constant 0 : index
    %c0_519 = arith.constant 0 : index
    %c0_520 = arith.constant 0 : index
    %734 = vector.load %arg33[%c0_517, %c0_518, %c0_519, %c0_520] : memref<1x4x176x50xbf16, #tpu.memory_space<vmem>>, vector<1x1x176x50xbf16>
    %735 = vector.shape_cast %734 : vector<1x1x176x50xbf16> to vector<176x50xbf16>
    %cst_521 = arith.constant dense<0.000000e+00> : vector<176x128xf32>
    %736 = tpu.matmul %735, %729, %cst_521 {dimension_numbers = #tpu.dot_dimension_numbers<[1], [0], [0], [1], [0, 0, 1, 1], [], []>} : vector<176x50xbf16>, vector<50x128xbf16>, vector<176x128xf32> -> vector<176x128xf32>
    %737 = arith.addf %733, %736 : vector<176x128xf32>
    %c0_522 = arith.constant 0 : index
    %c1_523 = arith.constant 1 : index
    %c0_524 = arith.constant 0 : index
    %c0_525 = arith.constant 0 : index
    %738 = vector.load %arg33[%c0_522, %c1_523, %c0_524, %c0_525] : memref<1x4x176x50xbf16, #tpu.memory_space<vmem>>, vector<1x1x176x50xbf16>
    %739 = vector.shape_cast %738 : vector<1x1x176x50xbf16> to vector<176x50xbf16>
    %cst_526 = arith.constant dense<0.000000e+00> : vector<176x128xf32>
    %740 = tpu.matmul %739, %730, %cst_526 {dimension_numbers = #tpu.dot_dimension_numbers<[1], [0], [0], [1], [0, 0, 1, 1], [], []>} : vector<176x50xbf16>, vector<50x128xbf16>, vector<176x128xf32> -> vector<176x128xf32>
    %741 = arith.addf %737, %740 : vector<176x128xf32>
    %c0_527 = arith.constant 0 : index
    %c2_528 = arith.constant 2 : index
    %c0_529 = arith.constant 0 : index
    %c0_530 = arith.constant 0 : index
    %742 = vector.load %arg33[%c0_527, %c2_528, %c0_529, %c0_530] : memref<1x4x176x50xbf16, #tpu.memory_space<vmem>>, vector<1x1x176x50xbf16>
    %743 = vector.shape_cast %742 : vector<1x1x176x50xbf16> to vector<176x50xbf16>
    %cst_531 = arith.constant dense<0.000000e+00> : vector<176x128xf32>
    %744 = tpu.matmul %743, %731, %cst_531 {dimension_numbers = #tpu.dot_dimension_numbers<[1], [0], [0], [1], [0, 0, 1, 1], [], []>} : vector<176x50xbf16>, vector<50x128xbf16>, vector<176x128xf32> -> vector<176x128xf32>
    %745 = arith.addf %741, %744 : vector<176x128xf32>
    %c0_532 = arith.constant 0 : index
    %c3_533 = arith.constant 3 : index
    %c0_534 = arith.constant 0 : index
    %c0_535 = arith.constant 0 : index
    %746 = vector.load %arg33[%c0_532, %c3_533, %c0_534, %c0_535] : memref<1x4x176x50xbf16, #tpu.memory_space<vmem>>, vector<1x1x176x50xbf16>
    %747 = vector.shape_cast %746 : vector<1x1x176x50xbf16> to vector<176x50xbf16>
    %cst_536 = arith.constant dense<0.000000e+00> : vector<176x128xf32>
    %748 = tpu.matmul %747, %732, %cst_536 {dimension_numbers = #tpu.dot_dimension_numbers<[1], [0], [0], [1], [0, 0, 1, 1], [], []>} : vector<176x50xbf16>, vector<50x128xbf16>, vector<176x128xf32> -> vector<176x128xf32>
    %749 = arith.addf %745, %748 : vector<176x128xf32>
    %c0_537 = arith.constant 0 : index
    %c0_538 = arith.constant 0 : index
    %c0_539 = arith.constant 0 : index
    %750 = vector.load %arg42[%c0_537, %c0_538, %c0_539] : memref<1x176x128xf32, #tpu.memory_space<vmem>>, vector<1x176x128xf32>
    %751 = vector.shape_cast %750 : vector<1x176x128xf32> to vector<176x128xf32>
    %752 = vector.shape_cast %749 : vector<176x128xf32> to vector<1x176x128xf32>
    tpu.vector_store %arg42[%c0_537, %c0_538, %c0_539], %752 {strides = array<i32>} : memref<1x176x128xf32, #tpu.memory_space<vmem>>, vector<1x176x128xf32>,
    %c0_540 = arith.constant 0 : index
    %c0_541 = arith.constant 0 : index
    %753 = vector.load %arg32[%c0_540, %c0_541] : memref<1x128xf32, #tpu.memory_space<vmem>>, vector<1x128xf32>
    %cst_542 = arith.constant 0.000000e+00 : f32
    %754 = vector.broadcast %cst_542 : f32 to vector<162x128xf32>
    %c0_543 = arith.constant 0 : index
    %c0_544 = arith.constant 0 : index
    %c0_545 = arith.constant 0 : index
    %755 = vector.load %arg42[%c0_543, %c0_544, %c0_545] : memref<1x176x128xf32, #tpu.memory_space<vmem>>, vector<1x162x128xf32>
    %756 = vector.shape_cast %755 : vector<1x162x128xf32> to vector<162x128xf32>
    %757 = arith.truncf %756 : vector<162x128xf32> to vector<162x128xbf16>
    %c4_546 = arith.constant 4 : index
    %c0_547 = arith.constant 0 : index
    %c0_548 = arith.constant 0 : index
    %758 = vector.load %arg31[%c4_546, %c0_547, %c0_548] : memref<9x128x128xbf16, #tpu.memory_space<vmem>>, vector<1x128x128xbf16>
    %759 = vector.shape_cast %758 : vector<1x128x128xbf16> to vector<128x128xbf16>
    %cst_549 = arith.constant dense<0.000000e+00> : vector<162x128xf32>
    %760 = tpu.matmul %757, %759, %cst_549 {dimension_numbers = #tpu.dot_dimension_numbers<[1], [0], [0], [1], [0, 0, 1, 1], [], []>} : vector<162x128xbf16>, vector<128x128xbf16>, vector<162x128xf32> -> vector<162x128xf32>
    %761 = arith.addf %754, %760 : vector<162x128xf32>
    %762 = vector.broadcast %753 : vector<1x128xf32> to vector<162x128xf32>
    %763 = arith.addf %761, %762 : vector<162x128xf32>
    %cst_550 = arith.constant 0.000000e+00 : f32
    %764 = vector.broadcast %cst_550 : f32 to vector<162x128xf32>
    %c0_551 = arith.constant 0 : index
    %c0_552 = arith.constant 0 : index
    %c0_553 = arith.constant 0 : index
    %765 = vector.load %arg42[%c0_551, %c0_552, %c0_553] : memref<1x176x128xf32, #tpu.memory_space<vmem>>, vector<1x162x128xf32>
    %766 = vector.shape_cast %765 : vector<1x162x128xf32> to vector<162x128xf32>
    %767 = arith.truncf %766 : vector<162x128xf32> to vector<162x128xbf16>
    %c5_554 = arith.constant 5 : index
    %c0_555 = arith.constant 0 : index
    %c0_556 = arith.constant 0 : index
    %768 = vector.load %arg31[%c5_554, %c0_555, %c0_556] : memref<9x128x128xbf16, #tpu.memory_space<vmem>>, vector<1x128x128xbf16>
    %769 = vector.shape_cast %768 : vector<1x128x128xbf16> to vector<128x128xbf16>
    %cst_557 = arith.constant dense<0.000000e+00> : vector<162x128xf32>
    %770 = tpu.matmul %767, %769, %cst_557 {dimension_numbers = #tpu.dot_dimension_numbers<[1], [0], [0], [1], [0, 0, 1, 1], [], []>} : vector<162x128xbf16>, vector<128x128xbf16>, vector<162x128xf32> -> vector<162x128xf32>
    %771 = arith.addf %764, %770 : vector<162x128xf32>
    %c0_558 = arith.constant 0 : index
    %c1_559 = arith.constant 1 : index
    %c0_560 = arith.constant 0 : index
    %772 = vector.load %arg42[%c0_558, %c1_559, %c0_560] : memref<1x176x128xf32, #tpu.memory_space<vmem>>, vector<1x162x128xf32>
    %773 = vector.shape_cast %772 : vector<1x162x128xf32> to vector<162x128xf32>
    %774 = arith.truncf %773 : vector<162x128xf32> to vector<162x128xbf16>
    %c3_561 = arith.constant 3 : index
    %c0_562 = arith.constant 0 : index
    %c0_563 = arith.constant 0 : index
    %775 = vector.load %arg31[%c3_561, %c0_562, %c0_563] : memref<9x128x128xbf16, #tpu.memory_space<vmem>>, vector<1x128x128xbf16>
    %776 = vector.shape_cast %775 : vector<1x128x128xbf16> to vector<128x128xbf16>
    %cst_564 = arith.constant dense<0.000000e+00> : vector<162x128xf32>
    %777 = tpu.matmul %774, %776, %cst_564 {dimension_numbers = #tpu.dot_dimension_numbers<[1], [0], [0], [1], [0, 0, 1, 1], [], []>} : vector<162x128xbf16>, vector<128x128xbf16>, vector<162x128xf32> -> vector<162x128xf32>
    %778 = arith.addf %771, %777 : vector<162x128xf32>
    %779 = vector.broadcast %753 : vector<1x128xf32> to vector<162x128xf32>
    %780 = arith.addf %778, %779 : vector<162x128xf32>
    %cst_565 = arith.constant 0.000000e+00 : f32
    %781 = vector.broadcast %cst_565 : f32 to vector<162x128xf32>
    %c0_566 = arith.constant 0 : index
    %c0_567 = arith.constant 0 : index
    %c0_568 = arith.constant 0 : index
    %782 = vector.load %arg42[%c0_566, %c0_567, %c0_568] : memref<1x176x128xf32, #tpu.memory_space<vmem>>, vector<1x162x128xf32>
    %783 = vector.shape_cast %782 : vector<1x162x128xf32> to vector<162x128xf32>
    %784 = arith.truncf %783 : vector<162x128xf32> to vector<162x128xbf16>
    %c7_569 = arith.constant 7 : index
    %c0_570 = arith.constant 0 : index
    %c0_571 = arith.constant 0 : index
    %785 = vector.load %arg31[%c7_569, %c0_570, %c0_571] : memref<9x128x128xbf16, #tpu.memory_space<vmem>>, vector<1x128x128xbf16>
    %786 = vector.shape_cast %785 : vector<1x128x128xbf16> to vector<128x128xbf16>
    %cst_572 = arith.constant dense<0.000000e+00> : vector<162x128xf32>
    %787 = tpu.matmul %784, %786, %cst_572 {dimension_numbers = #tpu.dot_dimension_numbers<[1], [0], [0], [1], [0, 0, 1, 1], [], []>} : vector<162x128xbf16>, vector<128x128xbf16>, vector<162x128xf32> -> vector<162x128xf32>
    %788 = arith.addf %781, %787 : vector<162x128xf32>
    %c0_573 = arith.constant 0 : index
    %c9_574 = arith.constant 9 : index
    %c0_575 = arith.constant 0 : index
    %789 = vector.load %arg42[%c0_573, %c9_574, %c0_575] : memref<1x176x128xf32, #tpu.memory_space<vmem>>, vector<1x162x128xf32>
    %790 = vector.shape_cast %789 : vector<1x162x128xf32> to vector<162x128xf32>
    %791 = arith.truncf %790 : vector<162x128xf32> to vector<162x128xbf16>
    %c1_576 = arith.constant 1 : index
    %c0_577 = arith.constant 0 : index
    %c0_578 = arith.constant 0 : index
    %792 = vector.load %arg31[%c1_576, %c0_577, %c0_578] : memref<9x128x128xbf16, #tpu.memory_space<vmem>>, vector<1x128x128xbf16>
    %793 = vector.shape_cast %792 : vector<1x128x128xbf16> to vector<128x128xbf16>
    %cst_579 = arith.constant dense<0.000000e+00> : vector<162x128xf32>
    %794 = tpu.matmul %791, %793, %cst_579 {dimension_numbers = #tpu.dot_dimension_numbers<[1], [0], [0], [1], [0, 0, 1, 1], [], []>} : vector<162x128xbf16>, vector<128x128xbf16>, vector<162x128xf32> -> vector<162x128xf32>
    %795 = arith.addf %788, %794 : vector<162x128xf32>
    %796 = vector.broadcast %753 : vector<1x128xf32> to vector<162x128xf32>
    %797 = arith.addf %795, %796 : vector<162x128xf32>
    %cst_580 = arith.constant 0.000000e+00 : f32
    %798 = vector.broadcast %cst_580 : f32 to vector<162x128xf32>
    %c0_581 = arith.constant 0 : index
    %c0_582 = arith.constant 0 : index
    %c0_583 = arith.constant 0 : index
    %799 = vector.load %arg42[%c0_581, %c0_582, %c0_583] : memref<1x176x128xf32, #tpu.memory_space<vmem>>, vector<1x162x128xf32>
    %800 = vector.shape_cast %799 : vector<1x162x128xf32> to vector<162x128xf32>
    %801 = arith.truncf %800 : vector<162x128xf32> to vector<162x128xbf16>
    %c8_584 = arith.constant 8 : index
    %c0_585 = arith.constant 0 : index
    %c0_586 = arith.constant 0 : index
    %802 = vector.load %arg31[%c8_584, %c0_585, %c0_586] : memref<9x128x128xbf16, #tpu.memory_space<vmem>>, vector<1x128x128xbf16>
    %803 = vector.shape_cast %802 : vector<1x128x128xbf16> to vector<128x128xbf16>
    %cst_587 = arith.constant dense<0.000000e+00> : vector<162x128xf32>
    %804 = tpu.matmul %801, %803, %cst_587 {dimension_numbers = #tpu.dot_dimension_numbers<[1], [0], [0], [1], [0, 0, 1, 1], [], []>} : vector<162x128xbf16>, vector<128x128xbf16>, vector<162x128xf32> -> vector<162x128xf32>
    %805 = arith.addf %798, %804 : vector<162x128xf32>
    %c0_588 = arith.constant 0 : index
    %c1_589 = arith.constant 1 : index
    %c0_590 = arith.constant 0 : index
    %806 = vector.load %arg42[%c0_588, %c1_589, %c0_590] : memref<1x176x128xf32, #tpu.memory_space<vmem>>, vector<1x162x128xf32>
    %807 = vector.shape_cast %806 : vector<1x162x128xf32> to vector<162x128xf32>
    %808 = arith.truncf %807 : vector<162x128xf32> to vector<162x128xbf16>
    %c6_591 = arith.constant 6 : index
    %c0_592 = arith.constant 0 : index
    %c0_593 = arith.constant 0 : index
    %809 = vector.load %arg31[%c6_591, %c0_592, %c0_593] : memref<9x128x128xbf16, #tpu.memory_space<vmem>>, vector<1x128x128xbf16>
    %810 = vector.shape_cast %809 : vector<1x128x128xbf16> to vector<128x128xbf16>
    %cst_594 = arith.constant dense<0.000000e+00> : vector<162x128xf32>
    %811 = tpu.matmul %808, %810, %cst_594 {dimension_numbers = #tpu.dot_dimension_numbers<[1], [0], [0], [1], [0, 0, 1, 1], [], []>} : vector<162x128xbf16>, vector<128x128xbf16>, vector<162x128xf32> -> vector<162x128xf32>
    %812 = arith.addf %805, %811 : vector<162x128xf32>
    %c0_595 = arith.constant 0 : index
    %c9_596 = arith.constant 9 : index
    %c0_597 = arith.constant 0 : index
    %813 = vector.load %arg42[%c0_595, %c9_596, %c0_597] : memref<1x176x128xf32, #tpu.memory_space<vmem>>, vector<1x162x128xf32>
    %814 = vector.shape_cast %813 : vector<1x162x128xf32> to vector<162x128xf32>
    %815 = arith.truncf %814 : vector<162x128xf32> to vector<162x128xbf16>
    %c2_598 = arith.constant 2 : index
    %c0_599 = arith.constant 0 : index
    %c0_600 = arith.constant 0 : index
    %816 = vector.load %arg31[%c2_598, %c0_599, %c0_600] : memref<9x128x128xbf16, #tpu.memory_space<vmem>>, vector<1x128x128xbf16>
    %817 = vector.shape_cast %816 : vector<1x128x128xbf16> to vector<128x128xbf16>
    %cst_601 = arith.constant dense<0.000000e+00> : vector<162x128xf32>
    %818 = tpu.matmul %815, %817, %cst_601 {dimension_numbers = #tpu.dot_dimension_numbers<[1], [0], [0], [1], [0, 0, 1, 1], [], []>} : vector<162x128xbf16>, vector<128x128xbf16>, vector<162x128xf32> -> vector<162x128xf32>
    %819 = arith.addf %812, %818 : vector<162x128xf32>
    %c0_602 = arith.constant 0 : index
    %c10_603 = arith.constant 10 : index
    %c0_604 = arith.constant 0 : index
    %820 = vector.load %arg42[%c0_602, %c10_603, %c0_604] : memref<1x176x128xf32, #tpu.memory_space<vmem>>, vector<1x162x128xf32>
    %821 = vector.shape_cast %820 : vector<1x162x128xf32> to vector<162x128xf32>
    %822 = arith.truncf %821 : vector<162x128xf32> to vector<162x128xbf16>
    %c0_605 = arith.constant 0 : index
    %c0_606 = arith.constant 0 : index
    %c0_607 = arith.constant 0 : index
    %823 = vector.load %arg31[%c0_605, %c0_606, %c0_607] : memref<9x128x128xbf16, #tpu.memory_space<vmem>>, vector<1x128x128xbf16>
    %824 = vector.shape_cast %823 : vector<1x128x128xbf16> to vector<128x128xbf16>
    %cst_608 = arith.constant dense<0.000000e+00> : vector<162x128xf32>
    %825 = tpu.matmul %822, %824, %cst_608 {dimension_numbers = #tpu.dot_dimension_numbers<[1], [0], [0], [1], [0, 0, 1, 1], [], []>} : vector<162x128xbf16>, vector<128x128xbf16>, vector<162x128xf32> -> vector<162x128xf32>
    %826 = arith.addf %819, %825 : vector<162x128xf32>
    %827 = vector.broadcast %753 : vector<1x128xf32> to vector<162x128xf32>
    %828 = arith.addf %826, %827 : vector<162x128xf32>
    %829 = math.tanh %763 : vector<162x128xf32>
    %830 = math.tanh %780 : vector<162x128xf32>
    %831 = math.tanh %797 : vector<162x128xf32>
    %832 = math.tanh %828 : vector<162x128xf32>
    %c0_609 = arith.constant 0 : index
    %c0_610 = arith.constant 0 : index
    %833 = vector.load %arg34[%c0_609, %c0_610] : memref<162x128xf32, #tpu.memory_space<vmem>>, vector<162x128xf32>
    tpu.vector_store %arg34[%c0_609, %c0_610], %829 {strides = array<i32>} : memref<162x128xf32, #tpu.memory_space<vmem>>, vector<162x128xf32>,
    %c0_611 = arith.constant 0 : index
    %c0_612 = arith.constant 0 : index
    %834 = vector.load %arg35[%c0_611, %c0_612] : memref<162x128xf32, #tpu.memory_space<vmem>>, vector<162x128xf32>
    tpu.vector_store %arg35[%c0_611, %c0_612], %830 {strides = array<i32>} : memref<162x128xf32, #tpu.memory_space<vmem>>, vector<162x128xf32>,
    %c0_613 = arith.constant 0 : index
    %c0_614 = arith.constant 0 : index
    %835 = vector.load %arg36[%c0_613, %c0_614] : memref<162x128xf32, #tpu.memory_space<vmem>>, vector<162x128xf32>
    tpu.vector_store %arg36[%c0_613, %c0_614], %831 {strides = array<i32>} : memref<162x128xf32, #tpu.memory_space<vmem>>, vector<162x128xf32>,
    %c0_615 = arith.constant 0 : index
    %c0_616 = arith.constant 0 : index
    %836 = vector.load %arg37[%c0_615, %c0_616] : memref<162x128xf32, #tpu.memory_space<vmem>>, vector<162x128xf32>
    tpu.vector_store %arg37[%c0_615, %c0_616], %832 {strides = array<i32>} : memref<162x128xf32, #tpu.memory_space<vmem>>, vector<162x128xf32>,
    return
  }
  func.func @transform_0(%arg0: i32) -> (i32, i32, i32) {
    %c0_i32 = arith.constant 0 : i32
    %c0_i32_0 = arith.constant 0 : i32
    %c0_i32_1 = arith.constant 0 : i32
    %c0_i32_2 = arith.constant 0 : i32
    return %c0_i32, %c0_i32_0, %c0_i32_1 : i32, i32, i32
  }
  func.func @transform_1(%arg0: i32) -> (i32, i32, i32) {
    %c0_i32 = arith.constant 0 : i32
    %c0_i32_0 = arith.constant 0 : i32
    %c0_i32_1 = arith.constant 0 : i32
    %c0_i32_2 = arith.constant 0 : i32
    return %c0_i32, %c0_i32_0, %c0_i32_1 : i32, i32, i32
  }
  func.func @transform_2(%arg0: i32) -> (i32, i32) {
    %c0_i32 = arith.constant 0 : i32
    %c0_i32_0 = arith.constant 0 : i32
    %c0_i32_1 = arith.constant 0 : i32
    return %c0_i32, %c0_i32_0 : i32, i32
  }
  func.func @transform_3(%arg0: i32) -> (i32, i32) {
    %c0_i32 = arith.constant 0 : i32
    %c0_i32_0 = arith.constant 0 : i32
    %c0_i32_1 = arith.constant 0 : i32
    return %c0_i32, %c0_i32_0 : i32, i32
  }
  func.func @transform_4(%arg0: i32) -> (i32, i32) {
    %c0_i32 = arith.constant 0 : i32
    %c0_i32_0 = arith.constant 0 : i32
    %c0_i32_1 = arith.constant 0 : i32
    return %c0_i32, %c0_i32_0 : i32, i32
  }
  func.func @transform_5(%arg0: i32) -> (i32, i32) {
    %c0_i32 = arith.constant 0 : i32
    %c0_i32_0 = arith.constant 0 : i32
    %c0_i32_1 = arith.constant 0 : i32
    return %c0_i32, %c0_i32_0 : i32, i32
  }
  func.func @transform_6(%arg0: i32) -> (i32, i32, i32) {
    %c0_i32 = arith.constant 0 : i32
    %c0_i32_0 = arith.constant 0 : i32
    %c0_i32_1 = arith.constant 0 : i32
    %c0_i32_2 = arith.constant 0 : i32
    return %c0_i32, %c0_i32_0, %c0_i32_1 : i32, i32, i32
  }
  func.func @transform_7(%arg0: i32) -> (i32, i32) {
    %c0_i32 = arith.constant 0 : i32
    %c0_i32_0 = arith.constant 0 : i32
    %c0_i32_1 = arith.constant 0 : i32
    return %c0_i32, %c0_i32_0 : i32, i32
  }
  func.func @transform_8(%arg0: i32) -> (i32, i32) {
    %c0_i32 = arith.constant 0 : i32
    %c0_i32_0 = arith.constant 0 : i32
    %c0_i32_1 = arith.constant 0 : i32
    return %c0_i32, %c0_i32_0 : i32, i32
  }
  func.func @transform_9(%arg0: i32) -> (i32, i32) {
    %c0_i32 = arith.constant 0 : i32
    %c0_i32_0 = arith.constant 0 : i32
    %c0_i32_1 = arith.constant 0 : i32
    return %c0_i32, %c0_i32_0 : i32, i32
  }
  func.func @transform_10(%arg0: i32) -> (i32, i32) {
    %c0_i32 = arith.constant 0 : i32
    %c0_i32_0 = arith.constant 0 : i32
    %c0_i32_1 = arith.constant 0 : i32
    return %c0_i32, %c0_i32_0 : i32, i32
  }
  func.func @transform_11(%arg0: i32) -> (i32, i32, i32, i32) {
    %c0_i32 = arith.constant 0 : i32
    %c0_i32_0 = arith.constant 0 : i32
    %c0_i32_1 = arith.constant 0 : i32
    %c0_i32_2 = arith.constant 0 : i32
    %c0_i32_3 = arith.constant 0 : i32
    return %c0_i32, %c0_i32_0, %c0_i32_1, %c0_i32_2 : i32, i32, i32, i32
  }
  func.func @transform_12(%arg0: i32) -> (i32, i32, i32) {
    %c0_i32 = arith.constant 0 : i32
    %c0_i32_0 = arith.constant 0 : i32
    %c0_i32_1 = arith.constant 0 : i32
    %c0_i32_2 = arith.constant 0 : i32
    return %c0_i32, %c0_i32_0, %c0_i32_1 : i32, i32, i32
  }
  func.func @transform_13(%arg0: i32) -> (i32, i32) {
    %c0_i32 = arith.constant 0 : i32
    %c0_i32_0 = arith.constant 0 : i32
    %c0_i32_1 = arith.constant 0 : i32
    return %c0_i32, %c0_i32_0 : i32, i32
  }
  func.func @transform_14(%arg0: i32) -> (i32, i32) {
    %c0_i32 = arith.constant 0 : i32
    %c0_i32_0 = arith.constant 0 : i32
    %c0_i32_1 = arith.constant 0 : i32
    return %c0_i32, %c0_i32_0 : i32, i32
  }
  func.func @transform_15(%arg0: i32) -> (i32, i32) {
    %c0_i32 = arith.constant 0 : i32
    %c0_i32_0 = arith.constant 0 : i32
    %c0_i32_1 = arith.constant 0 : i32
    return %c0_i32, %c0_i32_0 : i32, i32
  }
  func.func @transform_16(%arg0: i32) -> (i32, i32) {
    %c0_i32 = arith.constant 0 : i32
    %c0_i32_0 = arith.constant 0 : i32
    %c0_i32_1 = arith.constant 0 : i32
    return %c0_i32, %c0_i32_0 : i32, i32
  }
  func.func @transform_17(%arg0: i32) -> (i32, i32, i32, i32) {
    %c0_i32 = arith.constant 0 : i32
    %c0_i32_0 = arith.constant 0 : i32
    %c0_i32_1 = arith.constant 0 : i32
    %c0_i32_2 = arith.constant 0 : i32
    %c0_i32_3 = arith.constant 0 : i32
    return %c0_i32, %c0_i32_0, %c0_i32_1, %c0_i32_2 : i32, i32, i32, i32
  }
  func.func @transform_18(%arg0: i32) -> (i32, i32, i32) {
    %c0_i32 = arith.constant 0 : i32
    %c0_i32_0 = arith.constant 0 : i32
    %c0_i32_1 = arith.constant 0 : i32
    %c0_i32_2 = arith.constant 0 : i32
    return %c0_i32, %c0_i32_0, %c0_i32_1 : i32, i32, i32
  }
  func.func @transform_19(%arg0: i32) -> (i32, i32) {
    %c0_i32 = arith.constant 0 : i32
    %c0_i32_0 = arith.constant 0 : i32
    %c0_i32_1 = arith.constant 0 : i32
    return %c0_i32, %c0_i32_0 : i32, i32
  }
  func.func @transform_20(%arg0: i32) -> (i32, i32) {
    %c0_i32 = arith.constant 0 : i32
    %c0_i32_0 = arith.constant 0 : i32
    %c0_i32_1 = arith.constant 0 : i32
    return %c0_i32, %c0_i32_0 : i32, i32
  }
  func.func @transform_21(%arg0: i32) -> (i32, i32) {
    %c0_i32 = arith.constant 0 : i32
    %c0_i32_0 = arith.constant 0 : i32
    %c0_i32_1 = arith.constant 0 : i32
    return %c0_i32, %c0_i32_0 : i32, i32
  }
  func.func @transform_22(%arg0: i32) -> (i32, i32) {
    %c0_i32 = arith.constant 0 : i32
    %c0_i32_0 = arith.constant 0 : i32
    %c0_i32_1 = arith.constant 0 : i32
    return %c0_i32, %c0_i32_0 : i32, i32
  }
  func.func @transform_23(%arg0: i32) -> (i32, i32, i32, i32) {
    %c0_i32 = arith.constant 0 : i32
    %c0_i32_0 = arith.constant 0 : i32
    %c0_i32_1 = arith.constant 0 : i32
    %c0_i32_2 = arith.constant 0 : i32
    %c0_i32_3 = arith.constant 0 : i32
    return %c0_i32, %c0_i32_0, %c0_i32_1, %c0_i32_2 : i32, i32, i32, i32
  }
  func.func @transform_24(%arg0: i32) -> (i32, i32, i32) {
    %c0_i32 = arith.constant 0 : i32
    %c0_i32_0 = arith.constant 0 : i32
    %c0_i32_1 = arith.constant 0 : i32
    %c0_i32_2 = arith.constant 0 : i32
    return %c0_i32, %c0_i32_0, %c0_i32_1 : i32, i32, i32
  }
  func.func @transform_25(%arg0: i32) -> (i32, i32) {
    %c0_i32 = arith.constant 0 : i32
    %c0_i32_0 = arith.constant 0 : i32
    %c0_i32_1 = arith.constant 0 : i32
    return %c0_i32, %c0_i32_0 : i32, i32
  }
  func.func @transform_26(%arg0: i32) -> (i32, i32) {
    %c0_i32 = arith.constant 0 : i32
    %c0_i32_0 = arith.constant 0 : i32
    %c0_i32_1 = arith.constant 0 : i32
    return %c0_i32, %c0_i32_0 : i32, i32
  }
  func.func @transform_27(%arg0: i32) -> (i32, i32) {
    %c0_i32 = arith.constant 0 : i32
    %c0_i32_0 = arith.constant 0 : i32
    %c0_i32_1 = arith.constant 0 : i32
    return %c0_i32, %c0_i32_0 : i32, i32
  }
  func.func @transform_28(%arg0: i32) -> (i32, i32) {
    %c0_i32 = arith.constant 0 : i32
    %c0_i32_0 = arith.constant 0 : i32
    %c0_i32_1 = arith.constant 0 : i32
    return %c0_i32, %c0_i32_0 : i32, i32
  }
  func.func @transform_29(%arg0: i32) -> (i32, i32, i32, i32) {
    %c0_i32 = arith.constant 0 : i32
    %c0_i32_0 = arith.constant 0 : i32
    %c0_i32_1 = arith.constant 0 : i32
    %c0_i32_2 = arith.constant 0 : i32
    %c0_i32_3 = arith.constant 0 : i32
    return %c0_i32, %c0_i32_0, %c0_i32_1, %c0_i32_2 : i32, i32, i32, i32
  }
  func.func @transform_30(%arg0: i32) -> (i32, i32, i32) {
    %c0_i32 = arith.constant 0 : i32
    %c0_i32_0 = arith.constant 0 : i32
    %c0_i32_1 = arith.constant 0 : i32
    %c0_i32_2 = arith.constant 0 : i32
    return %c0_i32, %c0_i32_0, %c0_i32_1 : i32, i32, i32
  }
  func.func @transform_31(%arg0: i32) -> (i32, i32) {
    %c0_i32 = arith.constant 0 : i32
    %c0_i32_0 = arith.constant 0 : i32
    %c0_i32_1 = arith.constant 0 : i32
    return %c0_i32, %c0_i32_0 : i32, i32
  }
  func.func @transform_32(%arg0: i32) -> (i32, i32, i32, i32) {
    %c0_i32 = arith.constant 0 : i32
    %c0_i32_0 = arith.constant 0 : i32
    %c0_i32_1 = arith.constant 0 : i32
    %c0_i32_2 = arith.constant 0 : i32
    %c0_i32_3 = arith.constant 0 : i32
    return %c0_i32, %c0_i32_0, %c0_i32_1, %c0_i32_2 : i32, i32, i32, i32
  }
  func.func @transform_33(%arg0: i32) -> (i32, i32) {
    %c0_i32 = arith.constant 0 : i32
    %c0_i32_0 = arith.constant 0 : i32
    %c0_i32_1 = arith.constant 0 : i32
    return %c0_i32, %c0_i32_0 : i32, i32
  }
  func.func @transform_34(%arg0: i32) -> (i32, i32) {
    %c0_i32 = arith.constant 0 : i32
    %c0_i32_0 = arith.constant 0 : i32
    %c0_i32_1 = arith.constant 0 : i32
    return %c0_i32, %c0_i32_0 : i32, i32
  }
  func.func @transform_35(%arg0: i32) -> (i32, i32) {
    %c0_i32 = arith.constant 0 : i32
    %c0_i32_0 = arith.constant 0 : i32
    %c0_i32_1 = arith.constant 0 : i32
    return %c0_i32, %c0_i32_0 : i32, i32
  }
  func.func @transform_36(%arg0: i32) -> (i32, i32) {
    %c0_i32 = arith.constant 0 : i32
    %c0_i32_0 = arith.constant 0 : i32
    %c0_i32_1 = arith.constant 0 : i32
    return %c0_i32, %c0_i32_0 : i32, i32
  }
}

</mosaic_0001>

<llo_original>
// kernel: _lambda_.1
$region0: #{_lambda_.1}
  #allocation0 [shape = 'u32[]', space=smem, size = 0x4, offset = 0x4, fixed_abs, tag = 'smem constant byte address 0x4 - core index']
  #allocation1 [shape = 'u32[72,128]{1,0:T(1,128)}', space=vmem, size = 0x9000, scoped, tag = 'internal scratch']
  #allocation2 [shape = 'f32[4,56,128]{2,1,0:T(8,128)}', space=vmem, size = 0x1c000, scoped, tag = 'scratch operand']
  #allocation3 [shape = 'f32[4,24,128]{2,1,0:T(8,128)}', space=vmem, size = 0xc000, scoped, tag = 'scratch operand']
  #allocation4 [shape = 'f32[1,24,128]{2,1,0:T(8,128)}', space=vmem, size = 0x3000, scoped, tag = 'scratch operand']
  #allocation5 [shape = 'f32[1,56,128]{2,1,0:T(8,128)}', space=vmem, size = 0x7000, scoped, tag = 'scratch operand']
  #allocation6 [shape = 'f32[1,176,128]{2,1,0:T(8,128)}', space=vmem, size = 0x16000, scoped, tag = 'scratch operand']
  %s0 = inlined_call_operand.smem [shape: u32[37], index: -1, kind: input, shape index: {}]
  %s1 = sld [smem:[%s0]]
  %s2 = scalar_lea.smem %s0, 1
  %s3 = sld [smem:[%s2]]
  %s4 = scalar_lea.smem %s0, 2
  %s5 = sld [smem:[%s4]]
  %s6 = scalar_lea.smem %s0, 3
  %s7 = sld [smem:[%s6]]
  %s8 = scalar_lea.smem %s0, 4
  %s9 = sld [smem:[%s8]]
  %s10 = scalar_lea.smem %s0, 5
  %s11 = sld [smem:[%s10]]
  %s12 = scalar_lea.smem %s0, 6
  %s13 = sld [smem:[%s12]]
  %s14 = scalar_lea.smem %s0, 7
  %s15 = sld [smem:[%s14]]
  %s16 = scalar_lea.smem %s0, 8
  %s17 = sld [smem:[%s16]]
  %s18 = scalar_lea.smem %s0, 9
  %s19 = sld [smem:[%s18]]
  %s20 = scalar_lea.smem %s0, 10
  %s21 = sld [smem:[%s20]]
  %s22 = scalar_lea.smem %s0, 11
  %s23 = sld [smem:[%s22]]
  %s24 = scalar_lea.smem %s0, 12
  %s25 = sld [smem:[%s24]]
  %s26 = scalar_lea.smem %s0, 13
  %s27 = sld [smem:[%s26]]
  %s28 = scalar_lea.smem %s0, 14
  %s29 = sld [smem:[%s28]]
  %s30 = scalar_lea.smem %s0, 15
  %s31 = sld [smem:[%s30]]
  %s32 = scalar_lea.smem %s0, 16
  %s33 = sld [smem:[%s32]]
  %s34 = scalar_lea.smem %s0, 17
  %s35 = sld [smem:[%s34]]
  %s36 = scalar_lea.smem %s0, 18
  %s37 = sld [smem:[%s36]]
  %s38 = scalar_lea.smem %s0, 19
  %s39 = sld [smem:[%s38]]
  %s40 = scalar_lea.smem %s0, 20
  %s41 = sld [smem:[%s40]]
  %s42 = scalar_lea.smem %s0, 21
  %s43 = sld [smem:[%s42]]
  %s44 = scalar_lea.smem %s0, 22
  %s45 = sld [smem:[%s44]]
  %s46 = scalar_lea.smem %s0, 23
  %s47 = sld [smem:[%s46]]
  %s48 = scalar_lea.smem %s0, 24
  %s49 = sld [smem:[%s48]]
  %s50 = scalar_lea.smem %s0, 25
  %s51 = sld [smem:[%s50]]
  %s52 = scalar_lea.smem %s0, 26
  %s53 = sld [smem:[%s52]]
  %s54 = scalar_lea.smem %s0, 27
  %s55 = sld [smem:[%s54]]
  %s56 = scalar_lea.smem %s0, 28
  %s57 = sld [smem:[%s56]]
  %s58 = scalar_lea.smem %s0, 29
  %s59 = sld [smem:[%s58]]
  %s60 = scalar_lea.smem %s0, 30
  %s61 = sld [smem:[%s60]]
  %s62 = scalar_lea.smem %s0, 31
  %s63 = sld [smem:[%s62]]
  %s64 = scalar_lea.smem %s0, 32
  %s65 = sld [smem:[%s64]]
  %s66 = scalar_lea.smem %s0, 33
  %s67 = sld [smem:[%s66]]
  %s68 = scalar_lea.smem %s0, 34
  %s69 = sld [smem:[%s68]]
  %s70 = scalar_lea.smem %s0, 35
  %s71 = sld [smem:[%s70]]
  %s72 = scalar_lea.smem %s0, 36
  %s73 = sld [smem:[%s72]]
  %74 = xla_tuple %s67, %s69, %s71, %s73
  %s75 = sld [smem:[#allocation0]]
  $region166: #{_lambda_.1} parent=0
    _
  %s77 = ssub.s32 1, %s75
  %s78 = scalar_select 0, %s77, %s75
  // Predicated region
  $region2: #{_lambda_.1} parent=0 // pred_check
    _
  $region3: #{_lambda_.1} parent=0 // pred_check_branch
    %80 = sbr.rel (0) target = $region5
  $region4: #{_lambda_.1} parent=0 // pred_region
    _
  $region5: #{_lambda_.1} parent=0 // pred_fallthru
    _
  // Predicated region
  $region6: #{_lambda_.1} parent=0 // pred_check
    _
  $region7: #{_lambda_.1} parent=0 // pred_check_branch
    %82 = sbr.rel (0) target = $region9
  $region8: #{_lambda_.1} parent=0 // pred_region
    _
  $region9: #{_lambda_.1} parent=0 // pred_fallthru
    _
  // Predicated region
  $region10: #{_lambda_.1} parent=0 // pred_check
    _
  $region11: #{_lambda_.1} parent=0 // pred_check_branch
    %84 = sbr.rel (0) target = $region13
  $region12: #{_lambda_.1} parent=0 // pred_region
    _
  $region13: #{_lambda_.1} parent=0 // pred_fallthru
    _
  // Predicated region
  $region14: #{_lambda_.1} parent=0 // pred_check
    _
  $region15: #{_lambda_.1} parent=0 // pred_check_branch
    %86 = sbr.rel (0) target = $region17
  $region16: #{_lambda_.1} parent=0 // pred_region
    _
  $region17: #{_lambda_.1} parent=0 // pred_fallthru
    _
  // Predicated region
  $region18: #{_lambda_.1} parent=0 // pred_check
    _
  $region19: #{_lambda_.1} parent=0 // pred_check_branch
    %88 = sbr.rel (0) target = $region21
  $region20: #{_lambda_.1} parent=0 // pred_region
    _
  $region21: #{_lambda_.1} parent=0 // pred_fallthru
    _
  // Predicated region
  $region22: #{_lambda_.1} parent=0 // pred_check
    _
  $region23: #{_lambda_.1} parent=0 // pred_check_branch
    %90 = sbr.rel (0) target = $region25
  $region24: #{_lambda_.1} parent=0 // pred_region
    _
  $region25: #{_lambda_.1} parent=0 // pred_fallthru
    _
  // Predicated region
  $region26: #{_lambda_.1} parent=0 // pred_check
    _
  $region27: #{_lambda_.1} parent=0 // pred_check_branch
    %92 = sbr.rel (0) target = $region29
  $region28: #{_lambda_.1} parent=0 // pred_region
    _
  $region29: #{_lambda_.1} parent=0 // pred_fallthru
    _
  // Predicated region
  $region30: #{_lambda_.1} parent=0 // pred_check
    _
  $region31: #{_lambda_.1} parent=0 // pred_check_branch
    %94 = sbr.rel (0) target = $region33
  $region32: #{_lambda_.1} parent=0 // pred_region
    _
  $region33: #{_lambda_.1} parent=0 // pred_fallthru
    _
  // Predicated region
  $region34: #{_lambda_.1} parent=0 // pred_check
    _
  $region35: #{_lambda_.1} parent=0 // pred_check_branch
    %96 = sbr.rel (0) target = $region37
  $region36: #{_lambda_.1} parent=0 // pred_region
    _
  $region37: #{_lambda_.1} parent=0 // pred_fallthru
    _
  // Predicated region
  $region38: #{_lambda_.1} parent=0 // pred_check
    _
  $region39: #{_lambda_.1} parent=0 // pred_check_branch
    %98 = sbr.rel (0) target = $region41
  $region40: #{_lambda_.1} parent=0 // pred_region
    _
  $region41: #{_lambda_.1} parent=0 // pred_fallthru
    _
  // Predicated region
  $region42: #{_lambda_.1} parent=0 // pred_check
    _
  $region43: #{_lambda_.1} parent=0 // pred_check_branch
    %100 = sbr.rel (0) target = $region45
  $region44: #{_lambda_.1} parent=0 // pred_region
    _
  $region45: #{_lambda_.1} parent=0 // pred_fallthru
    _
  // Predicated region
  $region46: #{_lambda_.1} parent=0 // pred_check
    _
  $region47: #{_lambda_.1} parent=0 // pred_check_branch
    %102 = sbr.rel (0) target = $region49
  $region48: #{_lambda_.1} parent=0 // pred_region
    _
  $region49: #{_lambda_.1} parent=0 // pred_fallthru
    _
  // Predicated region
  $region50: #{_lambda_.1} parent=0 // pred_check
    _
  $region51: #{_lambda_.1} parent=0 // pred_check_branch
    %104 = sbr.rel (0) target = $region53
  $region52: #{_lambda_.1} parent=0 // pred_region
    _
  $region53: #{_lambda_.1} parent=0 // pred_fallthru
    _
  // Predicated region
  $region54: #{_lambda_.1} parent=0 // pred_check
    _
  $region55: #{_lambda_.1} parent=0 // pred_check_branch
    %106 = sbr.rel (0) target = $region57
  $region56: #{_lambda_.1} parent=0 // pred_region
    _
  $region57: #{_lambda_.1} parent=0 // pred_fallthru
    _
  // Predicated region
  $region58: #{_lambda_.1} parent=0 // pred_check
    _
  $region59: #{_lambda_.1} parent=0 // pred_check_branch
    %108 = sbr.rel (0) target = $region61
  $region60: #{_lambda_.1} parent=0 // pred_region
    _
  $region61: #{_lambda_.1} parent=0 // pred_fallthru
    _
  // Predicated region
  $region62: #{_lambda_.1} parent=0 // pred_check
    _
  $region63: #{_lambda_.1} parent=0 // pred_check_branch
    %110 = sbr.rel (0) target = $region65
  $region64: #{_lambda_.1} parent=0 // pred_region
    _
  $region65: #{_lambda_.1} parent=0 // pred_fallthru
    _
  // Predicated region
  $region66: #{_lambda_.1} parent=0 // pred_check
    _
  $region67: #{_lambda_.1} parent=0 // pred_check_branch
    %112 = sbr.rel (0) target = $region69
  $region68: #{_lambda_.1} parent=0 // pred_region
    _
  $region69: #{_lambda_.1} parent=0 // pred_fallthru
    _
  // Predicated region
  $region70: #{_lambda_.1} parent=0 // pred_check
    _
  $region71: #{_lambda_.1} parent=0 // pred_check_branch
    %114 = sbr.rel (0) target = $region73
  $region72: #{_lambda_.1} parent=0 // pred_region
    _
  $region73: #{_lambda_.1} parent=0 // pred_fallthru
    _
  // Predicated region
  $region74: #{_lambda_.1} parent=0 // pred_check
    _
  $region75: #{_lambda_.1} parent=0 // pred_check_branch
    %116 = sbr.rel (0) target = $region77
  $region76: #{_lambda_.1} parent=0 // pred_region
    _
  $region77: #{_lambda_.1} parent=0 // pred_fallthru
    _
  // Predicated region
  $region78: #{_lambda_.1} parent=0 // pred_check
    _
  $region79: #{_lambda_.1} parent=0 // pred_check_branch
    %118 = sbr.rel (0) target = $region81
  $region80: #{_lambda_.1} parent=0 // pred_region
    _
  $region81: #{_lambda_.1} parent=0 // pred_fallthru
    _
  // Predicated region
  $region82: #{_lambda_.1} parent=0 // pred_check
    _
  $region83: #{_lambda_.1} parent=0 // pred_check_branch
    %120 = sbr.rel (0) target = $region85
  $region84: #{_lambda_.1} parent=0 // pred_region
    _
  $region85: #{_lambda_.1} parent=0 // pred_fallthru
    _
  // Predicated region
  $region86: #{_lambda_.1} parent=0 // pred_check
    _
  $region87: #{_lambda_.1} parent=0 // pred_check_branch
    %122 = sbr.rel (0) target = $region89
  $region88: #{_lambda_.1} parent=0 // pred_region
    _
  $region89: #{_lambda_.1} parent=0 // pred_fallthru
    _
  // Predicated region
  $region90: #{_lambda_.1} parent=0 // pred_check
    _
  $region91: #{_lambda_.1} parent=0 // pred_check_branch
    %124 = sbr.rel (0) target = $region93
  $region92: #{_lambda_.1} parent=0 // pred_region
    _
  $region93: #{_lambda_.1} parent=0 // pred_fallthru
    _
  // Predicated region
  $region94: #{_lambda_.1} parent=0 // pred_check
    _
  $region95: #{_lambda_.1} parent=0 // pred_check_branch
    %126 = sbr.rel (0) target = $region97
  $region96: #{_lambda_.1} parent=0 // pred_region
    _
  $region97: #{_lambda_.1} parent=0 // pred_fallthru
    _
  // Predicated region
  $region98: #{_lambda_.1} parent=0 // pred_check
    _
  $region99: #{_lambda_.1} parent=0 // pred_check_branch
    %128 = sbr.rel (0) target = $region101
  $region100: #{_lambda_.1} parent=0 // pred_region
    _
  $region101: #{_lambda_.1} parent=0 // pred_fallthru
    _
  // Predicated region
  $region102: #{_lambda_.1} parent=0 // pred_check
    _
  $region103: #{_lambda_.1} parent=0 // pred_check_branch
    %130 = sbr.rel (0) target = $region105
  $region104: #{_lambda_.1} parent=0 // pred_region
    _
  $region105: #{_lambda_.1} parent=0 // pred_fallthru
    _
  // Predicated region
  $region106: #{_lambda_.1} parent=0 // pred_check
    _
  $region107: #{_lambda_.1} parent=0 // pred_check_branch
    %132 = sbr.rel (0) target = $region109
  $region108: #{_lambda_.1} parent=0 // pred_region
    _
  $region109: #{_lambda_.1} parent=0 // pred_fallthru
    _
  // Predicated region
  $region110: #{_lambda_.1} parent=0 // pred_check
    _
  $region111: #{_lambda_.1} parent=0 // pred_check_branch
    %134 = sbr.rel (0) target = $region113
  $region112: #{_lambda_.1} parent=0 // pred_region
    _
  $region113: #{_lambda_.1} parent=0 // pred_fallthru
    _
  // Predicated region
  $region114: #{_lambda_.1} parent=0 // pred_check
    _
  $region115: #{_lambda_.1} parent=0 // pred_check_branch
    %136 = sbr.rel (0) target = $region117
  $region116: #{_lambda_.1} parent=0 // pred_region
    _
  $region117: #{_lambda_.1} parent=0 // pred_fallthru
    _
  // Predicated region
  $region118: #{_lambda_.1} parent=0 // pred_check
    _
  $region119: #{_lambda_.1} parent=0 // pred_check_branch
    %138 = sbr.rel (0) target = $region121
  $region120: #{_lambda_.1} parent=0 // pred_region
    _
  $region121: #{_lambda_.1} parent=0 // pred_fallthru
    _
  // Predicated region
  $region122: #{_lambda_.1} parent=0 // pred_check
    _
  $region123: #{_lambda_.1} parent=0 // pred_check_branch
    %140 = sbr.rel (0) target = $region125
  $region124: #{_lambda_.1} parent=0 // pred_region
    _
  $region125: #{_lambda_.1} parent=0 // pred_fallthru
    _
  // Predicated region
  $region126: #{_lambda_.1} parent=0 // pred_check
    _
  $region127: #{_lambda_.1} parent=0 // pred_check_branch
    %142 = sbr.rel (0) target = $region129
  $region128: #{_lambda_.1} parent=0 // pred_region
    _
  $region129: #{_lambda_.1} parent=0 // pred_fallthru
    _
  // Predicated region
  $region130: #{_lambda_.1} parent=0 // pred_check
    _
  $region131: #{_lambda_.1} parent=0 // pred_check_branch
    %144 = sbr.rel (0) target = $region133
  $region132: #{_lambda_.1} parent=0 // pred_region
    _
  $region133: #{_lambda_.1} parent=0 // pred_fallthru
    _
  %v146 = vld [vmem:[%s1] sm:$0xff]
  %v147 = vld [vmem:[%s1 + $0x8] sm:$0xff]
  %v148 = vld [vmem:[%s1 + $0x10] sm:$0xff]
  %v149 = vld [vmem:[%s1 + $0x18] sm:$0xff]
  %v150 = vld [vmem:[%s1 + $0x20] sm:$0xff]
  %v151 = vld [vmem:[%s1 + $0x28] sm:$0xff]
  %v152 = vld [vmem:[%s1 + $0x30] sm:$0xff]
  %v153 = vld [vmem:[%s1 + $0x38] sm:$0xff]
  %v154 = vld [vmem:[%s1 + $0x40] sm:$0xff]
  %v155 = vld [vmem:[%s1 + $0x48] sm:$0xff]
  %v156 = vld [vmem:[%s1 + $0x50] sm:$0xff]
  %v157 = vld [vmem:[%s1 + $0x58] sm:$0xff]
  %v158 = vld [vmem:[%s1 + $0x60] sm:$0xff]
  %v159 = vld [vmem:[%s1 + $0x68] sm:$0xff]
  %v160 = vld [vmem:[%s1 + $0x70] sm:$0xff]
  %v161 = vld [vmem:[%s1 + $0x78] sm:$0xff]
  %v162 = vld [vmem:[%s1 + $0x80] sm:$0xff]
  %v163 = vld [vmem:[%s1 + $0x88] sm:$0xff]
  %v164 = vld [vmem:[%s1 + $0x90] sm:$0xff]
  %v165 = vld [vmem:[%s1 + $0x98] sm:$0xff]
  %v166 = vld [vmem:[%s1 + $0xa0] sm:$0x3]
  %v167 = vpack.c.bf16 %v147, %v146
  %v168 = vpack.c.bf16 %v149, %v148
  %v169 = vpack.c.bf16 %v151, %v150
  %v170 = vpack.c.bf16 %v153, %v152
  %v171 = vpack.c.bf16 %v155, %v154
  %v172 = vpack.c.bf16 %v157, %v156
  %v173 = vpack.c.bf16 %v159, %v158
  %v174 = vpack.c.bf16 %v161, %v160
  %v175 = vpack.c.bf16 %v163, %v162
  %v176 = vpack.c.bf16 %v165, %v164
  %v177 = vpack.c.bf16 %v166, %v166
  %v178 = vld [vmem:[%s3] sm:$0xf]
  %v179 = vld [vmem:[%s3 + $0x4] sm:$0xf]
  %v180 = vld [vmem:[%s3 + $0x8] sm:$0xf]
  %v181 = vld [vmem:[%s3 + $0xc] sm:$0xf]
  %v182 = vld [vmem:[%s3 + $0x10] sm:$0xf]
  %v183 = vld [vmem:[%s3 + $0x14] sm:$0xf]
  %v184 = vld [vmem:[%s3 + $0x18] sm:$0xf]
  %v185 = vld [vmem:[%s3 + $0x1c] sm:$0xf]
  %v186 = vld [vmem:[%s3 + $0x20] sm:$0xf]
  %v187 = vld [vmem:[%s3 + $0x24] sm:$0xf]
  %v188 = vld [vmem:[%s3 + $0x28] sm:$0xf]
  %v189 = vld [vmem:[%s3 + $0x2c] sm:$0xf]
  %v190 = vld [vmem:[%s3 + $0x30] sm:$0xf]
  %v191 = vld [vmem:[%s3 + $0x34] sm:$0xf]
  %v192 = vld [vmem:[%s3 + $0x38] sm:$0xf]
  %v193 = vld [vmem:[%s3 + $0x3c] sm:$0xf]
  %s194 = scalar_lea.vmem %s1, 176
  %v195 = vld [vmem:[%s194] sm:$0xff]
  %v196 = vld [vmem:[%s194 + $0x8] sm:$0xff]
  %v197 = vld [vmem:[%s194 + $0x10] sm:$0xff]
  %v198 = vld [vmem:[%s194 + $0x18] sm:$0xff]
  %v199 = vld [vmem:[%s194 + $0x20] sm:$0xff]
  %v200 = vld [vmem:[%s194 + $0x28] sm:$0xff]
  %v201 = vld [vmem:[%s194 + $0x30] sm:$0xff]
  %v202 = vld [vmem:[%s194 + $0x38] sm:$0xff]
  %v203 = vld [vmem:[%s194 + $0x40] sm:$0xff]
  %v204 = vld [vmem:[%s194 + $0x48] sm:$0xff]
  %v205 = vld [vmem:[%s194 + $0x50] sm:$0xff]
  %v206 = vld [vmem:[%s194 + $0x58] sm:$0xff]
  %v207 = vld [vmem:[%s194 + $0x60] sm:$0xff]
  %v208 = vld [vmem:[%s194 + $0x68] sm:$0xff]
  %v209 = vld [vmem:[%s194 + $0x70] sm:$0xff]
  %v210 = vld [vmem:[%s194 + $0x78] sm:$0xff]
  %v211 = vld [vmem:[%s194 + $0x80] sm:$0xff]
  %v212 = vld [vmem:[%s194 + $0x88] sm:$0xff]
  %v213 = vld [vmem:[%s194 + $0x90] sm:$0xff]
  %v214 = vld [vmem:[%s194 + $0x98] sm:$0xff]
  %v215 = vld [vmem:[%s194 + $0xa0] sm:$0x3]
  %v216 = vpack.c.bf16 %v196, %v195
  %v217 = vpack.c.bf16 %v198, %v197
  %v218 = vpack.c.bf16 %v200, %v199
  %v219 = vpack.c.bf16 %v202, %v201
  %v220 = vpack.c.bf16 %v204, %v203
  %v221 = vpack.c.bf16 %v206, %v205
  %v222 = vpack.c.bf16 %v208, %v207
  %v223 = vpack.c.bf16 %v210, %v209
  %v224 = vpack.c.bf16 %v212, %v211
  %v225 = vpack.c.bf16 %v214, %v213
  %v226 = vpack.c.bf16 %v215, %v215
  %s227 = scalar_lea.vmem %s3, 64
  %v228 = vld [vmem:[%s227] sm:$0xf]
  %v229 = vld [vmem:[%s227 + $0x4] sm:$0xf]
  %v230 = vld [vmem:[%s227 + $0x8] sm:$0xf]
  %v231 = vld [vmem:[%s227 + $0xc] sm:$0xf]
  %v232 = vld [vmem:[%s227 + $0x10] sm:$0xf]
  %v233 = vld [vmem:[%s227 + $0x14] sm:$0xf]
  %v234 = vld [vmem:[%s227 + $0x18] sm:$0xf]
  %v235 = vld [vmem:[%s227 + $0x1c] sm:$0xf]
  %v236 = vld [vmem:[%s227 + $0x20] sm:$0xf]
  %v237 = vld [vmem:[%s227 + $0x24] sm:$0xf]
  %v238 = vld [vmem:[%s227 + $0x28] sm:$0xf]
  %v239 = vld [vmem:[%s227 + $0x2c] sm:$0xf]
  %v240 = vld [vmem:[%s227 + $0x30] sm:$0xf]
  %v241 = vld [vmem:[%s227 + $0x34] sm:$0xf]
  %v242 = vld [vmem:[%s227 + $0x38] sm:$0xf]
  %v243 = vld [vmem:[%s227 + $0x3c] sm:$0xf]
  %v260 = vunpack.c.l.b16 %v228
  %v261 = vunpack.c.l.b16 %v229
  %v262 = vunpack.c.l.b16 %v230
  %v263 = vunpack.c.l.b16 %v231
  %v264 = vunpack.c.l.b16 %v232
  %v265 = vunpack.c.l.b16 %v233
  %v266 = vunpack.c.l.b16 %v234
  %v267 = vunpack.c.l.b16 %v235
  %v268 = vunpack.c.l.b16 %v236
  %v269 = vunpack.c.l.b16 %v237
  %v270 = vunpack.c.l.b16 %v238
  %v271 = vunpack.c.l.b16 %v239
  %v272 = vunpack.c.l.b16 %v240
  %v273 = vunpack.c.l.b16 %v241
  %v274 = vunpack.c.l.b16 %v242
  %v275 = vunpack.c.l.b16 %v243
  %v276 = vpack.c.b16 %v261, %v260
  %v277 = vpack.c.b16 %v263, %v262
  %v278 = vpack.c.b16 %v265, %v264
  %v279 = vpack.c.b16 %v267, %v266
  %v280 = vpack.c.b16 %v269, %v268
  %v281 = vpack.c.b16 %v271, %v270
  %v282 = vpack.c.b16 %v273, %v272
  %v283 = vpack.c.b16 %v275, %v274
  %292 = vmatpush.bf16.msra.mxu0 %v283
  %293 = vmatpush.bf16.msra.mxu0 %v282
  %294 = vmatpush.bf16.msra.mxu0 %v281
  %295 = vmatpush.bf16.msra.mxu0 %v280
  %296 = vmatpush.bf16.msra.mxu0 %v279
  %297 = vmatpush.bf16.msra.mxu0 %v278
  %298 = vmatpush.bf16.msra.mxu0 %v277
  %299 = vmatpush.bf16.msra.mxu0 %v276
  %300 = vmatmul.bf16.gmra.mxu0 %v216
  %v301 = vpop.f32.mrf.mxu0
  %v302 = vadd.f32 0.0, %v301
  %v303 = vpop.f32.mrf.mxu0
  %v304 = vadd.f32 0.0, %v303
  %305 = vmatmul.bf16.gmra.mxu0 %v217
  %v306 = vpop.f32.mrf.mxu0
  %v307 = vadd.f32 0.0, %v306
  %v308 = vpop.f32.mrf.mxu0
  %v309 = vadd.f32 0.0, %v308
  %310 = vmatmul.bf16.gmra.mxu0 %v218
  %v311 = vpop.f32.mrf.mxu0
  %v312 = vadd.f32 0.0, %v311
  %v313 = vpop.f32.mrf.mxu0
  %v314 = vadd.f32 0.0, %v313
  %315 = vmatmul.bf16.gmra.mxu0 %v219
  %v316 = vpop.f32.mrf.mxu0
  %v317 = vadd.f32 0.0, %v316
  %v318 = vpop.f32.mrf.mxu0
  %v319 = vadd.f32 0.0, %v318
  %320 = vmatmul.bf16.gmra.mxu0 %v220
  %v321 = vpop.f32.mrf.mxu0
  %v322 = vadd.f32 0.0, %v321
  %v323 = vpop.f32.mrf.mxu0
  %v324 = vadd.f32 0.0, %v323
  %325 = vmatmul.bf16.gmra.mxu0 %v221
  %v326 = vpop.f32.mrf.mxu0
  %v327 = vadd.f32 0.0, %v326
  %v328 = vpop.f32.mrf.mxu0
  %v329 = vadd.f32 0.0, %v328
  %330 = vmatmul.bf16.gmra.mxu0 %v222
  %v331 = vpop.f32.mrf.mxu0
  %v332 = vadd.f32 0.0, %v331
  %v333 = vpop.f32.mrf.mxu0
  %v334 = vadd.f32 0.0, %v333
  %335 = vmatmul.bf16.gmra.mxu0 %v223
  %v336 = vpop.f32.mrf.mxu0
  %v337 = vadd.f32 0.0, %v336
  %v338 = vpop.f32.mrf.mxu0
  %v339 = vadd.f32 0.0, %v338
  %340 = vmatmul.bf16.gmra.mxu0 %v224
  %v341 = vpop.f32.mrf.mxu0
  %v342 = vadd.f32 0.0, %v341
  %v343 = vpop.f32.mrf.mxu0
  %v344 = vadd.f32 0.0, %v343
  %345 = vmatmul.bf16.gmra.mxu0 %v225
  %v346 = vpop.f32.mrf.mxu0
  %v347 = vadd.f32 0.0, %v346
  %v348 = vpop.f32.mrf.mxu0
  %v349 = vadd.f32 0.0, %v348
  %350 = vmatmul.bf16.gmra.mxu0 %v226
  %v351 = vpop.f32.mrf.mxu0
  %v352 = vadd.f32 0.0, %v351
  %v353 = vpop.f32.mrf.mxu0
  %354 = vdwg.mxu0
  %v371 = vunpack.c.l.b16 %v178
  %v372 = vunpack.c.l.b16 %v179
  %v373 = vunpack.c.l.b16 %v180
  %v374 = vunpack.c.l.b16 %v181
  %v375 = vunpack.c.l.b16 %v182
  %v376 = vunpack.c.l.b16 %v183
  %v377 = vunpack.c.l.b16 %v184
  %v378 = vunpack.c.l.b16 %v185
  %v379 = vunpack.c.l.b16 %v186
  %v380 = vunpack.c.l.b16 %v187
  %v381 = vunpack.c.l.b16 %v188
  %v382 = vunpack.c.l.b16 %v189
  %v383 = vunpack.c.l.b16 %v190
  %v384 = vunpack.c.l.b16 %v191
  %v385 = vunpack.c.l.b16 %v192
  %v386 = vunpack.c.l.b16 %v193
  %v387 = vpack.c.b16 %v372, %v371
  %v388 = vpack.c.b16 %v374, %v373
  %v389 = vpack.c.b16 %v376, %v375
  %v390 = vpack.c.b16 %v378, %v377
  %v391 = vpack.c.b16 %v380, %v379
  %v392 = vpack.c.b16 %v382, %v381
  %v393 = vpack.c.b16 %v384, %v383
  %v394 = vpack.c.b16 %v386, %v385
  %403 = vmatpush.bf16.msra.mxu0 %v394
  %404 = vmatpush.bf16.msra.mxu0 %v393
  %405 = vmatpush.bf16.msra.mxu0 %v392
  %406 = vmatpush.bf16.msra.mxu0 %v391
  %407 = vmatpush.bf16.msra.mxu0 %v390
  %408 = vmatpush.bf16.msra.mxu0 %v389
  %409 = vmatpush.bf16.msra.mxu0 %v388
  %410 = vmatpush.bf16.msra.mxu0 %v387
  %411 = vmatmul.bf16.gmra.mxu0 %v167
  %v412 = vpop.f32.mrf.mxu0
  %v413 = vadd.f32 %v302, %v412
  %v414 = vpop.f32.mrf.mxu0
  %v415 = vadd.f32 %v304, %v414
  %416 = vmatmul.bf16.gmra.mxu0 %v168
  %v417 = vpop.f32.mrf.mxu0
  %v418 = vadd.f32 %v307, %v417
  %v419 = vpop.f32.mrf.mxu0
  %v420 = vadd.f32 %v309, %v419
  %421 = vmatmul.bf16.gmra.mxu0 %v169
  %v422 = vpop.f32.mrf.mxu0
  %v423 = vadd.f32 %v312, %v422
  %v424 = vpop.f32.mrf.mxu0
  %v425 = vadd.f32 %v314, %v424
  %426 = vmatmul.bf16.gmra.mxu0 %v170
  %v427 = vpop.f32.mrf.mxu0
  %v428 = vadd.f32 %v317, %v427
  %v429 = vpop.f32.mrf.mxu0
  %v430 = vadd.f32 %v319, %v429
  %431 = vmatmul.bf16.gmra.mxu0 %v171
  %v432 = vpop.f32.mrf.mxu0
  %v433 = vadd.f32 %v322, %v432
  %v434 = vpop.f32.mrf.mxu0
  %v435 = vadd.f32 %v324, %v434
  %436 = vmatmul.bf16.gmra.mxu0 %v172
  %v437 = vpop.f32.mrf.mxu0
  %v438 = vadd.f32 %v327, %v437
  %v439 = vpop.f32.mrf.mxu0
  %v440 = vadd.f32 %v329, %v439
  %441 = vmatmul.bf16.gmra.mxu0 %v173
  %v442 = vpop.f32.mrf.mxu0
  %v443 = vadd.f32 %v332, %v442
  %v444 = vpop.f32.mrf.mxu0
  %v445 = vadd.f32 %v334, %v444
  %446 = vmatmul.bf16.gmra.mxu0 %v174
  %v447 = vpop.f32.mrf.mxu0
  %v448 = vadd.f32 %v337, %v447
  %v449 = vpop.f32.mrf.mxu0
  %v450 = vadd.f32 %v339, %v449
  %451 = vmatmul.bf16.gmra.mxu0 %v175
  %v452 = vpop.f32.mrf.mxu0
  %v453 = vadd.f32 %v342, %v452
  %v454 = vpop.f32.mrf.mxu0
  %v455 = vadd.f32 %v344, %v454
  %456 = vmatmul.bf16.gmra.mxu0 %v176
  %v457 = vpop.f32.mrf.mxu0
  %v458 = vadd.f32 %v347, %v457
  %v459 = vpop.f32.mrf.mxu0
  %v460 = vadd.f32 %v349, %v459
  %461 = vmatmul.bf16.gmra.mxu0 %v177
  %v462 = vpop.f32.mrf.mxu0
  %v463 = vadd.f32 %v352, %v462
  %v464 = vpop.f32.mrf.mxu0
  %465 = vdwg.mxu0
  %v466 = vld [vmem:[%s1 + $0x1] sm:$0xff]
  %v467 = vld [vmem:[%s1 + $0x9] sm:$0xff]
  %v468 = vld [vmem:[%s1 + $0x11] sm:$0xff]
  %v469 = vld [vmem:[%s1 + $0x19] sm:$0xff]
  %v470 = vld [vmem:[%s1 + $0x21] sm:$0xff]
  %v471 = vld [vmem:[%s1 + $0x29] sm:$0xff]
  %v472 = vld [vmem:[%s1 + $0x31] sm:$0xff]
  %v473 = vld [vmem:[%s1 + $0x39] sm:$0xff]
  %v474 = vld [vmem:[%s1 + $0x41] sm:$0xff]
  %v475 = vld [vmem:[%s1 + $0x49] sm:$0xff]
  %v476 = vld [vmem:[%s1 + $0x51] sm:$0xff]
  %v477 = vld [vmem:[%s1 + $0x59] sm:$0xff]
  %v478 = vld [vmem:[%s1 + $0x61] sm:$0xff]
  %v479 = vld [vmem:[%s1 + $0x69] sm:$0xff]
  %v480 = vld [vmem:[%s1 + $0x71] sm:$0xff]
  %v481 = vld [vmem:[%s1 + $0x79] sm:$0xff]
  %v482 = vld [vmem:[%s1 + $0x81] sm:$0xff]
  %v483 = vld [vmem:[%s1 + $0x89] sm:$0xff]
  %v484 = vld [vmem:[%s1 + $0x91] sm:$0xff]
  %v485 = vld [vmem:[%s1 + $0x99] sm:$0xff]
  %v486 = vld [vmem:[%s1 + $0xa1] sm:$0x3]
  %v487 = vpack.c.bf16 %v467, %v466
  %v488 = vpack.c.bf16 %v469, %v468
  %v489 = vpack.c.bf16 %v471, %v470
  %v490 = vpack.c.bf16 %v473, %v472
  %v491 = vpack.c.bf16 %v475, %v474
  %v492 = vpack.c.bf16 %v477, %v476
  %v493 = vpack.c.bf16 %v479, %v478
  %v494 = vpack.c.bf16 %v481, %v480
  %v495 = vpack.c.bf16 %v483, %v482
  %v496 = vpack.c.bf16 %v485, %v484
  %v497 = vpack.c.bf16 %v486, %v486
  %s498 = scalar_lea.vmem %s3, 128
  %v499 = vld [vmem:[%s498] sm:$0xf]
  %v500 = vld [vmem:[%s498 + $0x4] sm:$0xf]
  %v501 = vld [vmem:[%s498 + $0x8] sm:$0xf]
  %v502 = vld [vmem:[%s498 + $0xc] sm:$0xf]
  %v503 = vld [vmem:[%s498 + $0x10] sm:$0xf]
  %v504 = vld [vmem:[%s498 + $0x14] sm:$0xf]
  %v505 = vld [vmem:[%s498 + $0x18] sm:$0xf]
  %v506 = vld [vmem:[%s498 + $0x1c] sm:$0xf]
  %v507 = vld [vmem:[%s498 + $0x20] sm:$0xf]
  %v508 = vld [vmem:[%s498 + $0x24] sm:$0xf]
  %v509 = vld [vmem:[%s498 + $0x28] sm:$0xf]
  %v510 = vld [vmem:[%s498 + $0x2c] sm:$0xf]
  %v511 = vld [vmem:[%s498 + $0x30] sm:$0xf]
  %v512 = vld [vmem:[%s498 + $0x34] sm:$0xf]
  %v513 = vld [vmem:[%s498 + $0x38] sm:$0xf]
  %v514 = vld [vmem:[%s498 + $0x3c] sm:$0xf]
  %v531 = vunpack.c.l.b16 %v499
  %v532 = vunpack.c.l.b16 %v500
  %v533 = vunpack.c.l.b16 %v501
  %v534 = vunpack.c.l.b16 %v502
  %v535 = vunpack.c.l.b16 %v503
  %v536 = vunpack.c.l.b16 %v504
  %v537 = vunpack.c.l.b16 %v505
  %v538 = vunpack.c.l.b16 %v506
  %v539 = vunpack.c.l.b16 %v507
  %v540 = vunpack.c.l.b16 %v508
  %v541 = vunpack.c.l.b16 %v509
  %v542 = vunpack.c.l.b16 %v510
  %v543 = vunpack.c.l.b16 %v511
  %v544 = vunpack.c.l.b16 %v512
  %v545 = vunpack.c.l.b16 %v513
  %v546 = vunpack.c.l.b16 %v514
  %v547 = vpack.c.b16 %v532, %v531
  %v548 = vpack.c.b16 %v534, %v533
  %v549 = vpack.c.b16 %v536, %v535
  %v550 = vpack.c.b16 %v538, %v537
  %v551 = vpack.c.b16 %v540, %v539
  %v552 = vpack.c.b16 %v542, %v541
  %v553 = vpack.c.b16 %v544, %v543
  %v554 = vpack.c.b16 %v546, %v545
  %563 = vmatpush.bf16.msra.mxu0 %v554
  %564 = vmatpush.bf16.msra.mxu0 %v553
  %565 = vmatpush.bf16.msra.mxu0 %v552
  %566 = vmatpush.bf16.msra.mxu0 %v551
  %567 = vmatpush.bf16.msra.mxu0 %v550
  %568 = vmatpush.bf16.msra.mxu0 %v549
  %569 = vmatpush.bf16.msra.mxu0 %v548
  %570 = vmatpush.bf16.msra.mxu0 %v547
  %571 = vmatmul.bf16.gmra.mxu0 %v487
  %v572 = vpop.f32.mrf.mxu0
  %v573 = vadd.f32 0.0, %v572
  %v574 = vpop.f32.mrf.mxu0
  %v575 = vadd.f32 0.0, %v574
  %576 = vmatmul.bf16.gmra.mxu0 %v488
  %v577 = vpop.f32.mrf.mxu0
  %v578 = vadd.f32 0.0, %v577
  %v579 = vpop.f32.mrf.mxu0
  %v580 = vadd.f32 0.0, %v579
  %581 = vmatmul.bf16.gmra.mxu0 %v489
  %v582 = vpop.f32.mrf.mxu0
  %v583 = vadd.f32 0.0, %v582
  %v584 = vpop.f32.mrf.mxu0
  %v585 = vadd.f32 0.0, %v584
  %586 = vmatmul.bf16.gmra.mxu0 %v490
  %v587 = vpop.f32.mrf.mxu0
  %v588 = vadd.f32 0.0, %v587
  %v589 = vpop.f32.mrf.mxu0
  %v590 = vadd.f32 0.0, %v589
  %591 = vmatmul.bf16.gmra.mxu0 %v491
  %v592 = vpop.f32.mrf.mxu0
  %v593 = vadd.f32 0.0, %v592
  %v594 = vpop.f32.mrf.mxu0
  %v595 = vadd.f32 0.0, %v594
  %596 = vmatmul.bf16.gmra.mxu0 %v492
  %v597 = vpop.f32.mrf.mxu0
  %v598 = vadd.f32 0.0, %v597
  %v599 = vpop.f32.mrf.mxu0
  %v600 = vadd.f32 0.0, %v599
  %601 = vmatmul.bf16.gmra.mxu0 %v493
  %v602 = vpop.f32.mrf.mxu0
  %v603 = vadd.f32 0.0, %v602
  %v604 = vpop.f32.mrf.mxu0
  %v605 = vadd.f32 0.0, %v604
  %606 = vmatmul.bf16.gmra.mxu0 %v494
  %v607 = vpop.f32.mrf.mxu0
  %v608 = vadd.f32 0.0, %v607
  %v609 = vpop.f32.mrf.mxu0
  %v610 = vadd.f32 0.0, %v609
  %611 = vmatmul.bf16.gmra.mxu0 %v495
  %v612 = vpop.f32.mrf.mxu0
  %v613 = vadd.f32 0.0, %v612
  %v614 = vpop.f32.mrf.mxu0
  %v615 = vadd.f32 0.0, %v614
  %616 = vmatmul.bf16.gmra.mxu0 %v496
  %v617 = vpop.f32.mrf.mxu0
  %v618 = vadd.f32 0.0, %v617
  %v619 = vpop.f32.mrf.mxu0
  %v620 = vadd.f32 0.0, %v619
  %621 = vmatmul.bf16.gmra.mxu0 %v497
  %v622 = vpop.f32.mrf.mxu0
  %v623 = vadd.f32 0.0, %v622
  %v624 = vpop.f32.mrf.mxu0
  %625 = vdwg.mxu0
  %v626 = vadd.f32 %v413, %v573
  %v627 = vadd.f32 %v415, %v575
  %v628 = vadd.f32 %v418, %v578
  %v629 = vadd.f32 %v420, %v580
  %v630 = vadd.f32 %v423, %v583
  %v631 = vadd.f32 %v425, %v585
  %v632 = vadd.f32 %v428, %v588
  %v633 = vadd.f32 %v430, %v590
  %v634 = vadd.f32 %v433, %v593
  %v635 = vadd.f32 %v435, %v595
  %v636 = vadd.f32 %v438, %v598
  %v637 = vadd.f32 %v440, %v600
  %v638 = vadd.f32 %v443, %v603
  %v639 = vadd.f32 %v445, %v605
  %v640 = vadd.f32 %v448, %v608
  %v641 = vadd.f32 %v450, %v610
  %v642 = vadd.f32 %v453, %v613
  %v643 = vadd.f32 %v455, %v615
  %v644 = vadd.f32 %v458, %v618
  %v645 = vadd.f32 %v460, %v620
  %v646 = vadd.f32 %v463, %v623
  %s647 = scalar_lea.vmem %s1, 352
  %v648 = vld [vmem:[%s647] sm:$0xff]
  %v649 = vld [vmem:[%s647 + $0x8] sm:$0xff]
  %v650 = vld [vmem:[%s647 + $0x10] sm:$0xff]
  %v651 = vld [vmem:[%s647 + $0x18] sm:$0xff]
  %v652 = vld [vmem:[%s647 + $0x20] sm:$0xff]
  %v653 = vld [vmem:[%s647 + $0x28] sm:$0xff]
  %v654 = vld [vmem:[%s647 + $0x30] sm:$0xff]
  %v655 = vld [vmem:[%s647 + $0x38] sm:$0xff]
  %v656 = vld [vmem:[%s647 + $0x40] sm:$0xff]
  %v657 = vld [vmem:[%s647 + $0x48] sm:$0xff]
  %v658 = vld [vmem:[%s647 + $0x50] sm:$0xff]
  %v659 = vld [vmem:[%s647 + $0x58] sm:$0xff]
  %v660 = vld [vmem:[%s647 + $0x60] sm:$0xff]
  %v661 = vld [vmem:[%s647 + $0x68] sm:$0xff]
  %v662 = vld [vmem:[%s647 + $0x70] sm:$0xff]
  %v663 = vld [vmem:[%s647 + $0x78] sm:$0xff]
  %v664 = vld [vmem:[%s647 + $0x80] sm:$0xff]
  %v665 = vld [vmem:[%s647 + $0x88] sm:$0xff]
  %v666 = vld [vmem:[%s647 + $0x90] sm:$0xff]
  %v667 = vld [vmem:[%s647 + $0x98] sm:$0xff]
  %v668 = vld [vmem:[%s647 + $0xa0] sm:$0x3]
  %v669 = vpack.c.bf16 %v649, %v648
  %v670 = vpack.c.bf16 %v651, %v650
  %v671 = vpack.c.bf16 %v653, %v652
  %v672 = vpack.c.bf16 %v655, %v654
  %v673 = vpack.c.bf16 %v657, %v656
  %v674 = vpack.c.bf16 %v659, %v658
  %v675 = vpack.c.bf16 %v661, %v660
  %v676 = vpack.c.bf16 %v663, %v662
  %v677 = vpack.c.bf16 %v665, %v664
  %v678 = vpack.c.bf16 %v667, %v666
  %v679 = vpack.c.bf16 %v668, %v668
  %s680 = scalar_lea.vmem %s3, 192
  %v681 = vld [vmem:[%s680] sm:$0xf]
  %v682 = vld [vmem:[%s680 + $0x4] sm:$0xf]
  %v683 = vld [vmem:[%s680 + $0x8] sm:$0xf]
  %v684 = vld [vmem:[%s680 + $0xc] sm:$0xf]
  %v685 = vld [vmem:[%s680 + $0x10] sm:$0xf]
  %v686 = vld [vmem:[%s680 + $0x14] sm:$0xf]
  %v687 = vld [vmem:[%s680 + $0x18] sm:$0xf]
  %v688 = vld [vmem:[%s680 + $0x1c] sm:$0xf]
  %v689 = vld [vmem:[%s680 + $0x20] sm:$0xf]
  %v690 = vld [vmem:[%s680 + $0x24] sm:$0xf]
  %v691 = vld [vmem:[%s680 + $0x28] sm:$0xf]
  %v692 = vld [vmem:[%s680 + $0x2c] sm:$0xf]
  %v693 = vld [vmem:[%s680 + $0x30] sm:$0xf]
  %v694 = vld [vmem:[%s680 + $0x34] sm:$0xf]
  %v695 = vld [vmem:[%s680 + $0x38] sm:$0xf]
  %v696 = vld [vmem:[%s680 + $0x3c] sm:$0xf]
  %v713 = vunpack.c.l.b16 %v681
  %v714 = vunpack.c.l.b16 %v682
  %v715 = vunpack.c.l.b16 %v683
  %v716 = vunpack.c.l.b16 %v684
  %v717 = vunpack.c.l.b16 %v685
  %v718 = vunpack.c.l.b16 %v686
  %v719 = vunpack.c.l.b16 %v687
  %v720 = vunpack.c.l.b16 %v688
  %v721 = vunpack.c.l.b16 %v689
  %v722 = vunpack.c.l.b16 %v690
  %v723 = vunpack.c.l.b16 %v691
  %v724 = vunpack.c.l.b16 %v692
  %v725 = vunpack.c.l.b16 %v693
  %v726 = vunpack.c.l.b16 %v694
  %v727 = vunpack.c.l.b16 %v695
  %v728 = vunpack.c.l.b16 %v696
  %v729 = vpack.c.b16 %v714, %v713
  %v730 = vpack.c.b16 %v716, %v715
  %v731 = vpack.c.b16 %v718, %v717
  %v732 = vpack.c.b16 %v720, %v719
  %v733 = vpack.c.b16 %v722, %v721
  %v734 = vpack.c.b16 %v724, %v723
  %v735 = vpack.c.b16 %v726, %v725
  %v736 = vpack.c.b16 %v728, %v727
  %745 = vmatpush.bf16.msra.mxu0 %v736
  %746 = vmatpush.bf16.msra.mxu0 %v735
  %747 = vmatpush.bf16.msra.mxu0 %v734
  %748 = vmatpush.bf16.msra.mxu0 %v733
  %749 = vmatpush.bf16.msra.mxu0 %v732
  %750 = vmatpush.bf16.msra.mxu0 %v731
  %751 = vmatpush.bf16.msra.mxu0 %v730
  %752 = vmatpush.bf16.msra.mxu0 %v729
  %753 = vmatmul.bf16.gmra.mxu0 %v669
  %v754 = vpop.f32.mrf.mxu0
  %v755 = vadd.f32 0.0, %v754
  %v756 = vpop.f32.mrf.mxu0
  %v757 = vadd.f32 0.0, %v756
  %758 = vmatmul.bf16.gmra.mxu0 %v670
  %v759 = vpop.f32.mrf.mxu0
  %v760 = vadd.f32 0.0, %v759
  %v761 = vpop.f32.mrf.mxu0
  %v762 = vadd.f32 0.0, %v761
  %763 = vmatmul.bf16.gmra.mxu0 %v671
  %v764 = vpop.f32.mrf.mxu0
  %v765 = vadd.f32 0.0, %v764
  %v766 = vpop.f32.mrf.mxu0
  %v767 = vadd.f32 0.0, %v766
  %768 = vmatmul.bf16.gmra.mxu0 %v672
  %v769 = vpop.f32.mrf.mxu0
  %v770 = vadd.f32 0.0, %v769
  %v771 = vpop.f32.mrf.mxu0
  %v772 = vadd.f32 0.0, %v771
  %773 = vmatmul.bf16.gmra.mxu0 %v673
  %v774 = vpop.f32.mrf.mxu0
  %v775 = vadd.f32 0.0, %v774
  %v776 = vpop.f32.mrf.mxu0
  %v777 = vadd.f32 0.0, %v776
  %778 = vmatmul.bf16.gmra.mxu0 %v674
  %v779 = vpop.f32.mrf.mxu0
  %v780 = vadd.f32 0.0, %v779
  %v781 = vpop.f32.mrf.mxu0
  %v782 = vadd.f32 0.0, %v781
  %783 = vmatmul.bf16.gmra.mxu0 %v675
  %v784 = vpop.f32.mrf.mxu0
  %v785 = vadd.f32 0.0, %v784
  %v786 = vpop.f32.mrf.mxu0
  %v787 = vadd.f32 0.0, %v786
  %788 = vmatmul.bf16.gmra.mxu0 %v676
  %v789 = vpop.f32.mrf.mxu0
  %v790 = vadd.f32 0.0, %v789
  %v791 = vpop.f32.mrf.mxu0
  %v792 = vadd.f32 0.0, %v791
  %793 = vmatmul.bf16.gmra.mxu0 %v677
  %v794 = vpop.f32.mrf.mxu0
  %v795 = vadd.f32 0.0, %v794
  %v796 = vpop.f32.mrf.mxu0
  %v797 = vadd.f32 0.0, %v796
  %798 = vmatmul.bf16.gmra.mxu0 %v678
  %v799 = vpop.f32.mrf.mxu0
  %v800 = vadd.f32 0.0, %v799
  %v801 = vpop.f32.mrf.mxu0
  %v802 = vadd.f32 0.0, %v801
  %803 = vmatmul.bf16.gmra.mxu0 %v679
  %v804 = vpop.f32.mrf.mxu0
  %v805 = vadd.f32 0.0, %v804
  %v806 = vpop.f32.mrf.mxu0
  %807 = vdwg.mxu0
  %v808 = vadd.f32 %v626, %v755
  %v809 = vadd.f32 %v627, %v757
  %v810 = vadd.f32 %v628, %v760
  %v811 = vadd.f32 %v629, %v762
  %v812 = vadd.f32 %v630, %v765
  %v813 = vadd.f32 %v631, %v767
  %v814 = vadd.f32 %v632, %v770
  %v815 = vadd.f32 %v633, %v772
  %v816 = vadd.f32 %v634, %v775
  %v817 = vadd.f32 %v635, %v777
  %v818 = vadd.f32 %v636, %v780
  %v819 = vadd.f32 %v637, %v782
  %v820 = vadd.f32 %v638, %v785
  %v821 = vadd.f32 %v639, %v787
  %v822 = vadd.f32 %v640, %v790
  %v823 = vadd.f32 %v641, %v792
  %v824 = vadd.f32 %v642, %v795
  %v825 = vadd.f32 %v643, %v797
  %v826 = vadd.f32 %v644, %v800
  %v827 = vadd.f32 %v645, %v802
  %v828 = vadd.f32 %v646, %v805
  %s829 = scalar_lea.vmem %s1, 528
  %v830 = vld [vmem:[%s829] sm:$0xff]
  %v831 = vld [vmem:[%s829 + $0x8] sm:$0xff]
  %v832 = vld [vmem:[%s829 + $0x10] sm:$0xff]
  %v833 = vld [vmem:[%s829 + $0x18] sm:$0xff]
  %v834 = vld [vmem:[%s829 + $0x20] sm:$0xff]
  %v835 = vld [vmem:[%s829 + $0x28] sm:$0xff]
  %v836 = vld [vmem:[%s829 + $0x30] sm:$0xff]
  %v837 = vld [vmem:[%s829 + $0x38] sm:$0xff]
  %v838 = vld [vmem:[%s829 + $0x40] sm:$0xff]
  %v839 = vld [vmem:[%s829 + $0x48] sm:$0xff]
  %v840 = vld [vmem:[%s829 + $0x50] sm:$0xff]
  %v841 = vld [vmem:[%s829 + $0x58] sm:$0xff]
  %v842 = vld [vmem:[%s829 + $0x60] sm:$0xff]
  %v843 = vld [vmem:[%s829 + $0x68] sm:$0xff]
  %v844 = vld [vmem:[%s829 + $0x70] sm:$0xff]
  %v845 = vld [vmem:[%s829 + $0x78] sm:$0xff]
  %v846 = vld [vmem:[%s829 + $0x80] sm:$0xff]
  %v847 = vld [vmem:[%s829 + $0x88] sm:$0xff]
  %v848 = vld [vmem:[%s829 + $0x90] sm:$0xff]
  %v849 = vld [vmem:[%s829 + $0x98] sm:$0xff]
  %v850 = vld [vmem:[%s829 + $0xa0] sm:$0x3]
  %v851 = vpack.c.bf16 %v831, %v830
  %v852 = vpack.c.bf16 %v833, %v832
  %v853 = vpack.c.bf16 %v835, %v834
  %v854 = vpack.c.bf16 %v837, %v836
  %v855 = vpack.c.bf16 %v839, %v838
  %v856 = vpack.c.bf16 %v841, %v840
  %v857 = vpack.c.bf16 %v843, %v842
  %v858 = vpack.c.bf16 %v845, %v844
  %v859 = vpack.c.bf16 %v847, %v846
  %v860 = vpack.c.bf16 %v849, %v848
  %v861 = vpack.c.bf16 %v850, %v850
  %s862 = scalar_lea.vmem %s3, 256
  %v863 = vld [vmem:[%s862] sm:$0xf]
  %v864 = vld [vmem:[%s862 + $0x4] sm:$0xf]
  %v865 = vld [vmem:[%s862 + $0x8] sm:$0xf]
  %v866 = vld [vmem:[%s862 + $0xc] sm:$0xf]
  %v867 = vld [vmem:[%s862 + $0x10] sm:$0xf]
  %v868 = vld [vmem:[%s862 + $0x14] sm:$0xf]
  %v869 = vld [vmem:[%s862 + $0x18] sm:$0xf]
  %v870 = vld [vmem:[%s862 + $0x1c] sm:$0xf]
  %v871 = vld [vmem:[%s862 + $0x20] sm:$0xf]
  %v872 = vld [vmem:[%s862 + $0x24] sm:$0xf]
  %v873 = vld [vmem:[%s862 + $0x28] sm:$0xf]
  %v874 = vld [vmem:[%s862 + $0x2c] sm:$0xf]
  %v875 = vld [vmem:[%s862 + $0x30] sm:$0xf]
  %v876 = vld [vmem:[%s862 + $0x34] sm:$0xf]
  %v877 = vld [vmem:[%s862 + $0x38] sm:$0xf]
  %v878 = vld [vmem:[%s862 + $0x3c] sm:$0xf]
  %v895 = vunpack.c.l.b16 %v863
  %v896 = vunpack.c.l.b16 %v864
  %v897 = vunpack.c.l.b16 %v865
  %v898 = vunpack.c.l.b16 %v866
  %v899 = vunpack.c.l.b16 %v867
  %v900 = vunpack.c.l.b16 %v868
  %v901 = vunpack.c.l.b16 %v869
  %v902 = vunpack.c.l.b16 %v870
  %v903 = vunpack.c.l.b16 %v871
  %v904 = vunpack.c.l.b16 %v872
  %v905 = vunpack.c.l.b16 %v873
  %v906 = vunpack.c.l.b16 %v874
  %v907 = vunpack.c.l.b16 %v875
  %v908 = vunpack.c.l.b16 %v876
  %v909 = vunpack.c.l.b16 %v877
  %v910 = vunpack.c.l.b16 %v878
  %v911 = vpack.c.b16 %v896, %v895
  %v912 = vpack.c.b16 %v898, %v897
  %v913 = vpack.c.b16 %v900, %v899
  %v914 = vpack.c.b16 %v902, %v901
  %v915 = vpack.c.b16 %v904, %v903
  %v916 = vpack.c.b16 %v906, %v905
  %v917 = vpack.c.b16 %v908, %v907
  %v918 = vpack.c.b16 %v910, %v909
  %927 = vmatpush.bf16.msra.mxu0 %v918
  %928 = vmatpush.bf16.msra.mxu0 %v917
  %929 = vmatpush.bf16.msra.mxu0 %v916
  %930 = vmatpush.bf16.msra.mxu0 %v915
  %931 = vmatpush.bf16.msra.mxu0 %v914
  %932 = vmatpush.bf16.msra.mxu0 %v913
  %933 = vmatpush.bf16.msra.mxu0 %v912
  %934 = vmatpush.bf16.msra.mxu0 %v911
  %935 = vmatmul.bf16.gmra.mxu0 %v851
  %v936 = vpop.f32.mrf.mxu0
  %v937 = vadd.f32 0.0, %v936
  %v938 = vpop.f32.mrf.mxu0
  %v939 = vadd.f32 0.0, %v938
  %940 = vmatmul.bf16.gmra.mxu0 %v852
  %v941 = vpop.f32.mrf.mxu0
  %v942 = vadd.f32 0.0, %v941
  %v943 = vpop.f32.mrf.mxu0
  %v944 = vadd.f32 0.0, %v943
  %945 = vmatmul.bf16.gmra.mxu0 %v853
  %v946 = vpop.f32.mrf.mxu0
  %v947 = vadd.f32 0.0, %v946
  %v948 = vpop.f32.mrf.mxu0
  %v949 = vadd.f32 0.0, %v948
  %950 = vmatmul.bf16.gmra.mxu0 %v854
  %v951 = vpop.f32.mrf.mxu0
  %v952 = vadd.f32 0.0, %v951
  %v953 = vpop.f32.mrf.mxu0
  %v954 = vadd.f32 0.0, %v953
  %955 = vmatmul.bf16.gmra.mxu0 %v855
  %v956 = vpop.f32.mrf.mxu0
  %v957 = vadd.f32 0.0, %v956
  %v958 = vpop.f32.mrf.mxu0
  %v959 = vadd.f32 0.0, %v958
  %960 = vmatmul.bf16.gmra.mxu0 %v856
  %v961 = vpop.f32.mrf.mxu0
  %v962 = vadd.f32 0.0, %v961
  %v963 = vpop.f32.mrf.mxu0
  %v964 = vadd.f32 0.0, %v963
  %965 = vmatmul.bf16.gmra.mxu0 %v857
  %v966 = vpop.f32.mrf.mxu0
  %v967 = vadd.f32 0.0, %v966
  %v968 = vpop.f32.mrf.mxu0
  %v969 = vadd.f32 0.0, %v968
  %970 = vmatmul.bf16.gmra.mxu0 %v858
  %v971 = vpop.f32.mrf.mxu0
  %v972 = vadd.f32 0.0, %v971
  %v973 = vpop.f32.mrf.mxu0
  %v974 = vadd.f32 0.0, %v973
  %975 = vmatmul.bf16.gmra.mxu0 %v859
  %v976 = vpop.f32.mrf.mxu0
  %v977 = vadd.f32 0.0, %v976
  %v978 = vpop.f32.mrf.mxu0
  %v979 = vadd.f32 0.0, %v978
  %980 = vmatmul.bf16.gmra.mxu0 %v860
  %v981 = vpop.f32.mrf.mxu0
  %v982 = vadd.f32 0.0, %v981
  %v983 = vpop.f32.mrf.mxu0
  %v984 = vadd.f32 0.0, %v983
  %985 = vmatmul.bf16.gmra.mxu0 %v861
  %v986 = vpop.f32.mrf.mxu0
  %v987 = vadd.f32 0.0, %v986
  %v988 = vpop.f32.mrf.mxu0
  %989 = vdwg.mxu0
  %v990 = vadd.f32 %v808, %v937
  %v991 = vadd.f32 %v809, %v939
  %v992 = vadd.f32 %v810, %v942
  %v993 = vadd.f32 %v811, %v944
  %v994 = vadd.f32 %v812, %v947
  %v995 = vadd.f32 %v813, %v949
  %v996 = vadd.f32 %v814, %v952
  %v997 = vadd.f32 %v815, %v954
  %v998 = vadd.f32 %v816, %v957
  %v999 = vadd.f32 %v817, %v959
  %v1000 = vadd.f32 %v818, %v962
  %v1001 = vadd.f32 %v819, %v964
  %v1002 = vadd.f32 %v820, %v967
  %v1003 = vadd.f32 %v821, %v969
  %v1004 = vadd.f32 %v822, %v972
  %v1005 = vadd.f32 %v823, %v974
  %v1006 = vadd.f32 %v824, %v977
  %v1007 = vadd.f32 %v825, %v979
  %v1008 = vadd.f32 %v826, %v982
  %v1009 = vadd.f32 %v827, %v984
  %v1010 = vadd.f32 %v828, %v987
  %v1011 = vld [vmem:[%s647 + $0x1] sm:$0xff]
  %v1012 = vld [vmem:[%s647 + $0x9] sm:$0xff]
  %v1013 = vld [vmem:[%s647 + $0x11] sm:$0xff]
  %v1014 = vld [vmem:[%s647 + $0x19] sm:$0xff]
  %v1015 = vld [vmem:[%s647 + $0x21] sm:$0xff]
  %v1016 = vld [vmem:[%s647 + $0x29] sm:$0xff]
  %v1017 = vld [vmem:[%s647 + $0x31] sm:$0xff]
  %v1018 = vld [vmem:[%s647 + $0x39] sm:$0xff]
  %v1019 = vld [vmem:[%s647 + $0x41] sm:$0xff]
  %v1020 = vld [vmem:[%s647 + $0x49] sm:$0xff]
  %v1021 = vld [vmem:[%s647 + $0x51] sm:$0xff]
  %v1022 = vld [vmem:[%s647 + $0x59] sm:$0xff]
  %v1023 = vld [vmem:[%s647 + $0x61] sm:$0xff]
  %v1024 = vld [vmem:[%s647 + $0x69] sm:$0xff]
  %v1025 = vld [vmem:[%s647 + $0x71] sm:$0xff]
  %v1026 = vld [vmem:[%s647 + $0x79] sm:$0xff]
  %v1027 = vld [vmem:[%s647 + $0x81] sm:$0xff]
  %v1028 = vld [vmem:[%s647 + $0x89] sm:$0xff]
  %v1029 = vld [vmem:[%s647 + $0x91] sm:$0xff]
  %v1030 = vld [vmem:[%s647 + $0x99] sm:$0xff]
  %v1031 = vld [vmem:[%s647 + $0xa1] sm:$0x3]
  %v1032 = vpack.c.bf16 %v1012, %v1011
  %v1033 = vpack.c.bf16 %v1014, %v1013
  %v1034 = vpack.c.bf16 %v1016, %v1015
  %v1035 = vpack.c.bf16 %v1018, %v1017
  %v1036 = vpack.c.bf16 %v1020, %v1019
  %v1037 = vpack.c.bf16 %v1022, %v1021
  %v1038 = vpack.c.bf16 %v1024, %v1023
  %v1039 = vpack.c.bf16 %v1026, %v1025
  %v1040 = vpack.c.bf16 %v1028, %v1027
  %v1041 = vpack.c.bf16 %v1030, %v1029
  %v1042 = vpack.c.bf16 %v1031, %v1031
  %s1043 = scalar_lea.vmem %s3, 320
  %v1044 = vld [vmem:[%s1043] sm:$0xf]
  %v1045 = vld [vmem:[%s1043 + $0x4] sm:$0xf]
  %v1046 = vld [vmem:[%s1043 + $0x8] sm:$0xf]
  %v1047 = vld [vmem:[%s1043 + $0xc] sm:$0xf]
  %v1048 = vld [vmem:[%s1043 + $0x10] sm:$0xf]
  %v1049 = vld [vmem:[%s1043 + $0x14] sm:$0xf]
  %v1050 = vld [vmem:[%s1043 + $0x18] sm:$0xf]
  %v1051 = vld [vmem:[%s1043 + $0x1c] sm:$0xf]
  %v1052 = vld [vmem:[%s1043 + $0x20] sm:$0xf]
  %v1053 = vld [vmem:[%s1043 + $0x24] sm:$0xf]
  %v1054 = vld [vmem:[%s1043 + $0x28] sm:$0xf]
  %v1055 = vld [vmem:[%s1043 + $0x2c] sm:$0xf]
  %v1056 = vld [vmem:[%s1043 + $0x30] sm:$0xf]
  %v1057 = vld [vmem:[%s1043 + $0x34] sm:$0xf]
  %v1058 = vld [vmem:[%s1043 + $0x38] sm:$0xf]
  %v1059 = vld [vmem:[%s1043 + $0x3c] sm:$0xf]
  %v1076 = vunpack.c.l.b16 %v1044
  %v1077 = vunpack.c.l.b16 %v1045
  %v1078 = vunpack.c.l.b16 %v1046
  %v1079 = vunpack.c.l.b16 %v1047
  %v1080 = vunpack.c.l.b16 %v1048
  %v1081 = vunpack.c.l.b16 %v1049
  %v1082 = vunpack.c.l.b16 %v1050
  %v1083 = vunpack.c.l.b16 %v1051
  %v1084 = vunpack.c.l.b16 %v1052
  %v1085 = vunpack.c.l.b16 %v1053
  %v1086 = vunpack.c.l.b16 %v1054
  %v1087 = vunpack.c.l.b16 %v1055
  %v1088 = vunpack.c.l.b16 %v1056
  %v1089 = vunpack.c.l.b16 %v1057
  %v1090 = vunpack.c.l.b16 %v1058
  %v1091 = vunpack.c.l.b16 %v1059
  %v1092 = vpack.c.b16 %v1077, %v1076
  %v1093 = vpack.c.b16 %v1079, %v1078
  %v1094 = vpack.c.b16 %v1081, %v1080
  %v1095 = vpack.c.b16 %v1083, %v1082
  %v1096 = vpack.c.b16 %v1085, %v1084
  %v1097 = vpack.c.b16 %v1087, %v1086
  %v1098 = vpack.c.b16 %v1089, %v1088
  %v1099 = vpack.c.b16 %v1091, %v1090
  %1108 = vmatpush.bf16.msra.mxu0 %v1099
  %1109 = vmatpush.bf16.msra.mxu0 %v1098
  %1110 = vmatpush.bf16.msra.mxu0 %v1097
  %1111 = vmatpush.bf16.msra.mxu0 %v1096
  %1112 = vmatpush.bf16.msra.mxu0 %v1095
  %1113 = vmatpush.bf16.msra.mxu0 %v1094
  %1114 = vmatpush.bf16.msra.mxu0 %v1093
  %1115 = vmatpush.bf16.msra.mxu0 %v1092
  %1116 = vmatmul.bf16.gmra.mxu0 %v1032
  %v1117 = vpop.f32.mrf.mxu0
  %v1118 = vadd.f32 0.0, %v1117
  %v1119 = vpop.f32.mrf.mxu0
  %v1120 = vadd.f32 0.0, %v1119
  %1121 = vmatmul.bf16.gmra.mxu0 %v1033
  %v1122 = vpop.f32.mrf.mxu0
  %v1123 = vadd.f32 0.0, %v1122
  %v1124 = vpop.f32.mrf.mxu0
  %v1125 = vadd.f32 0.0, %v1124
  %1126 = vmatmul.bf16.gmra.mxu0 %v1034
  %v1127 = vpop.f32.mrf.mxu0
  %v1128 = vadd.f32 0.0, %v1127
  %v1129 = vpop.f32.mrf.mxu0
  %v1130 = vadd.f32 0.0, %v1129
  %1131 = vmatmul.bf16.gmra.mxu0 %v1035
  %v1132 = vpop.f32.mrf.mxu0
  %v1133 = vadd.f32 0.0, %v1132
  %v1134 = vpop.f32.mrf.mxu0
  %v1135 = vadd.f32 0.0, %v1134
  %1136 = vmatmul.bf16.gmra.mxu0 %v1036
  %v1137 = vpop.f32.mrf.mxu0
  %v1138 = vadd.f32 0.0, %v1137
  %v1139 = vpop.f32.mrf.mxu0
  %v1140 = vadd.f32 0.0, %v1139
  %1141 = vmatmul.bf16.gmra.mxu0 %v1037
  %v1142 = vpop.f32.mrf.mxu0
  %v1143 = vadd.f32 0.0, %v1142
  %v1144 = vpop.f32.mrf.mxu0
  %v1145 = vadd.f32 0.0, %v1144
  %1146 = vmatmul.bf16.gmra.mxu0 %v1038
  %v1147 = vpop.f32.mrf.mxu0
  %v1148 = vadd.f32 0.0, %v1147
  %v1149 = vpop.f32.mrf.mxu0
  %v1150 = vadd.f32 0.0, %v1149
  %1151 = vmatmul.bf16.gmra.mxu0 %v1039
  %v1152 = vpop.f32.mrf.mxu0
  %v1153 = vadd.f32 0.0, %v1152
  %v1154 = vpop.f32.mrf.mxu0
  %v1155 = vadd.f32 0.0, %v1154
  %1156 = vmatmul.bf16.gmra.mxu0 %v1040
  %v1157 = vpop.f32.mrf.mxu0
  %v1158 = vadd.f32 0.0, %v1157
  %v1159 = vpop.f32.mrf.mxu0
  %v1160 = vadd.f32 0.0, %v1159
  %1161 = vmatmul.bf16.gmra.mxu0 %v1041
  %v1162 = vpop.f32.mrf.mxu0
  %v1163 = vadd.f32 0.0, %v1162
  %v1164 = vpop.f32.mrf.mxu0
  %v1165 = vadd.f32 0.0, %v1164
  %1166 = vmatmul.bf16.gmra.mxu0 %v1042
  %v1167 = vpop.f32.mrf.mxu0
  %v1168 = vadd.f32 0.0, %v1167
  %v1169 = vpop.f32.mrf.mxu0
  %1170 = vdwg.mxu0
  %v1171 = vadd.f32 %v990, %v1118
  %v1172 = vadd.f32 %v991, %v1120
  %v1173 = vadd.f32 %v992, %v1123
  %v1174 = vadd.f32 %v993, %v1125
  %v1175 = vadd.f32 %v994, %v1128
  %v1176 = vadd.f32 %v995, %v1130
  %v1177 = vadd.f32 %v996, %v1133
  %v1178 = vadd.f32 %v997, %v1135
  %v1179 = vadd.f32 %v998, %v1138
  %v1180 = vadd.f32 %v999, %v1140
  %v1181 = vadd.f32 %v1000, %v1143
  %v1182 = vadd.f32 %v1001, %v1145
  %v1183 = vadd.f32 %v1002, %v1148
  %v1184 = vadd.f32 %v1003, %v1150
  %v1185 = vadd.f32 %v1004, %v1153
  %v1186 = vadd.f32 %v1005, %v1155
  %v1187 = vadd.f32 %v1006, %v1158
  %v1188 = vadd.f32 %v1007, %v1160
  %v1189 = vadd.f32 %v1008, %v1163
  %v1190 = vadd.f32 %v1009, %v1165
  %v1191 = vadd.f32 %v1010, %v1168
  %v1192 = vld [vmem:[%s1 + $0x9] sm:$0xff]
  %v1193 = vld [vmem:[%s1 + $0x11] sm:$0xff]
  %v1194 = vld [vmem:[%s1 + $0x19] sm:$0xff]
  %v1195 = vld [vmem:[%s1 + $0x21] sm:$0xff]
  %v1196 = vld [vmem:[%s1 + $0x29] sm:$0xff]
  %v1197 = vld [vmem:[%s1 + $0x31] sm:$0xff]
  %v1198 = vld [vmem:[%s1 + $0x39] sm:$0xff]
  %v1199 = vld [vmem:[%s1 + $0x41] sm:$0xff]
  %v1200 = vld [vmem:[%s1 + $0x49] sm:$0xff]
  %v1201 = vld [vmem:[%s1 + $0x51] sm:$0xff]
  %v1202 = vld [vmem:[%s1 + $0x59] sm:$0xff]
  %v1203 = vld [vmem:[%s1 + $0x61] sm:$0xff]
  %v1204 = vld [vmem:[%s1 + $0x69] sm:$0xff]
  %v1205 = vld [vmem:[%s1 + $0x71] sm:$0xff]
  %v1206 = vld [vmem:[%s1 + $0x79] sm:$0xff]
  %v1207 = vld [vmem:[%s1 + $0x81] sm:$0xff]
  %v1208 = vld [vmem:[%s1 + $0x89] sm:$0xff]
  %v1209 = vld [vmem:[%s1 + $0x91] sm:$0xff]
  %v1210 = vld [vmem:[%s1 + $0x99] sm:$0xff]
  %v1211 = vld [vmem:[%s1 + $0xa1] sm:$0xff]
  %v1212 = vld [vmem:[%s1 + $0xa9] sm:$0x3]
  %v1213 = vpack.c.bf16 %v1193, %v1192
  %v1214 = vpack.c.bf16 %v1195, %v1194
  %v1215 = vpack.c.bf16 %v1197, %v1196
  %v1216 = vpack.c.bf16 %v1199, %v1198
  %v1217 = vpack.c.bf16 %v1201, %v1200
  %v1218 = vpack.c.bf16 %v1203, %v1202
  %v1219 = vpack.c.bf16 %v1205, %v1204
  %v1220 = vpack.c.bf16 %v1207, %v1206
  %v1221 = vpack.c.bf16 %v1209, %v1208
  %v1222 = vpack.c.bf16 %v1211, %v1210
  %v1223 = vpack.c.bf16 %v1212, %v1212
  %s1224 = scalar_lea.vmem %s3, 384
  %v1225 = vld [vmem:[%s1224] sm:$0xf]
  %v1226 = vld [vmem:[%s1224 + $0x4] sm:$0xf]
  %v1227 = vld [vmem:[%s1224 + $0x8] sm:$0xf]
  %v1228 = vld [vmem:[%s1224 + $0xc] sm:$0xf]
  %v1229 = vld [vmem:[%s1224 + $0x10] sm:$0xf]
  %v1230 = vld [vmem:[%s1224 + $0x14] sm:$0xf]
  %v1231 = vld [vmem:[%s1224 + $0x18] sm:$0xf]
  %v1232 = vld [vmem:[%s1224 + $0x1c] sm:$0xf]
  %v1233 = vld [vmem:[%s1224 + $0x20] sm:$0xf]
  %v1234 = vld [vmem:[%s1224 + $0x24] sm:$0xf]
  %v1235 = vld [vmem:[%s1224 + $0x28] sm:$0xf]
  %v1236 = vld [vmem:[%s1224 + $0x2c] sm:$0xf]
  %v1237 = vld [vmem:[%s1224 + $0x30] sm:$0xf]
  %v1238 = vld [vmem:[%s1224 + $0x34] sm:$0xf]
  %v1239 = vld [vmem:[%s1224 + $0x38] sm:$0xf]
  %v1240 = vld [vmem:[%s1224 + $0x3c] sm:$0xf]
  %v1257 = vunpack.c.l.b16 %v1225
  %v1258 = vunpack.c.l.b16 %v1226
  %v1259 = vunpack.c.l.b16 %v1227
  %v1260 = vunpack.c.l.b16 %v1228
  %v1261 = vunpack.c.l.b16 %v1229
  %v1262 = vunpack.c.l.b16 %v1230
  %v1263 = vunpack.c.l.b16 %v1231
  %v1264 = vunpack.c.l.b16 %v1232
  %v1265 = vunpack.c.l.b16 %v1233
  %v1266 = vunpack.c.l.b16 %v1234
  %v1267 = vunpack.c.l.b16 %v1235
  %v1268 = vunpack.c.l.b16 %v1236
  %v1269 = vunpack.c.l.b16 %v1237
  %v1270 = vunpack.c.l.b16 %v1238
  %v1271 = vunpack.c.l.b16 %v1239
  %v1272 = vunpack.c.l.b16 %v1240
  %v1273 = vpack.c.b16 %v1258, %v1257
  %v1274 = vpack.c.b16 %v1260, %v1259
  %v1275 = vpack.c.b16 %v1262, %v1261
  %v1276 = vpack.c.b16 %v1264, %v1263
  %v1277 = vpack.c.b16 %v1266, %v1265
  %v1278 = vpack.c.b16 %v1268, %v1267
  %v1279 = vpack.c.b16 %v1270, %v1269
  %v1280 = vpack.c.b16 %v1272, %v1271
  %1289 = vmatpush.bf16.msra.mxu0 %v1280
  %1290 = vmatpush.bf16.msra.mxu0 %v1279
  %1291 = vmatpush.bf16.msra.mxu0 %v1278
  %1292 = vmatpush.bf16.msra.mxu0 %v1277
  %1293 = vmatpush.bf16.msra.mxu0 %v1276
  %1294 = vmatpush.bf16.msra.mxu0 %v1275
  %1295 = vmatpush.bf16.msra.mxu0 %v1274
  %1296 = vmatpush.bf16.msra.mxu0 %v1273
  %1297 = vmatmul.bf16.gmra.mxu0 %v1213
  %v1298 = vpop.f32.mrf.mxu0
  %v1299 = vadd.f32 0.0, %v1298
  %v1300 = vpop.f32.mrf.mxu0
  %v1301 = vadd.f32 0.0, %v1300
  %1302 = vmatmul.bf16.gmra.mxu0 %v1214
  %v1303 = vpop.f32.mrf.mxu0
  %v1304 = vadd.f32 0.0, %v1303
  %v1305 = vpop.f32.mrf.mxu0
  %v1306 = vadd.f32 0.0, %v1305
  %1307 = vmatmul.bf16.gmra.mxu0 %v1215
  %v1308 = vpop.f32.mrf.mxu0
  %v1309 = vadd.f32 0.0, %v1308
  %v1310 = vpop.f32.mrf.mxu0
  %v1311 = vadd.f32 0.0, %v1310
  %1312 = vmatmul.bf16.gmra.mxu0 %v1216
  %v1313 = vpop.f32.mrf.mxu0
  %v1314 = vadd.f32 0.0, %v1313
  %v1315 = vpop.f32.mrf.mxu0
  %v1316 = vadd.f32 0.0, %v1315
  %1317 = vmatmul.bf16.gmra.mxu0 %v1217
  %v1318 = vpop.f32.mrf.mxu0
  %v1319 = vadd.f32 0.0, %v1318
  %v1320 = vpop.f32.mrf.mxu0
  %v1321 = vadd.f32 0.0, %v1320
  %1322 = vmatmul.bf16.gmra.mxu0 %v1218
  %v1323 = vpop.f32.mrf.mxu0
  %v1324 = vadd.f32 0.0, %v1323
  %v1325 = vpop.f32.mrf.mxu0
  %v1326 = vadd.f32 0.0, %v1325
  %1327 = vmatmul.bf16.gmra.mxu0 %v1219
  %v1328 = vpop.f32.mrf.mxu0
  %v1329 = vadd.f32 0.0, %v1328
  %v1330 = vpop.f32.mrf.mxu0
  %v1331 = vadd.f32 0.0, %v1330
  %1332 = vmatmul.bf16.gmra.mxu0 %v1220
  %v1333 = vpop.f32.mrf.mxu0
  %v1334 = vadd.f32 0.0, %v1333
  %v1335 = vpop.f32.mrf.mxu0
  %v1336 = vadd.f32 0.0, %v1335
  %1337 = vmatmul.bf16.gmra.mxu0 %v1221
  %v1338 = vpop.f32.mrf.mxu0
  %v1339 = vadd.f32 0.0, %v1338
  %v1340 = vpop.f32.mrf.mxu0
  %v1341 = vadd.f32 0.0, %v1340
  %1342 = vmatmul.bf16.gmra.mxu0 %v1222
  %v1343 = vpop.f32.mrf.mxu0
  %v1344 = vadd.f32 0.0, %v1343
  %v1345 = vpop.f32.mrf.mxu0
  %v1346 = vadd.f32 0.0, %v1345
  %1347 = vmatmul.bf16.gmra.mxu0 %v1223
  %v1348 = vpop.f32.mrf.mxu0
  %v1349 = vadd.f32 0.0, %v1348
  %v1350 = vpop.f32.mrf.mxu0
  %1351 = vdwg.mxu0
  %v1352 = vadd.f32 %v1171, %v1299
  %v1353 = vadd.f32 %v1172, %v1301
  %v1354 = vadd.f32 %v1173, %v1304
  %v1355 = vadd.f32 %v1174, %v1306
  %v1356 = vadd.f32 %v1175, %v1309
  %v1357 = vadd.f32 %v1176, %v1311
  %v1358 = vadd.f32 %v1177, %v1314
  %v1359 = vadd.f32 %v1178, %v1316
  %v1360 = vadd.f32 %v1179, %v1319
  %v1361 = vadd.f32 %v1180, %v1321
  %v1362 = vadd.f32 %v1181, %v1324
  %v1363 = vadd.f32 %v1182, %v1326
  %v1364 = vadd.f32 %v1183, %v1329
  %v1365 = vadd.f32 %v1184, %v1331
  %v1366 = vadd.f32 %v1185, %v1334
  %v1367 = vadd.f32 %v1186, %v1336
  %v1368 = vadd.f32 %v1187, %v1339
  %v1369 = vadd.f32 %v1188, %v1341
  %v1370 = vadd.f32 %v1189, %v1344
  %v1371 = vadd.f32 %v1190, %v1346
  %v1372 = vadd.f32 %v1191, %v1349
  %v1373 = vld [vmem:[%s194 + $0x9] sm:$0xff]
  %v1374 = vld [vmem:[%s194 + $0x11] sm:$0xff]
  %v1375 = vld [vmem:[%s194 + $0x19] sm:$0xff]
  %v1376 = vld [vmem:[%s194 + $0x21] sm:$0xff]
  %v1377 = vld [vmem:[%s194 + $0x29] sm:$0xff]
  %v1378 = vld [vmem:[%s194 + $0x31] sm:$0xff]
  %v1379 = vld [vmem:[%s194 + $0x39] sm:$0xff]
  %v1380 = vld [vmem:[%s194 + $0x41] sm:$0xff]
  %v1381 = vld [vmem:[%s194 + $0x49] sm:$0xff]
  %v1382 = vld [vmem:[%s194 + $0x51] sm:$0xff]
  %v1383 = vld [vmem:[%s194 + $0x59] sm:$0xff]
  %v1384 = vld [vmem:[%s194 + $0x61] sm:$0xff]
  %v1385 = vld [vmem:[%s194 + $0x69] sm:$0xff]
  %v1386 = vld [vmem:[%s194 + $0x71] sm:$0xff]
  %v1387 = vld [vmem:[%s194 + $0x79] sm:$0xff]
  %v1388 = vld [vmem:[%s194 + $0x81] sm:$0xff]
  %v1389 = vld [vmem:[%s194 + $0x89] sm:$0xff]
  %v1390 = vld [vmem:[%s194 + $0x91] sm:$0xff]
  %v1391 = vld [vmem:[%s194 + $0x99] sm:$0xff]
  %v1392 = vld [vmem:[%s194 + $0xa1] sm:$0xff]
  %v1393 = vld [vmem:[%s194 + $0xa9] sm:$0x3]
  %v1394 = vpack.c.bf16 %v1374, %v1373
  %v1395 = vpack.c.bf16 %v1376, %v1375
  %v1396 = vpack.c.bf16 %v1378, %v1377
  %v1397 = vpack.c.bf16 %v1380, %v1379
  %v1398 = vpack.c.bf16 %v1382, %v1381
  %v1399 = vpack.c.bf16 %v1384, %v1383
  %v1400 = vpack.c.bf16 %v1386, %v1385
  %v1401 = vpack.c.bf16 %v1388, %v1387
  %v1402 = vpack.c.bf16 %v1390, %v1389
  %v1403 = vpack.c.bf16 %v1392, %v1391
  %v1404 = vpack.c.bf16 %v1393, %v1393
  %s1405 = scalar_lea.vmem %s3, 448
  %v1406 = vld [vmem:[%s1405] sm:$0xf]
  %v1407 = vld [vmem:[%s1405 + $0x4] sm:$0xf]
  %v1408 = vld [vmem:[%s1405 + $0x8] sm:$0xf]
  %v1409 = vld [vmem:[%s1405 + $0xc] sm:$0xf]
  %v1410 = vld [vmem:[%s1405 + $0x10] sm:$0xf]
  %v1411 = vld [vmem:[%s1405 + $0x14] sm:$0xf]
  %v1412 = vld [vmem:[%s1405 + $0x18] sm:$0xf]
  %v1413 = vld [vmem:[%s1405 + $0x1c] sm:$0xf]
  %v1414 = vld [vmem:[%s1405 + $0x20] sm:$0xf]
  %v1415 = vld [vmem:[%s1405 + $0x24] sm:$0xf]
  %v1416 = vld [vmem:[%s1405 + $0x28] sm:$0xf]
  %v1417 = vld [vmem:[%s1405 + $0x2c] sm:$0xf]
  %v1418 = vld [vmem:[%s1405 + $0x30] sm:$0xf]
  %v1419 = vld [vmem:[%s1405 + $0x34] sm:$0xf]
  %v1420 = vld [vmem:[%s1405 + $0x38] sm:$0xf]
  %v1421 = vld [vmem:[%s1405 + $0x3c] sm:$0xf]
  %v1438 = vunpack.c.l.b16 %v1406
  %v1439 = vunpack.c.l.b16 %v1407
  %v1440 = vunpack.c.l.b16 %v1408
  %v1441 = vunpack.c.l.b16 %v1409
  %v1442 = vunpack.c.l.b16 %v1410
  %v1443 = vunpack.c.l.b16 %v1411
  %v1444 = vunpack.c.l.b16 %v1412
  %v1445 = vunpack.c.l.b16 %v1413
  %v1446 = vunpack.c.l.b16 %v1414
  %v1447 = vunpack.c.l.b16 %v1415
  %v1448 = vunpack.c.l.b16 %v1416
  %v1449 = vunpack.c.l.b16 %v1417
  %v1450 = vunpack.c.l.b16 %v1418
  %v1451 = vunpack.c.l.b16 %v1419
  %v1452 = vunpack.c.l.b16 %v1420
  %v1453 = vunpack.c.l.b16 %v1421
  %v1454 = vpack.c.b16 %v1439, %v1438
  %v1455 = vpack.c.b16 %v1441, %v1440
  %v1456 = vpack.c.b16 %v1443, %v1442
  %v1457 = vpack.c.b16 %v1445, %v1444
  %v1458 = vpack.c.b16 %v1447, %v1446
  %v1459 = vpack.c.b16 %v1449, %v1448
  %v1460 = vpack.c.b16 %v1451, %v1450
  %v1461 = vpack.c.b16 %v1453, %v1452
  %1470 = vmatpush.bf16.msra.mxu0 %v1461
  %1471 = vmatpush.bf16.msra.mxu0 %v1460
  %1472 = vmatpush.bf16.msra.mxu0 %v1459
  %1473 = vmatpush.bf16.msra.mxu0 %v1458
  %1474 = vmatpush.bf16.msra.mxu0 %v1457
  %1475 = vmatpush.bf16.msra.mxu0 %v1456
  %1476 = vmatpush.bf16.msra.mxu0 %v1455
  %1477 = vmatpush.bf16.msra.mxu0 %v1454
  %1478 = vmatmul.bf16.gmra.mxu0 %v1394
  %v1479 = vpop.f32.mrf.mxu0
  %v1480 = vadd.f32 0.0, %v1479
  %v1481 = vpop.f32.mrf.mxu0
  %v1482 = vadd.f32 0.0, %v1481
  %1483 = vmatmul.bf16.gmra.mxu0 %v1395
  %v1484 = vpop.f32.mrf.mxu0
  %v1485 = vadd.f32 0.0, %v1484
  %v1486 = vpop.f32.mrf.mxu0
  %v1487 = vadd.f32 0.0, %v1486
  %1488 = vmatmul.bf16.gmra.mxu0 %v1396
  %v1489 = vpop.f32.mrf.mxu0
  %v1490 = vadd.f32 0.0, %v1489
  %v1491 = vpop.f32.mrf.mxu0
  %v1492 = vadd.f32 0.0, %v1491
  %1493 = vmatmul.bf16.gmra.mxu0 %v1397
  %v1494 = vpop.f32.mrf.mxu0
  %v1495 = vadd.f32 0.0, %v1494
  %v1496 = vpop.f32.mrf.mxu0
  %v1497 = vadd.f32 0.0, %v1496
  %1498 = vmatmul.bf16.gmra.mxu0 %v1398
  %v1499 = vpop.f32.mrf.mxu0
  %v1500 = vadd.f32 0.0, %v1499
  %v1501 = vpop.f32.mrf.mxu0
  %v1502 = vadd.f32 0.0, %v1501
  %1503 = vmatmul.bf16.gmra.mxu0 %v1399
  %v1504 = vpop.f32.mrf.mxu0
  %v1505 = vadd.f32 0.0, %v1504
  %v1506 = vpop.f32.mrf.mxu0
  %v1507 = vadd.f32 0.0, %v1506
  %1508 = vmatmul.bf16.gmra.mxu0 %v1400
  %v1509 = vpop.f32.mrf.mxu0
  %v1510 = vadd.f32 0.0, %v1509
  %v1511 = vpop.f32.mrf.mxu0
  %v1512 = vadd.f32 0.0, %v1511
  %1513 = vmatmul.bf16.gmra.mxu0 %v1401
  %v1514 = vpop.f32.mrf.mxu0
  %v1515 = vadd.f32 0.0, %v1514
  %v1516 = vpop.f32.mrf.mxu0
  %v1517 = vadd.f32 0.0, %v1516
  %1518 = vmatmul.bf16.gmra.mxu0 %v1402
  %v1519 = vpop.f32.mrf.mxu0
  %v1520 = vadd.f32 0.0, %v1519
  %v1521 = vpop.f32.mrf.mxu0
  %v1522 = vadd.f32 0.0, %v1521
  %1523 = vmatmul.bf16.gmra.mxu0 %v1403
  %v1524 = vpop.f32.mrf.mxu0
  %v1525 = vadd.f32 0.0, %v1524
  %v1526 = vpop.f32.mrf.mxu0
  %v1527 = vadd.f32 0.0, %v1526
  %1528 = vmatmul.bf16.gmra.mxu0 %v1404
  %v1529 = vpop.f32.mrf.mxu0
  %v1530 = vadd.f32 0.0, %v1529
  %v1531 = vpop.f32.mrf.mxu0
  %1532 = vdwg.mxu0
  %v1533 = vadd.f32 %v1352, %v1480
  %v1534 = vadd.f32 %v1353, %v1482
  %v1535 = vadd.f32 %v1354, %v1485
  %v1536 = vadd.f32 %v1355, %v1487
  %v1537 = vadd.f32 %v1356, %v1490
  %v1538 = vadd.f32 %v1357, %v1492
  %v1539 = vadd.f32 %v1358, %v1495
  %v1540 = vadd.f32 %v1359, %v1497
  %v1541 = vadd.f32 %v1360, %v1500
  %v1542 = vadd.f32 %v1361, %v1502
  %v1543 = vadd.f32 %v1362, %v1505
  %v1544 = vadd.f32 %v1363, %v1507
  %v1545 = vadd.f32 %v1364, %v1510
  %v1546 = vadd.f32 %v1365, %v1512
  %v1547 = vadd.f32 %v1366, %v1515
  %v1548 = vadd.f32 %v1367, %v1517
  %v1549 = vadd.f32 %v1368, %v1520
  %v1550 = vadd.f32 %v1369, %v1522
  %v1551 = vadd.f32 %v1370, %v1525
  %v1552 = vadd.f32 %v1371, %v1527
  %v1553 = vadd.f32 %v1372, %v1530
  %v1554 = vld [vmem:[%s1 + $0xa] sm:$0xff]
  %v1555 = vld [vmem:[%s1 + $0x12] sm:$0xff]
  %v1556 = vld [vmem:[%s1 + $0x1a] sm:$0xff]
  %v1557 = vld [vmem:[%s1 + $0x22] sm:$0xff]
  %v1558 = vld [vmem:[%s1 + $0x2a] sm:$0xff]
  %v1559 = vld [vmem:[%s1 + $0x32] sm:$0xff]
  %v1560 = vld [vmem:[%s1 + $0x3a] sm:$0xff]
  %v1561 = vld [vmem:[%s1 + $0x42] sm:$0xff]
  %v1562 = vld [vmem:[%s1 + $0x4a] sm:$0xff]
  %v1563 = vld [vmem:[%s1 + $0x52] sm:$0xff]
  %v1564 = vld [vmem:[%s1 + $0x5a] sm:$0xff]
  %v1565 = vld [vmem:[%s1 + $0x62] sm:$0xff]
  %v1566 = vld [vmem:[%s1 + $0x6a] sm:$0xff]
  %v1567 = vld [vmem:[%s1 + $0x72] sm:$0xff]
  %v1568 = vld [vmem:[%s1 + $0x7a] sm:$0xff]
  %v1569 = vld [vmem:[%s1 + $0x82] sm:$0xff]
  %v1570 = vld [vmem:[%s1 + $0x8a] sm:$0xff]
  %v1571 = vld [vmem:[%s1 + $0x92] sm:$0xff]
  %v1572 = vld [vmem:[%s1 + $0x9a] sm:$0xff]
  %v1573 = vld [vmem:[%s1 + $0xa2] sm:$0xff]
  %v1574 = vld [vmem:[%s1 + $0xaa] sm:$0x3]
  %v1575 = vpack.c.bf16 %v1555, %v1554
  %v1576 = vpack.c.bf16 %v1557, %v1556
  %v1577 = vpack.c.bf16 %v1559, %v1558
  %v1578 = vpack.c.bf16 %v1561, %v1560
  %v1579 = vpack.c.bf16 %v1563, %v1562
  %v1580 = vpack.c.bf16 %v1565, %v1564
  %v1581 = vpack.c.bf16 %v1567, %v1566
  %v1582 = vpack.c.bf16 %v1569, %v1568
  %v1583 = vpack.c.bf16 %v1571, %v1570
  %v1584 = vpack.c.bf16 %v1573, %v1572
  %v1585 = vpack.c.bf16 %v1574, %v1574
  %s1586 = scalar_lea.vmem %s3, 512
  %v1587 = vld [vmem:[%s1586] sm:$0xf]
  %v1588 = vld [vmem:[%s1586 + $0x4] sm:$0xf]
  %v1589 = vld [vmem:[%s1586 + $0x8] sm:$0xf]
  %v1590 = vld [vmem:[%s1586 + $0xc] sm:$0xf]
  %v1591 = vld [vmem:[%s1586 + $0x10] sm:$0xf]
  %v1592 = vld [vmem:[%s1586 + $0x14] sm:$0xf]
  %v1593 = vld [vmem:[%s1586 + $0x18] sm:$0xf]
  %v1594 = vld [vmem:[%s1586 + $0x1c] sm:$0xf]
  %v1595 = vld [vmem:[%s1586 + $0x20] sm:$0xf]
  %v1596 = vld [vmem:[%s1586 + $0x24] sm:$0xf]
  %v1597 = vld [vmem:[%s1586 + $0x28] sm:$0xf]
  %v1598 = vld [vmem:[%s1586 + $0x2c] sm:$0xf]
  %v1599 = vld [vmem:[%s1586 + $0x30] sm:$0xf]
  %v1600 = vld [vmem:[%s1586 + $0x34] sm:$0xf]
  %v1601 = vld [vmem:[%s1586 + $0x38] sm:$0xf]
  %v1602 = vld [vmem:[%s1586 + $0x3c] sm:$0xf]
  %v1619 = vunpack.c.l.b16 %v1587
  %v1620 = vunpack.c.l.b16 %v1588
  %v1621 = vunpack.c.l.b16 %v1589
  %v1622 = vunpack.c.l.b16 %v1590
  %v1623 = vunpack.c.l.b16 %v1591
  %v1624 = vunpack.c.l.b16 %v1592
  %v1625 = vunpack.c.l.b16 %v1593
  %v1626 = vunpack.c.l.b16 %v1594
  %v1627 = vunpack.c.l.b16 %v1595
  %v1628 = vunpack.c.l.b16 %v1596
  %v1629 = vunpack.c.l.b16 %v1597
  %v1630 = vunpack.c.l.b16 %v1598
  %v1631 = vunpack.c.l.b16 %v1599
  %v1632 = vunpack.c.l.b16 %v1600
  %v1633 = vunpack.c.l.b16 %v1601
  %v1634 = vunpack.c.l.b16 %v1602
  %v1635 = vpack.c.b16 %v1620, %v1619
  %v1636 = vpack.c.b16 %v1622, %v1621
  %v1637 = vpack.c.b16 %v1624, %v1623
  %v1638 = vpack.c.b16 %v1626, %v1625
  %v1639 = vpack.c.b16 %v1628, %v1627
  %v1640 = vpack.c.b16 %v1630, %v1629
  %v1641 = vpack.c.b16 %v1632, %v1631
  %v1642 = vpack.c.b16 %v1634, %v1633
  %1651 = vmatpush.bf16.msra.mxu0 %v1642
  %1652 = vmatpush.bf16.msra.mxu0 %v1641
  %1653 = vmatpush.bf16.msra.mxu0 %v1640
  %1654 = vmatpush.bf16.msra.mxu0 %v1639
  %1655 = vmatpush.bf16.msra.mxu0 %v1638
  %1656 = vmatpush.bf16.msra.mxu0 %v1637
  %1657 = vmatpush.bf16.msra.mxu0 %v1636
  %1658 = vmatpush.bf16.msra.mxu0 %v1635
  %1659 = vmatmul.bf16.gmra.mxu0 %v1575
  %v1660 = vpop.f32.mrf.mxu0
  %v1661 = vadd.f32 0.0, %v1660
  %v1662 = vpop.f32.mrf.mxu0
  %v1663 = vadd.f32 0.0, %v1662
  %1664 = vmatmul.bf16.gmra.mxu0 %v1576
  %v1665 = vpop.f32.mrf.mxu0
  %v1666 = vadd.f32 0.0, %v1665
  %v1667 = vpop.f32.mrf.mxu0
  %v1668 = vadd.f32 0.0, %v1667
  %1669 = vmatmul.bf16.gmra.mxu0 %v1577
  %v1670 = vpop.f32.mrf.mxu0
  %v1671 = vadd.f32 0.0, %v1670
  %v1672 = vpop.f32.mrf.mxu0
  %v1673 = vadd.f32 0.0, %v1672
  %1674 = vmatmul.bf16.gmra.mxu0 %v1578
  %v1675 = vpop.f32.mrf.mxu0
  %v1676 = vadd.f32 0.0, %v1675
  %v1677 = vpop.f32.mrf.mxu0
  %v1678 = vadd.f32 0.0, %v1677
  %1679 = vmatmul.bf16.gmra.mxu0 %v1579
  %v1680 = vpop.f32.mrf.mxu0
  %v1681 = vadd.f32 0.0, %v1680
  %v1682 = vpop.f32.mrf.mxu0
  %v1683 = vadd.f32 0.0, %v1682
  %1684 = vmatmul.bf16.gmra.mxu0 %v1580
  %v1685 = vpop.f32.mrf.mxu0
  %v1686 = vadd.f32 0.0, %v1685
  %v1687 = vpop.f32.mrf.mxu0
  %v1688 = vadd.f32 0.0, %v1687
  %1689 = vmatmul.bf16.gmra.mxu0 %v1581
  %v1690 = vpop.f32.mrf.mxu0
  %v1691 = vadd.f32 0.0, %v1690
  %v1692 = vpop.f32.mrf.mxu0
  %v1693 = vadd.f32 0.0, %v1692
  %1694 = vmatmul.bf16.gmra.mxu0 %v1582
  %v1695 = vpop.f32.mrf.mxu0
  %v1696 = vadd.f32 0.0, %v1695
  %v1697 = vpop.f32.mrf.mxu0
  %v1698 = vadd.f32 0.0, %v1697
  %1699 = vmatmul.bf16.gmra.mxu0 %v1583
  %v1700 = vpop.f32.mrf.mxu0
  %v1701 = vadd.f32 0.0, %v1700
  %v1702 = vpop.f32.mrf.mxu0
  %v1703 = vadd.f32 0.0, %v1702
  %1704 = vmatmul.bf16.gmra.mxu0 %v1584
  %v1705 = vpop.f32.mrf.mxu0
  %v1706 = vadd.f32 0.0, %v1705
  %v1707 = vpop.f32.mrf.mxu0
  %v1708 = vadd.f32 0.0, %v1707
  %1709 = vmatmul.bf16.gmra.mxu0 %v1585
  %v1710 = vpop.f32.mrf.mxu0
  %v1711 = vadd.f32 0.0, %v1710
  %v1712 = vpop.f32.mrf.mxu0
  %1713 = vdwg.mxu0
  %v1714 = vadd.f32 %v1533, %v1661
  %v1715 = vadd.f32 %v1534, %v1663
  %v1716 = vadd.f32 %v1535, %v1666
  %v1717 = vadd.f32 %v1536, %v1668
  %v1718 = vadd.f32 %v1537, %v1671
  %v1719 = vadd.f32 %v1538, %v1673
  %v1720 = vadd.f32 %v1539, %v1676
  %v1721 = vadd.f32 %v1540, %v1678
  %v1722 = vadd.f32 %v1541, %v1681
  %v1723 = vadd.f32 %v1542, %v1683
  %v1724 = vadd.f32 %v1543, %v1686
  %v1725 = vadd.f32 %v1544, %v1688
  %v1726 = vadd.f32 %v1545, %v1691
  %v1727 = vadd.f32 %v1546, %v1693
  %v1728 = vadd.f32 %v1547, %v1696
  %v1729 = vadd.f32 %v1548, %v1698
  %v1730 = vadd.f32 %v1549, %v1701
  %v1731 = vadd.f32 %v1550, %v1703
  %v1732 = vadd.f32 %v1551, %v1706
  %v1733 = vadd.f32 %v1552, %v1708
  %v1734 = vadd.f32 %v1553, %v1711
  %v1735 = vld [vmem:[%s5] sm:$0x1]
  %v1737 = vperm.slane %v1735, 0
  %v1739 = vadd.f32 %v1714, %v1737
  %v1740 = vadd.f32 %v1715, %v1737
  %v1741 = vadd.f32 %v1716, %v1737
  %v1742 = vadd.f32 %v1717, %v1737
  %v1743 = vadd.f32 %v1718, %v1737
  %v1744 = vadd.f32 %v1719, %v1737
  %v1745 = vadd.f32 %v1720, %v1737
  %v1746 = vadd.f32 %v1721, %v1737
  %v1747 = vadd.f32 %v1722, %v1737
  %v1748 = vadd.f32 %v1723, %v1737
  %v1749 = vadd.f32 %v1724, %v1737
  %v1750 = vadd.f32 %v1725, %v1737
  %v1751 = vadd.f32 %v1726, %v1737
  %v1752 = vadd.f32 %v1727, %v1737
  %v1753 = vadd.f32 %v1728, %v1737
  %v1754 = vadd.f32 %v1729, %v1737
  %v1755 = vadd.f32 %v1730, %v1737
  %v1756 = vadd.f32 %v1731, %v1737
  %v1757 = vadd.f32 %v1732, %v1737
  %v1758 = vadd.f32 %v1733, %v1737
  %v1759 = vadd.f32 %v1734, %v1737
  %v1760 = vld [vmem:[%s11] sm:$0xff]
  %v1761 = vld [vmem:[%s11 + $0x8] sm:$0xff]
  %v1762 = vld [vmem:[%s11 + $0x10] sm:$0xff]
  %v1763 = vld [vmem:[%s11 + $0x18] sm:$0xff]
  %v1764 = vld [vmem:[%s11 + $0x20] sm:$0xff]
  %v1765 = vld [vmem:[%s11 + $0x28] sm:$0xff]
  %v1766 = vld [vmem:[%s11 + $0x30] sm:$0xff]
  %v1767 = vld [vmem:[%s11 + $0x38] sm:$0xff]
  %v1768 = vld [vmem:[%s11 + $0x40] sm:$0xff]
  %v1769 = vld [vmem:[%s11 + $0x48] sm:$0xff]
  %v1770 = vld [vmem:[%s11 + $0x50] sm:$0xff]
  %v1771 = vld [vmem:[%s11 + $0x58] sm:$0xff]
  %v1772 = vld [vmem:[%s11 + $0x60] sm:$0xff]
  %v1773 = vld [vmem:[%s11 + $0x68] sm:$0xff]
  %v1774 = vld [vmem:[%s11 + $0x70] sm:$0xff]
  %v1775 = vld [vmem:[%s11 + $0x78] sm:$0xff]
  %v1776 = vld [vmem:[%s11 + $0x80] sm:$0xff]
  %v1777 = vld [vmem:[%s11 + $0x88] sm:$0xff]
  %v1778 = vld [vmem:[%s11 + $0x90] sm:$0xff]
  %v1779 = vld [vmem:[%s11 + $0x98] sm:$0xff]
  %v1780 = vld [vmem:[%s11 + $0xa0] sm:$0x3]
  %1782 = vset.pattern.permute.xlu0 0
  %1783 = vperm.xlu0 %1782, %v1760
  %v1784 = vpop.permute.xlu0 %1783
  %1787 = vset.pattern.permute.xlu0 0
  %1788 = vperm.xlu0 %1787, %v1761
  %v1789 = vpop.permute.xlu0 %1788
  %1792 = vset.pattern.permute.xlu0 0
  %1793 = vperm.xlu0 %1792, %v1762
  %v1794 = vpop.permute.xlu0 %1793
  %1797 = vset.pattern.permute.xlu0 0
  %1798 = vperm.xlu0 %1797, %v1763
  %v1799 = vpop.permute.xlu0 %1798
  %1802 = vset.pattern.permute.xlu0 0
  %1803 = vperm.xlu0 %1802, %v1764
  %v1804 = vpop.permute.xlu0 %1803
  %1807 = vset.pattern.permute.xlu0 0
  %1808 = vperm.xlu0 %1807, %v1765
  %v1809 = vpop.permute.xlu0 %1808
  %1812 = vset.pattern.permute.xlu0 0
  %1813 = vperm.xlu0 %1812, %v1766
  %v1814 = vpop.permute.xlu0 %1813
  %1817 = vset.pattern.permute.xlu0 0
  %1818 = vperm.xlu0 %1817, %v1767
  %v1819 = vpop.permute.xlu0 %1818
  %1822 = vset.pattern.permute.xlu0 0
  %1823 = vperm.xlu0 %1822, %v1768
  %v1824 = vpop.permute.xlu0 %1823
  %1827 = vset.pattern.permute.xlu0 0
  %1828 = vperm.xlu0 %1827, %v1769
  %v1829 = vpop.permute.xlu0 %1828
  %1832 = vset.pattern.permute.xlu0 0
  %1833 = vperm.xlu0 %1832, %v1770
  %v1834 = vpop.permute.xlu0 %1833
  %1837 = vset.pattern.permute.xlu0 0
  %1838 = vperm.xlu0 %1837, %v1771
  %v1839 = vpop.permute.xlu0 %1838
  %1842 = vset.pattern.permute.xlu0 0
  %1843 = vperm.xlu0 %1842, %v1772
  %v1844 = vpop.permute.xlu0 %1843
  %1847 = vset.pattern.permute.xlu0 0
  %1848 = vperm.xlu0 %1847, %v1773
  %v1849 = vpop.permute.xlu0 %1848
  %1852 = vset.pattern.permute.xlu0 0
  %1853 = vperm.xlu0 %1852, %v1774
  %v1854 = vpop.permute.xlu0 %1853
  %1857 = vset.pattern.permute.xlu0 0
  %1858 = vperm.xlu0 %1857, %v1775
  %v1859 = vpop.permute.xlu0 %1858
  %1862 = vset.pattern.permute.xlu0 0
  %1863 = vperm.xlu0 %1862, %v1776
  %v1864 = vpop.permute.xlu0 %1863
  %1867 = vset.pattern.permute.xlu0 0
  %1868 = vperm.xlu0 %1867, %v1777
  %v1869 = vpop.permute.xlu0 %1868
  %1872 = vset.pattern.permute.xlu0 0
  %1873 = vperm.xlu0 %1872, %v1778
  %v1874 = vpop.permute.xlu0 %1873
  %1877 = vset.pattern.permute.xlu0 0
  %1878 = vperm.xlu0 %1877, %v1779
  %v1879 = vpop.permute.xlu0 %1878
  %1882 = vset.pattern.permute.xlu0 0
  %1883 = vperm.xlu0 %1882, %v1780
  %v1884 = vpop.permute.xlu0 %1883
  %v1886 = vmul.f32 %v1739, %v1784
  %v1887 = vmul.f32 %v1740, %v1789
  %v1888 = vmul.f32 %v1741, %v1794
  %v1889 = vmul.f32 %v1742, %v1799
  %v1890 = vmul.f32 %v1743, %v1804
  %v1891 = vmul.f32 %v1744, %v1809
  %v1892 = vmul.f32 %v1745, %v1814
  %v1893 = vmul.f32 %v1746, %v1819
  %v1894 = vmul.f32 %v1747, %v1824
  %v1895 = vmul.f32 %v1748, %v1829
  %v1896 = vmul.f32 %v1749, %v1834
  %v1897 = vmul.f32 %v1750, %v1839
  %v1898 = vmul.f32 %v1751, %v1844
  %v1899 = vmul.f32 %v1752, %v1849
  %v1900 = vmul.f32 %v1753, %v1854
  %v1901 = vmul.f32 %v1754, %v1859
  %v1902 = vmul.f32 %v1755, %v1864
  %v1903 = vmul.f32 %v1756, %v1869
  %v1904 = vmul.f32 %v1757, %v1874
  %v1905 = vmul.f32 %v1758, %v1879
  %v1906 = vmul.f32 %v1759, %v1884
  %v1907 = vadd.f32 %v1886, %v1887
  %v1908 = vadd.f32 %v1907, %v1888
  %v1909 = vadd.f32 %v1908, %v1889
  %v1910 = vadd.f32 %v1909, %v1890
  %v1911 = vadd.f32 %v1910, %v1891
  %v1912 = vadd.f32 %v1911, %v1892
  %v1913 = vadd.f32 %v1912, %v1893
  %v1914 = vadd.f32 %v1913, %v1894
  %v1915 = vadd.f32 %v1914, %v1895
  %v1916 = vadd.f32 %v1915, %v1896
  %v1917 = vadd.f32 %v1916, %v1897
  %v1918 = vadd.f32 %v1917, %v1898
  %v1919 = vadd.f32 %v1918, %v1899
  %v1920 = vadd.f32 %v1919, %v1900
  %v1921 = vadd.f32 %v1920, %v1901
  %v1922 = vadd.f32 %v1921, %v1902
  %v1923 = vadd.f32 %v1922, %v1903
  %v1924 = vadd.f32 %v1923, %v1904
  %v1925 = vadd.f32 %v1924, %v1905
  %vm1926 = vcmask 1041408
  %v1927 = vsel %vm1926, %v1906, 0.0
  %v1928 = vadd.f32 %v1925, %v1927
  %v1929 = vrot.slane %v1928, 4
  %v1930 = vadd.f32 %v1928, %v1929
  %v1931 = vrot.slane %v1930, 2
  %v1932 = vadd.f32 %v1930, %v1931
  %v1933 = vrot.slane %v1932, 1
  %v1934 = vadd.f32 %v1932, %v1933
  %v1935 = vmul.f32 %v1934, 0.0078125
  %v1936 = vmul.f32 %v1886, %v1739
  %v1937 = vmul.f32 %v1887, %v1740
  %v1938 = vmul.f32 %v1888, %v1741
  %v1939 = vmul.f32 %v1889, %v1742
  %v1940 = vmul.f32 %v1890, %v1743
  %v1941 = vmul.f32 %v1891, %v1744
  %v1942 = vmul.f32 %v1892, %v1745
  %v1943 = vmul.f32 %v1893, %v1746
  %v1944 = vmul.f32 %v1894, %v1747
  %v1945 = vmul.f32 %v1895, %v1748
  %v1946 = vmul.f32 %v1896, %v1749
  %v1947 = vmul.f32 %v1897, %v1750
  %v1948 = vmul.f32 %v1898, %v1751
  %v1949 = vmul.f32 %v1899, %v1752
  %v1950 = vmul.f32 %v1900, %v1753
  %v1951 = vmul.f32 %v1901, %v1754
  %v1952 = vmul.f32 %v1902, %v1755
  %v1953 = vmul.f32 %v1903, %v1756
  %v1954 = vmul.f32 %v1904, %v1757
  %v1955 = vmul.f32 %v1905, %v1758
  %v1956 = vmul.f32 %v1906, %v1759
  %v1957 = vadd.f32 %v1936, %v1937
  %v1958 = vadd.f32 %v1957, %v1938
  %v1959 = vadd.f32 %v1958, %v1939
  %v1960 = vadd.f32 %v1959, %v1940
  %v1961 = vadd.f32 %v1960, %v1941
  %v1962 = vadd.f32 %v1961, %v1942
  %v1963 = vadd.f32 %v1962, %v1943
  %v1964 = vadd.f32 %v1963, %v1944
  %v1965 = vadd.f32 %v1964, %v1945
  %v1966 = vadd.f32 %v1965, %v1946
  %v1967 = vadd.f32 %v1966, %v1947
  %v1968 = vadd.f32 %v1967, %v1948
  %v1969 = vadd.f32 %v1968, %v1949
  %v1970 = vadd.f32 %v1969, %v1950
  %v1971 = vadd.f32 %v1970, %v1951
  %v1972 = vadd.f32 %v1971, %v1952
  %v1973 = vadd.f32 %v1972, %v1953
  %v1974 = vadd.f32 %v1973, %v1954
  %v1975 = vadd.f32 %v1974, %v1955
  %v1976 = vsel %vm1926, %v1956, 0.0
  %v1977 = vadd.f32 %v1975, %v1976
  %v1978 = vrot.slane %v1977, 4
  %v1979 = vadd.f32 %v1977, %v1978
  %v1980 = vrot.slane %v1979, 2
  %v1981 = vadd.f32 %v1979, %v1980
  %v1982 = vrot.slane %v1981, 1
  %v1983 = vadd.f32 %v1981, %v1982
  %v1984 = vmul.f32 %v1983, 0.0078125
  %v1985 = vmul.f32 %v1935, %v1935
  %v1986 = vsub.f32 %v1984, %v1985
  %v1987 = vmax.f32 %v1986, 0.0
  %v1988 = vadd.f32 %v1987, 1e-05
  %v1989 = vrsqrt.pop %v1988
  %v1990 = vmul.f32 %v1989, %v1988
  %v1991 = vmul.f32 %v1990, %v1989
  %v1992 = vmul.f32 0.5, %v1991
  %v1993 = vsub.f32 1.5, %v1992
  %v1994 = vmul.f32 %v1989, %v1993
  %vm1995 = vweird.f32 %v1988
  %vm1996 = vweird.f32 %v1989
  %vm1997 = vmor %vm1995, %vm1996
  %v1998 = vsel %vm1997, %v1989, %v1994
  %v1999 = vsub.f32 %v1739, %v1935
  %v2000 = vsub.f32 %v1740, %v1935
  %v2001 = vsub.f32 %v1741, %v1935
  %v2002 = vsub.f32 %v1742, %v1935
  %v2003 = vsub.f32 %v1743, %v1935
  %v2004 = vsub.f32 %v1744, %v1935
  %v2005 = vsub.f32 %v1745, %v1935
  %v2006 = vsub.f32 %v1746, %v1935
  %v2007 = vsub.f32 %v1747, %v1935
  %v2008 = vsub.f32 %v1748, %v1935
  %v2009 = vsub.f32 %v1749, %v1935
  %v2010 = vsub.f32 %v1750, %v1935
  %v2011 = vsub.f32 %v1751, %v1935
  %v2012 = vsub.f32 %v1752, %v1935
  %v2013 = vsub.f32 %v1753, %v1935
  %v2014 = vsub.f32 %v1754, %v1935
  %v2015 = vsub.f32 %v1755, %v1935
  %v2016 = vsub.f32 %v1756, %v1935
  %v2017 = vsub.f32 %v1757, %v1935
  %v2018 = vsub.f32 %v1758, %v1935
  %v2019 = vsub.f32 %v1759, %v1935
  %v2020 = vmul.f32 %v1999, %v1998
  %v2021 = vmul.f32 %v2000, %v1998
  %v2022 = vmul.f32 %v2001, %v1998
  %v2023 = vmul.f32 %v2002, %v1998
  %v2024 = vmul.f32 %v2003, %v1998
  %v2025 = vmul.f32 %v2004, %v1998
  %v2026 = vmul.f32 %v2005, %v1998
  %v2027 = vmul.f32 %v2006, %v1998
  %v2028 = vmul.f32 %v2007, %v1998
  %v2029 = vmul.f32 %v2008, %v1998
  %v2030 = vmul.f32 %v2009, %v1998
  %v2031 = vmul.f32 %v2010, %v1998
  %v2032 = vmul.f32 %v2011, %v1998
  %v2033 = vmul.f32 %v2012, %v1998
  %v2034 = vmul.f32 %v2013, %v1998
  %v2035 = vmul.f32 %v2014, %v1998
  %v2036 = vmul.f32 %v2015, %v1998
  %v2037 = vmul.f32 %v2016, %v1998
  %v2038 = vmul.f32 %v2017, %v1998
  %v2039 = vmul.f32 %v2018, %v1998
  %v2040 = vmul.f32 %v2019, %v1998
  %v2041 = vld [vmem:[%s7] sm:$0x1]
  %v2043 = vperm.slane %v2041, 0
  %v2045 = vmul.f32 %v2020, %v2043
  %v2046 = vmul.f32 %v2021, %v2043
  %v2047 = vmul.f32 %v2022, %v2043
  %v2048 = vmul.f32 %v2023, %v2043
  %v2049 = vmul.f32 %v2024, %v2043
  %v2050 = vmul.f32 %v2025, %v2043
  %v2051 = vmul.f32 %v2026, %v2043
  %v2052 = vmul.f32 %v2027, %v2043
  %v2053 = vmul.f32 %v2028, %v2043
  %v2054 = vmul.f32 %v2029, %v2043
  %v2055 = vmul.f32 %v2030, %v2043
  %v2056 = vmul.f32 %v2031, %v2043
  %v2057 = vmul.f32 %v2032, %v2043
  %v2058 = vmul.f32 %v2033, %v2043
  %v2059 = vmul.f32 %v2034, %v2043
  %v2060 = vmul.f32 %v2035, %v2043
  %v2061 = vmul.f32 %v2036, %v2043
  %v2062 = vmul.f32 %v2037, %v2043
  %v2063 = vmul.f32 %v2038, %v2043
  %v2064 = vmul.f32 %v2039, %v2043
  %v2065 = vmul.f32 %v2040, %v2043
  %v2066 = vld [vmem:[%s9] sm:$0x1]
  %v2068 = vperm.slane %v2066, 0
  %v2070 = vadd.f32 %v2045, %v2068
  %v2071 = vadd.f32 %v2046, %v2068
  %v2072 = vadd.f32 %v2047, %v2068
  %v2073 = vadd.f32 %v2048, %v2068
  %v2074 = vadd.f32 %v2049, %v2068
  %v2075 = vadd.f32 %v2050, %v2068
  %v2076 = vadd.f32 %v2051, %v2068
  %v2077 = vadd.f32 %v2052, %v2068
  %v2078 = vadd.f32 %v2053, %v2068
  %v2079 = vadd.f32 %v2054, %v2068
  %v2080 = vadd.f32 %v2055, %v2068
  %v2081 = vadd.f32 %v2056, %v2068
  %v2082 = vadd.f32 %v2057, %v2068
  %v2083 = vadd.f32 %v2058, %v2068
  %v2084 = vadd.f32 %v2059, %v2068
  %v2085 = vadd.f32 %v2060, %v2068
  %v2086 = vadd.f32 %v2061, %v2068
  %v2087 = vadd.f32 %v2062, %v2068
  %v2088 = vadd.f32 %v2063, %v2068
  %v2089 = vadd.f32 %v2064, %v2068
  %v2090 = vadd.f32 %v2065, %v2068
  %v2091 = vmax.f32 %v2070, 0.0
  %v2092 = vmax.f32 %v2071, 0.0
  %v2093 = vmax.f32 %v2072, 0.0
  %v2094 = vmax.f32 %v2073, 0.0
  %v2095 = vmax.f32 %v2074, 0.0
  %v2096 = vmax.f32 %v2075, 0.0
  %v2097 = vmax.f32 %v2076, 0.0
  %v2098 = vmax.f32 %v2077, 0.0
  %v2099 = vmax.f32 %v2078, 0.0
  %v2100 = vmax.f32 %v2079, 0.0
  %v2101 = vmax.f32 %v2080, 0.0
  %v2102 = vmax.f32 %v2081, 0.0
  %v2103 = vmax.f32 %v2082, 0.0
  %v2104 = vmax.f32 %v2083, 0.0
  %v2105 = vmax.f32 %v2084, 0.0
  %v2106 = vmax.f32 %v2085, 0.0
  %v2107 = vmax.f32 %v2086, 0.0
  %v2108 = vmax.f32 %v2087, 0.0
  %v2109 = vmax.f32 %v2088, 0.0
  %v2110 = vmax.f32 %v2089, 0.0
  %v2111 = vmax.f32 %v2090, 0.0
  %v2112 = vpack.c.bf16 %v2092, %v2091
  %v2113 = vpack.c.bf16 %v2094, %v2093
  %v2114 = vpack.c.bf16 %v2096, %v2095
  %v2115 = vpack.c.bf16 %v2098, %v2097
  %v2116 = vpack.c.bf16 %v2100, %v2099
  %v2117 = vpack.c.bf16 %v2102, %v2101
  %v2118 = vpack.c.bf16 %v2104, %v2103
  %v2119 = vpack.c.bf16 %v2106, %v2105
  %v2120 = vpack.c.bf16 %v2108, %v2107
  %v2121 = vpack.c.bf16 %v2110, %v2109
  %v2122 = vpack.c.bf16 %v2111, %v2111
  %v2123 = vld [vmem:[%s23] sm:$0xff]
  %v2124 = vld [vmem:[%s23 + $0x8] sm:$0xff]
  %v2125 = vld [vmem:[%s23 + $0x10] sm:$0xff]
  %v2126 = vld [vmem:[%s23 + $0x18] sm:$0xff]
  %v2127 = vld [vmem:[%s23 + $0x20] sm:$0xff]
  %v2128 = vld [vmem:[%s23 + $0x28] sm:$0xff]
  %v2129 = vld [vmem:[%s23 + $0x30] sm:$0xff]
  %v2137 = vunpack.c.l.b16 %v2123
  %v2138 = vunpack.c.h.b16 %v2123
  %v2139 = vunpack.c.l.b16 %v2124
  %v2140 = vunpack.c.h.b16 %v2124
  %v2141 = vunpack.c.l.b16 %v2125
  %v2142 = vunpack.c.h.b16 %v2125
  %v2143 = vunpack.c.l.b16 %v2126
  %v2144 = vunpack.c.h.b16 %v2126
  %v2145 = vunpack.c.l.b16 %v2127
  %v2146 = vunpack.c.h.b16 %v2127
  %v2147 = vunpack.c.l.b16 %v2128
  %v2148 = vunpack.c.h.b16 %v2128
  %v2149 = vunpack.c.l.b16 %v2129
  %v2150 = vunpack.c.h.b16 %v2129
  %v2151 = vpack.c.b16 %v2139, %v2137
  %v2152 = vpack.c.b16 %v2140, %v2138
  %v2153 = vpack.c.b16 %v2143, %v2141
  %v2154 = vpack.c.b16 %v2144, %v2142
  %v2155 = vpack.c.b16 %v2147, %v2145
  %v2156 = vpack.c.b16 %v2148, %v2146
  %v2157 = vpack.c.b16 %v2149, %v2149
  %v2158 = vpack.c.b16 %v2150, %v2150
  %vm2163 = vcmask 277504
  %v2165 = vsel %vm2163, %v2152, 0
  %v2168 = vsel %vm2163, %v2154, 0
  %v2171 = vsel %vm2163, %v2156, 0
  %v2174 = vsel %vm2163, %v2158, 0
  %vm2176 = vcmask 1040384
  %v2178 = vsel %vm2176, %v2122, 0
  %2180 = vmatpush.bf16.msra.mxu0 %v2119
  %2181 = vmatpush.bf16.msra.mxu0 %v2118
  %2182 = vmatpush.bf16.msra.mxu0 %v2117
  %2183 = vmatpush.bf16.msra.mxu0 %v2116
  %2184 = vmatpush.bf16.msra.mxu0 %v2115
  %2185 = vmatpush.bf16.msra.mxu0 %v2114
  %2186 = vmatpush.bf16.msra.mxu0 %v2113
  %2187 = vmatpush.bf16.msra.mxu0 %v2112
  %2188 = vmatmul.bf16.gmra.mxu0 %v2151
  %v2189 = vpop.f32.mrf.mxu0
  %v2190 = vadd.f32 0.0, %v2189
  %v2191 = vpop.f32.mrf.mxu0
  %v2192 = vadd.f32 0.0, %v2191
  %2193 = vmatmul.bf16.gmra.mxu0 %v2153
  %v2194 = vpop.f32.mrf.mxu0
  %v2195 = vadd.f32 0.0, %v2194
  %v2196 = vpop.f32.mrf.mxu0
  %v2197 = vadd.f32 0.0, %v2196
  %2198 = vmatmul.bf16.gmra.mxu0 %v2155
  %v2199 = vpop.f32.mrf.mxu0
  %v2200 = vadd.f32 0.0, %v2199
  %v2201 = vpop.f32.mrf.mxu0
  %v2202 = vadd.f32 0.0, %v2201
  %2203 = vmatmul.bf16.gmra.mxu0 %v2157
  %v2204 = vpop.f32.mrf.mxu0
  %v2205 = vadd.f32 0.0, %v2204
  %v2206 = vpop.f32.mrf.mxu0
  %2207 = vdwg.mxu0
  %2208 = vmatpush.bf16.msra.mxu0 0
  %2209 = vmatpush.bf16.msra.mxu0 0
  %2210 = vmatpush.bf16.msra.mxu0 0
  %2211 = vmatpush.bf16.msra.mxu0 0
  %2212 = vmatpush.bf16.msra.mxu0 0
  %2213 = vmatpush.bf16.msra.mxu0 %v2178
  %2214 = vmatpush.bf16.msra.mxu0 %v2121
  %2215 = vmatpush.bf16.msra.mxu0 %v2120
  %2216 = vmatmul.bf16.gmra.mxu0 %v2165
  %v2217 = vpop.f32.mrf.mxu0
  %v2218 = vadd.f32 %v2190, %v2217
  %v2219 = vpop.f32.mrf.mxu0
  %v2220 = vadd.f32 %v2192, %v2219
  %2221 = vmatmul.bf16.gmra.mxu0 %v2168
  %v2222 = vpop.f32.mrf.mxu0
  %v2223 = vadd.f32 %v2195, %v2222
  %v2224 = vpop.f32.mrf.mxu0
  %v2225 = vadd.f32 %v2197, %v2224
  %2226 = vmatmul.bf16.gmra.mxu0 %v2171
  %v2227 = vpop.f32.mrf.mxu0
  %v2228 = vadd.f32 %v2200, %v2227
  %v2229 = vpop.f32.mrf.mxu0
  %v2230 = vadd.f32 %v2202, %v2229
  %2231 = vmatmul.bf16.gmra.mxu0 %v2174
  %v2232 = vpop.f32.mrf.mxu0
  %v2233 = vadd.f32 %v2205, %v2232
  %v2234 = vpop.f32.mrf.mxu0
  %2235 = vdwg.mxu0
  %2236 = vst [vmem:[#allocation2] sm:$0xff] %v2218
  %2237 = vst [vmem:[#allocation2 + $0x8] sm:$0xff] %v2220
  %2238 = vst [vmem:[#allocation2 + $0x10] sm:$0xff] %v2223
  %2239 = vst [vmem:[#allocation2 + $0x18] sm:$0xff] %v2225
  %2240 = vst [vmem:[#allocation2 + $0x20] sm:$0xff] %v2228
  %2241 = vst [vmem:[#allocation2 + $0x28] sm:$0xff] %v2230
  %2242 = vst [vmem:[#allocation2 + $0x30] sm:$0xff] %v2233
  %s2243 = scalar_lea.vmem %s23, 56
  %v2244 = vld [vmem:[%s2243] sm:$0xff]
  %v2245 = vld [vmem:[%s2243 + $0x8] sm:$0xff]
  %v2246 = vld [vmem:[%s2243 + $0x10] sm:$0xff]
  %v2247 = vld [vmem:[%s2243 + $0x18] sm:$0xff]
  %v2248 = vld [vmem:[%s2243 + $0x20] sm:$0xff]
  %v2249 = vld [vmem:[%s2243 + $0x28] sm:$0xff]
  %v2250 = vld [vmem:[%s2243 + $0x30] sm:$0xff]
  %v2258 = vunpack.c.l.b16 %v2244
  %v2259 = vunpack.c.h.b16 %v2244
  %v2260 = vunpack.c.l.b16 %v2245
  %v2261 = vunpack.c.h.b16 %v2245
  %v2262 = vunpack.c.l.b16 %v2246
  %v2263 = vunpack.c.h.b16 %v2246
  %v2264 = vunpack.c.l.b16 %v2247
  %v2265 = vunpack.c.h.b16 %v2247
  %v2266 = vunpack.c.l.b16 %v2248
  %v2267 = vunpack.c.h.b16 %v2248
  %v2268 = vunpack.c.l.b16 %v2249
  %v2269 = vunpack.c.h.b16 %v2249
  %v2270 = vunpack.c.l.b16 %v2250
  %v2271 = vunpack.c.h.b16 %v2250
  %v2272 = vpack.c.b16 %v2260, %v2258
  %v2273 = vpack.c.b16 %v2261, %v2259
  %v2274 = vpack.c.b16 %v2264, %v2262
  %v2275 = vpack.c.b16 %v2265, %v2263
  %v2276 = vpack.c.b16 %v2268, %v2266
  %v2277 = vpack.c.b16 %v2269, %v2267
  %v2278 = vpack.c.b16 %v2270, %v2270
  %v2279 = vpack.c.b16 %v2271, %v2271
  %v2285 = vsel %vm2163, %v2273, 0
  %v2288 = vsel %vm2163, %v2275, 0
  %v2291 = vsel %vm2163, %v2277, 0
  %v2294 = vsel %vm2163, %v2279, 0
  %2296 = vmatpush.bf16.msra.mxu0 %v2119
  %2297 = vmatpush.bf16.msra.mxu0 %v2118
  %2298 = vmatpush.bf16.msra.mxu0 %v2117
  %2299 = vmatpush.bf16.msra.mxu0 %v2116
  %2300 = vmatpush.bf16.msra.mxu0 %v2115
  %2301 = vmatpush.bf16.msra.mxu0 %v2114
  %2302 = vmatpush.bf16.msra.mxu0 %v2113
  %2303 = vmatpush.bf16.msra.mxu0 %v2112
  %2304 = vmatmul.bf16.gmra.mxu0 %v2272
  %v2305 = vpop.f32.mrf.mxu0
  %v2306 = vadd.f32 0.0, %v2305
  %v2307 = vpop.f32.mrf.mxu0
  %v2308 = vadd.f32 0.0, %v2307
  %2309 = vmatmul.bf16.gmra.mxu0 %v2274
  %v2310 = vpop.f32.mrf.mxu0
  %v2311 = vadd.f32 0.0, %v2310
  %v2312 = vpop.f32.mrf.mxu0
  %v2313 = vadd.f32 0.0, %v2312
  %2314 = vmatmul.bf16.gmra.mxu0 %v2276
  %v2315 = vpop.f32.mrf.mxu0
  %v2316 = vadd.f32 0.0, %v2315
  %v2317 = vpop.f32.mrf.mxu0
  %v2318 = vadd.f32 0.0, %v2317
  %2319 = vmatmul.bf16.gmra.mxu0 %v2278
  %v2320 = vpop.f32.mrf.mxu0
  %v2321 = vadd.f32 0.0, %v2320
  %v2322 = vpop.f32.mrf.mxu0
  %2323 = vdwg.mxu0
  %2324 = vmatpush.bf16.msra.mxu0 0
  %2325 = vmatpush.bf16.msra.mxu0 0
  %2326 = vmatpush.bf16.msra.mxu0 0
  %2327 = vmatpush.bf16.msra.mxu0 0
  %2328 = vmatpush.bf16.msra.mxu0 0
  %2329 = vmatpush.bf16.msra.mxu0 %v2178
  %2330 = vmatpush.bf16.msra.mxu0 %v2121
  %2331 = vmatpush.bf16.msra.mxu0 %v2120
  %2332 = vmatmul.bf16.gmra.mxu0 %v2285
  %v2333 = vpop.f32.mrf.mxu0
  %v2334 = vadd.f32 %v2306, %v2333
  %v2335 = vpop.f32.mrf.mxu0
  %v2336 = vadd.f32 %v2308, %v2335
  %2337 = vmatmul.bf16.gmra.mxu0 %v2288
  %v2338 = vpop.f32.mrf.mxu0
  %v2339 = vadd.f32 %v2311, %v2338
  %v2340 = vpop.f32.mrf.mxu0
  %v2341 = vadd.f32 %v2313, %v2340
  %2342 = vmatmul.bf16.gmra.mxu0 %v2291
  %v2343 = vpop.f32.mrf.mxu0
  %v2344 = vadd.f32 %v2316, %v2343
  %v2345 = vpop.f32.mrf.mxu0
  %v2346 = vadd.f32 %v2318, %v2345
  %2347 = vmatmul.bf16.gmra.mxu0 %v2294
  %v2348 = vpop.f32.mrf.mxu0
  %v2349 = vadd.f32 %v2321, %v2348
  %v2350 = vpop.f32.mrf.mxu0
  %2351 = vdwg.mxu0
  %s2352 = scalar_lea.vmem [#allocation2], 56
  %2353 = vst [vmem:[%s2352] sm:$0xff] %v2334
  %2354 = vst [vmem:[%s2352 + $0x8] sm:$0xff] %v2336
  %2355 = vst [vmem:[%s2352 + $0x10] sm:$0xff] %v2339
  %2356 = vst [vmem:[%s2352 + $0x18] sm:$0xff] %v2341
  %2357 = vst [vmem:[%s2352 + $0x20] sm:$0xff] %v2344
  %2358 = vst [vmem:[%s2352 + $0x28] sm:$0xff] %v2346
  %2359 = vst [vmem:[%s2352 + $0x30] sm:$0xff] %v2349
  %s2360 = scalar_lea.vmem %s23, 112
  %v2361 = vld [vmem:[%s2360] sm:$0xff]
  %v2362 = vld [vmem:[%s2360 + $0x8] sm:$0xff]
  %v2363 = vld [vmem:[%s2360 + $0x10] sm:$0xff]
  %v2364 = vld [vmem:[%s2360 + $0x18] sm:$0xff]
  %v2365 = vld [vmem:[%s2360 + $0x20] sm:$0xff]
  %v2366 = vld [vmem:[%s2360 + $0x28] sm:$0xff]
  %v2367 = vld [vmem:[%s2360 + $0x30] sm:$0xff]
  %v2375 = vunpack.c.l.b16 %v2361
  %v2376 = vunpack.c.h.b16 %v2361
  %v2377 = vunpack.c.l.b16 %v2362
  %v2378 = vunpack.c.h.b16 %v2362
  %v2379 = vunpack.c.l.b16 %v2363
  %v2380 = vunpack.c.h.b16 %v2363
  %v2381 = vunpack.c.l.b16 %v2364
  %v2382 = vunpack.c.h.b16 %v2364
  %v2383 = vunpack.c.l.b16 %v2365
  %v2384 = vunpack.c.h.b16 %v2365
  %v2385 = vunpack.c.l.b16 %v2366
  %v2386 = vunpack.c.h.b16 %v2366
  %v2387 = vunpack.c.l.b16 %v2367
  %v2388 = vunpack.c.h.b16 %v2367
  %v2389 = vpack.c.b16 %v2377, %v2375
  %v2390 = vpack.c.b16 %v2378, %v2376
  %v2391 = vpack.c.b16 %v2381, %v2379
  %v2392 = vpack.c.b16 %v2382, %v2380
  %v2393 = vpack.c.b16 %v2385, %v2383
  %v2394 = vpack.c.b16 %v2386, %v2384
  %v2395 = vpack.c.b16 %v2387, %v2387
  %v2396 = vpack.c.b16 %v2388, %v2388
  %v2402 = vsel %vm2163, %v2390, 0
  %v2405 = vsel %vm2163, %v2392, 0
  %v2408 = vsel %vm2163, %v2394, 0
  %v2411 = vsel %vm2163, %v2396, 0
  %2413 = vmatpush.bf16.msra.mxu0 %v2119
  %2414 = vmatpush.bf16.msra.mxu0 %v2118
  %2415 = vmatpush.bf16.msra.mxu0 %v2117
  %2416 = vmatpush.bf16.msra.mxu0 %v2116
  %2417 = vmatpush.bf16.msra.mxu0 %v2115
  %2418 = vmatpush.bf16.msra.mxu0 %v2114
  %2419 = vmatpush.bf16.msra.mxu0 %v2113
  %2420 = vmatpush.bf16.msra.mxu0 %v2112
  %2421 = vmatmul.bf16.gmra.mxu0 %v2389
  %v2422 = vpop.f32.mrf.mxu0
  %v2423 = vadd.f32 0.0, %v2422
  %v2424 = vpop.f32.mrf.mxu0
  %v2425 = vadd.f32 0.0, %v2424
  %2426 = vmatmul.bf16.gmra.mxu0 %v2391
  %v2427 = vpop.f32.mrf.mxu0
  %v2428 = vadd.f32 0.0, %v2427
  %v2429 = vpop.f32.mrf.mxu0
  %v2430 = vadd.f32 0.0, %v2429
  %2431 = vmatmul.bf16.gmra.mxu0 %v2393
  %v2432 = vpop.f32.mrf.mxu0
  %v2433 = vadd.f32 0.0, %v2432
  %v2434 = vpop.f32.mrf.mxu0
  %v2435 = vadd.f32 0.0, %v2434
  %2436 = vmatmul.bf16.gmra.mxu0 %v2395
  %v2437 = vpop.f32.mrf.mxu0
  %v2438 = vadd.f32 0.0, %v2437
  %v2439 = vpop.f32.mrf.mxu0
  %2440 = vdwg.mxu0
  %2441 = vmatpush.bf16.msra.mxu0 0
  %2442 = vmatpush.bf16.msra.mxu0 0
  %2443 = vmatpush.bf16.msra.mxu0 0
  %2444 = vmatpush.bf16.msra.mxu0 0
  %2445 = vmatpush.bf16.msra.mxu0 0
  %2446 = vmatpush.bf16.msra.mxu0 %v2178
  %2447 = vmatpush.bf16.msra.mxu0 %v2121
  %2448 = vmatpush.bf16.msra.mxu0 %v2120
  %2449 = vmatmul.bf16.gmra.mxu0 %v2402
  %v2450 = vpop.f32.mrf.mxu0
  %v2451 = vadd.f32 %v2423, %v2450
  %v2452 = vpop.f32.mrf.mxu0
  %v2453 = vadd.f32 %v2425, %v2452
  %2454 = vmatmul.bf16.gmra.mxu0 %v2405
  %v2455 = vpop.f32.mrf.mxu0
  %v2456 = vadd.f32 %v2428, %v2455
  %v2457 = vpop.f32.mrf.mxu0
  %v2458 = vadd.f32 %v2430, %v2457
  %2459 = vmatmul.bf16.gmra.mxu0 %v2408
  %v2460 = vpop.f32.mrf.mxu0
  %v2461 = vadd.f32 %v2433, %v2460
  %v2462 = vpop.f32.mrf.mxu0
  %v2463 = vadd.f32 %v2435, %v2462
  %2464 = vmatmul.bf16.gmra.mxu0 %v2411
  %v2465 = vpop.f32.mrf.mxu0
  %v2466 = vadd.f32 %v2438, %v2465
  %v2467 = vpop.f32.mrf.mxu0
  %2468 = vdwg.mxu0
  %s2469 = scalar_lea.vmem [#allocation2], 112
  %2470 = vst [vmem:[%s2469] sm:$0xff] %v2451
  %2471 = vst [vmem:[%s2469 + $0x8] sm:$0xff] %v2453
  %2472 = vst [vmem:[%s2469 + $0x10] sm:$0xff] %v2456
  %2473 = vst [vmem:[%s2469 + $0x18] sm:$0xff] %v2458
  %2474 = vst [vmem:[%s2469 + $0x20] sm:$0xff] %v2461
  %2475 = vst [vmem:[%s2469 + $0x28] sm:$0xff] %v2463
  %2476 = vst [vmem:[%s2469 + $0x30] sm:$0xff] %v2466
  %s2477 = scalar_lea.vmem %s23, 168
  %v2478 = vld [vmem:[%s2477] sm:$0xff]
  %v2479 = vld [vmem:[%s2477 + $0x8] sm:$0xff]
  %v2480 = vld [vmem:[%s2477 + $0x10] sm:$0xff]
  %v2481 = vld [vmem:[%s2477 + $0x18] sm:$0xff]
  %v2482 = vld [vmem:[%s2477 + $0x20] sm:$0xff]
  %v2483 = vld [vmem:[%s2477 + $0x28] sm:$0xff]
  %v2484 = vld [vmem:[%s2477 + $0x30] sm:$0xff]
  %v2492 = vunpack.c.l.b16 %v2478
  %v2493 = vunpack.c.h.b16 %v2478
  %v2494 = vunpack.c.l.b16 %v2479
  %v2495 = vunpack.c.h.b16 %v2479
  %v2496 = vunpack.c.l.b16 %v2480
  %v2497 = vunpack.c.h.b16 %v2480
  %v2498 = vunpack.c.l.b16 %v2481
  %v2499 = vunpack.c.h.b16 %v2481
  %v2500 = vunpack.c.l.b16 %v2482
  %v2501 = vunpack.c.h.b16 %v2482
  %v2502 = vunpack.c.l.b16 %v2483
  %v2503 = vunpack.c.h.b16 %v2483
  %v2504 = vunpack.c.l.b16 %v2484
  %v2505 = vunpack.c.h.b16 %v2484
  %v2506 = vpack.c.b16 %v2494, %v2492
  %v2507 = vpack.c.b16 %v2495, %v2493
  %v2508 = vpack.c.b16 %v2498, %v2496
  %v2509 = vpack.c.b16 %v2499, %v2497
  %v2510 = vpack.c.b16 %v2502, %v2500
  %v2511 = vpack.c.b16 %v2503, %v2501
  %v2512 = vpack.c.b16 %v2504, %v2504
  %v2513 = vpack.c.b16 %v2505, %v2505
  %v2519 = vsel %vm2163, %v2507, 0
  %v2522 = vsel %vm2163, %v2509, 0
  %v2525 = vsel %vm2163, %v2511, 0
  %v2528 = vsel %vm2163, %v2513, 0
  %2530 = vmatpush.bf16.msra.mxu0 %v2119
  %2531 = vmatpush.bf16.msra.mxu0 %v2118
  %2532 = vmatpush.bf16.msra.mxu0 %v2117
  %2533 = vmatpush.bf16.msra.mxu0 %v2116
  %2534 = vmatpush.bf16.msra.mxu0 %v2115
  %2535 = vmatpush.bf16.msra.mxu0 %v2114
  %2536 = vmatpush.bf16.msra.mxu0 %v2113
  %2537 = vmatpush.bf16.msra.mxu0 %v2112
  %2538 = vmatmul.bf16.gmra.mxu0 %v2506
  %v2539 = vpop.f32.mrf.mxu0
  %v2540 = vadd.f32 0.0, %v2539
  %v2541 = vpop.f32.mrf.mxu0
  %v2542 = vadd.f32 0.0, %v2541
  %2543 = vmatmul.bf16.gmra.mxu0 %v2508
  %v2544 = vpop.f32.mrf.mxu0
  %v2545 = vadd.f32 0.0, %v2544
  %v2546 = vpop.f32.mrf.mxu0
  %v2547 = vadd.f32 0.0, %v2546
  %2548 = vmatmul.bf16.gmra.mxu0 %v2510
  %v2549 = vpop.f32.mrf.mxu0
  %v2550 = vadd.f32 0.0, %v2549
  %v2551 = vpop.f32.mrf.mxu0
  %v2552 = vadd.f32 0.0, %v2551
  %2553 = vmatmul.bf16.gmra.mxu0 %v2512
  %v2554 = vpop.f32.mrf.mxu0
  %v2555 = vadd.f32 0.0, %v2554
  %v2556 = vpop.f32.mrf.mxu0
  %2557 = vdwg.mxu0
  %2558 = vmatpush.bf16.msra.mxu0 0
  %2559 = vmatpush.bf16.msra.mxu0 0
  %2560 = vmatpush.bf16.msra.mxu0 0
  %2561 = vmatpush.bf16.msra.mxu0 0
  %2562 = vmatpush.bf16.msra.mxu0 0
  %2563 = vmatpush.bf16.msra.mxu0 %v2178
  %2564 = vmatpush.bf16.msra.mxu0 %v2121
  %2565 = vmatpush.bf16.msra.mxu0 %v2120
  %2566 = vmatmul.bf16.gmra.mxu0 %v2519
  %v2567 = vpop.f32.mrf.mxu0
  %v2568 = vadd.f32 %v2540, %v2567
  %v2569 = vpop.f32.mrf.mxu0
  %v2570 = vadd.f32 %v2542, %v2569
  %2571 = vmatmul.bf16.gmra.mxu0 %v2522
  %v2572 = vpop.f32.mrf.mxu0
  %v2573 = vadd.f32 %v2545, %v2572
  %v2574 = vpop.f32.mrf.mxu0
  %v2575 = vadd.f32 %v2547, %v2574
  %2576 = vmatmul.bf16.gmra.mxu0 %v2525
  %v2577 = vpop.f32.mrf.mxu0
  %v2578 = vadd.f32 %v2550, %v2577
  %v2579 = vpop.f32.mrf.mxu0
  %v2580 = vadd.f32 %v2552, %v2579
  %2581 = vmatmul.bf16.gmra.mxu0 %v2528
  %v2582 = vpop.f32.mrf.mxu0
  %v2583 = vadd.f32 %v2555, %v2582
  %v2584 = vpop.f32.mrf.mxu0
  %2585 = vdwg.mxu0
  %s2586 = scalar_lea.vmem [#allocation2], 168
  %2587 = vst [vmem:[%s2586] sm:$0xff] %v2568
  %2588 = vst [vmem:[%s2586 + $0x8] sm:$0xff] %v2570
  %2589 = vst [vmem:[%s2586 + $0x10] sm:$0xff] %v2573
  %2590 = vst [vmem:[%s2586 + $0x18] sm:$0xff] %v2575
  %2591 = vst [vmem:[%s2586 + $0x20] sm:$0xff] %v2578
  %2592 = vst [vmem:[%s2586 + $0x28] sm:$0xff] %v2580
  %2593 = vst [vmem:[%s2586 + $0x30] sm:$0xff] %v2583
  %v2594 = vld [vmem:[#allocation2] sm:$0xff]
  %v2595 = vld [vmem:[#allocation2 + $0x8] sm:$0xff]
  %v2596 = vld [vmem:[#allocation2 + $0x10] sm:$0xff]
  %v2597 = vld [vmem:[#allocation2 + $0x18] sm:$0xff]
  %v2598 = vld [vmem:[#allocation2 + $0x20] sm:$0xff]
  %v2599 = vld [vmem:[#allocation2 + $0x28] sm:$0xff]
  %v2600 = vld [vmem:[#allocation2 + $0x30] sm:$0x3]
  %v2601 = vpack.c.bf16 %v2595, %v2594
  %v2602 = vpack.c.bf16 %v2597, %v2596
  %v2603 = vpack.c.bf16 %v2599, %v2598
  %v2604 = vpack.c.bf16 %v2600, %v2600
  %v2605 = vld [vmem:[%s13] sm:$0xf]
  %v2606 = vld [vmem:[%s13 + $0x4] sm:$0xf]
  %v2607 = vld [vmem:[%s13 + $0x8] sm:$0xf]
  %v2608 = vld [vmem:[%s13 + $0xc] sm:$0xf]
  %v2609 = vld [vmem:[%s13 + $0x10] sm:$0xf]
  %v2610 = vld [vmem:[%s13 + $0x14] sm:$0xf]
  %v2611 = vld [vmem:[%s13 + $0x18] sm:$0xf]
  %v2612 = vld [vmem:[%s13 + $0x1c] sm:$0xf]
  %v2613 = vld [vmem:[%s13 + $0x20] sm:$0xf]
  %v2614 = vld [vmem:[%s13 + $0x24] sm:$0xf]
  %v2615 = vld [vmem:[%s13 + $0x28] sm:$0xf]
  %v2616 = vld [vmem:[%s13 + $0x2c] sm:$0xf]
  %v2617 = vld [vmem:[%s13 + $0x30] sm:$0xf]
  %v2618 = vld [vmem:[%s13 + $0x34] sm:$0xf]
  %v2619 = vld [vmem:[%s13 + $0x38] sm:$0xf]
  %v2620 = vld [vmem:[%s13 + $0x3c] sm:$0xf]
  %v2621 = vld [vmem:[%s2352] sm:$0xff]
  %v2622 = vld [vmem:[%s2352 + $0x8] sm:$0xff]
  %v2623 = vld [vmem:[%s2352 + $0x10] sm:$0xff]
  %v2624 = vld [vmem:[%s2352 + $0x18] sm:$0xff]
  %v2625 = vld [vmem:[%s2352 + $0x20] sm:$0xff]
  %v2626 = vld [vmem:[%s2352 + $0x28] sm:$0xff]
  %v2627 = vld [vmem:[%s2352 + $0x30] sm:$0x3]
  %v2628 = vpack.c.bf16 %v2622, %v2621
  %v2629 = vpack.c.bf16 %v2624, %v2623
  %v2630 = vpack.c.bf16 %v2626, %v2625
  %v2631 = vpack.c.bf16 %v2627, %v2627
  %s2632 = scalar_lea.vmem %s13, 64
  %v2633 = vld [vmem:[%s2632] sm:$0xf]
  %v2634 = vld [vmem:[%s2632 + $0x4] sm:$0xf]
  %v2635 = vld [vmem:[%s2632 + $0x8] sm:$0xf]
  %v2636 = vld [vmem:[%s2632 + $0xc] sm:$0xf]
  %v2637 = vld [vmem:[%s2632 + $0x10] sm:$0xf]
  %v2638 = vld [vmem:[%s2632 + $0x14] sm:$0xf]
  %v2639 = vld [vmem:[%s2632 + $0x18] sm:$0xf]
  %v2640 = vld [vmem:[%s2632 + $0x1c] sm:$0xf]
  %v2641 = vld [vmem:[%s2632 + $0x20] sm:$0xf]
  %v2642 = vld [vmem:[%s2632 + $0x24] sm:$0xf]
  %v2643 = vld [vmem:[%s2632 + $0x28] sm:$0xf]
  %v2644 = vld [vmem:[%s2632 + $0x2c] sm:$0xf]
  %v2645 = vld [vmem:[%s2632 + $0x30] sm:$0xf]
  %v2646 = vld [vmem:[%s2632 + $0x34] sm:$0xf]
  %v2647 = vld [vmem:[%s2632 + $0x38] sm:$0xf]
  %v2648 = vld [vmem:[%s2632 + $0x3c] sm:$0xf]
  %v2665 = vunpack.c.l.b16 %v2633
  %v2666 = vunpack.c.l.b16 %v2634
  %v2667 = vunpack.c.l.b16 %v2635
  %v2668 = vunpack.c.l.b16 %v2636
  %v2669 = vunpack.c.l.b16 %v2637
  %v2670 = vunpack.c.l.b16 %v2638
  %v2671 = vunpack.c.l.b16 %v2639
  %v2672 = vunpack.c.l.b16 %v2640
  %v2673 = vunpack.c.l.b16 %v2641
  %v2674 = vunpack.c.l.b16 %v2642
  %v2675 = vunpack.c.l.b16 %v2643
  %v2676 = vunpack.c.l.b16 %v2644
  %v2677 = vunpack.c.l.b16 %v2645
  %v2678 = vunpack.c.l.b16 %v2646
  %v2679 = vunpack.c.l.b16 %v2647
  %v2680 = vunpack.c.l.b16 %v2648
  %v2681 = vpack.c.b16 %v2666, %v2665
  %v2682 = vpack.c.b16 %v2668, %v2667
  %v2683 = vpack.c.b16 %v2670, %v2669
  %v2684 = vpack.c.b16 %v2672, %v2671
  %v2685 = vpack.c.b16 %v2674, %v2673
  %v2686 = vpack.c.b16 %v2676, %v2675
  %v2687 = vpack.c.b16 %v2678, %v2677
  %v2688 = vpack.c.b16 %v2680, %v2679
  %2697 = vmatpush.bf16.msra.mxu0 %v2688
  %2698 = vmatpush.bf16.msra.mxu0 %v2687
  %2699 = vmatpush.bf16.msra.mxu0 %v2686
  %2700 = vmatpush.bf16.msra.mxu0 %v2685
  %2701 = vmatpush.bf16.msra.mxu0 %v2684
  %2702 = vmatpush.bf16.msra.mxu0 %v2683
  %2703 = vmatpush.bf16.msra.mxu0 %v2682
  %2704 = vmatpush.bf16.msra.mxu0 %v2681
  %2705 = vmatmul.bf16.gmra.mxu0 %v2628
  %v2706 = vpop.f32.mrf.mxu0
  %v2707 = vadd.f32 0.0, %v2706
  %v2708 = vpop.f32.mrf.mxu0
  %v2709 = vadd.f32 0.0, %v2708
  %2710 = vmatmul.bf16.gmra.mxu0 %v2629
  %v2711 = vpop.f32.mrf.mxu0
  %v2712 = vadd.f32 0.0, %v2711
  %v2713 = vpop.f32.mrf.mxu0
  %v2714 = vadd.f32 0.0, %v2713
  %2715 = vmatmul.bf16.gmra.mxu0 %v2630
  %v2716 = vpop.f32.mrf.mxu0
  %v2717 = vadd.f32 0.0, %v2716
  %v2718 = vpop.f32.mrf.mxu0
  %v2719 = vadd.f32 0.0, %v2718
  %2720 = vmatmul.bf16.gmra.mxu0 %v2631
  %v2721 = vpop.f32.mrf.mxu0
  %v2722 = vadd.f32 0.0, %v2721
  %v2723 = vpop.f32.mrf.mxu0
  %2724 = vdwg.mxu0
  %v2741 = vunpack.c.l.b16 %v2605
  %v2742 = vunpack.c.l.b16 %v2606
  %v2743 = vunpack.c.l.b16 %v2607
  %v2744 = vunpack.c.l.b16 %v2608
  %v2745 = vunpack.c.l.b16 %v2609
  %v2746 = vunpack.c.l.b16 %v2610
  %v2747 = vunpack.c.l.b16 %v2611
  %v2748 = vunpack.c.l.b16 %v2612
  %v2749 = vunpack.c.l.b16 %v2613
  %v2750 = vunpack.c.l.b16 %v2614
  %v2751 = vunpack.c.l.b16 %v2615
  %v2752 = vunpack.c.l.b16 %v2616
  %v2753 = vunpack.c.l.b16 %v2617
  %v2754 = vunpack.c.l.b16 %v2618
  %v2755 = vunpack.c.l.b16 %v2619
  %v2756 = vunpack.c.l.b16 %v2620
  %v2757 = vpack.c.b16 %v2742, %v2741
  %v2758 = vpack.c.b16 %v2744, %v2743
  %v2759 = vpack.c.b16 %v2746, %v2745
  %v2760 = vpack.c.b16 %v2748, %v2747
  %v2761 = vpack.c.b16 %v2750, %v2749
  %v2762 = vpack.c.b16 %v2752, %v2751
  %v2763 = vpack.c.b16 %v2754, %v2753
  %v2764 = vpack.c.b16 %v2756, %v2755
  %2773 = vmatpush.bf16.msra.mxu0 %v2764
  %2774 = vmatpush.bf16.msra.mxu0 %v2763
  %2775 = vmatpush.bf16.msra.mxu0 %v2762
  %2776 = vmatpush.bf16.msra.mxu0 %v2761
  %2777 = vmatpush.bf16.msra.mxu0 %v2760
  %2778 = vmatpush.bf16.msra.mxu0 %v2759
  %2779 = vmatpush.bf16.msra.mxu0 %v2758
  %2780 = vmatpush.bf16.msra.mxu0 %v2757
  %2781 = vmatmul.bf16.gmra.mxu0 %v2601
  %v2782 = vpop.f32.mrf.mxu0
  %v2783 = vadd.f32 %v2707, %v2782
  %v2784 = vpop.f32.mrf.mxu0
  %v2785 = vadd.f32 %v2709, %v2784
  %2786 = vmatmul.bf16.gmra.mxu0 %v2602
  %v2787 = vpop.f32.mrf.mxu0
  %v2788 = vadd.f32 %v2712, %v2787
  %v2789 = vpop.f32.mrf.mxu0
  %v2790 = vadd.f32 %v2714, %v2789
  %2791 = vmatmul.bf16.gmra.mxu0 %v2603
  %v2792 = vpop.f32.mrf.mxu0
  %v2793 = vadd.f32 %v2717, %v2792
  %v2794 = vpop.f32.mrf.mxu0
  %v2795 = vadd.f32 %v2719, %v2794
  %2796 = vmatmul.bf16.gmra.mxu0 %v2604
  %v2797 = vpop.f32.mrf.mxu0
  %v2798 = vadd.f32 %v2722, %v2797
  %v2799 = vpop.f32.mrf.mxu0
  %2800 = vdwg.mxu0
  %v2801 = vld [vmem:[#allocation2 + $0x1] sm:$0xff]
  %v2802 = vld [vmem:[#allocation2 + $0x9] sm:$0xff]
  %v2803 = vld [vmem:[#allocation2 + $0x11] sm:$0xff]
  %v2804 = vld [vmem:[#allocation2 + $0x19] sm:$0xff]
  %v2805 = vld [vmem:[#allocation2 + $0x21] sm:$0xff]
  %v2806 = vld [vmem:[#allocation2 + $0x29] sm:$0xff]
  %v2807 = vld [vmem:[#allocation2 + $0x31] sm:$0x3]
  %v2808 = vpack.c.bf16 %v2802, %v2801
  %v2809 = vpack.c.bf16 %v2804, %v2803
  %v2810 = vpack.c.bf16 %v2806, %v2805
  %v2811 = vpack.c.bf16 %v2807, %v2807
  %s2812 = scalar_lea.vmem %s13, 128
  %v2813 = vld [vmem:[%s2812] sm:$0xf]
  %v2814 = vld [vmem:[%s2812 + $0x4] sm:$0xf]
  %v2815 = vld [vmem:[%s2812 + $0x8] sm:$0xf]
  %v2816 = vld [vmem:[%s2812 + $0xc] sm:$0xf]
  %v2817 = vld [vmem:[%s2812 + $0x10] sm:$0xf]
  %v2818 = vld [vmem:[%s2812 + $0x14] sm:$0xf]
  %v2819 = vld [vmem:[%s2812 + $0x18] sm:$0xf]
  %v2820 = vld [vmem:[%s2812 + $0x1c] sm:$0xf]
  %v2821 = vld [vmem:[%s2812 + $0x20] sm:$0xf]
  %v2822 = vld [vmem:[%s2812 + $0x24] sm:$0xf]
  %v2823 = vld [vmem:[%s2812 + $0x28] sm:$0xf]
  %v2824 = vld [vmem:[%s2812 + $0x2c] sm:$0xf]
  %v2825 = vld [vmem:[%s2812 + $0x30] sm:$0xf]
  %v2826 = vld [vmem:[%s2812 + $0x34] sm:$0xf]
  %v2827 = vld [vmem:[%s2812 + $0x38] sm:$0xf]
  %v2828 = vld [vmem:[%s2812 + $0x3c] sm:$0xf]
  %v2845 = vunpack.c.l.b16 %v2813
  %v2846 = vunpack.c.l.b16 %v2814
  %v2847 = vunpack.c.l.b16 %v2815
  %v2848 = vunpack.c.l.b16 %v2816
  %v2849 = vunpack.c.l.b16 %v2817
  %v2850 = vunpack.c.l.b16 %v2818
  %v2851 = vunpack.c.l.b16 %v2819
  %v2852 = vunpack.c.l.b16 %v2820
  %v2853 = vunpack.c.l.b16 %v2821
  %v2854 = vunpack.c.l.b16 %v2822
  %v2855 = vunpack.c.l.b16 %v2823
  %v2856 = vunpack.c.l.b16 %v2824
  %v2857 = vunpack.c.l.b16 %v2825
  %v2858 = vunpack.c.l.b16 %v2826
  %v2859 = vunpack.c.l.b16 %v2827
  %v2860 = vunpack.c.l.b16 %v2828
  %v2861 = vpack.c.b16 %v2846, %v2845
  %v2862 = vpack.c.b16 %v2848, %v2847
  %v2863 = vpack.c.b16 %v2850, %v2849
  %v2864 = vpack.c.b16 %v2852, %v2851
  %v2865 = vpack.c.b16 %v2854, %v2853
  %v2866 = vpack.c.b16 %v2856, %v2855
  %v2867 = vpack.c.b16 %v2858, %v2857
  %v2868 = vpack.c.b16 %v2860, %v2859
  %2877 = vmatpush.bf16.msra.mxu0 %v2868
  %2878 = vmatpush.bf16.msra.mxu0 %v2867
  %2879 = vmatpush.bf16.msra.mxu0 %v2866
  %2880 = vmatpush.bf16.msra.mxu0 %v2865
  %2881 = vmatpush.bf16.msra.mxu0 %v2864
  %2882 = vmatpush.bf16.msra.mxu0 %v2863
  %2883 = vmatpush.bf16.msra.mxu0 %v2862
  %2884 = vmatpush.bf16.msra.mxu0 %v2861
  %2885 = vmatmul.bf16.gmra.mxu0 %v2808
  %v2886 = vpop.f32.mrf.mxu0
  %v2887 = vadd.f32 0.0, %v2886
  %v2888 = vpop.f32.mrf.mxu0
  %v2889 = vadd.f32 0.0, %v2888
  %2890 = vmatmul.bf16.gmra.mxu0 %v2809
  %v2891 = vpop.f32.mrf.mxu0
  %v2892 = vadd.f32 0.0, %v2891
  %v2893 = vpop.f32.mrf.mxu0
  %v2894 = vadd.f32 0.0, %v2893
  %2895 = vmatmul.bf16.gmra.mxu0 %v2810
  %v2896 = vpop.f32.mrf.mxu0
  %v2897 = vadd.f32 0.0, %v2896
  %v2898 = vpop.f32.mrf.mxu0
  %v2899 = vadd.f32 0.0, %v2898
  %2900 = vmatmul.bf16.gmra.mxu0 %v2811
  %v2901 = vpop.f32.mrf.mxu0
  %v2902 = vadd.f32 0.0, %v2901
  %v2903 = vpop.f32.mrf.mxu0
  %2904 = vdwg.mxu0
  %v2905 = vadd.f32 %v2783, %v2887
  %v2906 = vadd.f32 %v2785, %v2889
  %v2907 = vadd.f32 %v2788, %v2892
  %v2908 = vadd.f32 %v2790, %v2894
  %v2909 = vadd.f32 %v2793, %v2897
  %v2910 = vadd.f32 %v2795, %v2899
  %v2911 = vadd.f32 %v2798, %v2902
  %v2912 = vld [vmem:[%s2469] sm:$0xff]
  %v2913 = vld [vmem:[%s2469 + $0x8] sm:$0xff]
  %v2914 = vld [vmem:[%s2469 + $0x10] sm:$0xff]
  %v2915 = vld [vmem:[%s2469 + $0x18] sm:$0xff]
  %v2916 = vld [vmem:[%s2469 + $0x20] sm:$0xff]
  %v2917 = vld [vmem:[%s2469 + $0x28] sm:$0xff]
  %v2918 = vld [vmem:[%s2469 + $0x30] sm:$0x3]
  %v2919 = vpack.c.bf16 %v2913, %v2912
  %v2920 = vpack.c.bf16 %v2915, %v2914
  %v2921 = vpack.c.bf16 %v2917, %v2916
  %v2922 = vpack.c.bf16 %v2918, %v2918
  %s2923 = scalar_lea.vmem %s13, 192
  %v2924 = vld [vmem:[%s2923] sm:$0xf]
  %v2925 = vld [vmem:[%s2923 + $0x4] sm:$0xf]
  %v2926 = vld [vmem:[%s2923 + $0x8] sm:$0xf]
  %v2927 = vld [vmem:[%s2923 + $0xc] sm:$0xf]
  %v2928 = vld [vmem:[%s2923 + $0x10] sm:$0xf]
  %v2929 = vld [vmem:[%s2923 + $0x14] sm:$0xf]
  %v2930 = vld [vmem:[%s2923 + $0x18] sm:$0xf]
  %v2931 = vld [vmem:[%s2923 + $0x1c] sm:$0xf]
  %v2932 = vld [vmem:[%s2923 + $0x20] sm:$0xf]
  %v2933 = vld [vmem:[%s2923 + $0x24] sm:$0xf]
  %v2934 = vld [vmem:[%s2923 + $0x28] sm:$0xf]
  %v2935 = vld [vmem:[%s2923 + $0x2c] sm:$0xf]
  %v2936 = vld [vmem:[%s2923 + $0x30] sm:$0xf]
  %v2937 = vld [vmem:[%s2923 + $0x34] sm:$0xf]
  %v2938 = vld [vmem:[%s2923 + $0x38] sm:$0xf]
  %v2939 = vld [vmem:[%s2923 + $0x3c] sm:$0xf]
  %v2956 = vunpack.c.l.b16 %v2924
  %v2957 = vunpack.c.l.b16 %v2925
  %v2958 = vunpack.c.l.b16 %v2926
  %v2959 = vunpack.c.l.b16 %v2927
  %v2960 = vunpack.c.l.b16 %v2928
  %v2961 = vunpack.c.l.b16 %v2929
  %v2962 = vunpack.c.l.b16 %v2930
  %v2963 = vunpack.c.l.b16 %v2931
  %v2964 = vunpack.c.l.b16 %v2932
  %v2965 = vunpack.c.l.b16 %v2933
  %v2966 = vunpack.c.l.b16 %v2934
  %v2967 = vunpack.c.l.b16 %v2935
  %v2968 = vunpack.c.l.b16 %v2936
  %v2969 = vunpack.c.l.b16 %v2937
  %v2970 = vunpack.c.l.b16 %v2938
  %v2971 = vunpack.c.l.b16 %v2939
  %v2972 = vpack.c.b16 %v2957, %v2956
  %v2973 = vpack.c.b16 %v2959, %v2958
  %v2974 = vpack.c.b16 %v2961, %v2960
  %v2975 = vpack.c.b16 %v2963, %v2962
  %v2976 = vpack.c.b16 %v2965, %v2964
  %v2977 = vpack.c.b16 %v2967, %v2966
  %v2978 = vpack.c.b16 %v2969, %v2968
  %v2979 = vpack.c.b16 %v2971, %v2970
  %2988 = vmatpush.bf16.msra.mxu0 %v2979
  %2989 = vmatpush.bf16.msra.mxu0 %v2978
  %2990 = vmatpush.bf16.msra.mxu0 %v2977
  %2991 = vmatpush.bf16.msra.mxu0 %v2976
  %2992 = vmatpush.bf16.msra.mxu0 %v2975
  %2993 = vmatpush.bf16.msra.mxu0 %v2974
  %2994 = vmatpush.bf16.msra.mxu0 %v2973
  %2995 = vmatpush.bf16.msra.mxu0 %v2972
  %2996 = vmatmul.bf16.gmra.mxu0 %v2919
  %v2997 = vpop.f32.mrf.mxu0
  %v2998 = vadd.f32 0.0, %v2997
  %v2999 = vpop.f32.mrf.mxu0
  %v3000 = vadd.f32 0.0, %v2999
  %3001 = vmatmul.bf16.gmra.mxu0 %v2920
  %v3002 = vpop.f32.mrf.mxu0
  %v3003 = vadd.f32 0.0, %v3002
  %v3004 = vpop.f32.mrf.mxu0
  %v3005 = vadd.f32 0.0, %v3004
  %3006 = vmatmul.bf16.gmra.mxu0 %v2921
  %v3007 = vpop.f32.mrf.mxu0
  %v3008 = vadd.f32 0.0, %v3007
  %v3009 = vpop.f32.mrf.mxu0
  %v3010 = vadd.f32 0.0, %v3009
  %3011 = vmatmul.bf16.gmra.mxu0 %v2922
  %v3012 = vpop.f32.mrf.mxu0
  %v3013 = vadd.f32 0.0, %v3012
  %v3014 = vpop.f32.mrf.mxu0
  %3015 = vdwg.mxu0
  %v3016 = vadd.f32 %v2905, %v2998
  %v3017 = vadd.f32 %v2906, %v3000
  %v3018 = vadd.f32 %v2907, %v3003
  %v3019 = vadd.f32 %v2908, %v3005
  %v3020 = vadd.f32 %v2909, %v3008
  %v3021 = vadd.f32 %v2910, %v3010
  %v3022 = vadd.f32 %v2911, %v3013
  %v3023 = vld [vmem:[%s2586] sm:$0xff]
  %v3024 = vld [vmem:[%s2586 + $0x8] sm:$0xff]
  %v3025 = vld [vmem:[%s2586 + $0x10] sm:$0xff]
  %v3026 = vld [vmem:[%s2586 + $0x18] sm:$0xff]
  %v3027 = vld [vmem:[%s2586 + $0x20] sm:$0xff]
  %v3028 = vld [vmem:[%s2586 + $0x28] sm:$0xff]
  %v3029 = vld [vmem:[%s2586 + $0x30] sm:$0x3]
  %v3030 = vpack.c.bf16 %v3024, %v3023
  %v3031 = vpack.c.bf16 %v3026, %v3025
  %v3032 = vpack.c.bf16 %v3028, %v3027
  %v3033 = vpack.c.bf16 %v3029, %v3029
  %s3034 = scalar_lea.vmem %s13, 256
  %v3035 = vld [vmem:[%s3034] sm:$0xf]
  %v3036 = vld [vmem:[%s3034 + $0x4] sm:$0xf]
  %v3037 = vld [vmem:[%s3034 + $0x8] sm:$0xf]
  %v3038 = vld [vmem:[%s3034 + $0xc] sm:$0xf]
  %v3039 = vld [vmem:[%s3034 + $0x10] sm:$0xf]
  %v3040 = vld [vmem:[%s3034 + $0x14] sm:$0xf]
  %v3041 = vld [vmem:[%s3034 + $0x18] sm:$0xf]
  %v3042 = vld [vmem:[%s3034 + $0x1c] sm:$0xf]
  %v3043 = vld [vmem:[%s3034 + $0x20] sm:$0xf]
  %v3044 = vld [vmem:[%s3034 + $0x24] sm:$0xf]
  %v3045 = vld [vmem:[%s3034 + $0x28] sm:$0xf]
  %v3046 = vld [vmem:[%s3034 + $0x2c] sm:$0xf]
  %v3047 = vld [vmem:[%s3034 + $0x30] sm:$0xf]
  %v3048 = vld [vmem:[%s3034 + $0x34] sm:$0xf]
  %v3049 = vld [vmem:[%s3034 + $0x38] sm:$0xf]
  %v3050 = vld [vmem:[%s3034 + $0x3c] sm:$0xf]
  %v3067 = vunpack.c.l.b16 %v3035
  %v3068 = vunpack.c.l.b16 %v3036
  %v3069 = vunpack.c.l.b16 %v3037
  %v3070 = vunpack.c.l.b16 %v3038
  %v3071 = vunpack.c.l.b16 %v3039
  %v3072 = vunpack.c.l.b16 %v3040
  %v3073 = vunpack.c.l.b16 %v3041
  %v3074 = vunpack.c.l.b16 %v3042
  %v3075 = vunpack.c.l.b16 %v3043
  %v3076 = vunpack.c.l.b16 %v3044
  %v3077 = vunpack.c.l.b16 %v3045
  %v3078 = vunpack.c.l.b16 %v3046
  %v3079 = vunpack.c.l.b16 %v3047
  %v3080 = vunpack.c.l.b16 %v3048
  %v3081 = vunpack.c.l.b16 %v3049
  %v3082 = vunpack.c.l.b16 %v3050
  %v3083 = vpack.c.b16 %v3068, %v3067
  %v3084 = vpack.c.b16 %v3070, %v3069
  %v3085 = vpack.c.b16 %v3072, %v3071
  %v3086 = vpack.c.b16 %v3074, %v3073
  %v3087 = vpack.c.b16 %v3076, %v3075
  %v3088 = vpack.c.b16 %v3078, %v3077
  %v3089 = vpack.c.b16 %v3080, %v3079
  %v3090 = vpack.c.b16 %v3082, %v3081
  %3099 = vmatpush.bf16.msra.mxu0 %v3090
  %3100 = vmatpush.bf16.msra.mxu0 %v3089
  %3101 = vmatpush.bf16.msra.mxu0 %v3088
  %3102 = vmatpush.bf16.msra.mxu0 %v3087
  %3103 = vmatpush.bf16.msra.mxu0 %v3086
  %3104 = vmatpush.bf16.msra.mxu0 %v3085
  %3105 = vmatpush.bf16.msra.mxu0 %v3084
  %3106 = vmatpush.bf16.msra.mxu0 %v3083
  %3107 = vmatmul.bf16.gmra.mxu0 %v3030
  %v3108 = vpop.f32.mrf.mxu0
  %v3109 = vadd.f32 0.0, %v3108
  %v3110 = vpop.f32.mrf.mxu0
  %v3111 = vadd.f32 0.0, %v3110
  %3112 = vmatmul.bf16.gmra.mxu0 %v3031
  %v3113 = vpop.f32.mrf.mxu0
  %v3114 = vadd.f32 0.0, %v3113
  %v3115 = vpop.f32.mrf.mxu0
  %v3116 = vadd.f32 0.0, %v3115
  %3117 = vmatmul.bf16.gmra.mxu0 %v3032
  %v3118 = vpop.f32.mrf.mxu0
  %v3119 = vadd.f32 0.0, %v3118
  %v3120 = vpop.f32.mrf.mxu0
  %v3121 = vadd.f32 0.0, %v3120
  %3122 = vmatmul.bf16.gmra.mxu0 %v3033
  %v3123 = vpop.f32.mrf.mxu0
  %v3124 = vadd.f32 0.0, %v3123
  %v3125 = vpop.f32.mrf.mxu0
  %3126 = vdwg.mxu0
  %v3127 = vadd.f32 %v3016, %v3109
  %v3128 = vadd.f32 %v3017, %v3111
  %v3129 = vadd.f32 %v3018, %v3114
  %v3130 = vadd.f32 %v3019, %v3116
  %v3131 = vadd.f32 %v3020, %v3119
  %v3132 = vadd.f32 %v3021, %v3121
  %v3133 = vadd.f32 %v3022, %v3124
  %v3134 = vld [vmem:[%s2469 + $0x1] sm:$0xff]
  %v3135 = vld [vmem:[%s2469 + $0x9] sm:$0xff]
  %v3136 = vld [vmem:[%s2469 + $0x11] sm:$0xff]
  %v3137 = vld [vmem:[%s2469 + $0x19] sm:$0xff]
  %v3138 = vld [vmem:[%s2469 + $0x21] sm:$0xff]
  %v3139 = vld [vmem:[%s2469 + $0x29] sm:$0xff]
  %v3140 = vld [vmem:[%s2469 + $0x31] sm:$0x3]
  %v3141 = vpack.c.bf16 %v3135, %v3134
  %v3142 = vpack.c.bf16 %v3137, %v3136
  %v3143 = vpack.c.bf16 %v3139, %v3138
  %v3144 = vpack.c.bf16 %v3140, %v3140
  %s3145 = scalar_lea.vmem %s13, 320
  %v3146 = vld [vmem:[%s3145] sm:$0xf]
  %v3147 = vld [vmem:[%s3145 + $0x4] sm:$0xf]
  %v3148 = vld [vmem:[%s3145 + $0x8] sm:$0xf]
  %v3149 = vld [vmem:[%s3145 + $0xc] sm:$0xf]
  %v3150 = vld [vmem:[%s3145 + $0x10] sm:$0xf]
  %v3151 = vld [vmem:[%s3145 + $0x14] sm:$0xf]
  %v3152 = vld [vmem:[%s3145 + $0x18] sm:$0xf]
  %v3153 = vld [vmem:[%s3145 + $0x1c] sm:$0xf]
  %v3154 = vld [vmem:[%s3145 + $0x20] sm:$0xf]
  %v3155 = vld [vmem:[%s3145 + $0x24] sm:$0xf]
  %v3156 = vld [vmem:[%s3145 + $0x28] sm:$0xf]
  %v3157 = vld [vmem:[%s3145 + $0x2c] sm:$0xf]
  %v3158 = vld [vmem:[%s3145 + $0x30] sm:$0xf]
  %v3159 = vld [vmem:[%s3145 + $0x34] sm:$0xf]
  %v3160 = vld [vmem:[%s3145 + $0x38] sm:$0xf]
  %v3161 = vld [vmem:[%s3145 + $0x3c] sm:$0xf]
  %v3178 = vunpack.c.l.b16 %v3146
  %v3179 = vunpack.c.l.b16 %v3147
  %v3180 = vunpack.c.l.b16 %v3148
  %v3181 = vunpack.c.l.b16 %v3149
  %v3182 = vunpack.c.l.b16 %v3150
  %v3183 = vunpack.c.l.b16 %v3151
  %v3184 = vunpack.c.l.b16 %v3152
  %v3185 = vunpack.c.l.b16 %v3153
  %v3186 = vunpack.c.l.b16 %v3154
  %v3187 = vunpack.c.l.b16 %v3155
  %v3188 = vunpack.c.l.b16 %v3156
  %v3189 = vunpack.c.l.b16 %v3157
  %v3190 = vunpack.c.l.b16 %v3158
  %v3191 = vunpack.c.l.b16 %v3159
  %v3192 = vunpack.c.l.b16 %v3160
  %v3193 = vunpack.c.l.b16 %v3161
  %v3194 = vpack.c.b16 %v3179, %v3178
  %v3195 = vpack.c.b16 %v3181, %v3180
  %v3196 = vpack.c.b16 %v3183, %v3182
  %v3197 = vpack.c.b16 %v3185, %v3184
  %v3198 = vpack.c.b16 %v3187, %v3186
  %v3199 = vpack.c.b16 %v3189, %v3188
  %v3200 = vpack.c.b16 %v3191, %v3190
  %v3201 = vpack.c.b16 %v3193, %v3192
  %3210 = vmatpush.bf16.msra.mxu0 %v3201
  %3211 = vmatpush.bf16.msra.mxu0 %v3200
  %3212 = vmatpush.bf16.msra.mxu0 %v3199
  %3213 = vmatpush.bf16.msra.mxu0 %v3198
  %3214 = vmatpush.bf16.msra.mxu0 %v3197
  %3215 = vmatpush.bf16.msra.mxu0 %v3196
  %3216 = vmatpush.bf16.msra.mxu0 %v3195
  %3217 = vmatpush.bf16.msra.mxu0 %v3194
  %3218 = vmatmul.bf16.gmra.mxu0 %v3141
  %v3219 = vpop.f32.mrf.mxu0
  %v3220 = vadd.f32 0.0, %v3219
  %v3221 = vpop.f32.mrf.mxu0
  %v3222 = vadd.f32 0.0, %v3221
  %3223 = vmatmul.bf16.gmra.mxu0 %v3142
  %v3224 = vpop.f32.mrf.mxu0
  %v3225 = vadd.f32 0.0, %v3224
  %v3226 = vpop.f32.mrf.mxu0
  %v3227 = vadd.f32 0.0, %v3226
  %3228 = vmatmul.bf16.gmra.mxu0 %v3143
  %v3229 = vpop.f32.mrf.mxu0
  %v3230 = vadd.f32 0.0, %v3229
  %v3231 = vpop.f32.mrf.mxu0
  %v3232 = vadd.f32 0.0, %v3231
  %3233 = vmatmul.bf16.gmra.mxu0 %v3144
  %v3234 = vpop.f32.mrf.mxu0
  %v3235 = vadd.f32 0.0, %v3234
  %v3236 = vpop.f32.mrf.mxu0
  %3237 = vdwg.mxu0
  %v3238 = vadd.f32 %v3127, %v3220
  %v3239 = vadd.f32 %v3128, %v3222
  %v3240 = vadd.f32 %v3129, %v3225
  %v3241 = vadd.f32 %v3130, %v3227
  %v3242 = vadd.f32 %v3131, %v3230
  %v3243 = vadd.f32 %v3132, %v3232
  %v3244 = vadd.f32 %v3133, %v3235
  %v3245 = vld [vmem:[#allocation2 + $0x5] sm:$0xff]
  %v3246 = vld [vmem:[#allocation2 + $0xd] sm:$0xff]
  %v3247 = vld [vmem:[#allocation2 + $0x15] sm:$0xff]
  %v3248 = vld [vmem:[#allocation2 + $0x1d] sm:$0xff]
  %v3249 = vld [vmem:[#allocation2 + $0x25] sm:$0xff]
  %v3250 = vld [vmem:[#allocation2 + $0x2d] sm:$0xff]
  %v3251 = vld [vmem:[#allocation2 + $0x35] sm:$0x3]
  %v3252 = vpack.c.bf16 %v3246, %v3245
  %v3253 = vpack.c.bf16 %v3248, %v3247
  %v3254 = vpack.c.bf16 %v3250, %v3249
  %v3255 = vpack.c.bf16 %v3251, %v3251
  %s3256 = scalar_lea.vmem %s13, 384
  %v3257 = vld [vmem:[%s3256] sm:$0xf]
  %v3258 = vld [vmem:[%s3256 + $0x4] sm:$0xf]
  %v3259 = vld [vmem:[%s3256 + $0x8] sm:$0xf]
  %v3260 = vld [vmem:[%s3256 + $0xc] sm:$0xf]
  %v3261 = vld [vmem:[%s3256 + $0x10] sm:$0xf]
  %v3262 = vld [vmem:[%s3256 + $0x14] sm:$0xf]
  %v3263 = vld [vmem:[%s3256 + $0x18] sm:$0xf]
  %v3264 = vld [vmem:[%s3256 + $0x1c] sm:$0xf]
  %v3265 = vld [vmem:[%s3256 + $0x20] sm:$0xf]
  %v3266 = vld [vmem:[%s3256 + $0x24] sm:$0xf]
  %v3267 = vld [vmem:[%s3256 + $0x28] sm:$0xf]
  %v3268 = vld [vmem:[%s3256 + $0x2c] sm:$0xf]
  %v3269 = vld [vmem:[%s3256 + $0x30] sm:$0xf]
  %v3270 = vld [vmem:[%s3256 + $0x34] sm:$0xf]
  %v3271 = vld [vmem:[%s3256 + $0x38] sm:$0xf]
  %v3272 = vld [vmem:[%s3256 + $0x3c] sm:$0xf]
  %v3289 = vunpack.c.l.b16 %v3257
  %v3290 = vunpack.c.l.b16 %v3258
  %v3291 = vunpack.c.l.b16 %v3259
  %v3292 = vunpack.c.l.b16 %v3260
  %v3293 = vunpack.c.l.b16 %v3261
  %v3294 = vunpack.c.l.b16 %v3262
  %v3295 = vunpack.c.l.b16 %v3263
  %v3296 = vunpack.c.l.b16 %v3264
  %v3297 = vunpack.c.l.b16 %v3265
  %v3298 = vunpack.c.l.b16 %v3266
  %v3299 = vunpack.c.l.b16 %v3267
  %v3300 = vunpack.c.l.b16 %v3268
  %v3301 = vunpack.c.l.b16 %v3269
  %v3302 = vunpack.c.l.b16 %v3270
  %v3303 = vunpack.c.l.b16 %v3271
  %v3304 = vunpack.c.l.b16 %v3272
  %v3305 = vpack.c.b16 %v3290, %v3289
  %v3306 = vpack.c.b16 %v3292, %v3291
  %v3307 = vpack.c.b16 %v3294, %v3293
  %v3308 = vpack.c.b16 %v3296, %v3295
  %v3309 = vpack.c.b16 %v3298, %v3297
  %v3310 = vpack.c.b16 %v3300, %v3299
  %v3311 = vpack.c.b16 %v3302, %v3301
  %v3312 = vpack.c.b16 %v3304, %v3303
  %3321 = vmatpush.bf16.msra.mxu0 %v3312
  %3322 = vmatpush.bf16.msra.mxu0 %v3311
  %3323 = vmatpush.bf16.msra.mxu0 %v3310
  %3324 = vmatpush.bf16.msra.mxu0 %v3309
  %3325 = vmatpush.bf16.msra.mxu0 %v3308
  %3326 = vmatpush.bf16.msra.mxu0 %v3307
  %3327 = vmatpush.bf16.msra.mxu0 %v3306
  %3328 = vmatpush.bf16.msra.mxu0 %v3305
  %3329 = vmatmul.bf16.gmra.mxu0 %v3252
  %v3330 = vpop.f32.mrf.mxu0
  %v3331 = vadd.f32 0.0, %v3330
  %v3332 = vpop.f32.mrf.mxu0
  %v3333 = vadd.f32 0.0, %v3332
  %3334 = vmatmul.bf16.gmra.mxu0 %v3253
  %v3335 = vpop.f32.mrf.mxu0
  %v3336 = vadd.f32 0.0, %v3335
  %v3337 = vpop.f32.mrf.mxu0
  %v3338 = vadd.f32 0.0, %v3337
  %3339 = vmatmul.bf16.gmra.mxu0 %v3254
  %v3340 = vpop.f32.mrf.mxu0
  %v3341 = vadd.f32 0.0, %v3340
  %v3342 = vpop.f32.mrf.mxu0
  %v3343 = vadd.f32 0.0, %v3342
  %3344 = vmatmul.bf16.gmra.mxu0 %v3255
  %v3345 = vpop.f32.mrf.mxu0
  %v3346 = vadd.f32 0.0, %v3345
  %v3347 = vpop.f32.mrf.mxu0
  %3348 = vdwg.mxu0
  %v3349 = vadd.f32 %v3238, %v3331
  %v3350 = vadd.f32 %v3239, %v3333
  %v3351 = vadd.f32 %v3240, %v3336
  %v3352 = vadd.f32 %v3241, %v3338
  %v3353 = vadd.f32 %v3242, %v3341
  %v3354 = vadd.f32 %v3243, %v3343
  %v3355 = vadd.f32 %v3244, %v3346
  %v3356 = vld [vmem:[%s2352 + $0x5] sm:$0xff]
  %v3357 = vld [vmem:[%s2352 + $0xd] sm:$0xff]
  %v3358 = vld [vmem:[%s2352 + $0x15] sm:$0xff]
  %v3359 = vld [vmem:[%s2352 + $0x1d] sm:$0xff]
  %v3360 = vld [vmem:[%s2352 + $0x25] sm:$0xff]
  %v3361 = vld [vmem:[%s2352 + $0x2d] sm:$0xff]
  %v3362 = vld [vmem:[%s2352 + $0x35] sm:$0x3]
  %v3363 = vpack.c.bf16 %v3357, %v3356
  %v3364 = vpack.c.bf16 %v3359, %v3358
  %v3365 = vpack.c.bf16 %v3361, %v3360
  %v3366 = vpack.c.bf16 %v3362, %v3362
  %s3367 = scalar_lea.vmem %s13, 448
  %v3368 = vld [vmem:[%s3367] sm:$0xf]
  %v3369 = vld [vmem:[%s3367 + $0x4] sm:$0xf]
  %v3370 = vld [vmem:[%s3367 + $0x8] sm:$0xf]
  %v3371 = vld [vmem:[%s3367 + $0xc] sm:$0xf]
  %v3372 = vld [vmem:[%s3367 + $0x10] sm:$0xf]
  %v3373 = vld [vmem:[%s3367 + $0x14] sm:$0xf]
  %v3374 = vld [vmem:[%s3367 + $0x18] sm:$0xf]
  %v3375 = vld [vmem:[%s3367 + $0x1c] sm:$0xf]
  %v3376 = vld [vmem:[%s3367 + $0x20] sm:$0xf]
  %v3377 = vld [vmem:[%s3367 + $0x24] sm:$0xf]
  %v3378 = vld [vmem:[%s3367 + $0x28] sm:$0xf]
  %v3379 = vld [vmem:[%s3367 + $0x2c] sm:$0xf]
  %v3380 = vld [vmem:[%s3367 + $0x30] sm:$0xf]
  %v3381 = vld [vmem:[%s3367 + $0x34] sm:$0xf]
  %v3382 = vld [vmem:[%s3367 + $0x38] sm:$0xf]
  %v3383 = vld [vmem:[%s3367 + $0x3c] sm:$0xf]
  %v3400 = vunpack.c.l.b16 %v3368
  %v3401 = vunpack.c.l.b16 %v3369
  %v3402 = vunpack.c.l.b16 %v3370
  %v3403 = vunpack.c.l.b16 %v3371
  %v3404 = vunpack.c.l.b16 %v3372
  %v3405 = vunpack.c.l.b16 %v3373
  %v3406 = vunpack.c.l.b16 %v3374
  %v3407 = vunpack.c.l.b16 %v3375
  %v3408 = vunpack.c.l.b16 %v3376
  %v3409 = vunpack.c.l.b16 %v3377
  %v3410 = vunpack.c.l.b16 %v3378
  %v3411 = vunpack.c.l.b16 %v3379
  %v3412 = vunpack.c.l.b16 %v3380
  %v3413 = vunpack.c.l.b16 %v3381
  %v3414 = vunpack.c.l.b16 %v3382
  %v3415 = vunpack.c.l.b16 %v3383
  %v3416 = vpack.c.b16 %v3401, %v3400
  %v3417 = vpack.c.b16 %v3403, %v3402
  %v3418 = vpack.c.b16 %v3405, %v3404
  %v3419 = vpack.c.b16 %v3407, %v3406
  %v3420 = vpack.c.b16 %v3409, %v3408
  %v3421 = vpack.c.b16 %v3411, %v3410
  %v3422 = vpack.c.b16 %v3413, %v3412
  %v3423 = vpack.c.b16 %v3415, %v3414
  %3432 = vmatpush.bf16.msra.mxu0 %v3423
  %3433 = vmatpush.bf16.msra.mxu0 %v3422
  %3434 = vmatpush.bf16.msra.mxu0 %v3421
  %3435 = vmatpush.bf16.msra.mxu0 %v3420
  %3436 = vmatpush.bf16.msra.mxu0 %v3419
  %3437 = vmatpush.bf16.msra.mxu0 %v3418
  %3438 = vmatpush.bf16.msra.mxu0 %v3417
  %3439 = vmatpush.bf16.msra.mxu0 %v3416
  %3440 = vmatmul.bf16.gmra.mxu0 %v3363
  %v3441 = vpop.f32.mrf.mxu0
  %v3442 = vadd.f32 0.0, %v3441
  %v3443 = vpop.f32.mrf.mxu0
  %v3444 = vadd.f32 0.0, %v3443
  %3445 = vmatmul.bf16.gmra.mxu0 %v3364
  %v3446 = vpop.f32.mrf.mxu0
  %v3447 = vadd.f32 0.0, %v3446
  %v3448 = vpop.f32.mrf.mxu0
  %v3449 = vadd.f32 0.0, %v3448
  %3450 = vmatmul.bf16.gmra.mxu0 %v3365
  %v3451 = vpop.f32.mrf.mxu0
  %v3452 = vadd.f32 0.0, %v3451
  %v3453 = vpop.f32.mrf.mxu0
  %v3454 = vadd.f32 0.0, %v3453
  %3455 = vmatmul.bf16.gmra.mxu0 %v3366
  %v3456 = vpop.f32.mrf.mxu0
  %v3457 = vadd.f32 0.0, %v3456
  %v3458 = vpop.f32.mrf.mxu0
  %3459 = vdwg.mxu0
  %v3460 = vadd.f32 %v3349, %v3442
  %v3461 = vadd.f32 %v3350, %v3444
  %v3462 = vadd.f32 %v3351, %v3447
  %v3463 = vadd.f32 %v3352, %v3449
  %v3464 = vadd.f32 %v3353, %v3452
  %v3465 = vadd.f32 %v3354, %v3454
  %v3466 = vadd.f32 %v3355, %v3457
  %v3467 = vld [vmem:[#allocation2 + $0x6] sm:$0xff]
  %v3468 = vld [vmem:[#allocation2 + $0xe] sm:$0xff]
  %v3469 = vld [vmem:[#allocation2 + $0x16] sm:$0xff]
  %v3470 = vld [vmem:[#allocation2 + $0x1e] sm:$0xff]
  %v3471 = vld [vmem:[#allocation2 + $0x26] sm:$0xff]
  %v3472 = vld [vmem:[#allocation2 + $0x2e] sm:$0xff]
  %v3473 = vld [vmem:[#allocation2 + $0x36] sm:$0x3]
  %v3474 = vpack.c.bf16 %v3468, %v3467
  %v3475 = vpack.c.bf16 %v3470, %v3469
  %v3476 = vpack.c.bf16 %v3472, %v3471
  %v3477 = vpack.c.bf16 %v3473, %v3473
  %s3478 = scalar_lea.vmem %s13, 512
  %v3479 = vld [vmem:[%s3478] sm:$0xf]
  %v3480 = vld [vmem:[%s3478 + $0x4] sm:$0xf]
  %v3481 = vld [vmem:[%s3478 + $0x8] sm:$0xf]
  %v3482 = vld [vmem:[%s3478 + $0xc] sm:$0xf]
  %v3483 = vld [vmem:[%s3478 + $0x10] sm:$0xf]
  %v3484 = vld [vmem:[%s3478 + $0x14] sm:$0xf]
  %v3485 = vld [vmem:[%s3478 + $0x18] sm:$0xf]
  %v3486 = vld [vmem:[%s3478 + $0x1c] sm:$0xf]
  %v3487 = vld [vmem:[%s3478 + $0x20] sm:$0xf]
  %v3488 = vld [vmem:[%s3478 + $0x24] sm:$0xf]
  %v3489 = vld [vmem:[%s3478 + $0x28] sm:$0xf]
  %v3490 = vld [vmem:[%s3478 + $0x2c] sm:$0xf]
  %v3491 = vld [vmem:[%s3478 + $0x30] sm:$0xf]
  %v3492 = vld [vmem:[%s3478 + $0x34] sm:$0xf]
  %v3493 = vld [vmem:[%s3478 + $0x38] sm:$0xf]
  %v3494 = vld [vmem:[%s3478 + $0x3c] sm:$0xf]
  %v3511 = vunpack.c.l.b16 %v3479
  %v3512 = vunpack.c.l.b16 %v3480
  %v3513 = vunpack.c.l.b16 %v3481
  %v3514 = vunpack.c.l.b16 %v3482
  %v3515 = vunpack.c.l.b16 %v3483
  %v3516 = vunpack.c.l.b16 %v3484
  %v3517 = vunpack.c.l.b16 %v3485
  %v3518 = vunpack.c.l.b16 %v3486
  %v3519 = vunpack.c.l.b16 %v3487
  %v3520 = vunpack.c.l.b16 %v3488
  %v3521 = vunpack.c.l.b16 %v3489
  %v3522 = vunpack.c.l.b16 %v3490
  %v3523 = vunpack.c.l.b16 %v3491
  %v3524 = vunpack.c.l.b16 %v3492
  %v3525 = vunpack.c.l.b16 %v3493
  %v3526 = vunpack.c.l.b16 %v3494
  %v3527 = vpack.c.b16 %v3512, %v3511
  %v3528 = vpack.c.b16 %v3514, %v3513
  %v3529 = vpack.c.b16 %v3516, %v3515
  %v3530 = vpack.c.b16 %v3518, %v3517
  %v3531 = vpack.c.b16 %v3520, %v3519
  %v3532 = vpack.c.b16 %v3522, %v3521
  %v3533 = vpack.c.b16 %v3524, %v3523
  %v3534 = vpack.c.b16 %v3526, %v3525
  %3543 = vmatpush.bf16.msra.mxu0 %v3534
  %3544 = vmatpush.bf16.msra.mxu0 %v3533
  %3545 = vmatpush.bf16.msra.mxu0 %v3532
  %3546 = vmatpush.bf16.msra.mxu0 %v3531
  %3547 = vmatpush.bf16.msra.mxu0 %v3530
  %3548 = vmatpush.bf16.msra.mxu0 %v3529
  %3549 = vmatpush.bf16.msra.mxu0 %v3528
  %3550 = vmatpush.bf16.msra.mxu0 %v3527
  %3551 = vmatmul.bf16.gmra.mxu0 %v3474
  %v3552 = vpop.f32.mrf.mxu0
  %v3553 = vadd.f32 0.0, %v3552
  %v3554 = vpop.f32.mrf.mxu0
  %v3555 = vadd.f32 0.0, %v3554
  %3556 = vmatmul.bf16.gmra.mxu0 %v3475
  %v3557 = vpop.f32.mrf.mxu0
  %v3558 = vadd.f32 0.0, %v3557
  %v3559 = vpop.f32.mrf.mxu0
  %v3560 = vadd.f32 0.0, %v3559
  %3561 = vmatmul.bf16.gmra.mxu0 %v3476
  %v3562 = vpop.f32.mrf.mxu0
  %v3563 = vadd.f32 0.0, %v3562
  %v3564 = vpop.f32.mrf.mxu0
  %v3565 = vadd.f32 0.0, %v3564
  %3566 = vmatmul.bf16.gmra.mxu0 %v3477
  %v3567 = vpop.f32.mrf.mxu0
  %v3568 = vadd.f32 0.0, %v3567
  %v3569 = vpop.f32.mrf.mxu0
  %3570 = vdwg.mxu0
  %v3571 = vadd.f32 %v3460, %v3553
  %v3572 = vadd.f32 %v3461, %v3555
  %v3573 = vadd.f32 %v3462, %v3558
  %v3574 = vadd.f32 %v3463, %v3560
  %v3575 = vadd.f32 %v3464, %v3563
  %v3576 = vadd.f32 %v3465, %v3565
  %v3577 = vadd.f32 %v3466, %v3568
  %v3578 = vld [vmem:[%s15] sm:$0x1]
  %v3580 = vperm.slane %v3578, 0
  %v3582 = vadd.f32 %v3571, %v3580
  %v3583 = vadd.f32 %v3572, %v3580
  %v3584 = vadd.f32 %v3573, %v3580
  %v3585 = vadd.f32 %v3574, %v3580
  %v3586 = vadd.f32 %v3575, %v3580
  %v3587 = vadd.f32 %v3576, %v3580
  %v3588 = vadd.f32 %v3577, %v3580
  %v3589 = vld [vmem:[%s21] sm:$0xff]
  %v3590 = vld [vmem:[%s21 + $0x8] sm:$0xff]
  %v3591 = vld [vmem:[%s21 + $0x10] sm:$0xff]
  %v3592 = vld [vmem:[%s21 + $0x18] sm:$0xff]
  %v3593 = vld [vmem:[%s21 + $0x20] sm:$0xff]
  %v3594 = vld [vmem:[%s21 + $0x28] sm:$0xff]
  %v3595 = vld [vmem:[%s21 + $0x30] sm:$0x3]
  %3597 = vset.pattern.permute.xlu0 0
  %3598 = vperm.xlu0 %3597, %v3589
  %v3599 = vpop.permute.xlu0 %3598
  %3602 = vset.pattern.permute.xlu0 0
  %3603 = vperm.xlu0 %3602, %v3590
  %v3604 = vpop.permute.xlu0 %3603
  %3607 = vset.pattern.permute.xlu0 0
  %3608 = vperm.xlu0 %3607, %v3591
  %v3609 = vpop.permute.xlu0 %3608
  %3612 = vset.pattern.permute.xlu0 0
  %3613 = vperm.xlu0 %3612, %v3592
  %v3614 = vpop.permute.xlu0 %3613
  %3617 = vset.pattern.permute.xlu0 0
  %3618 = vperm.xlu0 %3617, %v3593
  %v3619 = vpop.permute.xlu0 %3618
  %3622 = vset.pattern.permute.xlu0 0
  %3623 = vperm.xlu0 %3622, %v3594
  %v3624 = vpop.permute.xlu0 %3623
  %3627 = vset.pattern.permute.xlu0 0
  %3628 = vperm.xlu0 %3627, %v3595
  %v3629 = vpop.permute.xlu0 %3628
  %v3631 = vmul.f32 %v3582, %v3599
  %v3632 = vmul.f32 %v3583, %v3604
  %v3633 = vmul.f32 %v3584, %v3609
  %v3634 = vmul.f32 %v3585, %v3614
  %v3635 = vmul.f32 %v3586, %v3619
  %v3636 = vmul.f32 %v3587, %v3624
  %v3637 = vmul.f32 %v3588, %v3629
  %v3638 = vadd.f32 %v3631, %v3632
  %v3639 = vadd.f32 %v3638, %v3633
  %v3640 = vadd.f32 %v3639, %v3634
  %v3641 = vadd.f32 %v3640, %v3635
  %v3642 = vadd.f32 %v3641, %v3636
  %v3643 = vsel %vm1926, %v3637, 0.0
  %v3644 = vadd.f32 %v3642, %v3643
  %v3645 = vrot.slane %v3644, 4
  %v3646 = vadd.f32 %v3644, %v3645
  %v3647 = vrot.slane %v3646, 2
  %v3648 = vadd.f32 %v3646, %v3647
  %v3649 = vrot.slane %v3648, 1
  %v3650 = vadd.f32 %v3648, %v3649
  %v3651 = vmul.f32 %v3650, 0.03125
  %v3652 = vmul.f32 %v3631, %v3582
  %v3653 = vmul.f32 %v3632, %v3583
  %v3654 = vmul.f32 %v3633, %v3584
  %v3655 = vmul.f32 %v3634, %v3585
  %v3656 = vmul.f32 %v3635, %v3586
  %v3657 = vmul.f32 %v3636, %v3587
  %v3658 = vmul.f32 %v3637, %v3588
  %v3659 = vadd.f32 %v3652, %v3653
  %v3660 = vadd.f32 %v3659, %v3654
  %v3661 = vadd.f32 %v3660, %v3655
  %v3662 = vadd.f32 %v3661, %v3656
  %v3663 = vadd.f32 %v3662, %v3657
  %v3664 = vsel %vm1926, %v3658, 0.0
  %v3665 = vadd.f32 %v3663, %v3664
  %v3666 = vrot.slane %v3665, 4
  %v3667 = vadd.f32 %v3665, %v3666
  %v3668 = vrot.slane %v3667, 2
  %v3669 = vadd.f32 %v3667, %v3668
  %v3670 = vrot.slane %v3669, 1
  %v3671 = vadd.f32 %v3669, %v3670
  %v3672 = vmul.f32 %v3671, 0.03125
  %v3673 = vmul.f32 %v3651, %v3651
  %v3674 = vsub.f32 %v3672, %v3673
  %v3675 = vmax.f32 %v3674, 0.0
  %v3676 = vadd.f32 %v3675, 1e-05
  %v3677 = vrsqrt.pop %v3676
  %v3678 = vmul.f32 %v3677, %v3676
  %v3679 = vmul.f32 %v3678, %v3677
  %v3680 = vmul.f32 0.5, %v3679
  %v3681 = vsub.f32 1.5, %v3680
  %v3682 = vmul.f32 %v3677, %v3681
  %vm3683 = vweird.f32 %v3676
  %vm3684 = vweird.f32 %v3677
  %vm3685 = vmor %vm3683, %vm3684
  %v3686 = vsel %vm3685, %v3677, %v3682
  %v3687 = vsub.f32 %v3582, %v3651
  %v3688 = vsub.f32 %v3583, %v3651
  %v3689 = vsub.f32 %v3584, %v3651
  %v3690 = vsub.f32 %v3585, %v3651
  %v3691 = vsub.f32 %v3586, %v3651
  %v3692 = vsub.f32 %v3587, %v3651
  %v3693 = vsub.f32 %v3588, %v3651
  %v3694 = vmul.f32 %v3687, %v3686
  %v3695 = vmul.f32 %v3688, %v3686
  %v3696 = vmul.f32 %v3689, %v3686
  %v3697 = vmul.f32 %v3690, %v3686
  %v3698 = vmul.f32 %v3691, %v3686
  %v3699 = vmul.f32 %v3692, %v3686
  %v3700 = vmul.f32 %v3693, %v3686
  %v3701 = vld [vmem:[%s17] sm:$0x1]
  %v3703 = vperm.slane %v3701, 0
  %v3705 = vmul.f32 %v3694, %v3703
  %v3706 = vmul.f32 %v3695, %v3703
  %v3707 = vmul.f32 %v3696, %v3703
  %v3708 = vmul.f32 %v3697, %v3703
  %v3709 = vmul.f32 %v3698, %v3703
  %v3710 = vmul.f32 %v3699, %v3703
  %v3711 = vmul.f32 %v3700, %v3703
  %v3712 = vld [vmem:[%s19] sm:$0x1]
  %v3714 = vperm.slane %v3712, 0
  %v3716 = vadd.f32 %v3705, %v3714
  %v3717 = vadd.f32 %v3706, %v3714
  %v3718 = vadd.f32 %v3707, %v3714
  %v3719 = vadd.f32 %v3708, %v3714
  %v3720 = vadd.f32 %v3709, %v3714
  %v3721 = vadd.f32 %v3710, %v3714
  %v3722 = vadd.f32 %v3711, %v3714
  %v3723 = vmax.f32 %v3716, 0.0
  %v3724 = vmax.f32 %v3717, 0.0
  %v3725 = vmax.f32 %v3718, 0.0
  %v3726 = vmax.f32 %v3719, 0.0
  %v3727 = vmax.f32 %v3720, 0.0
  %v3728 = vmax.f32 %v3721, 0.0
  %v3729 = vmax.f32 %v3722, 0.0
  %v3730 = vpack.c.bf16 %v3724, %v3723
  %v3731 = vpack.c.bf16 %v3726, %v3725
  %v3732 = vpack.c.bf16 %v3728, %v3727
  %v3733 = vpack.c.bf16 %v3729, %v3729
  %v3734 = vld [vmem:[%s35] sm:$0xf]
  %v3735 = vld [vmem:[%s35 + $0x4] sm:$0xf]
  %v3736 = vld [vmem:[%s35 + $0x8] sm:$0xf]
  %v3740 = vunpack.c.l.b16 %v3734
  %v3741 = vunpack.c.l.b16 %v3735
  %v3742 = vunpack.c.l.b16 %v3736
  %v3743 = vpack.c.b16 %v3741, %v3740
  %v3744 = vpack.c.b16 %v3742, %v3742
  %vm3745 = vcmask 408576
  %v3747 = vsel %vm3745, %v3743, 0
  %v3750 = vsel %vm3745, %v3744, 0
  %v3753 = vsel %vm2176, %v3733, 0
  %3755 = vmatpush.bf16.msra.mxu0 0
  %3756 = vmatpush.bf16.msra.mxu0 0
  %3757 = vmatpush.bf16.msra.mxu0 0
  %3758 = vmatpush.bf16.msra.mxu0 0
  %3759 = vmatpush.bf16.msra.mxu0 %v3753
  %3760 = vmatpush.bf16.msra.mxu0 %v3732
  %3761 = vmatpush.bf16.msra.mxu0 %v3731
  %3762 = vmatpush.bf16.msra.mxu0 %v3730
  %3763 = vmatmul.bf16.gmra.mxu0 %v3747
  %v3764 = vpop.f32.mrf.mxu0
  %v3765 = vadd.f32 0.0, %v3764
  %v3766 = vpop.f32.mrf.mxu0
  %v3767 = vadd.f32 0.0, %v3766
  %3768 = vmatmul.bf16.gmra.mxu0 %v3750
  %v3769 = vpop.f32.mrf.mxu0
  %v3770 = vadd.f32 0.0, %v3769
  %v3771 = vpop.f32.mrf.mxu0
  %3772 = vdwg.mxu0
  %3773 = vst [vmem:[#allocation3] sm:$0xff] %v3765
  %3774 = vst [vmem:[#allocation3 + $0x8] sm:$0xff] %v3767
  %3775 = vst [vmem:[#allocation3 + $0x10] sm:$0xff] %v3770
  %s3776 = scalar_lea.vmem %s35, 12
  %v3777 = vld [vmem:[%s3776] sm:$0xf]
  %v3778 = vld [vmem:[%s3776 + $0x4] sm:$0xf]
  %v3779 = vld [vmem:[%s3776 + $0x8] sm:$0xf]
  %v3783 = vunpack.c.l.b16 %v3777
  %v3784 = vunpack.c.l.b16 %v3778
  %v3785 = vunpack.c.l.b16 %v3779
  %v3786 = vpack.c.b16 %v3784, %v3783
  %v3787 = vpack.c.b16 %v3785, %v3785
  %v3789 = vsel %vm3745, %v3786, 0
  %v3792 = vsel %vm3745, %v3787, 0
  %3794 = vmatpush.bf16.msra.mxu0 0
  %3795 = vmatpush.bf16.msra.mxu0 0
  %3796 = vmatpush.bf16.msra.mxu0 0
  %3797 = vmatpush.bf16.msra.mxu0 0
  %3798 = vmatpush.bf16.msra.mxu0 %v3753
  %3799 = vmatpush.bf16.msra.mxu0 %v3732
  %3800 = vmatpush.bf16.msra.mxu0 %v3731
  %3801 = vmatpush.bf16.msra.mxu0 %v3730
  %3802 = vmatmul.bf16.gmra.mxu0 %v3789
  %v3803 = vpop.f32.mrf.mxu0
  %v3804 = vadd.f32 0.0, %v3803
  %v3805 = vpop.f32.mrf.mxu0
  %v3806 = vadd.f32 0.0, %v3805
  %3807 = vmatmul.bf16.gmra.mxu0 %v3792
  %v3808 = vpop.f32.mrf.mxu0
  %v3809 = vadd.f32 0.0, %v3808
  %v3810 = vpop.f32.mrf.mxu0
  %3811 = vdwg.mxu0
  %s3812 = scalar_lea.vmem [#allocation3], 24
  %3813 = vst [vmem:[%s3812] sm:$0xff] %v3804
  %3814 = vst [vmem:[%s3812 + $0x8] sm:$0xff] %v3806
  %3815 = vst [vmem:[%s3812 + $0x10] sm:$0xff] %v3809
  %s3816 = scalar_lea.vmem %s35, 24
  %v3817 = vld [vmem:[%s3816] sm:$0xf]
  %v3818 = vld [vmem:[%s3816 + $0x4] sm:$0xf]
  %v3819 = vld [vmem:[%s3816 + $0x8] sm:$0xf]
  %v3823 = vunpack.c.l.b16 %v3817
  %v3824 = vunpack.c.l.b16 %v3818
  %v3825 = vunpack.c.l.b16 %v3819
  %v3826 = vpack.c.b16 %v3824, %v3823
  %v3827 = vpack.c.b16 %v3825, %v3825
  %v3829 = vsel %vm3745, %v3826, 0
  %v3832 = vsel %vm3745, %v3827, 0
  %3834 = vmatpush.bf16.msra.mxu0 0
  %3835 = vmatpush.bf16.msra.mxu0 0
  %3836 = vmatpush.bf16.msra.mxu0 0
  %3837 = vmatpush.bf16.msra.mxu0 0
  %3838 = vmatpush.bf16.msra.mxu0 %v3753
  %3839 = vmatpush.bf16.msra.mxu0 %v3732
  %3840 = vmatpush.bf16.msra.mxu0 %v3731
  %3841 = vmatpush.bf16.msra.mxu0 %v3730
  %3842 = vmatmul.bf16.gmra.mxu0 %v3829
  %v3843 = vpop.f32.mrf.mxu0
  %v3844 = vadd.f32 0.0, %v3843
  %v3845 = vpop.f32.mrf.mxu0
  %v3846 = vadd.f32 0.0, %v3845
  %3847 = vmatmul.bf16.gmra.mxu0 %v3832
  %v3848 = vpop.f32.mrf.mxu0
  %v3849 = vadd.f32 0.0, %v3848
  %v3850 = vpop.f32.mrf.mxu0
  %3851 = vdwg.mxu0
  %s3852 = scalar_lea.vmem [#allocation3], 48
  %3853 = vst [vmem:[%s3852] sm:$0xff] %v3844
  %3854 = vst [vmem:[%s3852 + $0x8] sm:$0xff] %v3846
  %3855 = vst [vmem:[%s3852 + $0x10] sm:$0xff] %v3849
  %s3856 = scalar_lea.vmem %s35, 36
  %v3857 = vld [vmem:[%s3856] sm:$0xf]
  %v3858 = vld [vmem:[%s3856 + $0x4] sm:$0xf]
  %v3859 = vld [vmem:[%s3856 + $0x8] sm:$0xf]
  %v3863 = vunpack.c.l.b16 %v3857
  %v3864 = vunpack.c.l.b16 %v3858
  %v3865 = vunpack.c.l.b16 %v3859
  %v3866 = vpack.c.b16 %v3864, %v3863
  %v3867 = vpack.c.b16 %v3865, %v3865
  %v3869 = vsel %vm3745, %v3866, 0
  %v3872 = vsel %vm3745, %v3867, 0
  %3874 = vmatpush.bf16.msra.mxu0 0
  %3875 = vmatpush.bf16.msra.mxu0 0
  %3876 = vmatpush.bf16.msra.mxu0 0
  %3877 = vmatpush.bf16.msra.mxu0 0
  %3878 = vmatpush.bf16.msra.mxu0 %v3753
  %3879 = vmatpush.bf16.msra.mxu0 %v3732
  %3880 = vmatpush.bf16.msra.mxu0 %v3731
  %3881 = vmatpush.bf16.msra.mxu0 %v3730
  %3882 = vmatmul.bf16.gmra.mxu0 %v3869
  %v3883 = vpop.f32.mrf.mxu0
  %v3884 = vadd.f32 0.0, %v3883
  %v3885 = vpop.f32.mrf.mxu0
  %v3886 = vadd.f32 0.0, %v3885
  %3887 = vmatmul.bf16.gmra.mxu0 %v3872
  %v3888 = vpop.f32.mrf.mxu0
  %v3889 = vadd.f32 0.0, %v3888
  %v3890 = vpop.f32.mrf.mxu0
  %3891 = vdwg.mxu0
  %s3892 = scalar_lea.vmem [#allocation3], 72
  %3893 = vst [vmem:[%s3892] sm:$0xff] %v3884
  %3894 = vst [vmem:[%s3892 + $0x8] sm:$0xff] %v3886
  %3895 = vst [vmem:[%s3892 + $0x10] sm:$0xff] %v3889
  %v3896 = vld [vmem:[#allocation3] sm:$0xff]
  %v3897 = vld [vmem:[#allocation3 + $0x8] sm:$0xff]
  %v3898 = vld [vmem:[#allocation3 + $0x10] sm:$0x3]
  %v3899 = vpack.c.bf16 %v3897, %v3896
  %v3900 = vpack.c.bf16 %v3898, %v3898
  %v3901 = vld [vmem:[%s25] sm:$0xf]
  %v3902 = vld [vmem:[%s25 + $0x4] sm:$0xf]
  %v3903 = vld [vmem:[%s25 + $0x8] sm:$0xf]
  %v3904 = vld [vmem:[%s25 + $0xc] sm:$0xf]
  %v3905 = vld [vmem:[%s25 + $0x10] sm:$0xf]
  %v3906 = vld [vmem:[%s25 + $0x14] sm:$0xf]
  %v3907 = vld [vmem:[%s25 + $0x18] sm:$0xf]
  %v3908 = vld [vmem:[%s25 + $0x1c] sm:$0xf]
  %v3909 = vld [vmem:[%s25 + $0x20] sm:$0xf]
  %v3910 = vld [vmem:[%s25 + $0x24] sm:$0xf]
  %v3911 = vld [vmem:[%s25 + $0x28] sm:$0xf]
  %v3912 = vld [vmem:[%s25 + $0x2c] sm:$0xf]
  %v3913 = vld [vmem:[%s25 + $0x30] sm:$0xf]
  %v3914 = vld [vmem:[%s25 + $0x34] sm:$0xf]
  %v3915 = vld [vmem:[%s25 + $0x38] sm:$0xf]
  %v3916 = vld [vmem:[%s25 + $0x3c] sm:$0xf]
  %v3917 = vld [vmem:[%s3812] sm:$0xff]
  %v3918 = vld [vmem:[%s3812 + $0x8] sm:$0xff]
  %v3919 = vld [vmem:[%s3812 + $0x10] sm:$0x3]
  %v3920 = vpack.c.bf16 %v3918, %v3917
  %v3921 = vpack.c.bf16 %v3919, %v3919
  %s3922 = scalar_lea.vmem %s25, 64
  %v3923 = vld [vmem:[%s3922] sm:$0xf]
  %v3924 = vld [vmem:[%s3922 + $0x4] sm:$0xf]
  %v3925 = vld [vmem:[%s3922 + $0x8] sm:$0xf]
  %v3926 = vld [vmem:[%s3922 + $0xc] sm:$0xf]
  %v3927 = vld [vmem:[%s3922 + $0x10] sm:$0xf]
  %v3928 = vld [vmem:[%s3922 + $0x14] sm:$0xf]
  %v3929 = vld [vmem:[%s3922 + $0x18] sm:$0xf]
  %v3930 = vld [vmem:[%s3922 + $0x1c] sm:$0xf]
  %v3931 = vld [vmem:[%s3922 + $0x20] sm:$0xf]
  %v3932 = vld [vmem:[%s3922 + $0x24] sm:$0xf]
  %v3933 = vld [vmem:[%s3922 + $0x28] sm:$0xf]
  %v3934 = vld [vmem:[%s3922 + $0x2c] sm:$0xf]
  %v3935 = vld [vmem:[%s3922 + $0x30] sm:$0xf]
  %v3936 = vld [vmem:[%s3922 + $0x34] sm:$0xf]
  %v3937 = vld [vmem:[%s3922 + $0x38] sm:$0xf]
  %v3938 = vld [vmem:[%s3922 + $0x3c] sm:$0xf]
  %v3955 = vunpack.c.l.b16 %v3923
  %v3956 = vunpack.c.l.b16 %v3924
  %v3957 = vunpack.c.l.b16 %v3925
  %v3958 = vunpack.c.l.b16 %v3926
  %v3959 = vunpack.c.l.b16 %v3927
  %v3960 = vunpack.c.l.b16 %v3928
  %v3961 = vunpack.c.l.b16 %v3929
  %v3962 = vunpack.c.l.b16 %v3930
  %v3963 = vunpack.c.l.b16 %v3931
  %v3964 = vunpack.c.l.b16 %v3932
  %v3965 = vunpack.c.l.b16 %v3933
  %v3966 = vunpack.c.l.b16 %v3934
  %v3967 = vunpack.c.l.b16 %v3935
  %v3968 = vunpack.c.l.b16 %v3936
  %v3969 = vunpack.c.l.b16 %v3937
  %v3970 = vunpack.c.l.b16 %v3938
  %v3971 = vpack.c.b16 %v3956, %v3955
  %v3972 = vpack.c.b16 %v3958, %v3957
  %v3973 = vpack.c.b16 %v3960, %v3959
  %v3974 = vpack.c.b16 %v3962, %v3961
  %v3975 = vpack.c.b16 %v3964, %v3963
  %v3976 = vpack.c.b16 %v3966, %v3965
  %v3977 = vpack.c.b16 %v3968, %v3967
  %v3978 = vpack.c.b16 %v3970, %v3969
  %3987 = vmatpush.bf16.msra.mxu0 %v3978
  %3988 = vmatpush.bf16.msra.mxu0 %v3977
  %3989 = vmatpush.bf16.msra.mxu0 %v3976
  %3990 = vmatpush.bf16.msra.mxu0 %v3975
  %3991 = vmatpush.bf16.msra.mxu0 %v3974
  %3992 = vmatpush.bf16.msra.mxu0 %v3973
  %3993 = vmatpush.bf16.msra.mxu0 %v3972
  %3994 = vmatpush.bf16.msra.mxu0 %v3971
  %3995 = vmatmul.bf16.gmra.mxu0 %v3920
  %v3996 = vpop.f32.mrf.mxu0
  %v3997 = vadd.f32 0.0, %v3996
  %v3998 = vpop.f32.mrf.mxu0
  %v3999 = vadd.f32 0.0, %v3998
  %4000 = vmatmul.bf16.gmra.mxu0 %v3921
  %v4001 = vpop.f32.mrf.mxu0
  %v4002 = vadd.f32 0.0, %v4001
  %v4003 = vpop.f32.mrf.mxu0
  %4004 = vdwg.mxu0
  %v4021 = vunpack.c.l.b16 %v3901
  %v4022 = vunpack.c.l.b16 %v3902
  %v4023 = vunpack.c.l.b16 %v3903
  %v4024 = vunpack.c.l.b16 %v3904
  %v4025 = vunpack.c.l.b16 %v3905
  %v4026 = vunpack.c.l.b16 %v3906
  %v4027 = vunpack.c.l.b16 %v3907
  %v4028 = vunpack.c.l.b16 %v3908
  %v4029 = vunpack.c.l.b16 %v3909
  %v4030 = vunpack.c.l.b16 %v3910
  %v4031 = vunpack.c.l.b16 %v3911
  %v4032 = vunpack.c.l.b16 %v3912
  %v4033 = vunpack.c.l.b16 %v3913
  %v4034 = vunpack.c.l.b16 %v3914
  %v4035 = vunpack.c.l.b16 %v3915
  %v4036 = vunpack.c.l.b16 %v3916
  %v4037 = vpack.c.b16 %v4022, %v4021
  %v4038 = vpack.c.b16 %v4024, %v4023
  %v4039 = vpack.c.b16 %v4026, %v4025
  %v4040 = vpack.c.b16 %v4028, %v4027
  %v4041 = vpack.c.b16 %v4030, %v4029
  %v4042 = vpack.c.b16 %v4032, %v4031
  %v4043 = vpack.c.b16 %v4034, %v4033
  %v4044 = vpack.c.b16 %v4036, %v4035
  %4053 = vmatpush.bf16.msra.mxu0 %v4044
  %4054 = vmatpush.bf16.msra.mxu0 %v4043
  %4055 = vmatpush.bf16.msra.mxu0 %v4042
  %4056 = vmatpush.bf16.msra.mxu0 %v4041
  %4057 = vmatpush.bf16.msra.mxu0 %v4040
  %4058 = vmatpush.bf16.msra.mxu0 %v4039
  %4059 = vmatpush.bf16.msra.mxu0 %v4038
  %4060 = vmatpush.bf16.msra.mxu0 %v4037
  %4061 = vmatmul.bf16.gmra.mxu0 %v3899
  %v4062 = vpop.f32.mrf.mxu0
  %v4063 = vadd.f32 %v3997, %v4062
  %v4064 = vpop.f32.mrf.mxu0
  %v4065 = vadd.f32 %v3999, %v4064
  %4066 = vmatmul.bf16.gmra.mxu0 %v3900
  %v4067 = vpop.f32.mrf.mxu0
  %v4068 = vadd.f32 %v4002, %v4067
  %v4069 = vpop.f32.mrf.mxu0
  %4070 = vdwg.mxu0
  %v4071 = vld [vmem:[#allocation3 + $0x1] sm:$0xff]
  %v4072 = vld [vmem:[#allocation3 + $0x9] sm:$0xff]
  %v4073 = vld [vmem:[#allocation3 + $0x11] sm:$0x3]
  %v4074 = vpack.c.bf16 %v4072, %v4071
  %v4075 = vpack.c.bf16 %v4073, %v4073
  %s4076 = scalar_lea.vmem %s25, 128
  %v4077 = vld [vmem:[%s4076] sm:$0xf]
  %v4078 = vld [vmem:[%s4076 + $0x4] sm:$0xf]
  %v4079 = vld [vmem:[%s4076 + $0x8] sm:$0xf]
  %v4080 = vld [vmem:[%s4076 + $0xc] sm:$0xf]
  %v4081 = vld [vmem:[%s4076 + $0x10] sm:$0xf]
  %v4082 = vld [vmem:[%s4076 + $0x14] sm:$0xf]
  %v4083 = vld [vmem:[%s4076 + $0x18] sm:$0xf]
  %v4084 = vld [vmem:[%s4076 + $0x1c] sm:$0xf]
  %v4085 = vld [vmem:[%s4076 + $0x20] sm:$0xf]
  %v4086 = vld [vmem:[%s4076 + $0x24] sm:$0xf]
  %v4087 = vld [vmem:[%s4076 + $0x28] sm:$0xf]
  %v4088 = vld [vmem:[%s4076 + $0x2c] sm:$0xf]
  %v4089 = vld [vmem:[%s4076 + $0x30] sm:$0xf]
  %v4090 = vld [vmem:[%s4076 + $0x34] sm:$0xf]
  %v4091 = vld [vmem:[%s4076 + $0x38] sm:$0xf]
  %v4092 = vld [vmem:[%s4076 + $0x3c] sm:$0xf]
  %v4109 = vunpack.c.l.b16 %v4077
  %v4110 = vunpack.c.l.b16 %v4078
  %v4111 = vunpack.c.l.b16 %v4079
  %v4112 = vunpack.c.l.b16 %v4080
  %v4113 = vunpack.c.l.b16 %v4081
  %v4114 = vunpack.c.l.b16 %v4082
  %v4115 = vunpack.c.l.b16 %v4083
  %v4116 = vunpack.c.l.b16 %v4084
  %v4117 = vunpack.c.l.b16 %v4085
  %v4118 = vunpack.c.l.b16 %v4086
  %v4119 = vunpack.c.l.b16 %v4087
  %v4120 = vunpack.c.l.b16 %v4088
  %v4121 = vunpack.c.l.b16 %v4089
  %v4122 = vunpack.c.l.b16 %v4090
  %v4123 = vunpack.c.l.b16 %v4091
  %v4124 = vunpack.c.l.b16 %v4092
  %v4125 = vpack.c.b16 %v4110, %v4109
  %v4126 = vpack.c.b16 %v4112, %v4111
  %v4127 = vpack.c.b16 %v4114, %v4113
  %v4128 = vpack.c.b16 %v4116, %v4115
  %v4129 = vpack.c.b16 %v4118, %v4117
  %v4130 = vpack.c.b16 %v4120, %v4119
  %v4131 = vpack.c.b16 %v4122, %v4121
  %v4132 = vpack.c.b16 %v4124, %v4123
  %4141 = vmatpush.bf16.msra.mxu0 %v4132
  %4142 = vmatpush.bf16.msra.mxu0 %v4131
  %4143 = vmatpush.bf16.msra.mxu0 %v4130
  %4144 = vmatpush.bf16.msra.mxu0 %v4129
  %4145 = vmatpush.bf16.msra.mxu0 %v4128
  %4146 = vmatpush.bf16.msra.mxu0 %v4127
  %4147 = vmatpush.bf16.msra.mxu0 %v4126
  %4148 = vmatpush.bf16.msra.mxu0 %v4125
  %4149 = vmatmul.bf16.gmra.mxu0 %v4074
  %v4150 = vpop.f32.mrf.mxu0
  %v4151 = vadd.f32 0.0, %v4150
  %v4152 = vpop.f32.mrf.mxu0
  %v4153 = vadd.f32 0.0, %v4152
  %4154 = vmatmul.bf16.gmra.mxu0 %v4075
  %v4155 = vpop.f32.mrf.mxu0
  %v4156 = vadd.f32 0.0, %v4155
  %v4157 = vpop.f32.mrf.mxu0
  %4158 = vdwg.mxu0
  %v4159 = vadd.f32 %v4063, %v4151
  %v4160 = vadd.f32 %v4065, %v4153
  %v4161 = vadd.f32 %v4068, %v4156
  %v4162 = vld [vmem:[%s3852] sm:$0xff]
  %v4163 = vld [vmem:[%s3852 + $0x8] sm:$0xff]
  %v4164 = vld [vmem:[%s3852 + $0x10] sm:$0x3]
  %v4165 = vpack.c.bf16 %v4163, %v4162
  %v4166 = vpack.c.bf16 %v4164, %v4164
  %s4167 = scalar_lea.vmem %s25, 192
  %v4168 = vld [vmem:[%s4167] sm:$0xf]
  %v4169 = vld [vmem:[%s4167 + $0x4] sm:$0xf]
  %v4170 = vld [vmem:[%s4167 + $0x8] sm:$0xf]
  %v4171 = vld [vmem:[%s4167 + $0xc] sm:$0xf]
  %v4172 = vld [vmem:[%s4167 + $0x10] sm:$0xf]
  %v4173 = vld [vmem:[%s4167 + $0x14] sm:$0xf]
  %v4174 = vld [vmem:[%s4167 + $0x18] sm:$0xf]
  %v4175 = vld [vmem:[%s4167 + $0x1c] sm:$0xf]
  %v4176 = vld [vmem:[%s4167 + $0x20] sm:$0xf]
  %v4177 = vld [vmem:[%s4167 + $0x24] sm:$0xf]
  %v4178 = vld [vmem:[%s4167 + $0x28] sm:$0xf]
  %v4179 = vld [vmem:[%s4167 + $0x2c] sm:$0xf]
  %v4180 = vld [vmem:[%s4167 + $0x30] sm:$0xf]
  %v4181 = vld [vmem:[%s4167 + $0x34] sm:$0xf]
  %v4182 = vld [vmem:[%s4167 + $0x38] sm:$0xf]
  %v4183 = vld [vmem:[%s4167 + $0x3c] sm:$0xf]
  %v4200 = vunpack.c.l.b16 %v4168
  %v4201 = vunpack.c.l.b16 %v4169
  %v4202 = vunpack.c.l.b16 %v4170
  %v4203 = vunpack.c.l.b16 %v4171
  %v4204 = vunpack.c.l.b16 %v4172
  %v4205 = vunpack.c.l.b16 %v4173
  %v4206 = vunpack.c.l.b16 %v4174
  %v4207 = vunpack.c.l.b16 %v4175
  %v4208 = vunpack.c.l.b16 %v4176
  %v4209 = vunpack.c.l.b16 %v4177
  %v4210 = vunpack.c.l.b16 %v4178
  %v4211 = vunpack.c.l.b16 %v4179
  %v4212 = vunpack.c.l.b16 %v4180
  %v4213 = vunpack.c.l.b16 %v4181
  %v4214 = vunpack.c.l.b16 %v4182
  %v4215 = vunpack.c.l.b16 %v4183
  %v4216 = vpack.c.b16 %v4201, %v4200
  %v4217 = vpack.c.b16 %v4203, %v4202
  %v4218 = vpack.c.b16 %v4205, %v4204
  %v4219 = vpack.c.b16 %v4207, %v4206
  %v4220 = vpack.c.b16 %v4209, %v4208
  %v4221 = vpack.c.b16 %v4211, %v4210
  %v4222 = vpack.c.b16 %v4213, %v4212
  %v4223 = vpack.c.b16 %v4215, %v4214
  %4232 = vmatpush.bf16.msra.mxu0 %v4223
  %4233 = vmatpush.bf16.msra.mxu0 %v4222
  %4234 = vmatpush.bf16.msra.mxu0 %v4221
  %4235 = vmatpush.bf16.msra.mxu0 %v4220
  %4236 = vmatpush.bf16.msra.mxu0 %v4219
  %4237 = vmatpush.bf16.msra.mxu0 %v4218
  %4238 = vmatpush.bf16.msra.mxu0 %v4217
  %4239 = vmatpush.bf16.msra.mxu0 %v4216
  %4240 = vmatmul.bf16.gmra.mxu0 %v4165
  %v4241 = vpop.f32.mrf.mxu0
  %v4242 = vadd.f32 0.0, %v4241
  %v4243 = vpop.f32.mrf.mxu0
  %v4244 = vadd.f32 0.0, %v4243
  %4245 = vmatmul.bf16.gmra.mxu0 %v4166
  %v4246 = vpop.f32.mrf.mxu0
  %v4247 = vadd.f32 0.0, %v4246
  %v4248 = vpop.f32.mrf.mxu0
  %4249 = vdwg.mxu0
  %v4250 = vadd.f32 %v4159, %v4242
  %v4251 = vadd.f32 %v4160, %v4244
  %v4252 = vadd.f32 %v4161, %v4247
  %v4253 = vld [vmem:[%s3892] sm:$0xff]
  %v4254 = vld [vmem:[%s3892 + $0x8] sm:$0xff]
  %v4255 = vld [vmem:[%s3892 + $0x10] sm:$0x3]
  %v4256 = vpack.c.bf16 %v4254, %v4253
  %v4257 = vpack.c.bf16 %v4255, %v4255
  %s4258 = scalar_lea.vmem %s25, 256
  %v4259 = vld [vmem:[%s4258] sm:$0xf]
  %v4260 = vld [vmem:[%s4258 + $0x4] sm:$0xf]
  %v4261 = vld [vmem:[%s4258 + $0x8] sm:$0xf]
  %v4262 = vld [vmem:[%s4258 + $0xc] sm:$0xf]
  %v4263 = vld [vmem:[%s4258 + $0x10] sm:$0xf]
  %v4264 = vld [vmem:[%s4258 + $0x14] sm:$0xf]
  %v4265 = vld [vmem:[%s4258 + $0x18] sm:$0xf]
  %v4266 = vld [vmem:[%s4258 + $0x1c] sm:$0xf]
  %v4267 = vld [vmem:[%s4258 + $0x20] sm:$0xf]
  %v4268 = vld [vmem:[%s4258 + $0x24] sm:$0xf]
  %v4269 = vld [vmem:[%s4258 + $0x28] sm:$0xf]
  %v4270 = vld [vmem:[%s4258 + $0x2c] sm:$0xf]
  %v4271 = vld [vmem:[%s4258 + $0x30] sm:$0xf]
  %v4272 = vld [vmem:[%s4258 + $0x34] sm:$0xf]
  %v4273 = vld [vmem:[%s4258 + $0x38] sm:$0xf]
  %v4274 = vld [vmem:[%s4258 + $0x3c] sm:$0xf]
  %v4291 = vunpack.c.l.b16 %v4259
  %v4292 = vunpack.c.l.b16 %v4260
  %v4293 = vunpack.c.l.b16 %v4261
  %v4294 = vunpack.c.l.b16 %v4262
  %v4295 = vunpack.c.l.b16 %v4263
  %v4296 = vunpack.c.l.b16 %v4264
  %v4297 = vunpack.c.l.b16 %v4265
  %v4298 = vunpack.c.l.b16 %v4266
  %v4299 = vunpack.c.l.b16 %v4267
  %v4300 = vunpack.c.l.b16 %v4268
  %v4301 = vunpack.c.l.b16 %v4269
  %v4302 = vunpack.c.l.b16 %v4270
  %v4303 = vunpack.c.l.b16 %v4271
  %v4304 = vunpack.c.l.b16 %v4272
  %v4305 = vunpack.c.l.b16 %v4273
  %v4306 = vunpack.c.l.b16 %v4274
  %v4307 = vpack.c.b16 %v4292, %v4291
  %v4308 = vpack.c.b16 %v4294, %v4293
  %v4309 = vpack.c.b16 %v4296, %v4295
  %v4310 = vpack.c.b16 %v4298, %v4297
  %v4311 = vpack.c.b16 %v4300, %v4299
  %v4312 = vpack.c.b16 %v4302, %v4301
  %v4313 = vpack.c.b16 %v4304, %v4303
  %v4314 = vpack.c.b16 %v4306, %v4305
  %4323 = vmatpush.bf16.msra.mxu0 %v4314
  %4324 = vmatpush.bf16.msra.mxu0 %v4313
  %4325 = vmatpush.bf16.msra.mxu0 %v4312
  %4326 = vmatpush.bf16.msra.mxu0 %v4311
  %4327 = vmatpush.bf16.msra.mxu0 %v4310
  %4328 = vmatpush.bf16.msra.mxu0 %v4309
  %4329 = vmatpush.bf16.msra.mxu0 %v4308
  %4330 = vmatpush.bf16.msra.mxu0 %v4307
  %4331 = vmatmul.bf16.gmra.mxu0 %v4256
  %v4332 = vpop.f32.mrf.mxu0
  %v4333 = vadd.f32 0.0, %v4332
  %v4334 = vpop.f32.mrf.mxu0
  %v4335 = vadd.f32 0.0, %v4334
  %4336 = vmatmul.bf16.gmra.mxu0 %v4257
  %v4337 = vpop.f32.mrf.mxu0
  %v4338 = vadd.f32 0.0, %v4337
  %v4339 = vpop.f32.mrf.mxu0
  %4340 = vdwg.mxu0
  %v4341 = vadd.f32 %v4250, %v4333
  %v4342 = vadd.f32 %v4251, %v4335
  %v4343 = vadd.f32 %v4252, %v4338
  %v4344 = vld [vmem:[%s3852 + $0x1] sm:$0xff]
  %v4345 = vld [vmem:[%s3852 + $0x9] sm:$0xff]
  %v4346 = vld [vmem:[%s3852 + $0x11] sm:$0x3]
  %v4347 = vpack.c.bf16 %v4345, %v4344
  %v4348 = vpack.c.bf16 %v4346, %v4346
  %s4349 = scalar_lea.vmem %s25, 320
  %v4350 = vld [vmem:[%s4349] sm:$0xf]
  %v4351 = vld [vmem:[%s4349 + $0x4] sm:$0xf]
  %v4352 = vld [vmem:[%s4349 + $0x8] sm:$0xf]
  %v4353 = vld [vmem:[%s4349 + $0xc] sm:$0xf]
  %v4354 = vld [vmem:[%s4349 + $0x10] sm:$0xf]
  %v4355 = vld [vmem:[%s4349 + $0x14] sm:$0xf]
  %v4356 = vld [vmem:[%s4349 + $0x18] sm:$0xf]
  %v4357 = vld [vmem:[%s4349 + $0x1c] sm:$0xf]
  %v4358 = vld [vmem:[%s4349 + $0x20] sm:$0xf]
  %v4359 = vld [vmem:[%s4349 + $0x24] sm:$0xf]
  %v4360 = vld [vmem:[%s4349 + $0x28] sm:$0xf]
  %v4361 = vld [vmem:[%s4349 + $0x2c] sm:$0xf]
  %v4362 = vld [vmem:[%s4349 + $0x30] sm:$0xf]
  %v4363 = vld [vmem:[%s4349 + $0x34] sm:$0xf]
  %v4364 = vld [vmem:[%s4349 + $0x38] sm:$0xf]
  %v4365 = vld [vmem:[%s4349 + $0x3c] sm:$0xf]
  %v4382 = vunpack.c.l.b16 %v4350
  %v4383 = vunpack.c.l.b16 %v4351
  %v4384 = vunpack.c.l.b16 %v4352
  %v4385 = vunpack.c.l.b16 %v4353
  %v4386 = vunpack.c.l.b16 %v4354
  %v4387 = vunpack.c.l.b16 %v4355
  %v4388 = vunpack.c.l.b16 %v4356
  %v4389 = vunpack.c.l.b16 %v4357
  %v4390 = vunpack.c.l.b16 %v4358
  %v4391 = vunpack.c.l.b16 %v4359
  %v4392 = vunpack.c.l.b16 %v4360
  %v4393 = vunpack.c.l.b16 %v4361
  %v4394 = vunpack.c.l.b16 %v4362
  %v4395 = vunpack.c.l.b16 %v4363
  %v4396 = vunpack.c.l.b16 %v4364
  %v4397 = vunpack.c.l.b16 %v4365
  %v4398 = vpack.c.b16 %v4383, %v4382
  %v4399 = vpack.c.b16 %v4385, %v4384
  %v4400 = vpack.c.b16 %v4387, %v4386
  %v4401 = vpack.c.b16 %v4389, %v4388
  %v4402 = vpack.c.b16 %v4391, %v4390
  %v4403 = vpack.c.b16 %v4393, %v4392
  %v4404 = vpack.c.b16 %v4395, %v4394
  %v4405 = vpack.c.b16 %v4397, %v4396
  %4414 = vmatpush.bf16.msra.mxu0 %v4405
  %4415 = vmatpush.bf16.msra.mxu0 %v4404
  %4416 = vmatpush.bf16.msra.mxu0 %v4403
  %4417 = vmatpush.bf16.msra.mxu0 %v4402
  %4418 = vmatpush.bf16.msra.mxu0 %v4401
  %4419 = vmatpush.bf16.msra.mxu0 %v4400
  %4420 = vmatpush.bf16.msra.mxu0 %v4399
  %4421 = vmatpush.bf16.msra.mxu0 %v4398
  %4422 = vmatmul.bf16.gmra.mxu0 %v4347
  %v4423 = vpop.f32.mrf.mxu0
  %v4424 = vadd.f32 0.0, %v4423
  %v4425 = vpop.f32.mrf.mxu0
  %v4426 = vadd.f32 0.0, %v4425
  %4427 = vmatmul.bf16.gmra.mxu0 %v4348
  %v4428 = vpop.f32.mrf.mxu0
  %v4429 = vadd.f32 0.0, %v4428
  %v4430 = vpop.f32.mrf.mxu0
  %4431 = vdwg.mxu0
  %v4432 = vadd.f32 %v4341, %v4424
  %v4433 = vadd.f32 %v4342, %v4426
  %v4434 = vadd.f32 %v4343, %v4429
  %v4435 = vld [vmem:[#allocation3 + $0x3] sm:$0xff]
  %v4436 = vld [vmem:[#allocation3 + $0xb] sm:$0xff]
  %v4437 = vld [vmem:[#allocation3 + $0x13] sm:$0x3]
  %v4438 = vpack.c.bf16 %v4436, %v4435
  %v4439 = vpack.c.bf16 %v4437, %v4437
  %s4440 = scalar_lea.vmem %s25, 384
  %v4441 = vld [vmem:[%s4440] sm:$0xf]
  %v4442 = vld [vmem:[%s4440 + $0x4] sm:$0xf]
  %v4443 = vld [vmem:[%s4440 + $0x8] sm:$0xf]
  %v4444 = vld [vmem:[%s4440 + $0xc] sm:$0xf]
  %v4445 = vld [vmem:[%s4440 + $0x10] sm:$0xf]
  %v4446 = vld [vmem:[%s4440 + $0x14] sm:$0xf]
  %v4447 = vld [vmem:[%s4440 + $0x18] sm:$0xf]
  %v4448 = vld [vmem:[%s4440 + $0x1c] sm:$0xf]
  %v4449 = vld [vmem:[%s4440 + $0x20] sm:$0xf]
  %v4450 = vld [vmem:[%s4440 + $0x24] sm:$0xf]
  %v4451 = vld [vmem:[%s4440 + $0x28] sm:$0xf]
  %v4452 = vld [vmem:[%s4440 + $0x2c] sm:$0xf]
  %v4453 = vld [vmem:[%s4440 + $0x30] sm:$0xf]
  %v4454 = vld [vmem:[%s4440 + $0x34] sm:$0xf]
  %v4455 = vld [vmem:[%s4440 + $0x38] sm:$0xf]
  %v4456 = vld [vmem:[%s4440 + $0x3c] sm:$0xf]
  %v4473 = vunpack.c.l.b16 %v4441
  %v4474 = vunpack.c.l.b16 %v4442
  %v4475 = vunpack.c.l.b16 %v4443
  %v4476 = vunpack.c.l.b16 %v4444
  %v4477 = vunpack.c.l.b16 %v4445
  %v4478 = vunpack.c.l.b16 %v4446
  %v4479 = vunpack.c.l.b16 %v4447
  %v4480 = vunpack.c.l.b16 %v4448
  %v4481 = vunpack.c.l.b16 %v4449
  %v4482 = vunpack.c.l.b16 %v4450
  %v4483 = vunpack.c.l.b16 %v4451
  %v4484 = vunpack.c.l.b16 %v4452
  %v4485 = vunpack.c.l.b16 %v4453
  %v4486 = vunpack.c.l.b16 %v4454
  %v4487 = vunpack.c.l.b16 %v4455
  %v4488 = vunpack.c.l.b16 %v4456
  %v4489 = vpack.c.b16 %v4474, %v4473
  %v4490 = vpack.c.b16 %v4476, %v4475
  %v4491 = vpack.c.b16 %v4478, %v4477
  %v4492 = vpack.c.b16 %v4480, %v4479
  %v4493 = vpack.c.b16 %v4482, %v4481
  %v4494 = vpack.c.b16 %v4484, %v4483
  %v4495 = vpack.c.b16 %v4486, %v4485
  %v4496 = vpack.c.b16 %v4488, %v4487
  %4505 = vmatpush.bf16.msra.mxu0 %v4496
  %4506 = vmatpush.bf16.msra.mxu0 %v4495
  %4507 = vmatpush.bf16.msra.mxu0 %v4494
  %4508 = vmatpush.bf16.msra.mxu0 %v4493
  %4509 = vmatpush.bf16.msra.mxu0 %v4492
  %4510 = vmatpush.bf16.msra.mxu0 %v4491
  %4511 = vmatpush.bf16.msra.mxu0 %v4490
  %4512 = vmatpush.bf16.msra.mxu0 %v4489
  %4513 = vmatmul.bf16.gmra.mxu0 %v4438
  %v4514 = vpop.f32.mrf.mxu0
  %v4515 = vadd.f32 0.0, %v4514
  %v4516 = vpop.f32.mrf.mxu0
  %v4517 = vadd.f32 0.0, %v4516
  %4518 = vmatmul.bf16.gmra.mxu0 %v4439
  %v4519 = vpop.f32.mrf.mxu0
  %v4520 = vadd.f32 0.0, %v4519
  %v4521 = vpop.f32.mrf.mxu0
  %4522 = vdwg.mxu0
  %v4523 = vadd.f32 %v4432, %v4515
  %v4524 = vadd.f32 %v4433, %v4517
  %v4525 = vadd.f32 %v4434, %v4520
  %v4526 = vld [vmem:[%s3812 + $0x3] sm:$0xff]
  %v4527 = vld [vmem:[%s3812 + $0xb] sm:$0xff]
  %v4528 = vld [vmem:[%s3812 + $0x13] sm:$0x3]
  %v4529 = vpack.c.bf16 %v4527, %v4526
  %v4530 = vpack.c.bf16 %v4528, %v4528
  %s4531 = scalar_lea.vmem %s25, 448
  %v4532 = vld [vmem:[%s4531] sm:$0xf]
  %v4533 = vld [vmem:[%s4531 + $0x4] sm:$0xf]
  %v4534 = vld [vmem:[%s4531 + $0x8] sm:$0xf]
  %v4535 = vld [vmem:[%s4531 + $0xc] sm:$0xf]
  %v4536 = vld [vmem:[%s4531 + $0x10] sm:$0xf]
  %v4537 = vld [vmem:[%s4531 + $0x14] sm:$0xf]
  %v4538 = vld [vmem:[%s4531 + $0x18] sm:$0xf]
  %v4539 = vld [vmem:[%s4531 + $0x1c] sm:$0xf]
  %v4540 = vld [vmem:[%s4531 + $0x20] sm:$0xf]
  %v4541 = vld [vmem:[%s4531 + $0x24] sm:$0xf]
  %v4542 = vld [vmem:[%s4531 + $0x28] sm:$0xf]
  %v4543 = vld [vmem:[%s4531 + $0x2c] sm:$0xf]
  %v4544 = vld [vmem:[%s4531 + $0x30] sm:$0xf]
  %v4545 = vld [vmem:[%s4531 + $0x34] sm:$0xf]
  %v4546 = vld [vmem:[%s4531 + $0x38] sm:$0xf]
  %v4547 = vld [vmem:[%s4531 + $0x3c] sm:$0xf]
  %v4564 = vunpack.c.l.b16 %v4532
  %v4565 = vunpack.c.l.b16 %v4533
  %v4566 = vunpack.c.l.b16 %v4534
  %v4567 = vunpack.c.l.b16 %v4535
  %v4568 = vunpack.c.l.b16 %v4536
  %v4569 = vunpack.c.l.b16 %v4537
  %v4570 = vunpack.c.l.b16 %v4538
  %v4571 = vunpack.c.l.b16 %v4539
  %v4572 = vunpack.c.l.b16 %v4540
  %v4573 = vunpack.c.l.b16 %v4541
  %v4574 = vunpack.c.l.b16 %v4542
  %v4575 = vunpack.c.l.b16 %v4543
  %v4576 = vunpack.c.l.b16 %v4544
  %v4577 = vunpack.c.l.b16 %v4545
  %v4578 = vunpack.c.l.b16 %v4546
  %v4579 = vunpack.c.l.b16 %v4547
  %v4580 = vpack.c.b16 %v4565, %v4564
  %v4581 = vpack.c.b16 %v4567, %v4566
  %v4582 = vpack.c.b16 %v4569, %v4568
  %v4583 = vpack.c.b16 %v4571, %v4570
  %v4584 = vpack.c.b16 %v4573, %v4572
  %v4585 = vpack.c.b16 %v4575, %v4574
  %v4586 = vpack.c.b16 %v4577, %v4576
  %v4587 = vpack.c.b16 %v4579, %v4578
  %4596 = vmatpush.bf16.msra.mxu0 %v4587
  %4597 = vmatpush.bf16.msra.mxu0 %v4586
  %4598 = vmatpush.bf16.msra.mxu0 %v4585
  %4599 = vmatpush.bf16.msra.mxu0 %v4584
  %4600 = vmatpush.bf16.msra.mxu0 %v4583
  %4601 = vmatpush.bf16.msra.mxu0 %v4582
  %4602 = vmatpush.bf16.msra.mxu0 %v4581
  %4603 = vmatpush.bf16.msra.mxu0 %v4580
  %4604 = vmatmul.bf16.gmra.mxu0 %v4529
  %v4605 = vpop.f32.mrf.mxu0
  %v4606 = vadd.f32 0.0, %v4605
  %v4607 = vpop.f32.mrf.mxu0
  %v4608 = vadd.f32 0.0, %v4607
  %4609 = vmatmul.bf16.gmra.mxu0 %v4530
  %v4610 = vpop.f32.mrf.mxu0
  %v4611 = vadd.f32 0.0, %v4610
  %v4612 = vpop.f32.mrf.mxu0
  %4613 = vdwg.mxu0
  %v4614 = vadd.f32 %v4523, %v4606
  %v4615 = vadd.f32 %v4524, %v4608
  %v4616 = vadd.f32 %v4525, %v4611
  %v4617 = vld [vmem:[#allocation3 + $0x4] sm:$0xff]
  %v4618 = vld [vmem:[#allocation3 + $0xc] sm:$0xff]
  %v4619 = vld [vmem:[#allocation3 + $0x14] sm:$0x3]
  %v4620 = vpack.c.bf16 %v4618, %v4617
  %v4621 = vpack.c.bf16 %v4619, %v4619
  %s4622 = scalar_lea.vmem %s25, 512
  %v4623 = vld [vmem:[%s4622] sm:$0xf]
  %v4624 = vld [vmem:[%s4622 + $0x4] sm:$0xf]
  %v4625 = vld [vmem:[%s4622 + $0x8] sm:$0xf]
  %v4626 = vld [vmem:[%s4622 + $0xc] sm:$0xf]
  %v4627 = vld [vmem:[%s4622 + $0x10] sm:$0xf]
  %v4628 = vld [vmem:[%s4622 + $0x14] sm:$0xf]
  %v4629 = vld [vmem:[%s4622 + $0x18] sm:$0xf]
  %v4630 = vld [vmem:[%s4622 + $0x1c] sm:$0xf]
  %v4631 = vld [vmem:[%s4622 + $0x20] sm:$0xf]
  %v4632 = vld [vmem:[%s4622 + $0x24] sm:$0xf]
  %v4633 = vld [vmem:[%s4622 + $0x28] sm:$0xf]
  %v4634 = vld [vmem:[%s4622 + $0x2c] sm:$0xf]
  %v4635 = vld [vmem:[%s4622 + $0x30] sm:$0xf]
  %v4636 = vld [vmem:[%s4622 + $0x34] sm:$0xf]
  %v4637 = vld [vmem:[%s4622 + $0x38] sm:$0xf]
  %v4638 = vld [vmem:[%s4622 + $0x3c] sm:$0xf]
  %v4655 = vunpack.c.l.b16 %v4623
  %v4656 = vunpack.c.l.b16 %v4624
  %v4657 = vunpack.c.l.b16 %v4625
  %v4658 = vunpack.c.l.b16 %v4626
  %v4659 = vunpack.c.l.b16 %v4627
  %v4660 = vunpack.c.l.b16 %v4628
  %v4661 = vunpack.c.l.b16 %v4629
  %v4662 = vunpack.c.l.b16 %v4630
  %v4663 = vunpack.c.l.b16 %v4631
  %v4664 = vunpack.c.l.b16 %v4632
  %v4665 = vunpack.c.l.b16 %v4633
  %v4666 = vunpack.c.l.b16 %v4634
  %v4667 = vunpack.c.l.b16 %v4635
  %v4668 = vunpack.c.l.b16 %v4636
  %v4669 = vunpack.c.l.b16 %v4637
  %v4670 = vunpack.c.l.b16 %v4638
  %v4671 = vpack.c.b16 %v4656, %v4655
  %v4672 = vpack.c.b16 %v4658, %v4657
  %v4673 = vpack.c.b16 %v4660, %v4659
  %v4674 = vpack.c.b16 %v4662, %v4661
  %v4675 = vpack.c.b16 %v4664, %v4663
  %v4676 = vpack.c.b16 %v4666, %v4665
  %v4677 = vpack.c.b16 %v4668, %v4667
  %v4678 = vpack.c.b16 %v4670, %v4669
  %4687 = vmatpush.bf16.msra.mxu0 %v4678
  %4688 = vmatpush.bf16.msra.mxu0 %v4677
  %4689 = vmatpush.bf16.msra.mxu0 %v4676
  %4690 = vmatpush.bf16.msra.mxu0 %v4675
  %4691 = vmatpush.bf16.msra.mxu0 %v4674
  %4692 = vmatpush.bf16.msra.mxu0 %v4673
  %4693 = vmatpush.bf16.msra.mxu0 %v4672
  %4694 = vmatpush.bf16.msra.mxu0 %v4671
  %4695 = vmatmul.bf16.gmra.mxu0 %v4620
  %v4696 = vpop.f32.mrf.mxu0
  %v4697 = vadd.f32 0.0, %v4696
  %v4698 = vpop.f32.mrf.mxu0
  %v4699 = vadd.f32 0.0, %v4698
  %4700 = vmatmul.bf16.gmra.mxu0 %v4621
  %v4701 = vpop.f32.mrf.mxu0
  %v4702 = vadd.f32 0.0, %v4701
  %v4703 = vpop.f32.mrf.mxu0
  %4704 = vdwg.mxu0
  %v4705 = vadd.f32 %v4614, %v4697
  %v4706 = vadd.f32 %v4615, %v4699
  %v4707 = vadd.f32 %v4616, %v4702
  %v4708 = vld [vmem:[%s27] sm:$0x1]
  %v4710 = vperm.slane %v4708, 0
  %v4712 = vadd.f32 %v4705, %v4710
  %v4713 = vadd.f32 %v4706, %v4710
  %v4714 = vadd.f32 %v4707, %v4710
  %v4715 = vld [vmem:[%s33] sm:$0xff]
  %v4716 = vld [vmem:[%s33 + $0x8] sm:$0xff]
  %v4717 = vld [vmem:[%s33 + $0x10] sm:$0x3]
  %4719 = vset.pattern.permute.xlu0 0
  %4720 = vperm.xlu0 %4719, %v4715
  %v4721 = vpop.permute.xlu0 %4720
  %4724 = vset.pattern.permute.xlu0 0
  %4725 = vperm.xlu0 %4724, %v4716
  %v4726 = vpop.permute.xlu0 %4725
  %4729 = vset.pattern.permute.xlu0 0
  %4730 = vperm.xlu0 %4729, %v4717
  %v4731 = vpop.permute.xlu0 %4730
  %v4733 = vmul.f32 %v4712, %v4721
  %v4734 = vmul.f32 %v4713, %v4726
  %v4735 = vmul.f32 %v4714, %v4731
  %v4736 = vadd.f32 %v4733, %v4734
  %v4737 = vsel %vm1926, %v4735, 0.0
  %v4738 = vadd.f32 %v4736, %v4737
  %v4739 = vrot.slane %v4738, 4
  %v4740 = vadd.f32 %v4738, %v4739
  %v4741 = vrot.slane %v4740, 2
  %v4742 = vadd.f32 %v4740, %v4741
  %v4743 = vrot.slane %v4742, 1
  %v4744 = vadd.f32 %v4742, %v4743
  %v4745 = vmul.f32 %v4744, 0.125
  %v4746 = vmul.f32 %v4733, %v4712
  %v4747 = vmul.f32 %v4734, %v4713
  %v4748 = vmul.f32 %v4735, %v4714
  %v4749 = vadd.f32 %v4746, %v4747
  %v4750 = vsel %vm1926, %v4748, 0.0
  %v4751 = vadd.f32 %v4749, %v4750
  %v4752 = vrot.slane %v4751, 4
  %v4753 = vadd.f32 %v4751, %v4752
  %v4754 = vrot.slane %v4753, 2
  %v4755 = vadd.f32 %v4753, %v4754
  %v4756 = vrot.slane %v4755, 1
  %v4757 = vadd.f32 %v4755, %v4756
  %v4758 = vmul.f32 %v4757, 0.125
  %v4759 = vmul.f32 %v4745, %v4745
  %v4760 = vsub.f32 %v4758, %v4759
  %v4761 = vmax.f32 %v4760, 0.0
  %v4762 = vadd.f32 %v4761, 1e-05
  %v4763 = vrsqrt.pop %v4762
  %v4764 = vmul.f32 %v4763, %v4762
  %v4765 = vmul.f32 %v4764, %v4763
  %v4766 = vmul.f32 0.5, %v4765
  %v4767 = vsub.f32 1.5, %v4766
  %v4768 = vmul.f32 %v4763, %v4767
  %vm4769 = vweird.f32 %v4762
  %vm4770 = vweird.f32 %v4763
  %vm4771 = vmor %vm4769, %vm4770
  %v4772 = vsel %vm4771, %v4763, %v4768
  %v4773 = vsub.f32 %v4712, %v4745
  %v4774 = vsub.f32 %v4713, %v4745
  %v4775 = vsub.f32 %v4714, %v4745
  %v4776 = vmul.f32 %v4773, %v4772
  %v4777 = vmul.f32 %v4774, %v4772
  %v4778 = vmul.f32 %v4775, %v4772
  %v4779 = vld [vmem:[%s29] sm:$0x1]
  %v4781 = vperm.slane %v4779, 0
  %v4783 = vmul.f32 %v4776, %v4781
  %v4784 = vmul.f32 %v4777, %v4781
  %v4785 = vmul.f32 %v4778, %v4781
  %v4786 = vld [vmem:[%s31] sm:$0x1]
  %v4788 = vperm.slane %v4786, 0
  %v4790 = vadd.f32 %v4783, %v4788
  %v4791 = vadd.f32 %v4784, %v4788
  %v4792 = vadd.f32 %v4785, %v4788
  %v4793 = vmax.f32 %v4790, 0.0
  %v4794 = vmax.f32 %v4791, 0.0
  %v4795 = vmax.f32 %v4792, 0.0
  %v4796 = vpack.c.bf16 %v4794, %v4793
  %v4797 = vpack.c.bf16 %v4795, %v4795
  %v4798 = vld [vmem:[%s47] sm:$0xf]
  %v4799 = vld [vmem:[%s47 + $0x4] sm:$0xf]
  %v4800 = vld [vmem:[%s47 + $0x8] sm:$0xf]
  %v4804 = vunpack.c.l.b16 %v4798
  %v4805 = vunpack.c.l.b16 %v4799
  %v4806 = vunpack.c.l.b16 %v4800
  %v4807 = vpack.c.b16 %v4805, %v4804
  %v4808 = vpack.c.b16 %v4806, %v4806
  %vm4809 = vcmask 146432
  %v4811 = vsel %vm4809, %v4807, 0
  %v4814 = vsel %vm4809, %v4808, 0
  %v4817 = vsel %vm2176, %v4797, 0
  %4819 = vmatpush.bf16.msra.mxu0 0
  %4820 = vmatpush.bf16.msra.mxu0 0
  %4821 = vmatpush.bf16.msra.mxu0 0
  %4822 = vmatpush.bf16.msra.mxu0 0
  %4823 = vmatpush.bf16.msra.mxu0 0
  %4824 = vmatpush.bf16.msra.mxu0 0
  %4825 = vmatpush.bf16.msra.mxu0 %v4817
  %4826 = vmatpush.bf16.msra.mxu0 %v4796
  %4827 = vmatmul.bf16.gmra.mxu0 %v4811
  %v4828 = vpop.f32.mrf.mxu0
  %v4829 = vadd.f32 0.0, %v4828
  %v4830 = vpop.f32.mrf.mxu0
  %v4831 = vadd.f32 0.0, %v4830
  %4832 = vmatmul.bf16.gmra.mxu0 %v4814
  %v4833 = vpop.f32.mrf.mxu0
  %v4834 = vadd.f32 0.0, %v4833
  %v4835 = vpop.f32.mrf.mxu0
  %4836 = vdwg.mxu0
  %4837 = vst [vmem:[#allocation4] sm:$0xff] %v4829
  %4838 = vst [vmem:[#allocation4 + $0x8] sm:$0xff] %v4831
  %4839 = vst [vmem:[#allocation4 + $0x10] sm:$0xff] %v4834
  %v4840 = vld [vmem:[%s39] sm:$0x1]
  %v4841 = vld [vmem:[#allocation4] sm:$0xff]
  %v4842 = vld [vmem:[#allocation4 + $0x8] sm:$0xff]
  %v4843 = vld [vmem:[#allocation4 + $0x10] sm:$0x3]
  %v4844 = vpack.c.bf16 %v4842, %v4841
  %v4845 = vpack.c.bf16 %v4843, %v4843
  %s4846 = scalar_lea.vmem %s37, 256
  %v4847 = vld [vmem:[%s4846] sm:$0xf]
  %v4848 = vld [vmem:[%s4846 + $0x4] sm:$0xf]
  %v4849 = vld [vmem:[%s4846 + $0x8] sm:$0xf]
  %v4850 = vld [vmem:[%s4846 + $0xc] sm:$0xf]
  %v4851 = vld [vmem:[%s4846 + $0x10] sm:$0xf]
  %v4852 = vld [vmem:[%s4846 + $0x14] sm:$0xf]
  %v4853 = vld [vmem:[%s4846 + $0x18] sm:$0xf]
  %v4854 = vld [vmem:[%s4846 + $0x1c] sm:$0xf]
  %v4855 = vld [vmem:[%s4846 + $0x20] sm:$0xf]
  %v4856 = vld [vmem:[%s4846 + $0x24] sm:$0xf]
  %v4857 = vld [vmem:[%s4846 + $0x28] sm:$0xf]
  %v4858 = vld [vmem:[%s4846 + $0x2c] sm:$0xf]
  %v4859 = vld [vmem:[%s4846 + $0x30] sm:$0xf]
  %v4860 = vld [vmem:[%s4846 + $0x34] sm:$0xf]
  %v4861 = vld [vmem:[%s4846 + $0x38] sm:$0xf]
  %v4862 = vld [vmem:[%s4846 + $0x3c] sm:$0xf]
  %v4864 = vperm.slane %v4840, 0
  %v4882 = vunpack.c.l.b16 %v4847
  %v4883 = vunpack.c.l.b16 %v4848
  %v4884 = vunpack.c.l.b16 %v4849
  %v4885 = vunpack.c.l.b16 %v4850
  %v4886 = vunpack.c.l.b16 %v4851
  %v4887 = vunpack.c.l.b16 %v4852
  %v4888 = vunpack.c.l.b16 %v4853
  %v4889 = vunpack.c.l.b16 %v4854
  %v4890 = vunpack.c.l.b16 %v4855
  %v4891 = vunpack.c.l.b16 %v4856
  %v4892 = vunpack.c.l.b16 %v4857
  %v4893 = vunpack.c.l.b16 %v4858
  %v4894 = vunpack.c.l.b16 %v4859
  %v4895 = vunpack.c.l.b16 %v4860
  %v4896 = vunpack.c.l.b16 %v4861
  %v4897 = vunpack.c.l.b16 %v4862
  %v4898 = vpack.c.b16 %v4883, %v4882
  %v4899 = vpack.c.b16 %v4885, %v4884
  %v4900 = vpack.c.b16 %v4887, %v4886
  %v4901 = vpack.c.b16 %v4889, %v4888
  %v4902 = vpack.c.b16 %v4891, %v4890
  %v4903 = vpack.c.b16 %v4893, %v4892
  %v4904 = vpack.c.b16 %v4895, %v4894
  %v4905 = vpack.c.b16 %v4897, %v4896
  %4914 = vmatpush.bf16.msra.mxu0 %v4905
  %4915 = vmatpush.bf16.msra.mxu0 %v4904
  %4916 = vmatpush.bf16.msra.mxu0 %v4903
  %4917 = vmatpush.bf16.msra.mxu0 %v4902
  %4918 = vmatpush.bf16.msra.mxu0 %v4901
  %4919 = vmatpush.bf16.msra.mxu0 %v4900
  %4920 = vmatpush.bf16.msra.mxu0 %v4899
  %4921 = vmatpush.bf16.msra.mxu0 %v4898
  %4922 = vmatmul.bf16.gmra.mxu0 %v4844
  %v4923 = vpop.f32.mrf.mxu0
  %v4924 = vadd.f32 %v4864, %v4923
  %v4925 = vpop.f32.mrf.mxu0
  %v4926 = vadd.f32 %v4864, %v4925
  %4927 = vmatmul.bf16.gmra.mxu0 %v4845
  %v4928 = vpop.f32.mrf.mxu0
  %v4929 = vadd.f32 %v4864, %v4928
  %v4930 = vpop.f32.mrf.mxu0
  %4931 = vdwg.mxu0
  %s4932 = scalar_lea.vmem %s37, 320
  %v4933 = vld [vmem:[%s4932] sm:$0xf]
  %v4934 = vld [vmem:[%s4932 + $0x4] sm:$0xf]
  %v4935 = vld [vmem:[%s4932 + $0x8] sm:$0xf]
  %v4936 = vld [vmem:[%s4932 + $0xc] sm:$0xf]
  %v4937 = vld [vmem:[%s4932 + $0x10] sm:$0xf]
  %v4938 = vld [vmem:[%s4932 + $0x14] sm:$0xf]
  %v4939 = vld [vmem:[%s4932 + $0x18] sm:$0xf]
  %v4940 = vld [vmem:[%s4932 + $0x1c] sm:$0xf]
  %v4941 = vld [vmem:[%s4932 + $0x20] sm:$0xf]
  %v4942 = vld [vmem:[%s4932 + $0x24] sm:$0xf]
  %v4943 = vld [vmem:[%s4932 + $0x28] sm:$0xf]
  %v4944 = vld [vmem:[%s4932 + $0x2c] sm:$0xf]
  %v4945 = vld [vmem:[%s4932 + $0x30] sm:$0xf]
  %v4946 = vld [vmem:[%s4932 + $0x34] sm:$0xf]
  %v4947 = vld [vmem:[%s4932 + $0x38] sm:$0xf]
  %v4948 = vld [vmem:[%s4932 + $0x3c] sm:$0xf]
  %v4949 = vld [vmem:[#allocation4 + $0x1] sm:$0xff]
  %v4950 = vld [vmem:[#allocation4 + $0x9] sm:$0xff]
  %v4951 = vld [vmem:[#allocation4 + $0x11] sm:$0x3]
  %v4952 = vpack.c.bf16 %v4950, %v4949
  %v4953 = vpack.c.bf16 %v4951, %v4951
  %s4954 = scalar_lea.vmem %s37, 192
  %v4955 = vld [vmem:[%s4954] sm:$0xf]
  %v4956 = vld [vmem:[%s4954 + $0x4] sm:$0xf]
  %v4957 = vld [vmem:[%s4954 + $0x8] sm:$0xf]
  %v4958 = vld [vmem:[%s4954 + $0xc] sm:$0xf]
  %v4959 = vld [vmem:[%s4954 + $0x10] sm:$0xf]
  %v4960 = vld [vmem:[%s4954 + $0x14] sm:$0xf]
  %v4961 = vld [vmem:[%s4954 + $0x18] sm:$0xf]
  %v4962 = vld [vmem:[%s4954 + $0x1c] sm:$0xf]
  %v4963 = vld [vmem:[%s4954 + $0x20] sm:$0xf]
  %v4964 = vld [vmem:[%s4954 + $0x24] sm:$0xf]
  %v4965 = vld [vmem:[%s4954 + $0x28] sm:$0xf]
  %v4966 = vld [vmem:[%s4954 + $0x2c] sm:$0xf]
  %v4967 = vld [vmem:[%s4954 + $0x30] sm:$0xf]
  %v4968 = vld [vmem:[%s4954 + $0x34] sm:$0xf]
  %v4969 = vld [vmem:[%s4954 + $0x38] sm:$0xf]
  %v4970 = vld [vmem:[%s4954 + $0x3c] sm:$0xf]
  %v4987 = vunpack.c.l.b16 %v4955
  %v4988 = vunpack.c.l.b16 %v4956
  %v4989 = vunpack.c.l.b16 %v4957
  %v4990 = vunpack.c.l.b16 %v4958
  %v4991 = vunpack.c.l.b16 %v4959
  %v4992 = vunpack.c.l.b16 %v4960
  %v4993 = vunpack.c.l.b16 %v4961
  %v4994 = vunpack.c.l.b16 %v4962
  %v4995 = vunpack.c.l.b16 %v4963
  %v4996 = vunpack.c.l.b16 %v4964
  %v4997 = vunpack.c.l.b16 %v4965
  %v4998 = vunpack.c.l.b16 %v4966
  %v4999 = vunpack.c.l.b16 %v4967
  %v5000 = vunpack.c.l.b16 %v4968
  %v5001 = vunpack.c.l.b16 %v4969
  %v5002 = vunpack.c.l.b16 %v4970
  %v5003 = vpack.c.b16 %v4988, %v4987
  %v5004 = vpack.c.b16 %v4990, %v4989
  %v5005 = vpack.c.b16 %v4992, %v4991
  %v5006 = vpack.c.b16 %v4994, %v4993
  %v5007 = vpack.c.b16 %v4996, %v4995
  %v5008 = vpack.c.b16 %v4998, %v4997
  %v5009 = vpack.c.b16 %v5000, %v4999
  %v5010 = vpack.c.b16 %v5002, %v5001
  %5019 = vmatpush.bf16.msra.mxu0 %v5010
  %5020 = vmatpush.bf16.msra.mxu0 %v5009
  %5021 = vmatpush.bf16.msra.mxu0 %v5008
  %5022 = vmatpush.bf16.msra.mxu0 %v5007
  %5023 = vmatpush.bf16.msra.mxu0 %v5006
  %5024 = vmatpush.bf16.msra.mxu0 %v5005
  %5025 = vmatpush.bf16.msra.mxu0 %v5004
  %5026 = vmatpush.bf16.msra.mxu0 %v5003
  %5027 = vmatmul.bf16.gmra.mxu0 %v4952
  %v5028 = vpop.f32.mrf.mxu0
  %v5029 = vadd.f32 0.0, %v5028
  %v5030 = vpop.f32.mrf.mxu0
  %v5031 = vadd.f32 0.0, %v5030
  %5032 = vmatmul.bf16.gmra.mxu0 %v4953
  %v5033 = vpop.f32.mrf.mxu0
  %v5034 = vadd.f32 0.0, %v5033
  %v5035 = vpop.f32.mrf.mxu0
  %5036 = vdwg.mxu0
  %v5053 = vunpack.c.l.b16 %v4933
  %v5054 = vunpack.c.l.b16 %v4934
  %v5055 = vunpack.c.l.b16 %v4935
  %v5056 = vunpack.c.l.b16 %v4936
  %v5057 = vunpack.c.l.b16 %v4937
  %v5058 = vunpack.c.l.b16 %v4938
  %v5059 = vunpack.c.l.b16 %v4939
  %v5060 = vunpack.c.l.b16 %v4940
  %v5061 = vunpack.c.l.b16 %v4941
  %v5062 = vunpack.c.l.b16 %v4942
  %v5063 = vunpack.c.l.b16 %v4943
  %v5064 = vunpack.c.l.b16 %v4944
  %v5065 = vunpack.c.l.b16 %v4945
  %v5066 = vunpack.c.l.b16 %v4946
  %v5067 = vunpack.c.l.b16 %v4947
  %v5068 = vunpack.c.l.b16 %v4948
  %v5069 = vpack.c.b16 %v5054, %v5053
  %v5070 = vpack.c.b16 %v5056, %v5055
  %v5071 = vpack.c.b16 %v5058, %v5057
  %v5072 = vpack.c.b16 %v5060, %v5059
  %v5073 = vpack.c.b16 %v5062, %v5061
  %v5074 = vpack.c.b16 %v5064, %v5063
  %v5075 = vpack.c.b16 %v5066, %v5065
  %v5076 = vpack.c.b16 %v5068, %v5067
  %5085 = vmatpush.bf16.msra.mxu0 %v5076
  %5086 = vmatpush.bf16.msra.mxu0 %v5075
  %5087 = vmatpush.bf16.msra.mxu0 %v5074
  %5088 = vmatpush.bf16.msra.mxu0 %v5073
  %5089 = vmatpush.bf16.msra.mxu0 %v5072
  %5090 = vmatpush.bf16.msra.mxu0 %v5071
  %5091 = vmatpush.bf16.msra.mxu0 %v5070
  %5092 = vmatpush.bf16.msra.mxu0 %v5069
  %5093 = vmatmul.bf16.gmra.mxu0 %v4844
  %v5094 = vpop.f32.mrf.mxu0
  %v5095 = vadd.f32 %v5029, %v5094
  %v5096 = vpop.f32.mrf.mxu0
  %v5097 = vadd.f32 %v5031, %v5096
  %5098 = vmatmul.bf16.gmra.mxu0 %v4845
  %v5099 = vpop.f32.mrf.mxu0
  %v5100 = vadd.f32 %v5034, %v5099
  %v5101 = vpop.f32.mrf.mxu0
  %5102 = vdwg.mxu0
  %v5103 = vadd.f32 %v5095, %v4864
  %v5104 = vadd.f32 %v5097, %v4864
  %v5105 = vadd.f32 %v5100, %v4864
  %s5106 = scalar_lea.vmem %s37, 448
  %v5107 = vld [vmem:[%s5106] sm:$0xf]
  %v5108 = vld [vmem:[%s5106 + $0x4] sm:$0xf]
  %v5109 = vld [vmem:[%s5106 + $0x8] sm:$0xf]
  %v5110 = vld [vmem:[%s5106 + $0xc] sm:$0xf]
  %v5111 = vld [vmem:[%s5106 + $0x10] sm:$0xf]
  %v5112 = vld [vmem:[%s5106 + $0x14] sm:$0xf]
  %v5113 = vld [vmem:[%s5106 + $0x18] sm:$0xf]
  %v5114 = vld [vmem:[%s5106 + $0x1c] sm:$0xf]
  %v5115 = vld [vmem:[%s5106 + $0x20] sm:$0xf]
  %v5116 = vld [vmem:[%s5106 + $0x24] sm:$0xf]
  %v5117 = vld [vmem:[%s5106 + $0x28] sm:$0xf]
  %v5118 = vld [vmem:[%s5106 + $0x2c] sm:$0xf]
  %v5119 = vld [vmem:[%s5106 + $0x30] sm:$0xf]
  %v5120 = vld [vmem:[%s5106 + $0x34] sm:$0xf]
  %v5121 = vld [vmem:[%s5106 + $0x38] sm:$0xf]
  %v5122 = vld [vmem:[%s5106 + $0x3c] sm:$0xf]
  %v5123 = vld [vmem:[#allocation4 + $0x3] sm:$0xff]
  %v5124 = vld [vmem:[#allocation4 + $0xb] sm:$0xff]
  %v5125 = vld [vmem:[#allocation4 + $0x13] sm:$0x3]
  %v5126 = vpack.c.bf16 %v5124, %v5123
  %v5127 = vpack.c.bf16 %v5125, %v5125
  %s5128 = scalar_lea.vmem %s37, 64
  %v5129 = vld [vmem:[%s5128] sm:$0xf]
  %v5130 = vld [vmem:[%s5128 + $0x4] sm:$0xf]
  %v5131 = vld [vmem:[%s5128 + $0x8] sm:$0xf]
  %v5132 = vld [vmem:[%s5128 + $0xc] sm:$0xf]
  %v5133 = vld [vmem:[%s5128 + $0x10] sm:$0xf]
  %v5134 = vld [vmem:[%s5128 + $0x14] sm:$0xf]
  %v5135 = vld [vmem:[%s5128 + $0x18] sm:$0xf]
  %v5136 = vld [vmem:[%s5128 + $0x1c] sm:$0xf]
  %v5137 = vld [vmem:[%s5128 + $0x20] sm:$0xf]
  %v5138 = vld [vmem:[%s5128 + $0x24] sm:$0xf]
  %v5139 = vld [vmem:[%s5128 + $0x28] sm:$0xf]
  %v5140 = vld [vmem:[%s5128 + $0x2c] sm:$0xf]
  %v5141 = vld [vmem:[%s5128 + $0x30] sm:$0xf]
  %v5142 = vld [vmem:[%s5128 + $0x34] sm:$0xf]
  %v5143 = vld [vmem:[%s5128 + $0x38] sm:$0xf]
  %v5144 = vld [vmem:[%s5128 + $0x3c] sm:$0xf]
  %v5161 = vunpack.c.l.b16 %v5129
  %v5162 = vunpack.c.l.b16 %v5130
  %v5163 = vunpack.c.l.b16 %v5131
  %v5164 = vunpack.c.l.b16 %v5132
  %v5165 = vunpack.c.l.b16 %v5133
  %v5166 = vunpack.c.l.b16 %v5134
  %v5167 = vunpack.c.l.b16 %v5135
  %v5168 = vunpack.c.l.b16 %v5136
  %v5169 = vunpack.c.l.b16 %v5137
  %v5170 = vunpack.c.l.b16 %v5138
  %v5171 = vunpack.c.l.b16 %v5139
  %v5172 = vunpack.c.l.b16 %v5140
  %v5173 = vunpack.c.l.b16 %v5141
  %v5174 = vunpack.c.l.b16 %v5142
  %v5175 = vunpack.c.l.b16 %v5143
  %v5176 = vunpack.c.l.b16 %v5144
  %v5177 = vpack.c.b16 %v5162, %v5161
  %v5178 = vpack.c.b16 %v5164, %v5163
  %v5179 = vpack.c.b16 %v5166, %v5165
  %v5180 = vpack.c.b16 %v5168, %v5167
  %v5181 = vpack.c.b16 %v5170, %v5169
  %v5182 = vpack.c.b16 %v5172, %v5171
  %v5183 = vpack.c.b16 %v5174, %v5173
  %v5184 = vpack.c.b16 %v5176, %v5175
  %5193 = vmatpush.bf16.msra.mxu0 %v5184
  %5194 = vmatpush.bf16.msra.mxu0 %v5183
  %5195 = vmatpush.bf16.msra.mxu0 %v5182
  %5196 = vmatpush.bf16.msra.mxu0 %v5181
  %5197 = vmatpush.bf16.msra.mxu0 %v5180
  %5198 = vmatpush.bf16.msra.mxu0 %v5179
  %5199 = vmatpush.bf16.msra.mxu0 %v5178
  %5200 = vmatpush.bf16.msra.mxu0 %v5177
  %5201 = vmatmul.bf16.gmra.mxu0 %v5126
  %v5202 = vpop.f32.mrf.mxu0
  %v5203 = vadd.f32 0.0, %v5202
  %v5204 = vpop.f32.mrf.mxu0
  %v5205 = vadd.f32 0.0, %v5204
  %5206 = vmatmul.bf16.gmra.mxu0 %v5127
  %v5207 = vpop.f32.mrf.mxu0
  %v5208 = vadd.f32 0.0, %v5207
  %v5209 = vpop.f32.mrf.mxu0
  %5210 = vdwg.mxu0
  %v5227 = vunpack.c.l.b16 %v5107
  %v5228 = vunpack.c.l.b16 %v5108
  %v5229 = vunpack.c.l.b16 %v5109
  %v5230 = vunpack.c.l.b16 %v5110
  %v5231 = vunpack.c.l.b16 %v5111
  %v5232 = vunpack.c.l.b16 %v5112
  %v5233 = vunpack.c.l.b16 %v5113
  %v5234 = vunpack.c.l.b16 %v5114
  %v5235 = vunpack.c.l.b16 %v5115
  %v5236 = vunpack.c.l.b16 %v5116
  %v5237 = vunpack.c.l.b16 %v5117
  %v5238 = vunpack.c.l.b16 %v5118
  %v5239 = vunpack.c.l.b16 %v5119
  %v5240 = vunpack.c.l.b16 %v5120
  %v5241 = vunpack.c.l.b16 %v5121
  %v5242 = vunpack.c.l.b16 %v5122
  %v5243 = vpack.c.b16 %v5228, %v5227
  %v5244 = vpack.c.b16 %v5230, %v5229
  %v5245 = vpack.c.b16 %v5232, %v5231
  %v5246 = vpack.c.b16 %v5234, %v5233
  %v5247 = vpack.c.b16 %v5236, %v5235
  %v5248 = vpack.c.b16 %v5238, %v5237
  %v5249 = vpack.c.b16 %v5240, %v5239
  %v5250 = vpack.c.b16 %v5242, %v5241
  %5259 = vmatpush.bf16.msra.mxu0 %v5250
  %5260 = vmatpush.bf16.msra.mxu0 %v5249
  %5261 = vmatpush.bf16.msra.mxu0 %v5248
  %5262 = vmatpush.bf16.msra.mxu0 %v5247
  %5263 = vmatpush.bf16.msra.mxu0 %v5246
  %5264 = vmatpush.bf16.msra.mxu0 %v5245
  %5265 = vmatpush.bf16.msra.mxu0 %v5244
  %5266 = vmatpush.bf16.msra.mxu0 %v5243
  %5267 = vmatmul.bf16.gmra.mxu0 %v4844
  %v5268 = vpop.f32.mrf.mxu0
  %v5269 = vadd.f32 %v5203, %v5268
  %v5270 = vpop.f32.mrf.mxu0
  %v5271 = vadd.f32 %v5205, %v5270
  %5272 = vmatmul.bf16.gmra.mxu0 %v4845
  %v5273 = vpop.f32.mrf.mxu0
  %v5274 = vadd.f32 %v5208, %v5273
  %v5275 = vpop.f32.mrf.mxu0
  %5276 = vdwg.mxu0
  %v5277 = vadd.f32 %v5269, %v4864
  %v5278 = vadd.f32 %v5271, %v4864
  %v5279 = vadd.f32 %v5274, %v4864
  %s5280 = scalar_lea.vmem %s37, 512
  %v5281 = vld [vmem:[%s5280] sm:$0xf]
  %v5282 = vld [vmem:[%s5280 + $0x4] sm:$0xf]
  %v5283 = vld [vmem:[%s5280 + $0x8] sm:$0xf]
  %v5284 = vld [vmem:[%s5280 + $0xc] sm:$0xf]
  %v5285 = vld [vmem:[%s5280 + $0x10] sm:$0xf]
  %v5286 = vld [vmem:[%s5280 + $0x14] sm:$0xf]
  %v5287 = vld [vmem:[%s5280 + $0x18] sm:$0xf]
  %v5288 = vld [vmem:[%s5280 + $0x1c] sm:$0xf]
  %v5289 = vld [vmem:[%s5280 + $0x20] sm:$0xf]
  %v5290 = vld [vmem:[%s5280 + $0x24] sm:$0xf]
  %v5291 = vld [vmem:[%s5280 + $0x28] sm:$0xf]
  %v5292 = vld [vmem:[%s5280 + $0x2c] sm:$0xf]
  %v5293 = vld [vmem:[%s5280 + $0x30] sm:$0xf]
  %v5294 = vld [vmem:[%s5280 + $0x34] sm:$0xf]
  %v5295 = vld [vmem:[%s5280 + $0x38] sm:$0xf]
  %v5296 = vld [vmem:[%s5280 + $0x3c] sm:$0xf]
  %s5297 = scalar_lea.vmem %s37, 384
  %v5298 = vld [vmem:[%s5297] sm:$0xf]
  %v5299 = vld [vmem:[%s5297 + $0x4] sm:$0xf]
  %v5300 = vld [vmem:[%s5297 + $0x8] sm:$0xf]
  %v5301 = vld [vmem:[%s5297 + $0xc] sm:$0xf]
  %v5302 = vld [vmem:[%s5297 + $0x10] sm:$0xf]
  %v5303 = vld [vmem:[%s5297 + $0x14] sm:$0xf]
  %v5304 = vld [vmem:[%s5297 + $0x18] sm:$0xf]
  %v5305 = vld [vmem:[%s5297 + $0x1c] sm:$0xf]
  %v5306 = vld [vmem:[%s5297 + $0x20] sm:$0xf]
  %v5307 = vld [vmem:[%s5297 + $0x24] sm:$0xf]
  %v5308 = vld [vmem:[%s5297 + $0x28] sm:$0xf]
  %v5309 = vld [vmem:[%s5297 + $0x2c] sm:$0xf]
  %v5310 = vld [vmem:[%s5297 + $0x30] sm:$0xf]
  %v5311 = vld [vmem:[%s5297 + $0x34] sm:$0xf]
  %v5312 = vld [vmem:[%s5297 + $0x38] sm:$0xf]
  %v5313 = vld [vmem:[%s5297 + $0x3c] sm:$0xf]
  %v5330 = vunpack.c.l.b16 %v5298
  %v5331 = vunpack.c.l.b16 %v5299
  %v5332 = vunpack.c.l.b16 %v5300
  %v5333 = vunpack.c.l.b16 %v5301
  %v5334 = vunpack.c.l.b16 %v5302
  %v5335 = vunpack.c.l.b16 %v5303
  %v5336 = vunpack.c.l.b16 %v5304
  %v5337 = vunpack.c.l.b16 %v5305
  %v5338 = vunpack.c.l.b16 %v5306
  %v5339 = vunpack.c.l.b16 %v5307
  %v5340 = vunpack.c.l.b16 %v5308
  %v5341 = vunpack.c.l.b16 %v5309
  %v5342 = vunpack.c.l.b16 %v5310
  %v5343 = vunpack.c.l.b16 %v5311
  %v5344 = vunpack.c.l.b16 %v5312
  %v5345 = vunpack.c.l.b16 %v5313
  %v5346 = vpack.c.b16 %v5331, %v5330
  %v5347 = vpack.c.b16 %v5333, %v5332
  %v5348 = vpack.c.b16 %v5335, %v5334
  %v5349 = vpack.c.b16 %v5337, %v5336
  %v5350 = vpack.c.b16 %v5339, %v5338
  %v5351 = vpack.c.b16 %v5341, %v5340
  %v5352 = vpack.c.b16 %v5343, %v5342
  %v5353 = vpack.c.b16 %v5345, %v5344
  %5362 = vmatpush.bf16.msra.mxu0 %v5353
  %5363 = vmatpush.bf16.msra.mxu0 %v5352
  %5364 = vmatpush.bf16.msra.mxu0 %v5351
  %5365 = vmatpush.bf16.msra.mxu0 %v5350
  %5366 = vmatpush.bf16.msra.mxu0 %v5349
  %5367 = vmatpush.bf16.msra.mxu0 %v5348
  %5368 = vmatpush.bf16.msra.mxu0 %v5347
  %5369 = vmatpush.bf16.msra.mxu0 %v5346
  %5370 = vmatmul.bf16.gmra.mxu0 %v4952
  %v5371 = vpop.f32.mrf.mxu0
  %v5372 = vadd.f32 0.0, %v5371
  %v5373 = vpop.f32.mrf.mxu0
  %v5374 = vadd.f32 0.0, %v5373
  %5375 = vmatmul.bf16.gmra.mxu0 %v4953
  %v5376 = vpop.f32.mrf.mxu0
  %v5377 = vadd.f32 0.0, %v5376
  %v5378 = vpop.f32.mrf.mxu0
  %5379 = vdwg.mxu0
  %v5396 = vunpack.c.l.b16 %v5281
  %v5397 = vunpack.c.l.b16 %v5282
  %v5398 = vunpack.c.l.b16 %v5283
  %v5399 = vunpack.c.l.b16 %v5284
  %v5400 = vunpack.c.l.b16 %v5285
  %v5401 = vunpack.c.l.b16 %v5286
  %v5402 = vunpack.c.l.b16 %v5287
  %v5403 = vunpack.c.l.b16 %v5288
  %v5404 = vunpack.c.l.b16 %v5289
  %v5405 = vunpack.c.l.b16 %v5290
  %v5406 = vunpack.c.l.b16 %v5291
  %v5407 = vunpack.c.l.b16 %v5292
  %v5408 = vunpack.c.l.b16 %v5293
  %v5409 = vunpack.c.l.b16 %v5294
  %v5410 = vunpack.c.l.b16 %v5295
  %v5411 = vunpack.c.l.b16 %v5296
  %v5412 = vpack.c.b16 %v5397, %v5396
  %v5413 = vpack.c.b16 %v5399, %v5398
  %v5414 = vpack.c.b16 %v5401, %v5400
  %v5415 = vpack.c.b16 %v5403, %v5402
  %v5416 = vpack.c.b16 %v5405, %v5404
  %v5417 = vpack.c.b16 %v5407, %v5406
  %v5418 = vpack.c.b16 %v5409, %v5408
  %v5419 = vpack.c.b16 %v5411, %v5410
  %5428 = vmatpush.bf16.msra.mxu0 %v5419
  %5429 = vmatpush.bf16.msra.mxu0 %v5418
  %5430 = vmatpush.bf16.msra.mxu0 %v5417
  %5431 = vmatpush.bf16.msra.mxu0 %v5416
  %5432 = vmatpush.bf16.msra.mxu0 %v5415
  %5433 = vmatpush.bf16.msra.mxu0 %v5414
  %5434 = vmatpush.bf16.msra.mxu0 %v5413
  %5435 = vmatpush.bf16.msra.mxu0 %v5412
  %5436 = vmatmul.bf16.gmra.mxu0 %v4844
  %v5437 = vpop.f32.mrf.mxu0
  %v5438 = vadd.f32 %v5372, %v5437
  %v5439 = vpop.f32.mrf.mxu0
  %v5440 = vadd.f32 %v5374, %v5439
  %5441 = vmatmul.bf16.gmra.mxu0 %v4845
  %v5442 = vpop.f32.mrf.mxu0
  %v5443 = vadd.f32 %v5377, %v5442
  %v5444 = vpop.f32.mrf.mxu0
  %5445 = vdwg.mxu0
  %s5446 = scalar_lea.vmem %s37, 128
  %v5447 = vld [vmem:[%s5446] sm:$0xf]
  %v5448 = vld [vmem:[%s5446 + $0x4] sm:$0xf]
  %v5449 = vld [vmem:[%s5446 + $0x8] sm:$0xf]
  %v5450 = vld [vmem:[%s5446 + $0xc] sm:$0xf]
  %v5451 = vld [vmem:[%s5446 + $0x10] sm:$0xf]
  %v5452 = vld [vmem:[%s5446 + $0x14] sm:$0xf]
  %v5453 = vld [vmem:[%s5446 + $0x18] sm:$0xf]
  %v5454 = vld [vmem:[%s5446 + $0x1c] sm:$0xf]
  %v5455 = vld [vmem:[%s5446 + $0x20] sm:$0xf]
  %v5456 = vld [vmem:[%s5446 + $0x24] sm:$0xf]
  %v5457 = vld [vmem:[%s5446 + $0x28] sm:$0xf]
  %v5458 = vld [vmem:[%s5446 + $0x2c] sm:$0xf]
  %v5459 = vld [vmem:[%s5446 + $0x30] sm:$0xf]
  %v5460 = vld [vmem:[%s5446 + $0x34] sm:$0xf]
  %v5461 = vld [vmem:[%s5446 + $0x38] sm:$0xf]
  %v5462 = vld [vmem:[%s5446 + $0x3c] sm:$0xf]
  %v5479 = vunpack.c.l.b16 %v5447
  %v5480 = vunpack.c.l.b16 %v5448
  %v5481 = vunpack.c.l.b16 %v5449
  %v5482 = vunpack.c.l.b16 %v5450
  %v5483 = vunpack.c.l.b16 %v5451
  %v5484 = vunpack.c.l.b16 %v5452
  %v5485 = vunpack.c.l.b16 %v5453
  %v5486 = vunpack.c.l.b16 %v5454
  %v5487 = vunpack.c.l.b16 %v5455
  %v5488 = vunpack.c.l.b16 %v5456
  %v5489 = vunpack.c.l.b16 %v5457
  %v5490 = vunpack.c.l.b16 %v5458
  %v5491 = vunpack.c.l.b16 %v5459
  %v5492 = vunpack.c.l.b16 %v5460
  %v5493 = vunpack.c.l.b16 %v5461
  %v5494 = vunpack.c.l.b16 %v5462
  %v5495 = vpack.c.b16 %v5480, %v5479
  %v5496 = vpack.c.b16 %v5482, %v5481
  %v5497 = vpack.c.b16 %v5484, %v5483
  %v5498 = vpack.c.b16 %v5486, %v5485
  %v5499 = vpack.c.b16 %v5488, %v5487
  %v5500 = vpack.c.b16 %v5490, %v5489
  %v5501 = vpack.c.b16 %v5492, %v5491
  %v5502 = vpack.c.b16 %v5494, %v5493
  %5511 = vmatpush.bf16.msra.mxu0 %v5502
  %5512 = vmatpush.bf16.msra.mxu0 %v5501
  %5513 = vmatpush.bf16.msra.mxu0 %v5500
  %5514 = vmatpush.bf16.msra.mxu0 %v5499
  %5515 = vmatpush.bf16.msra.mxu0 %v5498
  %5516 = vmatpush.bf16.msra.mxu0 %v5497
  %5517 = vmatpush.bf16.msra.mxu0 %v5496
  %5518 = vmatpush.bf16.msra.mxu0 %v5495
  %5519 = vmatmul.bf16.gmra.mxu0 %v5126
  %v5520 = vpop.f32.mrf.mxu0
  %v5521 = vadd.f32 0.0, %v5520
  %v5522 = vpop.f32.mrf.mxu0
  %v5523 = vadd.f32 0.0, %v5522
  %5524 = vmatmul.bf16.gmra.mxu0 %v5127
  %v5525 = vpop.f32.mrf.mxu0
  %v5526 = vadd.f32 0.0, %v5525
  %v5527 = vpop.f32.mrf.mxu0
  %5528 = vdwg.mxu0
  %v5529 = vadd.f32 %v5438, %v5521
  %v5530 = vadd.f32 %v5440, %v5523
  %v5531 = vadd.f32 %v5443, %v5526
  %v5532 = vld [vmem:[#allocation4 + $0x4] sm:$0xff]
  %v5533 = vld [vmem:[#allocation4 + $0xc] sm:$0xff]
  %v5534 = vld [vmem:[#allocation4 + $0x14] sm:$0x3]
  %v5535 = vpack.c.bf16 %v5533, %v5532
  %v5536 = vpack.c.bf16 %v5534, %v5534
  %v5537 = vld [vmem:[%s37] sm:$0xf]
  %v5538 = vld [vmem:[%s37 + $0x4] sm:$0xf]
  %v5539 = vld [vmem:[%s37 + $0x8] sm:$0xf]
  %v5540 = vld [vmem:[%s37 + $0xc] sm:$0xf]
  %v5541 = vld [vmem:[%s37 + $0x10] sm:$0xf]
  %v5542 = vld [vmem:[%s37 + $0x14] sm:$0xf]
  %v5543 = vld [vmem:[%s37 + $0x18] sm:$0xf]
  %v5544 = vld [vmem:[%s37 + $0x1c] sm:$0xf]
  %v5545 = vld [vmem:[%s37 + $0x20] sm:$0xf]
  %v5546 = vld [vmem:[%s37 + $0x24] sm:$0xf]
  %v5547 = vld [vmem:[%s37 + $0x28] sm:$0xf]
  %v5548 = vld [vmem:[%s37 + $0x2c] sm:$0xf]
  %v5549 = vld [vmem:[%s37 + $0x30] sm:$0xf]
  %v5550 = vld [vmem:[%s37 + $0x34] sm:$0xf]
  %v5551 = vld [vmem:[%s37 + $0x38] sm:$0xf]
  %v5552 = vld [vmem:[%s37 + $0x3c] sm:$0xf]
  %v5569 = vunpack.c.l.b16 %v5537
  %v5570 = vunpack.c.l.b16 %v5538
  %v5571 = vunpack.c.l.b16 %v5539
  %v5572 = vunpack.c.l.b16 %v5540
  %v5573 = vunpack.c.l.b16 %v5541
  %v5574 = vunpack.c.l.b16 %v5542
  %v5575 = vunpack.c.l.b16 %v5543
  %v5576 = vunpack.c.l.b16 %v5544
  %v5577 = vunpack.c.l.b16 %v5545
  %v5578 = vunpack.c.l.b16 %v5546
  %v5579 = vunpack.c.l.b16 %v5547
  %v5580 = vunpack.c.l.b16 %v5548
  %v5581 = vunpack.c.l.b16 %v5549
  %v5582 = vunpack.c.l.b16 %v5550
  %v5583 = vunpack.c.l.b16 %v5551
  %v5584 = vunpack.c.l.b16 %v5552
  %v5585 = vpack.c.b16 %v5570, %v5569
  %v5586 = vpack.c.b16 %v5572, %v5571
  %v5587 = vpack.c.b16 %v5574, %v5573
  %v5588 = vpack.c.b16 %v5576, %v5575
  %v5589 = vpack.c.b16 %v5578, %v5577
  %v5590 = vpack.c.b16 %v5580, %v5579
  %v5591 = vpack.c.b16 %v5582, %v5581
  %v5592 = vpack.c.b16 %v5584, %v5583
  %5601 = vmatpush.bf16.msra.mxu0 %v5592
  %5602 = vmatpush.bf16.msra.mxu0 %v5591
  %5603 = vmatpush.bf16.msra.mxu0 %v5590
  %5604 = vmatpush.bf16.msra.mxu0 %v5589
  %5605 = vmatpush.bf16.msra.mxu0 %v5588
  %5606 = vmatpush.bf16.msra.mxu0 %v5587
  %5607 = vmatpush.bf16.msra.mxu0 %v5586
  %5608 = vmatpush.bf16.msra.mxu0 %v5585
  %5609 = vmatmul.bf16.gmra.mxu0 %v5535
  %v5610 = vpop.f32.mrf.mxu0
  %v5611 = vadd.f32 0.0, %v5610
  %v5612 = vpop.f32.mrf.mxu0
  %v5613 = vadd.f32 0.0, %v5612
  %5614 = vmatmul.bf16.gmra.mxu0 %v5536
  %v5615 = vpop.f32.mrf.mxu0
  %v5616 = vadd.f32 0.0, %v5615
  %v5617 = vpop.f32.mrf.mxu0
  %5618 = vdwg.mxu0
  %v5619 = vadd.f32 %v5529, %v5611
  %v5620 = vadd.f32 %v5530, %v5613
  %v5621 = vadd.f32 %v5531, %v5616
  %v5622 = vadd.f32 %v5619, %v4864
  %v5623 = vadd.f32 %v5620, %v4864
  %v5624 = vadd.f32 %v5621, %v4864
  %v5625 = vld [vmem:[%s45] sm:$0xff]
  %v5626 = vld [vmem:[%s45 + $0x8] sm:$0xff]
  %v5627 = vld [vmem:[%s45 + $0x10] sm:$0x3]
  %5629 = vset.pattern.permute.xlu0 0
  %5630 = vperm.xlu0 %5629, %v5625
  %v5631 = vpop.permute.xlu0 %5630
  %5634 = vset.pattern.permute.xlu0 0
  %5635 = vperm.xlu0 %5634, %v5626
  %v5636 = vpop.permute.xlu0 %5635
  %5639 = vset.pattern.permute.xlu0 0
  %5640 = vperm.xlu0 %5639, %v5627
  %v5641 = vpop.permute.xlu0 %5640
  %v5643 = vmul.f32 %v4924, %v5631
  %v5644 = vmul.f32 %v4926, %v5636
  %v5645 = vmul.f32 %v4929, %v5641
  %v5646 = vadd.f32 %v5643, %v5644
  %v5647 = vsel %vm1926, %v5645, 0.0
  %v5648 = vadd.f32 %v5646, %v5647
  %v5649 = vrot.slane %v5648, 4
  %v5650 = vadd.f32 %v5648, %v5649
  %v5651 = vrot.slane %v5650, 2
  %v5652 = vadd.f32 %v5650, %v5651
  %v5653 = vrot.slane %v5652, 1
  %v5654 = vadd.f32 %v5652, %v5653
  %v5655 = vadd.f32 %v5654, 0.0
  %v5656 = vmul.f32 %v5643, %v4924
  %v5657 = vmul.f32 %v5644, %v4926
  %v5658 = vmul.f32 %v5645, %v4929
  %v5659 = vadd.f32 %v5656, %v5657
  %v5660 = vsel %vm1926, %v5658, 0.0
  %v5661 = vadd.f32 %v5659, %v5660
  %v5662 = vrot.slane %v5661, 4
  %v5663 = vadd.f32 %v5661, %v5662
  %v5664 = vrot.slane %v5663, 2
  %v5665 = vadd.f32 %v5663, %v5664
  %v5666 = vrot.slane %v5665, 1
  %v5667 = vadd.f32 %v5665, %v5666
  %v5668 = vadd.f32 %v5667, 0.0
  %v5669 = vmul.f32 %v5103, %v5631
  %v5670 = vmul.f32 %v5104, %v5636
  %v5671 = vmul.f32 %v5105, %v5641
  %v5672 = vadd.f32 %v5669, %v5670
  %v5673 = vsel %vm1926, %v5671, 0.0
  %v5674 = vadd.f32 %v5672, %v5673
  %v5675 = vrot.slane %v5674, 4
  %v5676 = vadd.f32 %v5674, %v5675
  %v5677 = vrot.slane %v5676, 2
  %v5678 = vadd.f32 %v5676, %v5677
  %v5679 = vrot.slane %v5678, 1
  %v5680 = vadd.f32 %v5678, %v5679
  %v5681 = vadd.f32 %v5655, %v5680
  %v5682 = vmul.f32 %v5669, %v5103
  %v5683 = vmul.f32 %v5670, %v5104
  %v5684 = vmul.f32 %v5671, %v5105
  %v5685 = vadd.f32 %v5682, %v5683
  %v5686 = vsel %vm1926, %v5684, 0.0
  %v5687 = vadd.f32 %v5685, %v5686
  %v5688 = vrot.slane %v5687, 4
  %v5689 = vadd.f32 %v5687, %v5688
  %v5690 = vrot.slane %v5689, 2
  %v5691 = vadd.f32 %v5689, %v5690
  %v5692 = vrot.slane %v5691, 1
  %v5693 = vadd.f32 %v5691, %v5692
  %v5694 = vadd.f32 %v5668, %v5693
  %v5695 = vmul.f32 %v5277, %v5631
  %v5696 = vmul.f32 %v5278, %v5636
  %v5697 = vmul.f32 %v5279, %v5641
  %v5698 = vadd.f32 %v5695, %v5696
  %v5699 = vsel %vm1926, %v5697, 0.0
  %v5700 = vadd.f32 %v5698, %v5699
  %v5701 = vrot.slane %v5700, 4
  %v5702 = vadd.f32 %v5700, %v5701
  %v5703 = vrot.slane %v5702, 2
  %v5704 = vadd.f32 %v5702, %v5703
  %v5705 = vrot.slane %v5704, 1
  %v5706 = vadd.f32 %v5704, %v5705
  %v5707 = vadd.f32 %v5681, %v5706
  %v5708 = vmul.f32 %v5695, %v5277
  %v5709 = vmul.f32 %v5696, %v5278
  %v5710 = vmul.f32 %v5697, %v5279
  %v5711 = vadd.f32 %v5708, %v5709
  %v5712 = vsel %vm1926, %v5710, 0.0
  %v5713 = vadd.f32 %v5711, %v5712
  %v5714 = vrot.slane %v5713, 4
  %v5715 = vadd.f32 %v5713, %v5714
  %v5716 = vrot.slane %v5715, 2
  %v5717 = vadd.f32 %v5715, %v5716
  %v5718 = vrot.slane %v5717, 1
  %v5719 = vadd.f32 %v5717, %v5718
  %v5720 = vadd.f32 %v5694, %v5719
  %v5721 = vmul.f32 %v5622, %v5631
  %v5722 = vmul.f32 %v5623, %v5636
  %v5723 = vmul.f32 %v5624, %v5641
  %v5724 = vadd.f32 %v5721, %v5722
  %v5725 = vsel %vm1926, %v5723, 0.0
  %v5726 = vadd.f32 %v5724, %v5725
  %v5727 = vrot.slane %v5726, 4
  %v5728 = vadd.f32 %v5726, %v5727
  %v5729 = vrot.slane %v5728, 2
  %v5730 = vadd.f32 %v5728, %v5729
  %v5731 = vrot.slane %v5730, 1
  %v5732 = vadd.f32 %v5730, %v5731
  %v5733 = vadd.f32 %v5707, %v5732
  %v5734 = vmul.f32 %v5721, %v5622
  %v5735 = vmul.f32 %v5722, %v5623
  %v5736 = vmul.f32 %v5723, %v5624
  %v5737 = vadd.f32 %v5734, %v5735
  %v5738 = vsel %vm1926, %v5736, 0.0
  %v5739 = vadd.f32 %v5737, %v5738
  %v5740 = vrot.slane %v5739, 4
  %v5741 = vadd.f32 %v5739, %v5740
  %v5742 = vrot.slane %v5741, 2
  %v5743 = vadd.f32 %v5741, %v5742
  %v5744 = vrot.slane %v5743, 1
  %v5745 = vadd.f32 %v5743, %v5744
  %v5746 = vadd.f32 %v5720, %v5745
  %v5747 = vmul.f32 %v5733, 0.03125
  %v5748 = vmul.f32 %v5746, 0.03125
  %v5749 = vmul.f32 %v5747, %v5747
  %v5750 = vsub.f32 %v5748, %v5749
  %v5751 = vmax.f32 %v5750, 0.0
  %v5752 = vadd.f32 %v5751, 1e-05
  %v5753 = vrsqrt.pop %v5752
  %v5754 = vmul.f32 %v5753, %v5752
  %v5755 = vmul.f32 %v5754, %v5753
  %v5756 = vmul.f32 0.5, %v5755
  %v5757 = vsub.f32 1.5, %v5756
  %v5758 = vmul.f32 %v5753, %v5757
  %vm5759 = vweird.f32 %v5752
  %vm5760 = vweird.f32 %v5753
  %vm5761 = vmor %vm5759, %vm5760
  %v5762 = vsel %vm5761, %v5753, %v5758
  %v5763 = vld [vmem:[%s41] sm:$0x1]
  %v5764 = vld [vmem:[%s43] sm:$0x1]
  %v5765 = vsub.f32 %v4924, %v5747
  %v5766 = vsub.f32 %v4926, %v5747
  %v5767 = vsub.f32 %v4929, %v5747
  %v5768 = vmul.f32 %v5765, %v5762
  %v5769 = vmul.f32 %v5766, %v5762
  %v5770 = vmul.f32 %v5767, %v5762
  %v5772 = vperm.slane %v5763, 0
  %v5774 = vmul.f32 %v5768, %v5772
  %v5775 = vmul.f32 %v5769, %v5772
  %v5776 = vmul.f32 %v5770, %v5772
  %v5778 = vperm.slane %v5764, 0
  %v5780 = vadd.f32 %v5774, %v5778
  %v5781 = vadd.f32 %v5775, %v5778
  %v5782 = vadd.f32 %v5776, %v5778
  %v5783 = vmax.f32 %v5780, 0.0
  %v5784 = vmax.f32 %v5781, 0.0
  %v5785 = vmax.f32 %v5782, 0.0
  %v5786 = vsub.f32 %v5103, %v5747
  %v5787 = vsub.f32 %v5104, %v5747
  %v5788 = vsub.f32 %v5105, %v5747
  %v5789 = vmul.f32 %v5786, %v5762
  %v5790 = vmul.f32 %v5787, %v5762
  %v5791 = vmul.f32 %v5788, %v5762
  %v5792 = vmul.f32 %v5789, %v5772
  %v5793 = vmul.f32 %v5790, %v5772
  %v5794 = vmul.f32 %v5791, %v5772
  %v5795 = vadd.f32 %v5792, %v5778
  %v5796 = vadd.f32 %v5793, %v5778
  %v5797 = vadd.f32 %v5794, %v5778
  %v5798 = vmax.f32 %v5795, 0.0
  %v5799 = vmax.f32 %v5796, 0.0
  %v5800 = vmax.f32 %v5797, 0.0
  %v5801 = vsub.f32 %v5277, %v5747
  %v5802 = vsub.f32 %v5278, %v5747
  %v5803 = vsub.f32 %v5279, %v5747
  %v5804 = vmul.f32 %v5801, %v5762
  %v5805 = vmul.f32 %v5802, %v5762
  %v5806 = vmul.f32 %v5803, %v5762
  %v5807 = vmul.f32 %v5804, %v5772
  %v5808 = vmul.f32 %v5805, %v5772
  %v5809 = vmul.f32 %v5806, %v5772
  %v5810 = vadd.f32 %v5807, %v5778
  %v5811 = vadd.f32 %v5808, %v5778
  %v5812 = vadd.f32 %v5809, %v5778
  %v5813 = vmax.f32 %v5810, 0.0
  %v5814 = vmax.f32 %v5811, 0.0
  %v5815 = vmax.f32 %v5812, 0.0
  %v5816 = vsub.f32 %v5622, %v5747
  %v5817 = vsub.f32 %v5623, %v5747
  %v5818 = vsub.f32 %v5624, %v5747
  %v5819 = vmul.f32 %v5816, %v5762
  %v5820 = vmul.f32 %v5817, %v5762
  %v5821 = vmul.f32 %v5818, %v5762
  %v5822 = vmul.f32 %v5819, %v5772
  %v5823 = vmul.f32 %v5820, %v5772
  %v5824 = vmul.f32 %v5821, %v5772
  %v5825 = vadd.f32 %v5822, %v5778
  %v5826 = vadd.f32 %v5823, %v5778
  %v5827 = vadd.f32 %v5824, %v5778
  %v5828 = vmax.f32 %v5825, 0.0
  %v5829 = vmax.f32 %v5826, 0.0
  %v5830 = vmax.f32 %v5827, 0.0
  %v5831 = vpack.c.bf16 %v5784, %v5783
  %v5832 = vpack.c.bf16 %v5785, %v5785
  %v5833 = vpack.c.bf16 %v5799, %v5798
  %v5834 = vpack.c.bf16 %v5800, %v5800
  %v5835 = vpack.c.bf16 %v5814, %v5813
  %v5836 = vpack.c.bf16 %v5815, %v5815
  %v5837 = vpack.c.bf16 %v5829, %v5828
  %v5838 = vpack.c.bf16 %v5830, %v5830
  %v5839 = vld [vmem:[%s59] sm:$0xf]
  %v5840 = vld [vmem:[%s59 + $0x4] sm:$0xf]
  %v5841 = vld [vmem:[%s59 + $0x8] sm:$0xf]
  %v5842 = vld [vmem:[%s59 + $0xc] sm:$0xf]
  %v5843 = vld [vmem:[%s59 + $0x10] sm:$0xf]
  %v5844 = vld [vmem:[%s59 + $0x14] sm:$0xf]
  %v5845 = vld [vmem:[%s59 + $0x18] sm:$0xf]
  %s5846 = scalar_lea.vmem %s59, 28
  %v5847 = vld [vmem:[%s5846] sm:$0xf]
  %v5848 = vld [vmem:[%s5846 + $0x4] sm:$0xf]
  %v5849 = vld [vmem:[%s5846 + $0x8] sm:$0xf]
  %v5850 = vld [vmem:[%s5846 + $0xc] sm:$0xf]
  %v5851 = vld [vmem:[%s5846 + $0x10] sm:$0xf]
  %v5852 = vld [vmem:[%s5846 + $0x14] sm:$0xf]
  %v5853 = vld [vmem:[%s5846 + $0x18] sm:$0xf]
  %v5861 = vunpack.c.l.b16 %v5847
  %v5862 = vunpack.c.l.b16 %v5848
  %v5863 = vunpack.c.l.b16 %v5849
  %v5864 = vunpack.c.l.b16 %v5850
  %v5865 = vunpack.c.l.b16 %v5851
  %v5866 = vunpack.c.l.b16 %v5852
  %v5867 = vunpack.c.l.b16 %v5853
  %v5868 = vpack.c.b16 %v5862, %v5861
  %v5869 = vpack.c.b16 %v5864, %v5863
  %v5870 = vpack.c.b16 %v5866, %v5865
  %v5871 = vpack.c.b16 %v5867, %v5867
  %v5873 = vsel %vm4809, %v5868, 0
  %v5876 = vsel %vm4809, %v5869, 0
  %v5879 = vsel %vm4809, %v5870, 0
  %v5882 = vsel %vm4809, %v5871, 0
  %v5885 = vsel %vm2176, %v5834, 0
  %5887 = vmatpush.bf16.msra.mxu0 0
  %5888 = vmatpush.bf16.msra.mxu0 0
  %5889 = vmatpush.bf16.msra.mxu0 0
  %5890 = vmatpush.bf16.msra.mxu0 0
  %5891 = vmatpush.bf16.msra.mxu0 0
  %5892 = vmatpush.bf16.msra.mxu0 0
  %5893 = vmatpush.bf16.msra.mxu0 %v5885
  %5894 = vmatpush.bf16.msra.mxu0 %v5833
  %5895 = vmatmul.bf16.gmra.mxu0 %v5873
  %v5896 = vpop.f32.mrf.mxu0
  %v5897 = vadd.f32 0.0, %v5896
  %v5898 = vpop.f32.mrf.mxu0
  %v5899 = vadd.f32 0.0, %v5898
  %5900 = vmatmul.bf16.gmra.mxu0 %v5876
  %v5901 = vpop.f32.mrf.mxu0
  %v5902 = vadd.f32 0.0, %v5901
  %v5903 = vpop.f32.mrf.mxu0
  %v5904 = vadd.f32 0.0, %v5903
  %5905 = vmatmul.bf16.gmra.mxu0 %v5879
  %v5906 = vpop.f32.mrf.mxu0
  %v5907 = vadd.f32 0.0, %v5906
  %v5908 = vpop.f32.mrf.mxu0
  %v5909 = vadd.f32 0.0, %v5908
  %5910 = vmatmul.bf16.gmra.mxu0 %v5882
  %v5911 = vpop.f32.mrf.mxu0
  %v5912 = vadd.f32 0.0, %v5911
  %v5913 = vpop.f32.mrf.mxu0
  %5914 = vdwg.mxu0
  %v5922 = vunpack.c.l.b16 %v5839
  %v5923 = vunpack.c.l.b16 %v5840
  %v5924 = vunpack.c.l.b16 %v5841
  %v5925 = vunpack.c.l.b16 %v5842
  %v5926 = vunpack.c.l.b16 %v5843
  %v5927 = vunpack.c.l.b16 %v5844
  %v5928 = vunpack.c.l.b16 %v5845
  %v5929 = vpack.c.b16 %v5923, %v5922
  %v5930 = vpack.c.b16 %v5925, %v5924
  %v5931 = vpack.c.b16 %v5927, %v5926
  %v5932 = vpack.c.b16 %v5928, %v5928
  %v5934 = vsel %vm4809, %v5929, 0
  %v5937 = vsel %vm4809, %v5930, 0
  %v5940 = vsel %vm4809, %v5931, 0
  %v5943 = vsel %vm4809, %v5932, 0
  %v5946 = vsel %vm2176, %v5832, 0
  %5948 = vmatpush.bf16.msra.mxu0 0
  %5949 = vmatpush.bf16.msra.mxu0 0
  %5950 = vmatpush.bf16.msra.mxu0 0
  %5951 = vmatpush.bf16.msra.mxu0 0
  %5952 = vmatpush.bf16.msra.mxu0 0
  %5953 = vmatpush.bf16.msra.mxu0 0
  %5954 = vmatpush.bf16.msra.mxu0 %v5946
  %5955 = vmatpush.bf16.msra.mxu0 %v5831
  %5956 = vmatmul.bf16.gmra.mxu0 %v5934
  %v5957 = vpop.f32.mrf.mxu0
  %v5958 = vadd.f32 %v5897, %v5957
  %v5959 = vpop.f32.mrf.mxu0
  %v5960 = vadd.f32 %v5899, %v5959
  %5961 = vmatmul.bf16.gmra.mxu0 %v5937
  %v5962 = vpop.f32.mrf.mxu0
  %v5963 = vadd.f32 %v5902, %v5962
  %v5964 = vpop.f32.mrf.mxu0
  %v5965 = vadd.f32 %v5904, %v5964
  %5966 = vmatmul.bf16.gmra.mxu0 %v5940
  %v5967 = vpop.f32.mrf.mxu0
  %v5968 = vadd.f32 %v5907, %v5967
  %v5969 = vpop.f32.mrf.mxu0
  %v5970 = vadd.f32 %v5909, %v5969
  %5971 = vmatmul.bf16.gmra.mxu0 %v5943
  %v5972 = vpop.f32.mrf.mxu0
  %v5973 = vadd.f32 %v5912, %v5972
  %v5974 = vpop.f32.mrf.mxu0
  %5975 = vdwg.mxu0
  %s5976 = scalar_lea.vmem %s59, 56
  %v5977 = vld [vmem:[%s5976] sm:$0xf]
  %v5978 = vld [vmem:[%s5976 + $0x4] sm:$0xf]
  %v5979 = vld [vmem:[%s5976 + $0x8] sm:$0xf]
  %v5980 = vld [vmem:[%s5976 + $0xc] sm:$0xf]
  %v5981 = vld [vmem:[%s5976 + $0x10] sm:$0xf]
  %v5982 = vld [vmem:[%s5976 + $0x14] sm:$0xf]
  %v5983 = vld [vmem:[%s5976 + $0x18] sm:$0xf]
  %v5991 = vunpack.c.l.b16 %v5977
  %v5992 = vunpack.c.l.b16 %v5978
  %v5993 = vunpack.c.l.b16 %v5979
  %v5994 = vunpack.c.l.b16 %v5980
  %v5995 = vunpack.c.l.b16 %v5981
  %v5996 = vunpack.c.l.b16 %v5982
  %v5997 = vunpack.c.l.b16 %v5983
  %v5998 = vpack.c.b16 %v5992, %v5991
  %v5999 = vpack.c.b16 %v5994, %v5993
  %v6000 = vpack.c.b16 %v5996, %v5995
  %v6001 = vpack.c.b16 %v5997, %v5997
  %v6003 = vsel %vm4809, %v5998, 0
  %v6006 = vsel %vm4809, %v5999, 0
  %v6009 = vsel %vm4809, %v6000, 0
  %v6012 = vsel %vm4809, %v6001, 0
  %v6015 = vsel %vm2176, %v5836, 0
  %6017 = vmatpush.bf16.msra.mxu0 0
  %6018 = vmatpush.bf16.msra.mxu0 0
  %6019 = vmatpush.bf16.msra.mxu0 0
  %6020 = vmatpush.bf16.msra.mxu0 0
  %6021 = vmatpush.bf16.msra.mxu0 0
  %6022 = vmatpush.bf16.msra.mxu0 0
  %6023 = vmatpush.bf16.msra.mxu0 %v6015
  %6024 = vmatpush.bf16.msra.mxu0 %v5835
  %6025 = vmatmul.bf16.gmra.mxu0 %v6003
  %v6026 = vpop.f32.mrf.mxu0
  %v6027 = vadd.f32 0.0, %v6026
  %v6028 = vpop.f32.mrf.mxu0
  %v6029 = vadd.f32 0.0, %v6028
  %6030 = vmatmul.bf16.gmra.mxu0 %v6006
  %v6031 = vpop.f32.mrf.mxu0
  %v6032 = vadd.f32 0.0, %v6031
  %v6033 = vpop.f32.mrf.mxu0
  %v6034 = vadd.f32 0.0, %v6033
  %6035 = vmatmul.bf16.gmra.mxu0 %v6009
  %v6036 = vpop.f32.mrf.mxu0
  %v6037 = vadd.f32 0.0, %v6036
  %v6038 = vpop.f32.mrf.mxu0
  %v6039 = vadd.f32 0.0, %v6038
  %6040 = vmatmul.bf16.gmra.mxu0 %v6012
  %v6041 = vpop.f32.mrf.mxu0
  %v6042 = vadd.f32 0.0, %v6041
  %v6043 = vpop.f32.mrf.mxu0
  %6044 = vdwg.mxu0
  %v6045 = vadd.f32 %v5958, %v6027
  %v6046 = vadd.f32 %v5960, %v6029
  %v6047 = vadd.f32 %v5963, %v6032
  %v6048 = vadd.f32 %v5965, %v6034
  %v6049 = vadd.f32 %v5968, %v6037
  %v6050 = vadd.f32 %v5970, %v6039
  %v6051 = vadd.f32 %v5973, %v6042
  %s6052 = scalar_lea.vmem %s59, 84
  %v6053 = vld [vmem:[%s6052] sm:$0xf]
  %v6054 = vld [vmem:[%s6052 + $0x4] sm:$0xf]
  %v6055 = vld [vmem:[%s6052 + $0x8] sm:$0xf]
  %v6056 = vld [vmem:[%s6052 + $0xc] sm:$0xf]
  %v6057 = vld [vmem:[%s6052 + $0x10] sm:$0xf]
  %v6058 = vld [vmem:[%s6052 + $0x14] sm:$0xf]
  %v6059 = vld [vmem:[%s6052 + $0x18] sm:$0xf]
  %v6067 = vunpack.c.l.b16 %v6053
  %v6068 = vunpack.c.l.b16 %v6054
  %v6069 = vunpack.c.l.b16 %v6055
  %v6070 = vunpack.c.l.b16 %v6056
  %v6071 = vunpack.c.l.b16 %v6057
  %v6072 = vunpack.c.l.b16 %v6058
  %v6073 = vunpack.c.l.b16 %v6059
  %v6074 = vpack.c.b16 %v6068, %v6067
  %v6075 = vpack.c.b16 %v6070, %v6069
  %v6076 = vpack.c.b16 %v6072, %v6071
  %v6077 = vpack.c.b16 %v6073, %v6073
  %v6079 = vsel %vm4809, %v6074, 0
  %v6082 = vsel %vm4809, %v6075, 0
  %v6085 = vsel %vm4809, %v6076, 0
  %v6088 = vsel %vm4809, %v6077, 0
  %v6091 = vsel %vm2176, %v5838, 0
  %6093 = vmatpush.bf16.msra.mxu0 0
  %6094 = vmatpush.bf16.msra.mxu0 0
  %6095 = vmatpush.bf16.msra.mxu0 0
  %6096 = vmatpush.bf16.msra.mxu0 0
  %6097 = vmatpush.bf16.msra.mxu0 0
  %6098 = vmatpush.bf16.msra.mxu0 0
  %6099 = vmatpush.bf16.msra.mxu0 %v6091
  %6100 = vmatpush.bf16.msra.mxu0 %v5837
  %6101 = vmatmul.bf16.gmra.mxu0 %v6079
  %v6102 = vpop.f32.mrf.mxu0
  %v6103 = vadd.f32 0.0, %v6102
  %v6104 = vpop.f32.mrf.mxu0
  %v6105 = vadd.f32 0.0, %v6104
  %6106 = vmatmul.bf16.gmra.mxu0 %v6082
  %v6107 = vpop.f32.mrf.mxu0
  %v6108 = vadd.f32 0.0, %v6107
  %v6109 = vpop.f32.mrf.mxu0
  %v6110 = vadd.f32 0.0, %v6109
  %6111 = vmatmul.bf16.gmra.mxu0 %v6085
  %v6112 = vpop.f32.mrf.mxu0
  %v6113 = vadd.f32 0.0, %v6112
  %v6114 = vpop.f32.mrf.mxu0
  %v6115 = vadd.f32 0.0, %v6114
  %6116 = vmatmul.bf16.gmra.mxu0 %v6088
  %v6117 = vpop.f32.mrf.mxu0
  %v6118 = vadd.f32 0.0, %v6117
  %v6119 = vpop.f32.mrf.mxu0
  %6120 = vdwg.mxu0
  %v6121 = vadd.f32 %v6045, %v6103
  %v6122 = vadd.f32 %v6046, %v6105
  %v6123 = vadd.f32 %v6047, %v6108
  %v6124 = vadd.f32 %v6048, %v6110
  %v6125 = vadd.f32 %v6049, %v6113
  %v6126 = vadd.f32 %v6050, %v6115
  %v6127 = vadd.f32 %v6051, %v6118
  %6128 = vst [vmem:[#allocation5] sm:$0xff] %v6121
  %6129 = vst [vmem:[#allocation5 + $0x8] sm:$0xff] %v6122
  %6130 = vst [vmem:[#allocation5 + $0x10] sm:$0xff] %v6123
  %6131 = vst [vmem:[#allocation5 + $0x18] sm:$0xff] %v6124
  %6132 = vst [vmem:[#allocation5 + $0x20] sm:$0xff] %v6125
  %6133 = vst [vmem:[#allocation5 + $0x28] sm:$0xff] %v6126
  %6134 = vst [vmem:[#allocation5 + $0x30] sm:$0xff] %v6127
  %v6135 = vld [vmem:[%s51] sm:$0x1]
  %v6136 = vld [vmem:[#allocation5] sm:$0xff]
  %v6137 = vld [vmem:[#allocation5 + $0x8] sm:$0xff]
  %v6138 = vld [vmem:[#allocation5 + $0x10] sm:$0xff]
  %v6139 = vld [vmem:[#allocation5 + $0x18] sm:$0xff]
  %v6140 = vld [vmem:[#allocation5 + $0x20] sm:$0xff]
  %v6141 = vld [vmem:[#allocation5 + $0x28] sm:$0xff]
  %v6142 = vld [vmem:[#allocation5 + $0x30] sm:$0x3]
  %v6143 = vpack.c.bf16 %v6137, %v6136
  %v6144 = vpack.c.bf16 %v6139, %v6138
  %v6145 = vpack.c.bf16 %v6141, %v6140
  %v6146 = vpack.c.bf16 %v6142, %v6142
  %s6147 = scalar_lea.vmem %s49, 256
  %v6148 = vld [vmem:[%s6147] sm:$0xf]
  %v6149 = vld [vmem:[%s6147 + $0x4] sm:$0xf]
  %v6150 = vld [vmem:[%s6147 + $0x8] sm:$0xf]
  %v6151 = vld [vmem:[%s6147 + $0xc] sm:$0xf]
  %v6152 = vld [vmem:[%s6147 + $0x10] sm:$0xf]
  %v6153 = vld [vmem:[%s6147 + $0x14] sm:$0xf]
  %v6154 = vld [vmem:[%s6147 + $0x18] sm:$0xf]
  %v6155 = vld [vmem:[%s6147 + $0x1c] sm:$0xf]
  %v6156 = vld [vmem:[%s6147 + $0x20] sm:$0xf]
  %v6157 = vld [vmem:[%s6147 + $0x24] sm:$0xf]
  %v6158 = vld [vmem:[%s6147 + $0x28] sm:$0xf]
  %v6159 = vld [vmem:[%s6147 + $0x2c] sm:$0xf]
  %v6160 = vld [vmem:[%s6147 + $0x30] sm:$0xf]
  %v6161 = vld [vmem:[%s6147 + $0x34] sm:$0xf]
  %v6162 = vld [vmem:[%s6147 + $0x38] sm:$0xf]
  %v6163 = vld [vmem:[%s6147 + $0x3c] sm:$0xf]
  %v6165 = vperm.slane %v6135, 0
  %v6183 = vunpack.c.l.b16 %v6148
  %v6184 = vunpack.c.l.b16 %v6149
  %v6185 = vunpack.c.l.b16 %v6150
  %v6186 = vunpack.c.l.b16 %v6151
  %v6187 = vunpack.c.l.b16 %v6152
  %v6188 = vunpack.c.l.b16 %v6153
  %v6189 = vunpack.c.l.b16 %v6154
  %v6190 = vunpack.c.l.b16 %v6155
  %v6191 = vunpack.c.l.b16 %v6156
  %v6192 = vunpack.c.l.b16 %v6157
  %v6193 = vunpack.c.l.b16 %v6158
  %v6194 = vunpack.c.l.b16 %v6159
  %v6195 = vunpack.c.l.b16 %v6160
  %v6196 = vunpack.c.l.b16 %v6161
  %v6197 = vunpack.c.l.b16 %v6162
  %v6198 = vunpack.c.l.b16 %v6163
  %v6199 = vpack.c.b16 %v6184, %v6183
  %v6200 = vpack.c.b16 %v6186, %v6185
  %v6201 = vpack.c.b16 %v6188, %v6187
  %v6202 = vpack.c.b16 %v6190, %v6189
  %v6203 = vpack.c.b16 %v6192, %v6191
  %v6204 = vpack.c.b16 %v6194, %v6193
  %v6205 = vpack.c.b16 %v6196, %v6195
  %v6206 = vpack.c.b16 %v6198, %v6197
  %6215 = vmatpush.bf16.msra.mxu0 %v6206
  %6216 = vmatpush.bf16.msra.mxu0 %v6205
  %6217 = vmatpush.bf16.msra.mxu0 %v6204
  %6218 = vmatpush.bf16.msra.mxu0 %v6203
  %6219 = vmatpush.bf16.msra.mxu0 %v6202
  %6220 = vmatpush.bf16.msra.mxu0 %v6201
  %6221 = vmatpush.bf16.msra.mxu0 %v6200
  %6222 = vmatpush.bf16.msra.mxu0 %v6199
  %6223 = vmatmul.bf16.gmra.mxu0 %v6143
  %v6224 = vpop.f32.mrf.mxu0
  %v6225 = vadd.f32 %v6165, %v6224
  %v6226 = vpop.f32.mrf.mxu0
  %v6227 = vadd.f32 %v6165, %v6226
  %6228 = vmatmul.bf16.gmra.mxu0 %v6144
  %v6229 = vpop.f32.mrf.mxu0
  %v6230 = vadd.f32 %v6165, %v6229
  %v6231 = vpop.f32.mrf.mxu0
  %v6232 = vadd.f32 %v6165, %v6231
  %6233 = vmatmul.bf16.gmra.mxu0 %v6145
  %v6234 = vpop.f32.mrf.mxu0
  %v6235 = vadd.f32 %v6165, %v6234
  %v6236 = vpop.f32.mrf.mxu0
  %v6237 = vadd.f32 %v6165, %v6236
  %6238 = vmatmul.bf16.gmra.mxu0 %v6146
  %v6239 = vpop.f32.mrf.mxu0
  %v6240 = vadd.f32 %v6165, %v6239
  %v6241 = vpop.f32.mrf.mxu0
  %6242 = vdwg.mxu0
  %s6243 = scalar_lea.vmem %s49, 320
  %v6244 = vld [vmem:[%s6243] sm:$0xf]
  %v6245 = vld [vmem:[%s6243 + $0x4] sm:$0xf]
  %v6246 = vld [vmem:[%s6243 + $0x8] sm:$0xf]
  %v6247 = vld [vmem:[%s6243 + $0xc] sm:$0xf]
  %v6248 = vld [vmem:[%s6243 + $0x10] sm:$0xf]
  %v6249 = vld [vmem:[%s6243 + $0x14] sm:$0xf]
  %v6250 = vld [vmem:[%s6243 + $0x18] sm:$0xf]
  %v6251 = vld [vmem:[%s6243 + $0x1c] sm:$0xf]
  %v6252 = vld [vmem:[%s6243 + $0x20] sm:$0xf]
  %v6253 = vld [vmem:[%s6243 + $0x24] sm:$0xf]
  %v6254 = vld [vmem:[%s6243 + $0x28] sm:$0xf]
  %v6255 = vld [vmem:[%s6243 + $0x2c] sm:$0xf]
  %v6256 = vld [vmem:[%s6243 + $0x30] sm:$0xf]
  %v6257 = vld [vmem:[%s6243 + $0x34] sm:$0xf]
  %v6258 = vld [vmem:[%s6243 + $0x38] sm:$0xf]
  %v6259 = vld [vmem:[%s6243 + $0x3c] sm:$0xf]
  %v6260 = vld [vmem:[#allocation5 + $0x1] sm:$0xff]
  %v6261 = vld [vmem:[#allocation5 + $0x9] sm:$0xff]
  %v6262 = vld [vmem:[#allocation5 + $0x11] sm:$0xff]
  %v6263 = vld [vmem:[#allocation5 + $0x19] sm:$0xff]
  %v6264 = vld [vmem:[#allocation5 + $0x21] sm:$0xff]
  %v6265 = vld [vmem:[#allocation5 + $0x29] sm:$0xff]
  %v6266 = vld [vmem:[#allocation5 + $0x31] sm:$0x3]
  %v6267 = vpack.c.bf16 %v6261, %v6260
  %v6268 = vpack.c.bf16 %v6263, %v6262
  %v6269 = vpack.c.bf16 %v6265, %v6264
  %v6270 = vpack.c.bf16 %v6266, %v6266
  %s6271 = scalar_lea.vmem %s49, 192
  %v6272 = vld [vmem:[%s6271] sm:$0xf]
  %v6273 = vld [vmem:[%s6271 + $0x4] sm:$0xf]
  %v6274 = vld [vmem:[%s6271 + $0x8] sm:$0xf]
  %v6275 = vld [vmem:[%s6271 + $0xc] sm:$0xf]
  %v6276 = vld [vmem:[%s6271 + $0x10] sm:$0xf]
  %v6277 = vld [vmem:[%s6271 + $0x14] sm:$0xf]
  %v6278 = vld [vmem:[%s6271 + $0x18] sm:$0xf]
  %v6279 = vld [vmem:[%s6271 + $0x1c] sm:$0xf]
  %v6280 = vld [vmem:[%s6271 + $0x20] sm:$0xf]
  %v6281 = vld [vmem:[%s6271 + $0x24] sm:$0xf]
  %v6282 = vld [vmem:[%s6271 + $0x28] sm:$0xf]
  %v6283 = vld [vmem:[%s6271 + $0x2c] sm:$0xf]
  %v6284 = vld [vmem:[%s6271 + $0x30] sm:$0xf]
  %v6285 = vld [vmem:[%s6271 + $0x34] sm:$0xf]
  %v6286 = vld [vmem:[%s6271 + $0x38] sm:$0xf]
  %v6287 = vld [vmem:[%s6271 + $0x3c] sm:$0xf]
  %v6304 = vunpack.c.l.b16 %v6272
  %v6305 = vunpack.c.l.b16 %v6273
  %v6306 = vunpack.c.l.b16 %v6274
  %v6307 = vunpack.c.l.b16 %v6275
  %v6308 = vunpack.c.l.b16 %v6276
  %v6309 = vunpack.c.l.b16 %v6277
  %v6310 = vunpack.c.l.b16 %v6278
  %v6311 = vunpack.c.l.b16 %v6279
  %v6312 = vunpack.c.l.b16 %v6280
  %v6313 = vunpack.c.l.b16 %v6281
  %v6314 = vunpack.c.l.b16 %v6282
  %v6315 = vunpack.c.l.b16 %v6283
  %v6316 = vunpack.c.l.b16 %v6284
  %v6317 = vunpack.c.l.b16 %v6285
  %v6318 = vunpack.c.l.b16 %v6286
  %v6319 = vunpack.c.l.b16 %v6287
  %v6320 = vpack.c.b16 %v6305, %v6304
  %v6321 = vpack.c.b16 %v6307, %v6306
  %v6322 = vpack.c.b16 %v6309, %v6308
  %v6323 = vpack.c.b16 %v6311, %v6310
  %v6324 = vpack.c.b16 %v6313, %v6312
  %v6325 = vpack.c.b16 %v6315, %v6314
  %v6326 = vpack.c.b16 %v6317, %v6316
  %v6327 = vpack.c.b16 %v6319, %v6318
  %6336 = vmatpush.bf16.msra.mxu0 %v6327
  %6337 = vmatpush.bf16.msra.mxu0 %v6326
  %6338 = vmatpush.bf16.msra.mxu0 %v6325
  %6339 = vmatpush.bf16.msra.mxu0 %v6324
  %6340 = vmatpush.bf16.msra.mxu0 %v6323
  %6341 = vmatpush.bf16.msra.mxu0 %v6322
  %6342 = vmatpush.bf16.msra.mxu0 %v6321
  %6343 = vmatpush.bf16.msra.mxu0 %v6320
  %6344 = vmatmul.bf16.gmra.mxu0 %v6267
  %v6345 = vpop.f32.mrf.mxu0
  %v6346 = vadd.f32 0.0, %v6345
  %v6347 = vpop.f32.mrf.mxu0
  %v6348 = vadd.f32 0.0, %v6347
  %6349 = vmatmul.bf16.gmra.mxu0 %v6268
  %v6350 = vpop.f32.mrf.mxu0
  %v6351 = vadd.f32 0.0, %v6350
  %v6352 = vpop.f32.mrf.mxu0
  %v6353 = vadd.f32 0.0, %v6352
  %6354 = vmatmul.bf16.gmra.mxu0 %v6269
  %v6355 = vpop.f32.mrf.mxu0
  %v6356 = vadd.f32 0.0, %v6355
  %v6357 = vpop.f32.mrf.mxu0
  %v6358 = vadd.f32 0.0, %v6357
  %6359 = vmatmul.bf16.gmra.mxu0 %v6270
  %v6360 = vpop.f32.mrf.mxu0
  %v6361 = vadd.f32 0.0, %v6360
  %v6362 = vpop.f32.mrf.mxu0
  %6363 = vdwg.mxu0
  %v6380 = vunpack.c.l.b16 %v6244
  %v6381 = vunpack.c.l.b16 %v6245
  %v6382 = vunpack.c.l.b16 %v6246
  %v6383 = vunpack.c.l.b16 %v6247
  %v6384 = vunpack.c.l.b16 %v6248
  %v6385 = vunpack.c.l.b16 %v6249
  %v6386 = vunpack.c.l.b16 %v6250
  %v6387 = vunpack.c.l.b16 %v6251
  %v6388 = vunpack.c.l.b16 %v6252
  %v6389 = vunpack.c.l.b16 %v6253
  %v6390 = vunpack.c.l.b16 %v6254
  %v6391 = vunpack.c.l.b16 %v6255
  %v6392 = vunpack.c.l.b16 %v6256
  %v6393 = vunpack.c.l.b16 %v6257
  %v6394 = vunpack.c.l.b16 %v6258
  %v6395 = vunpack.c.l.b16 %v6259
  %v6396 = vpack.c.b16 %v6381, %v6380
  %v6397 = vpack.c.b16 %v6383, %v6382
  %v6398 = vpack.c.b16 %v6385, %v6384
  %v6399 = vpack.c.b16 %v6387, %v6386
  %v6400 = vpack.c.b16 %v6389, %v6388
  %v6401 = vpack.c.b16 %v6391, %v6390
  %v6402 = vpack.c.b16 %v6393, %v6392
  %v6403 = vpack.c.b16 %v6395, %v6394
  %6412 = vmatpush.bf16.msra.mxu0 %v6403
  %6413 = vmatpush.bf16.msra.mxu0 %v6402
  %6414 = vmatpush.bf16.msra.mxu0 %v6401
  %6415 = vmatpush.bf16.msra.mxu0 %v6400
  %6416 = vmatpush.bf16.msra.mxu0 %v6399
  %6417 = vmatpush.bf16.msra.mxu0 %v6398
  %6418 = vmatpush.bf16.msra.mxu0 %v6397
  %6419 = vmatpush.bf16.msra.mxu0 %v6396
  %6420 = vmatmul.bf16.gmra.mxu0 %v6143
  %v6421 = vpop.f32.mrf.mxu0
  %v6422 = vadd.f32 %v6346, %v6421
  %v6423 = vpop.f32.mrf.mxu0
  %v6424 = vadd.f32 %v6348, %v6423
  %6425 = vmatmul.bf16.gmra.mxu0 %v6144
  %v6426 = vpop.f32.mrf.mxu0
  %v6427 = vadd.f32 %v6351, %v6426
  %v6428 = vpop.f32.mrf.mxu0
  %v6429 = vadd.f32 %v6353, %v6428
  %6430 = vmatmul.bf16.gmra.mxu0 %v6145
  %v6431 = vpop.f32.mrf.mxu0
  %v6432 = vadd.f32 %v6356, %v6431
  %v6433 = vpop.f32.mrf.mxu0
  %v6434 = vadd.f32 %v6358, %v6433
  %6435 = vmatmul.bf16.gmra.mxu0 %v6146
  %v6436 = vpop.f32.mrf.mxu0
  %v6437 = vadd.f32 %v6361, %v6436
  %v6438 = vpop.f32.mrf.mxu0
  %6439 = vdwg.mxu0
  %v6440 = vadd.f32 %v6422, %v6165
  %v6441 = vadd.f32 %v6424, %v6165
  %v6442 = vadd.f32 %v6427, %v6165
  %v6443 = vadd.f32 %v6429, %v6165
  %v6444 = vadd.f32 %v6432, %v6165
  %v6445 = vadd.f32 %v6434, %v6165
  %v6446 = vadd.f32 %v6437, %v6165
  %s6447 = scalar_lea.vmem %s49, 448
  %v6448 = vld [vmem:[%s6447] sm:$0xf]
  %v6449 = vld [vmem:[%s6447 + $0x4] sm:$0xf]
  %v6450 = vld [vmem:[%s6447 + $0x8] sm:$0xf]
  %v6451 = vld [vmem:[%s6447 + $0xc] sm:$0xf]
  %v6452 = vld [vmem:[%s6447 + $0x10] sm:$0xf]
  %v6453 = vld [vmem:[%s6447 + $0x14] sm:$0xf]
  %v6454 = vld [vmem:[%s6447 + $0x18] sm:$0xf]
  %v6455 = vld [vmem:[%s6447 + $0x1c] sm:$0xf]
  %v6456 = vld [vmem:[%s6447 + $0x20] sm:$0xf]
  %v6457 = vld [vmem:[%s6447 + $0x24] sm:$0xf]
  %v6458 = vld [vmem:[%s6447 + $0x28] sm:$0xf]
  %v6459 = vld [vmem:[%s6447 + $0x2c] sm:$0xf]
  %v6460 = vld [vmem:[%s6447 + $0x30] sm:$0xf]
  %v6461 = vld [vmem:[%s6447 + $0x34] sm:$0xf]
  %v6462 = vld [vmem:[%s6447 + $0x38] sm:$0xf]
  %v6463 = vld [vmem:[%s6447 + $0x3c] sm:$0xf]
  %v6464 = vld [vmem:[#allocation5 + $0x5] sm:$0xff]
  %v6465 = vld [vmem:[#allocation5 + $0xd] sm:$0xff]
  %v6466 = vld [vmem:[#allocation5 + $0x15] sm:$0xff]
  %v6467 = vld [vmem:[#allocation5 + $0x1d] sm:$0xff]
  %v6468 = vld [vmem:[#allocation5 + $0x25] sm:$0xff]
  %v6469 = vld [vmem:[#allocation5 + $0x2d] sm:$0xff]
  %v6470 = vld [vmem:[#allocation5 + $0x35] sm:$0x3]
  %v6471 = vpack.c.bf16 %v6465, %v6464
  %v6472 = vpack.c.bf16 %v6467, %v6466
  %v6473 = vpack.c.bf16 %v6469, %v6468
  %v6474 = vpack.c.bf16 %v6470, %v6470
  %s6475 = scalar_lea.vmem %s49, 64
  %v6476 = vld [vmem:[%s6475] sm:$0xf]
  %v6477 = vld [vmem:[%s6475 + $0x4] sm:$0xf]
  %v6478 = vld [vmem:[%s6475 + $0x8] sm:$0xf]
  %v6479 = vld [vmem:[%s6475 + $0xc] sm:$0xf]
  %v6480 = vld [vmem:[%s6475 + $0x10] sm:$0xf]
  %v6481 = vld [vmem:[%s6475 + $0x14] sm:$0xf]
  %v6482 = vld [vmem:[%s6475 + $0x18] sm:$0xf]
  %v6483 = vld [vmem:[%s6475 + $0x1c] sm:$0xf]
  %v6484 = vld [vmem:[%s6475 + $0x20] sm:$0xf]
  %v6485 = vld [vmem:[%s6475 + $0x24] sm:$0xf]
  %v6486 = vld [vmem:[%s6475 + $0x28] sm:$0xf]
  %v6487 = vld [vmem:[%s6475 + $0x2c] sm:$0xf]
  %v6488 = vld [vmem:[%s6475 + $0x30] sm:$0xf]
  %v6489 = vld [vmem:[%s6475 + $0x34] sm:$0xf]
  %v6490 = vld [vmem:[%s6475 + $0x38] sm:$0xf]
  %v6491 = vld [vmem:[%s6475 + $0x3c] sm:$0xf]
  %v6508 = vunpack.c.l.b16 %v6476
  %v6509 = vunpack.c.l.b16 %v6477
  %v6510 = vunpack.c.l.b16 %v6478
  %v6511 = vunpack.c.l.b16 %v6479
  %v6512 = vunpack.c.l.b16 %v6480
  %v6513 = vunpack.c.l.b16 %v6481
  %v6514 = vunpack.c.l.b16 %v6482
  %v6515 = vunpack.c.l.b16 %v6483
  %v6516 = vunpack.c.l.b16 %v6484
  %v6517 = vunpack.c.l.b16 %v6485
  %v6518 = vunpack.c.l.b16 %v6486
  %v6519 = vunpack.c.l.b16 %v6487
  %v6520 = vunpack.c.l.b16 %v6488
  %v6521 = vunpack.c.l.b16 %v6489
  %v6522 = vunpack.c.l.b16 %v6490
  %v6523 = vunpack.c.l.b16 %v6491
  %v6524 = vpack.c.b16 %v6509, %v6508
  %v6525 = vpack.c.b16 %v6511, %v6510
  %v6526 = vpack.c.b16 %v6513, %v6512
  %v6527 = vpack.c.b16 %v6515, %v6514
  %v6528 = vpack.c.b16 %v6517, %v6516
  %v6529 = vpack.c.b16 %v6519, %v6518
  %v6530 = vpack.c.b16 %v6521, %v6520
  %v6531 = vpack.c.b16 %v6523, %v6522
  %6540 = vmatpush.bf16.msra.mxu0 %v6531
  %6541 = vmatpush.bf16.msra.mxu0 %v6530
  %6542 = vmatpush.bf16.msra.mxu0 %v6529
  %6543 = vmatpush.bf16.msra.mxu0 %v6528
  %6544 = vmatpush.bf16.msra.mxu0 %v6527
  %6545 = vmatpush.bf16.msra.mxu0 %v6526
  %6546 = vmatpush.bf16.msra.mxu0 %v6525
  %6547 = vmatpush.bf16.msra.mxu0 %v6524
  %6548 = vmatmul.bf16.gmra.mxu0 %v6471
  %v6549 = vpop.f32.mrf.mxu0
  %v6550 = vadd.f32 0.0, %v6549
  %v6551 = vpop.f32.mrf.mxu0
  %v6552 = vadd.f32 0.0, %v6551
  %6553 = vmatmul.bf16.gmra.mxu0 %v6472
  %v6554 = vpop.f32.mrf.mxu0
  %v6555 = vadd.f32 0.0, %v6554
  %v6556 = vpop.f32.mrf.mxu0
  %v6557 = vadd.f32 0.0, %v6556
  %6558 = vmatmul.bf16.gmra.mxu0 %v6473
  %v6559 = vpop.f32.mrf.mxu0
  %v6560 = vadd.f32 0.0, %v6559
  %v6561 = vpop.f32.mrf.mxu0
  %v6562 = vadd.f32 0.0, %v6561
  %6563 = vmatmul.bf16.gmra.mxu0 %v6474
  %v6564 = vpop.f32.mrf.mxu0
  %v6565 = vadd.f32 0.0, %v6564
  %v6566 = vpop.f32.mrf.mxu0
  %6567 = vdwg.mxu0
  %v6584 = vunpack.c.l.b16 %v6448
  %v6585 = vunpack.c.l.b16 %v6449
  %v6586 = vunpack.c.l.b16 %v6450
  %v6587 = vunpack.c.l.b16 %v6451
  %v6588 = vunpack.c.l.b16 %v6452
  %v6589 = vunpack.c.l.b16 %v6453
  %v6590 = vunpack.c.l.b16 %v6454
  %v6591 = vunpack.c.l.b16 %v6455
  %v6592 = vunpack.c.l.b16 %v6456
  %v6593 = vunpack.c.l.b16 %v6457
  %v6594 = vunpack.c.l.b16 %v6458
  %v6595 = vunpack.c.l.b16 %v6459
  %v6596 = vunpack.c.l.b16 %v6460
  %v6597 = vunpack.c.l.b16 %v6461
  %v6598 = vunpack.c.l.b16 %v6462
  %v6599 = vunpack.c.l.b16 %v6463
  %v6600 = vpack.c.b16 %v6585, %v6584
  %v6601 = vpack.c.b16 %v6587, %v6586
  %v6602 = vpack.c.b16 %v6589, %v6588
  %v6603 = vpack.c.b16 %v6591, %v6590
  %v6604 = vpack.c.b16 %v6593, %v6592
  %v6605 = vpack.c.b16 %v6595, %v6594
  %v6606 = vpack.c.b16 %v6597, %v6596
  %v6607 = vpack.c.b16 %v6599, %v6598
  %6616 = vmatpush.bf16.msra.mxu0 %v6607
  %6617 = vmatpush.bf16.msra.mxu0 %v6606
  %6618 = vmatpush.bf16.msra.mxu0 %v6605
  %6619 = vmatpush.bf16.msra.mxu0 %v6604
  %6620 = vmatpush.bf16.msra.mxu0 %v6603
  %6621 = vmatpush.bf16.msra.mxu0 %v6602
  %6622 = vmatpush.bf16.msra.mxu0 %v6601
  %6623 = vmatpush.bf16.msra.mxu0 %v6600
  %6624 = vmatmul.bf16.gmra.mxu0 %v6143
  %v6625 = vpop.f32.mrf.mxu0
  %v6626 = vadd.f32 %v6550, %v6625
  %v6627 = vpop.f32.mrf.mxu0
  %v6628 = vadd.f32 %v6552, %v6627
  %6629 = vmatmul.bf16.gmra.mxu0 %v6144
  %v6630 = vpop.f32.mrf.mxu0
  %v6631 = vadd.f32 %v6555, %v6630
  %v6632 = vpop.f32.mrf.mxu0
  %v6633 = vadd.f32 %v6557, %v6632
  %6634 = vmatmul.bf16.gmra.mxu0 %v6145
  %v6635 = vpop.f32.mrf.mxu0
  %v6636 = vadd.f32 %v6560, %v6635
  %v6637 = vpop.f32.mrf.mxu0
  %v6638 = vadd.f32 %v6562, %v6637
  %6639 = vmatmul.bf16.gmra.mxu0 %v6146
  %v6640 = vpop.f32.mrf.mxu0
  %v6641 = vadd.f32 %v6565, %v6640
  %v6642 = vpop.f32.mrf.mxu0
  %6643 = vdwg.mxu0
  %v6644 = vadd.f32 %v6626, %v6165
  %v6645 = vadd.f32 %v6628, %v6165
  %v6646 = vadd.f32 %v6631, %v6165
  %v6647 = vadd.f32 %v6633, %v6165
  %v6648 = vadd.f32 %v6636, %v6165
  %v6649 = vadd.f32 %v6638, %v6165
  %v6650 = vadd.f32 %v6641, %v6165
  %s6651 = scalar_lea.vmem %s49, 512
  %v6652 = vld [vmem:[%s6651] sm:$0xf]
  %v6653 = vld [vmem:[%s6651 + $0x4] sm:$0xf]
  %v6654 = vld [vmem:[%s6651 + $0x8] sm:$0xf]
  %v6655 = vld [vmem:[%s6651 + $0xc] sm:$0xf]
  %v6656 = vld [vmem:[%s6651 + $0x10] sm:$0xf]
  %v6657 = vld [vmem:[%s6651 + $0x14] sm:$0xf]
  %v6658 = vld [vmem:[%s6651 + $0x18] sm:$0xf]
  %v6659 = vld [vmem:[%s6651 + $0x1c] sm:$0xf]
  %v6660 = vld [vmem:[%s6651 + $0x20] sm:$0xf]
  %v6661 = vld [vmem:[%s6651 + $0x24] sm:$0xf]
  %v6662 = vld [vmem:[%s6651 + $0x28] sm:$0xf]
  %v6663 = vld [vmem:[%s6651 + $0x2c] sm:$0xf]
  %v6664 = vld [vmem:[%s6651 + $0x30] sm:$0xf]
  %v6665 = vld [vmem:[%s6651 + $0x34] sm:$0xf]
  %v6666 = vld [vmem:[%s6651 + $0x38] sm:$0xf]
  %v6667 = vld [vmem:[%s6651 + $0x3c] sm:$0xf]
  %s6668 = scalar_lea.vmem %s49, 384
  %v6669 = vld [vmem:[%s6668] sm:$0xf]
  %v6670 = vld [vmem:[%s6668 + $0x4] sm:$0xf]
  %v6671 = vld [vmem:[%s6668 + $0x8] sm:$0xf]
  %v6672 = vld [vmem:[%s6668 + $0xc] sm:$0xf]
  %v6673 = vld [vmem:[%s6668 + $0x10] sm:$0xf]
  %v6674 = vld [vmem:[%s6668 + $0x14] sm:$0xf]
  %v6675 = vld [vmem:[%s6668 + $0x18] sm:$0xf]
  %v6676 = vld [vmem:[%s6668 + $0x1c] sm:$0xf]
  %v6677 = vld [vmem:[%s6668 + $0x20] sm:$0xf]
  %v6678 = vld [vmem:[%s6668 + $0x24] sm:$0xf]
  %v6679 = vld [vmem:[%s6668 + $0x28] sm:$0xf]
  %v6680 = vld [vmem:[%s6668 + $0x2c] sm:$0xf]
  %v6681 = vld [vmem:[%s6668 + $0x30] sm:$0xf]
  %v6682 = vld [vmem:[%s6668 + $0x34] sm:$0xf]
  %v6683 = vld [vmem:[%s6668 + $0x38] sm:$0xf]
  %v6684 = vld [vmem:[%s6668 + $0x3c] sm:$0xf]
  %v6701 = vunpack.c.l.b16 %v6669
  %v6702 = vunpack.c.l.b16 %v6670
  %v6703 = vunpack.c.l.b16 %v6671
  %v6704 = vunpack.c.l.b16 %v6672
  %v6705 = vunpack.c.l.b16 %v6673
  %v6706 = vunpack.c.l.b16 %v6674
  %v6707 = vunpack.c.l.b16 %v6675
  %v6708 = vunpack.c.l.b16 %v6676
  %v6709 = vunpack.c.l.b16 %v6677
  %v6710 = vunpack.c.l.b16 %v6678
  %v6711 = vunpack.c.l.b16 %v6679
  %v6712 = vunpack.c.l.b16 %v6680
  %v6713 = vunpack.c.l.b16 %v6681
  %v6714 = vunpack.c.l.b16 %v6682
  %v6715 = vunpack.c.l.b16 %v6683
  %v6716 = vunpack.c.l.b16 %v6684
  %v6717 = vpack.c.b16 %v6702, %v6701
  %v6718 = vpack.c.b16 %v6704, %v6703
  %v6719 = vpack.c.b16 %v6706, %v6705
  %v6720 = vpack.c.b16 %v6708, %v6707
  %v6721 = vpack.c.b16 %v6710, %v6709
  %v6722 = vpack.c.b16 %v6712, %v6711
  %v6723 = vpack.c.b16 %v6714, %v6713
  %v6724 = vpack.c.b16 %v6716, %v6715
  %6733 = vmatpush.bf16.msra.mxu0 %v6724
  %6734 = vmatpush.bf16.msra.mxu0 %v6723
  %6735 = vmatpush.bf16.msra.mxu0 %v6722
  %6736 = vmatpush.bf16.msra.mxu0 %v6721
  %6737 = vmatpush.bf16.msra.mxu0 %v6720
  %6738 = vmatpush.bf16.msra.mxu0 %v6719
  %6739 = vmatpush.bf16.msra.mxu0 %v6718
  %6740 = vmatpush.bf16.msra.mxu0 %v6717
  %6741 = vmatmul.bf16.gmra.mxu0 %v6267
  %v6742 = vpop.f32.mrf.mxu0
  %v6743 = vadd.f32 0.0, %v6742
  %v6744 = vpop.f32.mrf.mxu0
  %v6745 = vadd.f32 0.0, %v6744
  %6746 = vmatmul.bf16.gmra.mxu0 %v6268
  %v6747 = vpop.f32.mrf.mxu0
  %v6748 = vadd.f32 0.0, %v6747
  %v6749 = vpop.f32.mrf.mxu0
  %v6750 = vadd.f32 0.0, %v6749
  %6751 = vmatmul.bf16.gmra.mxu0 %v6269
  %v6752 = vpop.f32.mrf.mxu0
  %v6753 = vadd.f32 0.0, %v6752
  %v6754 = vpop.f32.mrf.mxu0
  %v6755 = vadd.f32 0.0, %v6754
  %6756 = vmatmul.bf16.gmra.mxu0 %v6270
  %v6757 = vpop.f32.mrf.mxu0
  %v6758 = vadd.f32 0.0, %v6757
  %v6759 = vpop.f32.mrf.mxu0
  %6760 = vdwg.mxu0
  %v6777 = vunpack.c.l.b16 %v6652
  %v6778 = vunpack.c.l.b16 %v6653
  %v6779 = vunpack.c.l.b16 %v6654
  %v6780 = vunpack.c.l.b16 %v6655
  %v6781 = vunpack.c.l.b16 %v6656
  %v6782 = vunpack.c.l.b16 %v6657
  %v6783 = vunpack.c.l.b16 %v6658
  %v6784 = vunpack.c.l.b16 %v6659
  %v6785 = vunpack.c.l.b16 %v6660
  %v6786 = vunpack.c.l.b16 %v6661
  %v6787 = vunpack.c.l.b16 %v6662
  %v6788 = vunpack.c.l.b16 %v6663
  %v6789 = vunpack.c.l.b16 %v6664
  %v6790 = vunpack.c.l.b16 %v6665
  %v6791 = vunpack.c.l.b16 %v6666
  %v6792 = vunpack.c.l.b16 %v6667
  %v6793 = vpack.c.b16 %v6778, %v6777
  %v6794 = vpack.c.b16 %v6780, %v6779
  %v6795 = vpack.c.b16 %v6782, %v6781
  %v6796 = vpack.c.b16 %v6784, %v6783
  %v6797 = vpack.c.b16 %v6786, %v6785
  %v6798 = vpack.c.b16 %v6788, %v6787
  %v6799 = vpack.c.b16 %v6790, %v6789
  %v6800 = vpack.c.b16 %v6792, %v6791
  %6809 = vmatpush.bf16.msra.mxu0 %v6800
  %6810 = vmatpush.bf16.msra.mxu0 %v6799
  %6811 = vmatpush.bf16.msra.mxu0 %v6798
  %6812 = vmatpush.bf16.msra.mxu0 %v6797
  %6813 = vmatpush.bf16.msra.mxu0 %v6796
  %6814 = vmatpush.bf16.msra.mxu0 %v6795
  %6815 = vmatpush.bf16.msra.mxu0 %v6794
  %6816 = vmatpush.bf16.msra.mxu0 %v6793
  %6817 = vmatmul.bf16.gmra.mxu0 %v6143
  %v6818 = vpop.f32.mrf.mxu0
  %v6819 = vadd.f32 %v6743, %v6818
  %v6820 = vpop.f32.mrf.mxu0
  %v6821 = vadd.f32 %v6745, %v6820
  %6822 = vmatmul.bf16.gmra.mxu0 %v6144
  %v6823 = vpop.f32.mrf.mxu0
  %v6824 = vadd.f32 %v6748, %v6823
  %v6825 = vpop.f32.mrf.mxu0
  %v6826 = vadd.f32 %v6750, %v6825
  %6827 = vmatmul.bf16.gmra.mxu0 %v6145
  %v6828 = vpop.f32.mrf.mxu0
  %v6829 = vadd.f32 %v6753, %v6828
  %v6830 = vpop.f32.mrf.mxu0
  %v6831 = vadd.f32 %v6755, %v6830
  %6832 = vmatmul.bf16.gmra.mxu0 %v6146
  %v6833 = vpop.f32.mrf.mxu0
  %v6834 = vadd.f32 %v6758, %v6833
  %v6835 = vpop.f32.mrf.mxu0
  %6836 = vdwg.mxu0
  %s6837 = scalar_lea.vmem %s49, 128
  %v6838 = vld [vmem:[%s6837] sm:$0xf]
  %v6839 = vld [vmem:[%s6837 + $0x4] sm:$0xf]
  %v6840 = vld [vmem:[%s6837 + $0x8] sm:$0xf]
  %v6841 = vld [vmem:[%s6837 + $0xc] sm:$0xf]
  %v6842 = vld [vmem:[%s6837 + $0x10] sm:$0xf]
  %v6843 = vld [vmem:[%s6837 + $0x14] sm:$0xf]
  %v6844 = vld [vmem:[%s6837 + $0x18] sm:$0xf]
  %v6845 = vld [vmem:[%s6837 + $0x1c] sm:$0xf]
  %v6846 = vld [vmem:[%s6837 + $0x20] sm:$0xf]
  %v6847 = vld [vmem:[%s6837 + $0x24] sm:$0xf]
  %v6848 = vld [vmem:[%s6837 + $0x28] sm:$0xf]
  %v6849 = vld [vmem:[%s6837 + $0x2c] sm:$0xf]
  %v6850 = vld [vmem:[%s6837 + $0x30] sm:$0xf]
  %v6851 = vld [vmem:[%s6837 + $0x34] sm:$0xf]
  %v6852 = vld [vmem:[%s6837 + $0x38] sm:$0xf]
  %v6853 = vld [vmem:[%s6837 + $0x3c] sm:$0xf]
  %v6870 = vunpack.c.l.b16 %v6838
  %v6871 = vunpack.c.l.b16 %v6839
  %v6872 = vunpack.c.l.b16 %v6840
  %v6873 = vunpack.c.l.b16 %v6841
  %v6874 = vunpack.c.l.b16 %v6842
  %v6875 = vunpack.c.l.b16 %v6843
  %v6876 = vunpack.c.l.b16 %v6844
  %v6877 = vunpack.c.l.b16 %v6845
  %v6878 = vunpack.c.l.b16 %v6846
  %v6879 = vunpack.c.l.b16 %v6847
  %v6880 = vunpack.c.l.b16 %v6848
  %v6881 = vunpack.c.l.b16 %v6849
  %v6882 = vunpack.c.l.b16 %v6850
  %v6883 = vunpack.c.l.b16 %v6851
  %v6884 = vunpack.c.l.b16 %v6852
  %v6885 = vunpack.c.l.b16 %v6853
  %v6886 = vpack.c.b16 %v6871, %v6870
  %v6887 = vpack.c.b16 %v6873, %v6872
  %v6888 = vpack.c.b16 %v6875, %v6874
  %v6889 = vpack.c.b16 %v6877, %v6876
  %v6890 = vpack.c.b16 %v6879, %v6878
  %v6891 = vpack.c.b16 %v6881, %v6880
  %v6892 = vpack.c.b16 %v6883, %v6882
  %v6893 = vpack.c.b16 %v6885, %v6884
  %6902 = vmatpush.bf16.msra.mxu0 %v6893
  %6903 = vmatpush.bf16.msra.mxu0 %v6892
  %6904 = vmatpush.bf16.msra.mxu0 %v6891
  %6905 = vmatpush.bf16.msra.mxu0 %v6890
  %6906 = vmatpush.bf16.msra.mxu0 %v6889
  %6907 = vmatpush.bf16.msra.mxu0 %v6888
  %6908 = vmatpush.bf16.msra.mxu0 %v6887
  %6909 = vmatpush.bf16.msra.mxu0 %v6886
  %6910 = vmatmul.bf16.gmra.mxu0 %v6471
  %v6911 = vpop.f32.mrf.mxu0
  %v6912 = vadd.f32 0.0, %v6911
  %v6913 = vpop.f32.mrf.mxu0
  %v6914 = vadd.f32 0.0, %v6913
  %6915 = vmatmul.bf16.gmra.mxu0 %v6472
  %v6916 = vpop.f32.mrf.mxu0
  %v6917 = vadd.f32 0.0, %v6916
  %v6918 = vpop.f32.mrf.mxu0
  %v6919 = vadd.f32 0.0, %v6918
  %6920 = vmatmul.bf16.gmra.mxu0 %v6473
  %v6921 = vpop.f32.mrf.mxu0
  %v6922 = vadd.f32 0.0, %v6921
  %v6923 = vpop.f32.mrf.mxu0
  %v6924 = vadd.f32 0.0, %v6923
  %6925 = vmatmul.bf16.gmra.mxu0 %v6474
  %v6926 = vpop.f32.mrf.mxu0
  %v6927 = vadd.f32 0.0, %v6926
  %v6928 = vpop.f32.mrf.mxu0
  %6929 = vdwg.mxu0
  %v6930 = vadd.f32 %v6819, %v6912
  %v6931 = vadd.f32 %v6821, %v6914
  %v6932 = vadd.f32 %v6824, %v6917
  %v6933 = vadd.f32 %v6826, %v6919
  %v6934 = vadd.f32 %v6829, %v6922
  %v6935 = vadd.f32 %v6831, %v6924
  %v6936 = vadd.f32 %v6834, %v6927
  %v6937 = vld [vmem:[#allocation5 + $0x6] sm:$0xff]
  %v6938 = vld [vmem:[#allocation5 + $0xe] sm:$0xff]
  %v6939 = vld [vmem:[#allocation5 + $0x16] sm:$0xff]
  %v6940 = vld [vmem:[#allocation5 + $0x1e] sm:$0xff]
  %v6941 = vld [vmem:[#allocation5 + $0x26] sm:$0xff]
  %v6942 = vld [vmem:[#allocation5 + $0x2e] sm:$0xff]
  %v6943 = vld [vmem:[#allocation5 + $0x36] sm:$0x3]
  %v6944 = vpack.c.bf16 %v6938, %v6937
  %v6945 = vpack.c.bf16 %v6940, %v6939
  %v6946 = vpack.c.bf16 %v6942, %v6941
  %v6947 = vpack.c.bf16 %v6943, %v6943
  %v6948 = vld [vmem:[%s49] sm:$0xf]
  %v6949 = vld [vmem:[%s49 + $0x4] sm:$0xf]
  %v6950 = vld [vmem:[%s49 + $0x8] sm:$0xf]
  %v6951 = vld [vmem:[%s49 + $0xc] sm:$0xf]
  %v6952 = vld [vmem:[%s49 + $0x10] sm:$0xf]
  %v6953 = vld [vmem:[%s49 + $0x14] sm:$0xf]
  %v6954 = vld [vmem:[%s49 + $0x18] sm:$0xf]
  %v6955 = vld [vmem:[%s49 + $0x1c] sm:$0xf]
  %v6956 = vld [vmem:[%s49 + $0x20] sm:$0xf]
  %v6957 = vld [vmem:[%s49 + $0x24] sm:$0xf]
  %v6958 = vld [vmem:[%s49 + $0x28] sm:$0xf]
  %v6959 = vld [vmem:[%s49 + $0x2c] sm:$0xf]
  %v6960 = vld [vmem:[%s49 + $0x30] sm:$0xf]
  %v6961 = vld [vmem:[%s49 + $0x34] sm:$0xf]
  %v6962 = vld [vmem:[%s49 + $0x38] sm:$0xf]
  %v6963 = vld [vmem:[%s49 + $0x3c] sm:$0xf]
  %v6980 = vunpack.c.l.b16 %v6948
  %v6981 = vunpack.c.l.b16 %v6949
  %v6982 = vunpack.c.l.b16 %v6950
  %v6983 = vunpack.c.l.b16 %v6951
  %v6984 = vunpack.c.l.b16 %v6952
  %v6985 = vunpack.c.l.b16 %v6953
  %v6986 = vunpack.c.l.b16 %v6954
  %v6987 = vunpack.c.l.b16 %v6955
  %v6988 = vunpack.c.l.b16 %v6956
  %v6989 = vunpack.c.l.b16 %v6957
  %v6990 = vunpack.c.l.b16 %v6958
  %v6991 = vunpack.c.l.b16 %v6959
  %v6992 = vunpack.c.l.b16 %v6960
  %v6993 = vunpack.c.l.b16 %v6961
  %v6994 = vunpack.c.l.b16 %v6962
  %v6995 = vunpack.c.l.b16 %v6963
  %v6996 = vpack.c.b16 %v6981, %v6980
  %v6997 = vpack.c.b16 %v6983, %v6982
  %v6998 = vpack.c.b16 %v6985, %v6984
  %v6999 = vpack.c.b16 %v6987, %v6986
  %v7000 = vpack.c.b16 %v6989, %v6988
  %v7001 = vpack.c.b16 %v6991, %v6990
  %v7002 = vpack.c.b16 %v6993, %v6992
  %v7003 = vpack.c.b16 %v6995, %v6994
  %7012 = vmatpush.bf16.msra.mxu0 %v7003
  %7013 = vmatpush.bf16.msra.mxu0 %v7002
  %7014 = vmatpush.bf16.msra.mxu0 %v7001
  %7015 = vmatpush.bf16.msra.mxu0 %v7000
  %7016 = vmatpush.bf16.msra.mxu0 %v6999
  %7017 = vmatpush.bf16.msra.mxu0 %v6998
  %7018 = vmatpush.bf16.msra.mxu0 %v6997
  %7019 = vmatpush.bf16.msra.mxu0 %v6996
  %7020 = vmatmul.bf16.gmra.mxu0 %v6944
  %v7021 = vpop.f32.mrf.mxu0
  %v7022 = vadd.f32 0.0, %v7021
  %v7023 = vpop.f32.mrf.mxu0
  %v7024 = vadd.f32 0.0, %v7023
  %7025 = vmatmul.bf16.gmra.mxu0 %v6945
  %v7026 = vpop.f32.mrf.mxu0
  %v7027 = vadd.f32 0.0, %v7026
  %v7028 = vpop.f32.mrf.mxu0
  %v7029 = vadd.f32 0.0, %v7028
  %7030 = vmatmul.bf16.gmra.mxu0 %v6946
  %v7031 = vpop.f32.mrf.mxu0
  %v7032 = vadd.f32 0.0, %v7031
  %v7033 = vpop.f32.mrf.mxu0
  %v7034 = vadd.f32 0.0, %v7033
  %7035 = vmatmul.bf16.gmra.mxu0 %v6947
  %v7036 = vpop.f32.mrf.mxu0
  %v7037 = vadd.f32 0.0, %v7036
  %v7038 = vpop.f32.mrf.mxu0
  %7039 = vdwg.mxu0
  %v7040 = vadd.f32 %v6930, %v7022
  %v7041 = vadd.f32 %v6931, %v7024
  %v7042 = vadd.f32 %v6932, %v7027
  %v7043 = vadd.f32 %v6933, %v7029
  %v7044 = vadd.f32 %v6934, %v7032
  %v7045 = vadd.f32 %v6935, %v7034
  %v7046 = vadd.f32 %v6936, %v7037
  %v7047 = vadd.f32 %v7040, %v6165
  %v7048 = vadd.f32 %v7041, %v6165
  %v7049 = vadd.f32 %v7042, %v6165
  %v7050 = vadd.f32 %v7043, %v6165
  %v7051 = vadd.f32 %v7044, %v6165
  %v7052 = vadd.f32 %v7045, %v6165
  %v7053 = vadd.f32 %v7046, %v6165
  %v7054 = vld [vmem:[%s57] sm:$0xff]
  %v7055 = vld [vmem:[%s57 + $0x8] sm:$0xff]
  %v7056 = vld [vmem:[%s57 + $0x10] sm:$0xff]
  %v7057 = vld [vmem:[%s57 + $0x18] sm:$0xff]
  %v7058 = vld [vmem:[%s57 + $0x20] sm:$0xff]
  %v7059 = vld [vmem:[%s57 + $0x28] sm:$0xff]
  %v7060 = vld [vmem:[%s57 + $0x30] sm:$0x3]
  %7062 = vset.pattern.permute.xlu0 0
  %7063 = vperm.xlu0 %7062, %v7054
  %v7064 = vpop.permute.xlu0 %7063
  %7067 = vset.pattern.permute.xlu0 0
  %7068 = vperm.xlu0 %7067, %v7055
  %v7069 = vpop.permute.xlu0 %7068
  %7072 = vset.pattern.permute.xlu0 0
  %7073 = vperm.xlu0 %7072, %v7056
  %v7074 = vpop.permute.xlu0 %7073
  %7077 = vset.pattern.permute.xlu0 0
  %7078 = vperm.xlu0 %7077, %v7057
  %v7079 = vpop.permute.xlu0 %7078
  %7082 = vset.pattern.permute.xlu0 0
  %7083 = vperm.xlu0 %7082, %v7058
  %v7084 = vpop.permute.xlu0 %7083
  %7087 = vset.pattern.permute.xlu0 0
  %7088 = vperm.xlu0 %7087, %v7059
  %v7089 = vpop.permute.xlu0 %7088
  %7092 = vset.pattern.permute.xlu0 0
  %7093 = vperm.xlu0 %7092, %v7060
  %v7094 = vpop.permute.xlu0 %7093
  %v7096 = vmul.f32 %v6225, %v7064
  %v7097 = vmul.f32 %v6227, %v7069
  %v7098 = vmul.f32 %v6230, %v7074
  %v7099 = vmul.f32 %v6232, %v7079
  %v7100 = vmul.f32 %v6235, %v7084
  %v7101 = vmul.f32 %v6237, %v7089
  %v7102 = vmul.f32 %v6240, %v7094
  %v7103 = vadd.f32 %v7096, %v7097
  %v7104 = vadd.f32 %v7103, %v7098
  %v7105 = vadd.f32 %v7104, %v7099
  %v7106 = vadd.f32 %v7105, %v7100
  %v7107 = vadd.f32 %v7106, %v7101
  %v7108 = vsel %vm1926, %v7102, 0.0
  %v7109 = vadd.f32 %v7107, %v7108
  %v7110 = vrot.slane %v7109, 4
  %v7111 = vadd.f32 %v7109, %v7110
  %v7112 = vrot.slane %v7111, 2
  %v7113 = vadd.f32 %v7111, %v7112
  %v7114 = vrot.slane %v7113, 1
  %v7115 = vadd.f32 %v7113, %v7114
  %v7116 = vadd.f32 %v7115, 0.0
  %v7117 = vmul.f32 %v7096, %v6225
  %v7118 = vmul.f32 %v7097, %v6227
  %v7119 = vmul.f32 %v7098, %v6230
  %v7120 = vmul.f32 %v7099, %v6232
  %v7121 = vmul.f32 %v7100, %v6235
  %v7122 = vmul.f32 %v7101, %v6237
  %v7123 = vmul.f32 %v7102, %v6240
  %v7124 = vadd.f32 %v7117, %v7118
  %v7125 = vadd.f32 %v7124, %v7119
  %v7126 = vadd.f32 %v7125, %v7120
  %v7127 = vadd.f32 %v7126, %v7121
  %v7128 = vadd.f32 %v7127, %v7122
  %v7129 = vsel %vm1926, %v7123, 0.0
  %v7130 = vadd.f32 %v7128, %v7129
  %v7131 = vrot.slane %v7130, 4
  %v7132 = vadd.f32 %v7130, %v7131
  %v7133 = vrot.slane %v7132, 2
  %v7134 = vadd.f32 %v7132, %v7133
  %v7135 = vrot.slane %v7134, 1
  %v7136 = vadd.f32 %v7134, %v7135
  %v7137 = vadd.f32 %v7136, 0.0
  %v7138 = vmul.f32 %v6440, %v7064
  %v7139 = vmul.f32 %v6441, %v7069
  %v7140 = vmul.f32 %v6442, %v7074
  %v7141 = vmul.f32 %v6443, %v7079
  %v7142 = vmul.f32 %v6444, %v7084
  %v7143 = vmul.f32 %v6445, %v7089
  %v7144 = vmul.f32 %v6446, %v7094
  %v7145 = vadd.f32 %v7138, %v7139
  %v7146 = vadd.f32 %v7145, %v7140
  %v7147 = vadd.f32 %v7146, %v7141
  %v7148 = vadd.f32 %v7147, %v7142
  %v7149 = vadd.f32 %v7148, %v7143
  %v7150 = vsel %vm1926, %v7144, 0.0
  %v7151 = vadd.f32 %v7149, %v7150
  %v7152 = vrot.slane %v7151, 4
  %v7153 = vadd.f32 %v7151, %v7152
  %v7154 = vrot.slane %v7153, 2
  %v7155 = vadd.f32 %v7153, %v7154
  %v7156 = vrot.slane %v7155, 1
  %v7157 = vadd.f32 %v7155, %v7156
  %v7158 = vadd.f32 %v7116, %v7157
  %v7159 = vmul.f32 %v7138, %v6440
  %v7160 = vmul.f32 %v7139, %v6441
  %v7161 = vmul.f32 %v7140, %v6442
  %v7162 = vmul.f32 %v7141, %v6443
  %v7163 = vmul.f32 %v7142, %v6444
  %v7164 = vmul.f32 %v7143, %v6445
  %v7165 = vmul.f32 %v7144, %v6446
  %v7166 = vadd.f32 %v7159, %v7160
  %v7167 = vadd.f32 %v7166, %v7161
  %v7168 = vadd.f32 %v7167, %v7162
  %v7169 = vadd.f32 %v7168, %v7163
  %v7170 = vadd.f32 %v7169, %v7164
  %v7171 = vsel %vm1926, %v7165, 0.0
  %v7172 = vadd.f32 %v7170, %v7171
  %v7173 = vrot.slane %v7172, 4
  %v7174 = vadd.f32 %v7172, %v7173
  %v7175 = vrot.slane %v7174, 2
  %v7176 = vadd.f32 %v7174, %v7175
  %v7177 = vrot.slane %v7176, 1
  %v7178 = vadd.f32 %v7176, %v7177
  %v7179 = vadd.f32 %v7137, %v7178
  %v7180 = vmul.f32 %v6644, %v7064
  %v7181 = vmul.f32 %v6645, %v7069
  %v7182 = vmul.f32 %v6646, %v7074
  %v7183 = vmul.f32 %v6647, %v7079
  %v7184 = vmul.f32 %v6648, %v7084
  %v7185 = vmul.f32 %v6649, %v7089
  %v7186 = vmul.f32 %v6650, %v7094
  %v7187 = vadd.f32 %v7180, %v7181
  %v7188 = vadd.f32 %v7187, %v7182
  %v7189 = vadd.f32 %v7188, %v7183
  %v7190 = vadd.f32 %v7189, %v7184
  %v7191 = vadd.f32 %v7190, %v7185
  %v7192 = vsel %vm1926, %v7186, 0.0
  %v7193 = vadd.f32 %v7191, %v7192
  %v7194 = vrot.slane %v7193, 4
  %v7195 = vadd.f32 %v7193, %v7194
  %v7196 = vrot.slane %v7195, 2
  %v7197 = vadd.f32 %v7195, %v7196
  %v7198 = vrot.slane %v7197, 1
  %v7199 = vadd.f32 %v7197, %v7198
  %v7200 = vadd.f32 %v7158, %v7199
  %v7201 = vmul.f32 %v7180, %v6644
  %v7202 = vmul.f32 %v7181, %v6645
  %v7203 = vmul.f32 %v7182, %v6646
  %v7204 = vmul.f32 %v7183, %v6647
  %v7205 = vmul.f32 %v7184, %v6648
  %v7206 = vmul.f32 %v7185, %v6649
  %v7207 = vmul.f32 %v7186, %v6650
  %v7208 = vadd.f32 %v7201, %v7202
  %v7209 = vadd.f32 %v7208, %v7203
  %v7210 = vadd.f32 %v7209, %v7204
  %v7211 = vadd.f32 %v7210, %v7205
  %v7212 = vadd.f32 %v7211, %v7206
  %v7213 = vsel %vm1926, %v7207, 0.0
  %v7214 = vadd.f32 %v7212, %v7213
  %v7215 = vrot.slane %v7214, 4
  %v7216 = vadd.f32 %v7214, %v7215
  %v7217 = vrot.slane %v7216, 2
  %v7218 = vadd.f32 %v7216, %v7217
  %v7219 = vrot.slane %v7218, 1
  %v7220 = vadd.f32 %v7218, %v7219
  %v7221 = vadd.f32 %v7179, %v7220
  %v7222 = vmul.f32 %v7047, %v7064
  %v7223 = vmul.f32 %v7048, %v7069
  %v7224 = vmul.f32 %v7049, %v7074
  %v7225 = vmul.f32 %v7050, %v7079
  %v7226 = vmul.f32 %v7051, %v7084
  %v7227 = vmul.f32 %v7052, %v7089
  %v7228 = vmul.f32 %v7053, %v7094
  %v7229 = vadd.f32 %v7222, %v7223
  %v7230 = vadd.f32 %v7229, %v7224
  %v7231 = vadd.f32 %v7230, %v7225
  %v7232 = vadd.f32 %v7231, %v7226
  %v7233 = vadd.f32 %v7232, %v7227
  %v7234 = vsel %vm1926, %v7228, 0.0
  %v7235 = vadd.f32 %v7233, %v7234
  %v7236 = vrot.slane %v7235, 4
  %v7237 = vadd.f32 %v7235, %v7236
  %v7238 = vrot.slane %v7237, 2
  %v7239 = vadd.f32 %v7237, %v7238
  %v7240 = vrot.slane %v7239, 1
  %v7241 = vadd.f32 %v7239, %v7240
  %v7242 = vadd.f32 %v7200, %v7241
  %v7243 = vmul.f32 %v7222, %v7047
  %v7244 = vmul.f32 %v7223, %v7048
  %v7245 = vmul.f32 %v7224, %v7049
  %v7246 = vmul.f32 %v7225, %v7050
  %v7247 = vmul.f32 %v7226, %v7051
  %v7248 = vmul.f32 %v7227, %v7052
  %v7249 = vmul.f32 %v7228, %v7053
  %v7250 = vadd.f32 %v7243, %v7244
  %v7251 = vadd.f32 %v7250, %v7245
  %v7252 = vadd.f32 %v7251, %v7246
  %v7253 = vadd.f32 %v7252, %v7247
  %v7254 = vadd.f32 %v7253, %v7248
  %v7255 = vsel %vm1926, %v7249, 0.0
  %v7256 = vadd.f32 %v7254, %v7255
  %v7257 = vrot.slane %v7256, 4
  %v7258 = vadd.f32 %v7256, %v7257
  %v7259 = vrot.slane %v7258, 2
  %v7260 = vadd.f32 %v7258, %v7259
  %v7261 = vrot.slane %v7260, 1
  %v7262 = vadd.f32 %v7260, %v7261
  %v7263 = vadd.f32 %v7221, %v7262
  %v7264 = vmul.f32 %v7242, 0.0078125
  %v7265 = vmul.f32 %v7263, 0.0078125
  %v7266 = vmul.f32 %v7264, %v7264
  %v7267 = vsub.f32 %v7265, %v7266
  %v7268 = vmax.f32 %v7267, 0.0
  %v7269 = vadd.f32 %v7268, 1e-05
  %v7270 = vrsqrt.pop %v7269
  %v7271 = vmul.f32 %v7270, %v7269
  %v7272 = vmul.f32 %v7271, %v7270
  %v7273 = vmul.f32 0.5, %v7272
  %v7274 = vsub.f32 1.5, %v7273
  %v7275 = vmul.f32 %v7270, %v7274
  %vm7276 = vweird.f32 %v7269
  %vm7277 = vweird.f32 %v7270
  %vm7278 = vmor %vm7276, %vm7277
  %v7279 = vsel %vm7278, %v7270, %v7275
  %v7280 = vld [vmem:[%s53] sm:$0x1]
  %v7281 = vld [vmem:[%s55] sm:$0x1]
  %v7282 = vsub.f32 %v6225, %v7264
  %v7283 = vsub.f32 %v6227, %v7264
  %v7284 = vsub.f32 %v6230, %v7264
  %v7285 = vsub.f32 %v6232, %v7264
  %v7286 = vsub.f32 %v6235, %v7264
  %v7287 = vsub.f32 %v6237, %v7264
  %v7288 = vsub.f32 %v6240, %v7264
  %v7289 = vmul.f32 %v7282, %v7279
  %v7290 = vmul.f32 %v7283, %v7279
  %v7291 = vmul.f32 %v7284, %v7279
  %v7292 = vmul.f32 %v7285, %v7279
  %v7293 = vmul.f32 %v7286, %v7279
  %v7294 = vmul.f32 %v7287, %v7279
  %v7295 = vmul.f32 %v7288, %v7279
  %v7297 = vperm.slane %v7280, 0
  %v7299 = vmul.f32 %v7289, %v7297
  %v7300 = vmul.f32 %v7290, %v7297
  %v7301 = vmul.f32 %v7291, %v7297
  %v7302 = vmul.f32 %v7292, %v7297
  %v7303 = vmul.f32 %v7293, %v7297
  %v7304 = vmul.f32 %v7294, %v7297
  %v7305 = vmul.f32 %v7295, %v7297
  %v7307 = vperm.slane %v7281, 0
  %v7309 = vadd.f32 %v7299, %v7307
  %v7310 = vadd.f32 %v7300, %v7307
  %v7311 = vadd.f32 %v7301, %v7307
  %v7312 = vadd.f32 %v7302, %v7307
  %v7313 = vadd.f32 %v7303, %v7307
  %v7314 = vadd.f32 %v7304, %v7307
  %v7315 = vadd.f32 %v7305, %v7307
  %v7316 = vmax.f32 %v7309, 0.0
  %v7317 = vmax.f32 %v7310, 0.0
  %v7318 = vmax.f32 %v7311, 0.0
  %v7319 = vmax.f32 %v7312, 0.0
  %v7320 = vmax.f32 %v7313, 0.0
  %v7321 = vmax.f32 %v7314, 0.0
  %v7322 = vmax.f32 %v7315, 0.0
  %v7323 = vsub.f32 %v6440, %v7264
  %v7324 = vsub.f32 %v6441, %v7264
  %v7325 = vsub.f32 %v6442, %v7264
  %v7326 = vsub.f32 %v6443, %v7264
  %v7327 = vsub.f32 %v6444, %v7264
  %v7328 = vsub.f32 %v6445, %v7264
  %v7329 = vsub.f32 %v6446, %v7264
  %v7330 = vmul.f32 %v7323, %v7279
  %v7331 = vmul.f32 %v7324, %v7279
  %v7332 = vmul.f32 %v7325, %v7279
  %v7333 = vmul.f32 %v7326, %v7279
  %v7334 = vmul.f32 %v7327, %v7279
  %v7335 = vmul.f32 %v7328, %v7279
  %v7336 = vmul.f32 %v7329, %v7279
  %v7337 = vmul.f32 %v7330, %v7297
  %v7338 = vmul.f32 %v7331, %v7297
  %v7339 = vmul.f32 %v7332, %v7297
  %v7340 = vmul.f32 %v7333, %v7297
  %v7341 = vmul.f32 %v7334, %v7297
  %v7342 = vmul.f32 %v7335, %v7297
  %v7343 = vmul.f32 %v7336, %v7297
  %v7344 = vadd.f32 %v7337, %v7307
  %v7345 = vadd.f32 %v7338, %v7307
  %v7346 = vadd.f32 %v7339, %v7307
  %v7347 = vadd.f32 %v7340, %v7307
  %v7348 = vadd.f32 %v7341, %v7307
  %v7349 = vadd.f32 %v7342, %v7307
  %v7350 = vadd.f32 %v7343, %v7307
  %v7351 = vmax.f32 %v7344, 0.0
  %v7352 = vmax.f32 %v7345, 0.0
  %v7353 = vmax.f32 %v7346, 0.0
  %v7354 = vmax.f32 %v7347, 0.0
  %v7355 = vmax.f32 %v7348, 0.0
  %v7356 = vmax.f32 %v7349, 0.0
  %v7357 = vmax.f32 %v7350, 0.0
  %v7358 = vsub.f32 %v6644, %v7264
  %v7359 = vsub.f32 %v6645, %v7264
  %v7360 = vsub.f32 %v6646, %v7264
  %v7361 = vsub.f32 %v6647, %v7264
  %v7362 = vsub.f32 %v6648, %v7264
  %v7363 = vsub.f32 %v6649, %v7264
  %v7364 = vsub.f32 %v6650, %v7264
  %v7365 = vmul.f32 %v7358, %v7279
  %v7366 = vmul.f32 %v7359, %v7279
  %v7367 = vmul.f32 %v7360, %v7279
  %v7368 = vmul.f32 %v7361, %v7279
  %v7369 = vmul.f32 %v7362, %v7279
  %v7370 = vmul.f32 %v7363, %v7279
  %v7371 = vmul.f32 %v7364, %v7279
  %v7372 = vmul.f32 %v7365, %v7297
  %v7373 = vmul.f32 %v7366, %v7297
  %v7374 = vmul.f32 %v7367, %v7297
  %v7375 = vmul.f32 %v7368, %v7297
  %v7376 = vmul.f32 %v7369, %v7297
  %v7377 = vmul.f32 %v7370, %v7297
  %v7378 = vmul.f32 %v7371, %v7297
  %v7379 = vadd.f32 %v7372, %v7307
  %v7380 = vadd.f32 %v7373, %v7307
  %v7381 = vadd.f32 %v7374, %v7307
  %v7382 = vadd.f32 %v7375, %v7307
  %v7383 = vadd.f32 %v7376, %v7307
  %v7384 = vadd.f32 %v7377, %v7307
  %v7385 = vadd.f32 %v7378, %v7307
  %v7386 = vmax.f32 %v7379, 0.0
  %v7387 = vmax.f32 %v7380, 0.0
  %v7388 = vmax.f32 %v7381, 0.0
  %v7389 = vmax.f32 %v7382, 0.0
  %v7390 = vmax.f32 %v7383, 0.0
  %v7391 = vmax.f32 %v7384, 0.0
  %v7392 = vmax.f32 %v7385, 0.0
  %v7393 = vsub.f32 %v7047, %v7264
  %v7394 = vsub.f32 %v7048, %v7264
  %v7395 = vsub.f32 %v7049, %v7264
  %v7396 = vsub.f32 %v7050, %v7264
  %v7397 = vsub.f32 %v7051, %v7264
  %v7398 = vsub.f32 %v7052, %v7264
  %v7399 = vsub.f32 %v7053, %v7264
  %v7400 = vmul.f32 %v7393, %v7279
  %v7401 = vmul.f32 %v7394, %v7279
  %v7402 = vmul.f32 %v7395, %v7279
  %v7403 = vmul.f32 %v7396, %v7279
  %v7404 = vmul.f32 %v7397, %v7279
  %v7405 = vmul.f32 %v7398, %v7279
  %v7406 = vmul.f32 %v7399, %v7279
  %v7407 = vmul.f32 %v7400, %v7297
  %v7408 = vmul.f32 %v7401, %v7297
  %v7409 = vmul.f32 %v7402, %v7297
  %v7410 = vmul.f32 %v7403, %v7297
  %v7411 = vmul.f32 %v7404, %v7297
  %v7412 = vmul.f32 %v7405, %v7297
  %v7413 = vmul.f32 %v7406, %v7297
  %v7414 = vadd.f32 %v7407, %v7307
  %v7415 = vadd.f32 %v7408, %v7307
  %v7416 = vadd.f32 %v7409, %v7307
  %v7417 = vadd.f32 %v7410, %v7307
  %v7418 = vadd.f32 %v7411, %v7307
  %v7419 = vadd.f32 %v7412, %v7307
  %v7420 = vadd.f32 %v7413, %v7307
  %v7421 = vmax.f32 %v7414, 0.0
  %v7422 = vmax.f32 %v7415, 0.0
  %v7423 = vmax.f32 %v7416, 0.0
  %v7424 = vmax.f32 %v7417, 0.0
  %v7425 = vmax.f32 %v7418, 0.0
  %v7426 = vmax.f32 %v7419, 0.0
  %v7427 = vmax.f32 %v7420, 0.0
  %v7428 = vpack.c.bf16 %v7317, %v7316
  %v7429 = vpack.c.bf16 %v7319, %v7318
  %v7430 = vpack.c.bf16 %v7321, %v7320
  %v7431 = vpack.c.bf16 %v7322, %v7322
  %v7432 = vpack.c.bf16 %v7352, %v7351
  %v7433 = vpack.c.bf16 %v7354, %v7353
  %v7434 = vpack.c.bf16 %v7356, %v7355
  %v7435 = vpack.c.bf16 %v7357, %v7357
  %v7436 = vpack.c.bf16 %v7387, %v7386
  %v7437 = vpack.c.bf16 %v7389, %v7388
  %v7438 = vpack.c.bf16 %v7391, %v7390
  %v7439 = vpack.c.bf16 %v7392, %v7392
  %v7440 = vpack.c.bf16 %v7422, %v7421
  %v7441 = vpack.c.bf16 %v7424, %v7423
  %v7442 = vpack.c.bf16 %v7426, %v7425
  %v7443 = vpack.c.bf16 %v7427, %v7427
  %v7444 = vld [vmem:[%s65] sm:$0xf]
  %v7445 = vld [vmem:[%s65 + $0x4] sm:$0xf]
  %v7446 = vld [vmem:[%s65 + $0x8] sm:$0xf]
  %v7447 = vld [vmem:[%s65 + $0xc] sm:$0xf]
  %v7448 = vld [vmem:[%s65 + $0x10] sm:$0xf]
  %v7449 = vld [vmem:[%s65 + $0x14] sm:$0xf]
  %v7450 = vld [vmem:[%s65 + $0x18] sm:$0xf]
  %v7451 = vld [vmem:[%s65 + $0x1c] sm:$0xf]
  %v7452 = vld [vmem:[%s65 + $0x20] sm:$0xf]
  %v7453 = vld [vmem:[%s65 + $0x24] sm:$0xf]
  %v7454 = vld [vmem:[%s65 + $0x28] sm:$0xf]
  %v7455 = vld [vmem:[%s65 + $0x2c] sm:$0xf]
  %v7456 = vld [vmem:[%s65 + $0x30] sm:$0xf]
  %v7457 = vld [vmem:[%s65 + $0x34] sm:$0xf]
  %v7458 = vld [vmem:[%s65 + $0x38] sm:$0xf]
  %v7459 = vld [vmem:[%s65 + $0x3c] sm:$0xf]
  %v7460 = vld [vmem:[%s65 + $0x40] sm:$0xf]
  %v7461 = vld [vmem:[%s65 + $0x44] sm:$0xf]
  %v7462 = vld [vmem:[%s65 + $0x48] sm:$0xf]
  %v7463 = vld [vmem:[%s65 + $0x4c] sm:$0xf]
  %v7464 = vld [vmem:[%s65 + $0x50] sm:$0xf]
  %v7465 = vld [vmem:[%s65 + $0x54] sm:$0xf]
  %s7466 = scalar_lea.vmem %s65, 88
  %v7467 = vld [vmem:[%s7466] sm:$0xf]
  %v7468 = vld [vmem:[%s7466 + $0x4] sm:$0xf]
  %v7469 = vld [vmem:[%s7466 + $0x8] sm:$0xf]
  %v7470 = vld [vmem:[%s7466 + $0xc] sm:$0xf]
  %v7471 = vld [vmem:[%s7466 + $0x10] sm:$0xf]
  %v7472 = vld [vmem:[%s7466 + $0x14] sm:$0xf]
  %v7473 = vld [vmem:[%s7466 + $0x18] sm:$0xf]
  %v7474 = vld [vmem:[%s7466 + $0x1c] sm:$0xf]
  %v7475 = vld [vmem:[%s7466 + $0x20] sm:$0xf]
  %v7476 = vld [vmem:[%s7466 + $0x24] sm:$0xf]
  %v7477 = vld [vmem:[%s7466 + $0x28] sm:$0xf]
  %v7478 = vld [vmem:[%s7466 + $0x2c] sm:$0xf]
  %v7479 = vld [vmem:[%s7466 + $0x30] sm:$0xf]
  %v7480 = vld [vmem:[%s7466 + $0x34] sm:$0xf]
  %v7481 = vld [vmem:[%s7466 + $0x38] sm:$0xf]
  %v7482 = vld [vmem:[%s7466 + $0x3c] sm:$0xf]
  %v7483 = vld [vmem:[%s7466 + $0x40] sm:$0xf]
  %v7484 = vld [vmem:[%s7466 + $0x44] sm:$0xf]
  %v7485 = vld [vmem:[%s7466 + $0x48] sm:$0xf]
  %v7486 = vld [vmem:[%s7466 + $0x4c] sm:$0xf]
  %v7487 = vld [vmem:[%s7466 + $0x50] sm:$0xf]
  %v7488 = vld [vmem:[%s7466 + $0x54] sm:$0xf]
  %v7511 = vunpack.c.l.b16 %v7467
  %v7512 = vunpack.c.l.b16 %v7468
  %v7513 = vunpack.c.l.b16 %v7469
  %v7514 = vunpack.c.l.b16 %v7470
  %v7515 = vunpack.c.l.b16 %v7471
  %v7516 = vunpack.c.l.b16 %v7472
  %v7517 = vunpack.c.l.b16 %v7473
  %v7518 = vunpack.c.l.b16 %v7474
  %v7519 = vunpack.c.l.b16 %v7475
  %v7520 = vunpack.c.l.b16 %v7476
  %v7521 = vunpack.c.l.b16 %v7477
  %v7522 = vunpack.c.l.b16 %v7478
  %v7523 = vunpack.c.l.b16 %v7479
  %v7524 = vunpack.c.l.b16 %v7480
  %v7525 = vunpack.c.l.b16 %v7481
  %v7526 = vunpack.c.l.b16 %v7482
  %v7527 = vunpack.c.l.b16 %v7483
  %v7528 = vunpack.c.l.b16 %v7484
  %v7529 = vunpack.c.l.b16 %v7485
  %v7530 = vunpack.c.l.b16 %v7486
  %v7531 = vunpack.c.l.b16 %v7487
  %v7532 = vunpack.c.l.b16 %v7488
  %v7533 = vpack.c.b16 %v7512, %v7511
  %v7534 = vpack.c.b16 %v7514, %v7513
  %v7535 = vpack.c.b16 %v7516, %v7515
  %v7536 = vpack.c.b16 %v7518, %v7517
  %v7537 = vpack.c.b16 %v7520, %v7519
  %v7538 = vpack.c.b16 %v7522, %v7521
  %v7539 = vpack.c.b16 %v7524, %v7523
  %v7540 = vpack.c.b16 %v7526, %v7525
  %v7541 = vpack.c.b16 %v7528, %v7527
  %v7542 = vpack.c.b16 %v7530, %v7529
  %v7543 = vpack.c.b16 %v7532, %v7531
  %v7545 = vsel %vm3745, %v7533, 0
  %v7548 = vsel %vm3745, %v7534, 0
  %v7551 = vsel %vm3745, %v7535, 0
  %v7554 = vsel %vm3745, %v7536, 0
  %v7557 = vsel %vm3745, %v7537, 0
  %v7560 = vsel %vm3745, %v7538, 0
  %v7563 = vsel %vm3745, %v7539, 0
  %v7566 = vsel %vm3745, %v7540, 0
  %v7569 = vsel %vm3745, %v7541, 0
  %v7572 = vsel %vm3745, %v7542, 0
  %v7575 = vsel %vm3745, %v7543, 0
  %v7578 = vsel %vm2176, %v7435, 0
  %7580 = vmatpush.bf16.msra.mxu0 0
  %7581 = vmatpush.bf16.msra.mxu0 0
  %7582 = vmatpush.bf16.msra.mxu0 0
  %7583 = vmatpush.bf16.msra.mxu0 0
  %7584 = vmatpush.bf16.msra.mxu0 %v7578
  %7585 = vmatpush.bf16.msra.mxu0 %v7434
  %7586 = vmatpush.bf16.msra.mxu0 %v7433
  %7587 = vmatpush.bf16.msra.mxu0 %v7432
  %7588 = vmatmul.bf16.gmra.mxu0 %v7545
  %v7589 = vpop.f32.mrf.mxu0
  %v7590 = vadd.f32 0.0, %v7589
  %v7591 = vpop.f32.mrf.mxu0
  %v7592 = vadd.f32 0.0, %v7591
  %7593 = vmatmul.bf16.gmra.mxu0 %v7548
  %v7594 = vpop.f32.mrf.mxu0
  %v7595 = vadd.f32 0.0, %v7594
  %v7596 = vpop.f32.mrf.mxu0
  %v7597 = vadd.f32 0.0, %v7596
  %7598 = vmatmul.bf16.gmra.mxu0 %v7551
  %v7599 = vpop.f32.mrf.mxu0
  %v7600 = vadd.f32 0.0, %v7599
  %v7601 = vpop.f32.mrf.mxu0
  %v7602 = vadd.f32 0.0, %v7601
  %7603 = vmatmul.bf16.gmra.mxu0 %v7554
  %v7604 = vpop.f32.mrf.mxu0
  %v7605 = vadd.f32 0.0, %v7604
  %v7606 = vpop.f32.mrf.mxu0
  %v7607 = vadd.f32 0.0, %v7606
  %7608 = vmatmul.bf16.gmra.mxu0 %v7557
  %v7609 = vpop.f32.mrf.mxu0
  %v7610 = vadd.f32 0.0, %v7609
  %v7611 = vpop.f32.mrf.mxu0
  %v7612 = vadd.f32 0.0, %v7611
  %7613 = vmatmul.bf16.gmra.mxu0 %v7560
  %v7614 = vpop.f32.mrf.mxu0
  %v7615 = vadd.f32 0.0, %v7614
  %v7616 = vpop.f32.mrf.mxu0
  %v7617 = vadd.f32 0.0, %v7616
  %7618 = vmatmul.bf16.gmra.mxu0 %v7563
  %v7619 = vpop.f32.mrf.mxu0
  %v7620 = vadd.f32 0.0, %v7619
  %v7621 = vpop.f32.mrf.mxu0
  %v7622 = vadd.f32 0.0, %v7621
  %7623 = vmatmul.bf16.gmra.mxu0 %v7566
  %v7624 = vpop.f32.mrf.mxu0
  %v7625 = vadd.f32 0.0, %v7624
  %v7626 = vpop.f32.mrf.mxu0
  %v7627 = vadd.f32 0.0, %v7626
  %7628 = vmatmul.bf16.gmra.mxu0 %v7569
  %v7629 = vpop.f32.mrf.mxu0
  %v7630 = vadd.f32 0.0, %v7629
  %v7631 = vpop.f32.mrf.mxu0
  %v7632 = vadd.f32 0.0, %v7631
  %7633 = vmatmul.bf16.gmra.mxu0 %v7572
  %v7634 = vpop.f32.mrf.mxu0
  %v7635 = vadd.f32 0.0, %v7634
  %v7636 = vpop.f32.mrf.mxu0
  %v7637 = vadd.f32 0.0, %v7636
  %7638 = vmatmul.bf16.gmra.mxu0 %v7575
  %v7639 = vpop.f32.mrf.mxu0
  %v7640 = vadd.f32 0.0, %v7639
  %v7641 = vpop.f32.mrf.mxu0
  %v7642 = vadd.f32 0.0, %v7641
  %7643 = vdwg.mxu0
  %v7666 = vunpack.c.l.b16 %v7444
  %v7667 = vunpack.c.l.b16 %v7445
  %v7668 = vunpack.c.l.b16 %v7446
  %v7669 = vunpack.c.l.b16 %v7447
  %v7670 = vunpack.c.l.b16 %v7448
  %v7671 = vunpack.c.l.b16 %v7449
  %v7672 = vunpack.c.l.b16 %v7450
  %v7673 = vunpack.c.l.b16 %v7451
  %v7674 = vunpack.c.l.b16 %v7452
  %v7675 = vunpack.c.l.b16 %v7453
  %v7676 = vunpack.c.l.b16 %v7454
  %v7677 = vunpack.c.l.b16 %v7455
  %v7678 = vunpack.c.l.b16 %v7456
  %v7679 = vunpack.c.l.b16 %v7457
  %v7680 = vunpack.c.l.b16 %v7458
  %v7681 = vunpack.c.l.b16 %v7459
  %v7682 = vunpack.c.l.b16 %v7460
  %v7683 = vunpack.c.l.b16 %v7461
  %v7684 = vunpack.c.l.b16 %v7462
  %v7685 = vunpack.c.l.b16 %v7463
  %v7686 = vunpack.c.l.b16 %v7464
  %v7687 = vunpack.c.l.b16 %v7465
  %v7688 = vpack.c.b16 %v7667, %v7666
  %v7689 = vpack.c.b16 %v7669, %v7668
  %v7690 = vpack.c.b16 %v7671, %v7670
  %v7691 = vpack.c.b16 %v7673, %v7672
  %v7692 = vpack.c.b16 %v7675, %v7674
  %v7693 = vpack.c.b16 %v7677, %v7676
  %v7694 = vpack.c.b16 %v7679, %v7678
  %v7695 = vpack.c.b16 %v7681, %v7680
  %v7696 = vpack.c.b16 %v7683, %v7682
  %v7697 = vpack.c.b16 %v7685, %v7684
  %v7698 = vpack.c.b16 %v7687, %v7686
  %v7700 = vsel %vm3745, %v7688, 0
  %v7703 = vsel %vm3745, %v7689, 0
  %v7706 = vsel %vm3745, %v7690, 0
  %v7709 = vsel %vm3745, %v7691, 0
  %v7712 = vsel %vm3745, %v7692, 0
  %v7715 = vsel %vm3745, %v7693, 0
  %v7718 = vsel %vm3745, %v7694, 0
  %v7721 = vsel %vm3745, %v7695, 0
  %v7724 = vsel %vm3745, %v7696, 0
  %v7727 = vsel %vm3745, %v7697, 0
  %v7730 = vsel %vm3745, %v7698, 0
  %v7733 = vsel %vm2176, %v7431, 0
  %7735 = vmatpush.bf16.msra.mxu0 0
  %7736 = vmatpush.bf16.msra.mxu0 0
  %7737 = vmatpush.bf16.msra.mxu0 0
  %7738 = vmatpush.bf16.msra.mxu0 0
  %7739 = vmatpush.bf16.msra.mxu0 %v7733
  %7740 = vmatpush.bf16.msra.mxu0 %v7430
  %7741 = vmatpush.bf16.msra.mxu0 %v7429
  %7742 = vmatpush.bf16.msra.mxu0 %v7428
  %7743 = vmatmul.bf16.gmra.mxu0 %v7700
  %v7744 = vpop.f32.mrf.mxu0
  %v7745 = vadd.f32 %v7590, %v7744
  %v7746 = vpop.f32.mrf.mxu0
  %v7747 = vadd.f32 %v7592, %v7746
  %7748 = vmatmul.bf16.gmra.mxu0 %v7703
  %v7749 = vpop.f32.mrf.mxu0
  %v7750 = vadd.f32 %v7595, %v7749
  %v7751 = vpop.f32.mrf.mxu0
  %v7752 = vadd.f32 %v7597, %v7751
  %7753 = vmatmul.bf16.gmra.mxu0 %v7706
  %v7754 = vpop.f32.mrf.mxu0
  %v7755 = vadd.f32 %v7600, %v7754
  %v7756 = vpop.f32.mrf.mxu0
  %v7757 = vadd.f32 %v7602, %v7756
  %7758 = vmatmul.bf16.gmra.mxu0 %v7709
  %v7759 = vpop.f32.mrf.mxu0
  %v7760 = vadd.f32 %v7605, %v7759
  %v7761 = vpop.f32.mrf.mxu0
  %v7762 = vadd.f32 %v7607, %v7761
  %7763 = vmatmul.bf16.gmra.mxu0 %v7712
  %v7764 = vpop.f32.mrf.mxu0
  %v7765 = vadd.f32 %v7610, %v7764
  %v7766 = vpop.f32.mrf.mxu0
  %v7767 = vadd.f32 %v7612, %v7766
  %7768 = vmatmul.bf16.gmra.mxu0 %v7715
  %v7769 = vpop.f32.mrf.mxu0
  %v7770 = vadd.f32 %v7615, %v7769
  %v7771 = vpop.f32.mrf.mxu0
  %v7772 = vadd.f32 %v7617, %v7771
  %7773 = vmatmul.bf16.gmra.mxu0 %v7718
  %v7774 = vpop.f32.mrf.mxu0
  %v7775 = vadd.f32 %v7620, %v7774
  %v7776 = vpop.f32.mrf.mxu0
  %v7777 = vadd.f32 %v7622, %v7776
  %7778 = vmatmul.bf16.gmra.mxu0 %v7721
  %v7779 = vpop.f32.mrf.mxu0
  %v7780 = vadd.f32 %v7625, %v7779
  %v7781 = vpop.f32.mrf.mxu0
  %v7782 = vadd.f32 %v7627, %v7781
  %7783 = vmatmul.bf16.gmra.mxu0 %v7724
  %v7784 = vpop.f32.mrf.mxu0
  %v7785 = vadd.f32 %v7630, %v7784
  %v7786 = vpop.f32.mrf.mxu0
  %v7787 = vadd.f32 %v7632, %v7786
  %7788 = vmatmul.bf16.gmra.mxu0 %v7727
  %v7789 = vpop.f32.mrf.mxu0
  %v7790 = vadd.f32 %v7635, %v7789
  %v7791 = vpop.f32.mrf.mxu0
  %v7792 = vadd.f32 %v7637, %v7791
  %7793 = vmatmul.bf16.gmra.mxu0 %v7730
  %v7794 = vpop.f32.mrf.mxu0
  %v7795 = vadd.f32 %v7640, %v7794
  %v7796 = vpop.f32.mrf.mxu0
  %v7797 = vadd.f32 %v7642, %v7796
  %7798 = vdwg.mxu0
  %s7799 = scalar_lea.vmem %s65, 176
  %v7800 = vld [vmem:[%s7799] sm:$0xf]
  %v7801 = vld [vmem:[%s7799 + $0x4] sm:$0xf]
  %v7802 = vld [vmem:[%s7799 + $0x8] sm:$0xf]
  %v7803 = vld [vmem:[%s7799 + $0xc] sm:$0xf]
  %v7804 = vld [vmem:[%s7799 + $0x10] sm:$0xf]
  %v7805 = vld [vmem:[%s7799 + $0x14] sm:$0xf]
  %v7806 = vld [vmem:[%s7799 + $0x18] sm:$0xf]
  %v7807 = vld [vmem:[%s7799 + $0x1c] sm:$0xf]
  %v7808 = vld [vmem:[%s7799 + $0x20] sm:$0xf]
  %v7809 = vld [vmem:[%s7799 + $0x24] sm:$0xf]
  %v7810 = vld [vmem:[%s7799 + $0x28] sm:$0xf]
  %v7811 = vld [vmem:[%s7799 + $0x2c] sm:$0xf]
  %v7812 = vld [vmem:[%s7799 + $0x30] sm:$0xf]
  %v7813 = vld [vmem:[%s7799 + $0x34] sm:$0xf]
  %v7814 = vld [vmem:[%s7799 + $0x38] sm:$0xf]
  %v7815 = vld [vmem:[%s7799 + $0x3c] sm:$0xf]
  %v7816 = vld [vmem:[%s7799 + $0x40] sm:$0xf]
  %v7817 = vld [vmem:[%s7799 + $0x44] sm:$0xf]
  %v7818 = vld [vmem:[%s7799 + $0x48] sm:$0xf]
  %v7819 = vld [vmem:[%s7799 + $0x4c] sm:$0xf]
  %v7820 = vld [vmem:[%s7799 + $0x50] sm:$0xf]
  %v7821 = vld [vmem:[%s7799 + $0x54] sm:$0xf]
  %v7844 = vunpack.c.l.b16 %v7800
  %v7845 = vunpack.c.l.b16 %v7801
  %v7846 = vunpack.c.l.b16 %v7802
  %v7847 = vunpack.c.l.b16 %v7803
  %v7848 = vunpack.c.l.b16 %v7804
  %v7849 = vunpack.c.l.b16 %v7805
  %v7850 = vunpack.c.l.b16 %v7806
  %v7851 = vunpack.c.l.b16 %v7807
  %v7852 = vunpack.c.l.b16 %v7808
  %v7853 = vunpack.c.l.b16 %v7809
  %v7854 = vunpack.c.l.b16 %v7810
  %v7855 = vunpack.c.l.b16 %v7811
  %v7856 = vunpack.c.l.b16 %v7812
  %v7857 = vunpack.c.l.b16 %v7813
  %v7858 = vunpack.c.l.b16 %v7814
  %v7859 = vunpack.c.l.b16 %v7815
  %v7860 = vunpack.c.l.b16 %v7816
  %v7861 = vunpack.c.l.b16 %v7817
  %v7862 = vunpack.c.l.b16 %v7818
  %v7863 = vunpack.c.l.b16 %v7819
  %v7864 = vunpack.c.l.b16 %v7820
  %v7865 = vunpack.c.l.b16 %v7821
  %v7866 = vpack.c.b16 %v7845, %v7844
  %v7867 = vpack.c.b16 %v7847, %v7846
  %v7868 = vpack.c.b16 %v7849, %v7848
  %v7869 = vpack.c.b16 %v7851, %v7850
  %v7870 = vpack.c.b16 %v7853, %v7852
  %v7871 = vpack.c.b16 %v7855, %v7854
  %v7872 = vpack.c.b16 %v7857, %v7856
  %v7873 = vpack.c.b16 %v7859, %v7858
  %v7874 = vpack.c.b16 %v7861, %v7860
  %v7875 = vpack.c.b16 %v7863, %v7862
  %v7876 = vpack.c.b16 %v7865, %v7864
  %v7878 = vsel %vm3745, %v7866, 0
  %v7881 = vsel %vm3745, %v7867, 0
  %v7884 = vsel %vm3745, %v7868, 0
  %v7887 = vsel %vm3745, %v7869, 0
  %v7890 = vsel %vm3745, %v7870, 0
  %v7893 = vsel %vm3745, %v7871, 0
  %v7896 = vsel %vm3745, %v7872, 0
  %v7899 = vsel %vm3745, %v7873, 0
  %v7902 = vsel %vm3745, %v7874, 0
  %v7905 = vsel %vm3745, %v7875, 0
  %v7908 = vsel %vm3745, %v7876, 0
  %v7911 = vsel %vm2176, %v7439, 0
  %7913 = vmatpush.bf16.msra.mxu0 0
  %7914 = vmatpush.bf16.msra.mxu0 0
  %7915 = vmatpush.bf16.msra.mxu0 0
  %7916 = vmatpush.bf16.msra.mxu0 0
  %7917 = vmatpush.bf16.msra.mxu0 %v7911
  %7918 = vmatpush.bf16.msra.mxu0 %v7438
  %7919 = vmatpush.bf16.msra.mxu0 %v7437
  %7920 = vmatpush.bf16.msra.mxu0 %v7436
  %7921 = vmatmul.bf16.gmra.mxu0 %v7878
  %v7922 = vpop.f32.mrf.mxu0
  %v7923 = vadd.f32 0.0, %v7922
  %v7924 = vpop.f32.mrf.mxu0
  %v7925 = vadd.f32 0.0, %v7924
  %7926 = vmatmul.bf16.gmra.mxu0 %v7881
  %v7927 = vpop.f32.mrf.mxu0
  %v7928 = vadd.f32 0.0, %v7927
  %v7929 = vpop.f32.mrf.mxu0
  %v7930 = vadd.f32 0.0, %v7929
  %7931 = vmatmul.bf16.gmra.mxu0 %v7884
  %v7932 = vpop.f32.mrf.mxu0
  %v7933 = vadd.f32 0.0, %v7932
  %v7934 = vpop.f32.mrf.mxu0
  %v7935 = vadd.f32 0.0, %v7934
  %7936 = vmatmul.bf16.gmra.mxu0 %v7887
  %v7937 = vpop.f32.mrf.mxu0
  %v7938 = vadd.f32 0.0, %v7937
  %v7939 = vpop.f32.mrf.mxu0
  %v7940 = vadd.f32 0.0, %v7939
  %7941 = vmatmul.bf16.gmra.mxu0 %v7890
  %v7942 = vpop.f32.mrf.mxu0
  %v7943 = vadd.f32 0.0, %v7942
  %v7944 = vpop.f32.mrf.mxu0
  %v7945 = vadd.f32 0.0, %v7944
  %7946 = vmatmul.bf16.gmra.mxu0 %v7893
  %v7947 = vpop.f32.mrf.mxu0
  %v7948 = vadd.f32 0.0, %v7947
  %v7949 = vpop.f32.mrf.mxu0
  %v7950 = vadd.f32 0.0, %v7949
  %7951 = vmatmul.bf16.gmra.mxu0 %v7896
  %v7952 = vpop.f32.mrf.mxu0
  %v7953 = vadd.f32 0.0, %v7952
  %v7954 = vpop.f32.mrf.mxu0
  %v7955 = vadd.f32 0.0, %v7954
  %7956 = vmatmul.bf16.gmra.mxu0 %v7899
  %v7957 = vpop.f32.mrf.mxu0
  %v7958 = vadd.f32 0.0, %v7957
  %v7959 = vpop.f32.mrf.mxu0
  %v7960 = vadd.f32 0.0, %v7959
  %7961 = vmatmul.bf16.gmra.mxu0 %v7902
  %v7962 = vpop.f32.mrf.mxu0
  %v7963 = vadd.f32 0.0, %v7962
  %v7964 = vpop.f32.mrf.mxu0
  %v7965 = vadd.f32 0.0, %v7964
  %7966 = vmatmul.bf16.gmra.mxu0 %v7905
  %v7967 = vpop.f32.mrf.mxu0
  %v7968 = vadd.f32 0.0, %v7967
  %v7969 = vpop.f32.mrf.mxu0
  %v7970 = vadd.f32 0.0, %v7969
  %7971 = vmatmul.bf16.gmra.mxu0 %v7908
  %v7972 = vpop.f32.mrf.mxu0
  %v7973 = vadd.f32 0.0, %v7972
  %v7974 = vpop.f32.mrf.mxu0
  %v7975 = vadd.f32 0.0, %v7974
  %7976 = vdwg.mxu0
  %v7977 = vadd.f32 %v7745, %v7923
  %v7978 = vadd.f32 %v7747, %v7925
  %v7979 = vadd.f32 %v7750, %v7928
  %v7980 = vadd.f32 %v7752, %v7930
  %v7981 = vadd.f32 %v7755, %v7933
  %v7982 = vadd.f32 %v7757, %v7935
  %v7983 = vadd.f32 %v7760, %v7938
  %v7984 = vadd.f32 %v7762, %v7940
  %v7985 = vadd.f32 %v7765, %v7943
  %v7986 = vadd.f32 %v7767, %v7945
  %v7987 = vadd.f32 %v7770, %v7948
  %v7988 = vadd.f32 %v7772, %v7950
  %v7989 = vadd.f32 %v7775, %v7953
  %v7990 = vadd.f32 %v7777, %v7955
  %v7991 = vadd.f32 %v7780, %v7958
  %v7992 = vadd.f32 %v7782, %v7960
  %v7993 = vadd.f32 %v7785, %v7963
  %v7994 = vadd.f32 %v7787, %v7965
  %v7995 = vadd.f32 %v7790, %v7968
  %v7996 = vadd.f32 %v7792, %v7970
  %v7997 = vadd.f32 %v7795, %v7973
  %v7998 = vadd.f32 %v7797, %v7975
  %s7999 = scalar_lea.vmem %s65, 264
  %v8000 = vld [vmem:[%s7999] sm:$0xf]
  %v8001 = vld [vmem:[%s7999 + $0x4] sm:$0xf]
  %v8002 = vld [vmem:[%s7999 + $0x8] sm:$0xf]
  %v8003 = vld [vmem:[%s7999 + $0xc] sm:$0xf]
  %v8004 = vld [vmem:[%s7999 + $0x10] sm:$0xf]
  %v8005 = vld [vmem:[%s7999 + $0x14] sm:$0xf]
  %v8006 = vld [vmem:[%s7999 + $0x18] sm:$0xf]
  %v8007 = vld [vmem:[%s7999 + $0x1c] sm:$0xf]
  %v8008 = vld [vmem:[%s7999 + $0x20] sm:$0xf]
  %v8009 = vld [vmem:[%s7999 + $0x24] sm:$0xf]
  %v8010 = vld [vmem:[%s7999 + $0x28] sm:$0xf]
  %v8011 = vld [vmem:[%s7999 + $0x2c] sm:$0xf]
  %v8012 = vld [vmem:[%s7999 + $0x30] sm:$0xf]
  %v8013 = vld [vmem:[%s7999 + $0x34] sm:$0xf]
  %v8014 = vld [vmem:[%s7999 + $0x38] sm:$0xf]
  %v8015 = vld [vmem:[%s7999 + $0x3c] sm:$0xf]
  %v8016 = vld [vmem:[%s7999 + $0x40] sm:$0xf]
  %v8017 = vld [vmem:[%s7999 + $0x44] sm:$0xf]
  %v8018 = vld [vmem:[%s7999 + $0x48] sm:$0xf]
  %v8019 = vld [vmem:[%s7999 + $0x4c] sm:$0xf]
  %v8020 = vld [vmem:[%s7999 + $0x50] sm:$0xf]
  %v8021 = vld [vmem:[%s7999 + $0x54] sm:$0xf]
  %v8044 = vunpack.c.l.b16 %v8000
  %v8045 = vunpack.c.l.b16 %v8001
  %v8046 = vunpack.c.l.b16 %v8002
  %v8047 = vunpack.c.l.b16 %v8003
  %v8048 = vunpack.c.l.b16 %v8004
  %v8049 = vunpack.c.l.b16 %v8005
  %v8050 = vunpack.c.l.b16 %v8006
  %v8051 = vunpack.c.l.b16 %v8007
  %v8052 = vunpack.c.l.b16 %v8008
  %v8053 = vunpack.c.l.b16 %v8009
  %v8054 = vunpack.c.l.b16 %v8010
  %v8055 = vunpack.c.l.b16 %v8011
  %v8056 = vunpack.c.l.b16 %v8012
  %v8057 = vunpack.c.l.b16 %v8013
  %v8058 = vunpack.c.l.b16 %v8014
  %v8059 = vunpack.c.l.b16 %v8015
  %v8060 = vunpack.c.l.b16 %v8016
  %v8061 = vunpack.c.l.b16 %v8017
  %v8062 = vunpack.c.l.b16 %v8018
  %v8063 = vunpack.c.l.b16 %v8019
  %v8064 = vunpack.c.l.b16 %v8020
  %v8065 = vunpack.c.l.b16 %v8021
  %v8066 = vpack.c.b16 %v8045, %v8044
  %v8067 = vpack.c.b16 %v8047, %v8046
  %v8068 = vpack.c.b16 %v8049, %v8048
  %v8069 = vpack.c.b16 %v8051, %v8050
  %v8070 = vpack.c.b16 %v8053, %v8052
  %v8071 = vpack.c.b16 %v8055, %v8054
  %v8072 = vpack.c.b16 %v8057, %v8056
  %v8073 = vpack.c.b16 %v8059, %v8058
  %v8074 = vpack.c.b16 %v8061, %v8060
  %v8075 = vpack.c.b16 %v8063, %v8062
  %v8076 = vpack.c.b16 %v8065, %v8064
  %v8078 = vsel %vm3745, %v8066, 0
  %v8081 = vsel %vm3745, %v8067, 0
  %v8084 = vsel %vm3745, %v8068, 0
  %v8087 = vsel %vm3745, %v8069, 0
  %v8090 = vsel %vm3745, %v8070, 0
  %v8093 = vsel %vm3745, %v8071, 0
  %v8096 = vsel %vm3745, %v8072, 0
  %v8099 = vsel %vm3745, %v8073, 0
  %v8102 = vsel %vm3745, %v8074, 0
  %v8105 = vsel %vm3745, %v8075, 0
  %v8108 = vsel %vm3745, %v8076, 0
  %v8111 = vsel %vm2176, %v7443, 0
  %8113 = vmatpush.bf16.msra.mxu0 0
  %8114 = vmatpush.bf16.msra.mxu0 0
  %8115 = vmatpush.bf16.msra.mxu0 0
  %8116 = vmatpush.bf16.msra.mxu0 0
  %8117 = vmatpush.bf16.msra.mxu0 %v8111
  %8118 = vmatpush.bf16.msra.mxu0 %v7442
  %8119 = vmatpush.bf16.msra.mxu0 %v7441
  %8120 = vmatpush.bf16.msra.mxu0 %v7440
  %8121 = vmatmul.bf16.gmra.mxu0 %v8078
  %v8122 = vpop.f32.mrf.mxu0
  %v8123 = vadd.f32 0.0, %v8122
  %v8124 = vpop.f32.mrf.mxu0
  %v8125 = vadd.f32 0.0, %v8124
  %8126 = vmatmul.bf16.gmra.mxu0 %v8081
  %v8127 = vpop.f32.mrf.mxu0
  %v8128 = vadd.f32 0.0, %v8127
  %v8129 = vpop.f32.mrf.mxu0
  %v8130 = vadd.f32 0.0, %v8129
  %8131 = vmatmul.bf16.gmra.mxu0 %v8084
  %v8132 = vpop.f32.mrf.mxu0
  %v8133 = vadd.f32 0.0, %v8132
  %v8134 = vpop.f32.mrf.mxu0
  %v8135 = vadd.f32 0.0, %v8134
  %8136 = vmatmul.bf16.gmra.mxu0 %v8087
  %v8137 = vpop.f32.mrf.mxu0
  %v8138 = vadd.f32 0.0, %v8137
  %v8139 = vpop.f32.mrf.mxu0
  %v8140 = vadd.f32 0.0, %v8139
  %8141 = vmatmul.bf16.gmra.mxu0 %v8090
  %v8142 = vpop.f32.mrf.mxu0
  %v8143 = vadd.f32 0.0, %v8142
  %v8144 = vpop.f32.mrf.mxu0
  %v8145 = vadd.f32 0.0, %v8144
  %8146 = vmatmul.bf16.gmra.mxu0 %v8093
  %v8147 = vpop.f32.mrf.mxu0
  %v8148 = vadd.f32 0.0, %v8147
  %v8149 = vpop.f32.mrf.mxu0
  %v8150 = vadd.f32 0.0, %v8149
  %8151 = vmatmul.bf16.gmra.mxu0 %v8096
  %v8152 = vpop.f32.mrf.mxu0
  %v8153 = vadd.f32 0.0, %v8152
  %v8154 = vpop.f32.mrf.mxu0
  %v8155 = vadd.f32 0.0, %v8154
  %8156 = vmatmul.bf16.gmra.mxu0 %v8099
  %v8157 = vpop.f32.mrf.mxu0
  %v8158 = vadd.f32 0.0, %v8157
  %v8159 = vpop.f32.mrf.mxu0
  %v8160 = vadd.f32 0.0, %v8159
  %8161 = vmatmul.bf16.gmra.mxu0 %v8102
  %v8162 = vpop.f32.mrf.mxu0
  %v8163 = vadd.f32 0.0, %v8162
  %v8164 = vpop.f32.mrf.mxu0
  %v8165 = vadd.f32 0.0, %v8164
  %8166 = vmatmul.bf16.gmra.mxu0 %v8105
  %v8167 = vpop.f32.mrf.mxu0
  %v8168 = vadd.f32 0.0, %v8167
  %v8169 = vpop.f32.mrf.mxu0
  %v8170 = vadd.f32 0.0, %v8169
  %8171 = vmatmul.bf16.gmra.mxu0 %v8108
  %v8172 = vpop.f32.mrf.mxu0
  %v8173 = vadd.f32 0.0, %v8172
  %v8174 = vpop.f32.mrf.mxu0
  %v8175 = vadd.f32 0.0, %v8174
  %8176 = vdwg.mxu0
  %v8177 = vadd.f32 %v7977, %v8123
  %v8178 = vadd.f32 %v7978, %v8125
  %v8179 = vadd.f32 %v7979, %v8128
  %v8180 = vadd.f32 %v7980, %v8130
  %v8181 = vadd.f32 %v7981, %v8133
  %v8182 = vadd.f32 %v7982, %v8135
  %v8183 = vadd.f32 %v7983, %v8138
  %v8184 = vadd.f32 %v7984, %v8140
  %v8185 = vadd.f32 %v7985, %v8143
  %v8186 = vadd.f32 %v7986, %v8145
  %v8187 = vadd.f32 %v7987, %v8148
  %v8188 = vadd.f32 %v7988, %v8150
  %v8189 = vadd.f32 %v7989, %v8153
  %v8190 = vadd.f32 %v7990, %v8155
  %v8191 = vadd.f32 %v7991, %v8158
  %v8192 = vadd.f32 %v7992, %v8160
  %v8193 = vadd.f32 %v7993, %v8163
  %v8194 = vadd.f32 %v7994, %v8165
  %v8195 = vadd.f32 %v7995, %v8168
  %v8196 = vadd.f32 %v7996, %v8170
  %v8197 = vadd.f32 %v7997, %v8173
  %v8198 = vadd.f32 %v7998, %v8175
  %8199 = vst [vmem:[#allocation6] sm:$0xff] %v8177
  %8200 = vst [vmem:[#allocation6 + $0x8] sm:$0xff] %v8178
  %8201 = vst [vmem:[#allocation6 + $0x10] sm:$0xff] %v8179
  %8202 = vst [vmem:[#allocation6 + $0x18] sm:$0xff] %v8180
  %8203 = vst [vmem:[#allocation6 + $0x20] sm:$0xff] %v8181
  %8204 = vst [vmem:[#allocation6 + $0x28] sm:$0xff] %v8182
  %8205 = vst [vmem:[#allocation6 + $0x30] sm:$0xff] %v8183
  %8206 = vst [vmem:[#allocation6 + $0x38] sm:$0xff] %v8184
  %8207 = vst [vmem:[#allocation6 + $0x40] sm:$0xff] %v8185
  %8208 = vst [vmem:[#allocation6 + $0x48] sm:$0xff] %v8186
  %8209 = vst [vmem:[#allocation6 + $0x50] sm:$0xff] %v8187
  %8210 = vst [vmem:[#allocation6 + $0x58] sm:$0xff] %v8188
  %8211 = vst [vmem:[#allocation6 + $0x60] sm:$0xff] %v8189
  %8212 = vst [vmem:[#allocation6 + $0x68] sm:$0xff] %v8190
  %8213 = vst [vmem:[#allocation6 + $0x70] sm:$0xff] %v8191
  %8214 = vst [vmem:[#allocation6 + $0x78] sm:$0xff] %v8192
  %8215 = vst [vmem:[#allocation6 + $0x80] sm:$0xff] %v8193
  %8216 = vst [vmem:[#allocation6 + $0x88] sm:$0xff] %v8194
  %8217 = vst [vmem:[#allocation6 + $0x90] sm:$0xff] %v8195
  %8218 = vst [vmem:[#allocation6 + $0x98] sm:$0xff] %v8196
  %8219 = vst [vmem:[#allocation6 + $0xa0] sm:$0xff] %v8197
  %8220 = vst [vmem:[#allocation6 + $0xa8] sm:$0xff] %v8198
  %v8221 = vld [vmem:[%s63] sm:$0x1]
  %v8222 = vld [vmem:[#allocation6] sm:$0xff]
  %v8223 = vld [vmem:[#allocation6 + $0x8] sm:$0xff]
  %v8224 = vld [vmem:[#allocation6 + $0x10] sm:$0xff]
  %v8225 = vld [vmem:[#allocation6 + $0x18] sm:$0xff]
  %v8226 = vld [vmem:[#allocation6 + $0x20] sm:$0xff]
  %v8227 = vld [vmem:[#allocation6 + $0x28] sm:$0xff]
  %v8228 = vld [vmem:[#allocation6 + $0x30] sm:$0xff]
  %v8229 = vld [vmem:[#allocation6 + $0x38] sm:$0xff]
  %v8230 = vld [vmem:[#allocation6 + $0x40] sm:$0xff]
  %v8231 = vld [vmem:[#allocation6 + $0x48] sm:$0xff]
  %v8232 = vld [vmem:[#allocation6 + $0x50] sm:$0xff]
  %v8233 = vld [vmem:[#allocation6 + $0x58] sm:$0xff]
  %v8234 = vld [vmem:[#allocation6 + $0x60] sm:$0xff]
  %v8235 = vld [vmem:[#allocation6 + $0x68] sm:$0xff]
  %v8236 = vld [vmem:[#allocation6 + $0x70] sm:$0xff]
  %v8237 = vld [vmem:[#allocation6 + $0x78] sm:$0xff]
  %v8238 = vld [vmem:[#allocation6 + $0x80] sm:$0xff]
  %v8239 = vld [vmem:[#allocation6 + $0x88] sm:$0xff]
  %v8240 = vld [vmem:[#allocation6 + $0x90] sm:$0xff]
  %v8241 = vld [vmem:[#allocation6 + $0x98] sm:$0xff]
  %v8242 = vld [vmem:[#allocation6 + $0xa0] sm:$0x3]
  %v8243 = vpack.c.bf16 %v8223, %v8222
  %v8244 = vpack.c.bf16 %v8225, %v8224
  %v8245 = vpack.c.bf16 %v8227, %v8226
  %v8246 = vpack.c.bf16 %v8229, %v8228
  %v8247 = vpack.c.bf16 %v8231, %v8230
  %v8248 = vpack.c.bf16 %v8233, %v8232
  %v8249 = vpack.c.bf16 %v8235, %v8234
  %v8250 = vpack.c.bf16 %v8237, %v8236
  %v8251 = vpack.c.bf16 %v8239, %v8238
  %v8252 = vpack.c.bf16 %v8241, %v8240
  %v8253 = vpack.c.bf16 %v8242, %v8242
  %s8254 = scalar_lea.vmem %s61, 256
  %v8255 = vld [vmem:[%s8254] sm:$0xf]
  %v8256 = vld [vmem:[%s8254 + $0x4] sm:$0xf]
  %v8257 = vld [vmem:[%s8254 + $0x8] sm:$0xf]
  %v8258 = vld [vmem:[%s8254 + $0xc] sm:$0xf]
  %v8259 = vld [vmem:[%s8254 + $0x10] sm:$0xf]
  %v8260 = vld [vmem:[%s8254 + $0x14] sm:$0xf]
  %v8261 = vld [vmem:[%s8254 + $0x18] sm:$0xf]
  %v8262 = vld [vmem:[%s8254 + $0x1c] sm:$0xf]
  %v8263 = vld [vmem:[%s8254 + $0x20] sm:$0xf]
  %v8264 = vld [vmem:[%s8254 + $0x24] sm:$0xf]
  %v8265 = vld [vmem:[%s8254 + $0x28] sm:$0xf]
  %v8266 = vld [vmem:[%s8254 + $0x2c] sm:$0xf]
  %v8267 = vld [vmem:[%s8254 + $0x30] sm:$0xf]
  %v8268 = vld [vmem:[%s8254 + $0x34] sm:$0xf]
  %v8269 = vld [vmem:[%s8254 + $0x38] sm:$0xf]
  %v8270 = vld [vmem:[%s8254 + $0x3c] sm:$0xf]
  %v8272 = vperm.slane %v8221, 0
  %v8290 = vunpack.c.l.b16 %v8255
  %v8291 = vunpack.c.l.b16 %v8256
  %v8292 = vunpack.c.l.b16 %v8257
  %v8293 = vunpack.c.l.b16 %v8258
  %v8294 = vunpack.c.l.b16 %v8259
  %v8295 = vunpack.c.l.b16 %v8260
  %v8296 = vunpack.c.l.b16 %v8261
  %v8297 = vunpack.c.l.b16 %v8262
  %v8298 = vunpack.c.l.b16 %v8263
  %v8299 = vunpack.c.l.b16 %v8264
  %v8300 = vunpack.c.l.b16 %v8265
  %v8301 = vunpack.c.l.b16 %v8266
  %v8302 = vunpack.c.l.b16 %v8267
  %v8303 = vunpack.c.l.b16 %v8268
  %v8304 = vunpack.c.l.b16 %v8269
  %v8305 = vunpack.c.l.b16 %v8270
  %v8306 = vpack.c.b16 %v8291, %v8290
  %v8307 = vpack.c.b16 %v8293, %v8292
  %v8308 = vpack.c.b16 %v8295, %v8294
  %v8309 = vpack.c.b16 %v8297, %v8296
  %v8310 = vpack.c.b16 %v8299, %v8298
  %v8311 = vpack.c.b16 %v8301, %v8300
  %v8312 = vpack.c.b16 %v8303, %v8302
  %v8313 = vpack.c.b16 %v8305, %v8304
  %8322 = vmatpush.bf16.msra.mxu0 %v8313
  %8323 = vmatpush.bf16.msra.mxu0 %v8312
  %8324 = vmatpush.bf16.msra.mxu0 %v8311
  %8325 = vmatpush.bf16.msra.mxu0 %v8310
  %8326 = vmatpush.bf16.msra.mxu0 %v8309
  %8327 = vmatpush.bf16.msra.mxu0 %v8308
  %8328 = vmatpush.bf16.msra.mxu0 %v8307
  %8329 = vmatpush.bf16.msra.mxu0 %v8306
  %8330 = vmatmul.bf16.gmra.mxu0 %v8243
  %v8331 = vpop.f32.mrf.mxu0
  %v8332 = vadd.f32 %v8272, %v8331
  %v8333 = vpop.f32.mrf.mxu0
  %v8334 = vadd.f32 %v8272, %v8333
  %8335 = vmatmul.bf16.gmra.mxu0 %v8244
  %v8336 = vpop.f32.mrf.mxu0
  %v8337 = vadd.f32 %v8272, %v8336
  %v8338 = vpop.f32.mrf.mxu0
  %v8339 = vadd.f32 %v8272, %v8338
  %8340 = vmatmul.bf16.gmra.mxu0 %v8245
  %v8341 = vpop.f32.mrf.mxu0
  %v8342 = vadd.f32 %v8272, %v8341
  %v8343 = vpop.f32.mrf.mxu0
  %v8344 = vadd.f32 %v8272, %v8343
  %8345 = vmatmul.bf16.gmra.mxu0 %v8246
  %v8346 = vpop.f32.mrf.mxu0
  %v8347 = vadd.f32 %v8272, %v8346
  %v8348 = vpop.f32.mrf.mxu0
  %v8349 = vadd.f32 %v8272, %v8348
  %8350 = vmatmul.bf16.gmra.mxu0 %v8247
  %v8351 = vpop.f32.mrf.mxu0
  %v8352 = vadd.f32 %v8272, %v8351
  %v8353 = vpop.f32.mrf.mxu0
  %v8354 = vadd.f32 %v8272, %v8353
  %8355 = vmatmul.bf16.gmra.mxu0 %v8248
  %v8356 = vpop.f32.mrf.mxu0
  %v8357 = vadd.f32 %v8272, %v8356
  %v8358 = vpop.f32.mrf.mxu0
  %v8359 = vadd.f32 %v8272, %v8358
  %8360 = vmatmul.bf16.gmra.mxu0 %v8249
  %v8361 = vpop.f32.mrf.mxu0
  %v8362 = vadd.f32 %v8272, %v8361
  %v8363 = vpop.f32.mrf.mxu0
  %v8364 = vadd.f32 %v8272, %v8363
  %8365 = vmatmul.bf16.gmra.mxu0 %v8250
  %v8366 = vpop.f32.mrf.mxu0
  %v8367 = vadd.f32 %v8272, %v8366
  %v8368 = vpop.f32.mrf.mxu0
  %v8369 = vadd.f32 %v8272, %v8368
  %8370 = vmatmul.bf16.gmra.mxu0 %v8251
  %v8371 = vpop.f32.mrf.mxu0
  %v8372 = vadd.f32 %v8272, %v8371
  %v8373 = vpop.f32.mrf.mxu0
  %v8374 = vadd.f32 %v8272, %v8373
  %8375 = vmatmul.bf16.gmra.mxu0 %v8252
  %v8376 = vpop.f32.mrf.mxu0
  %v8377 = vadd.f32 %v8272, %v8376
  %v8378 = vpop.f32.mrf.mxu0
  %v8379 = vadd.f32 %v8272, %v8378
  %8380 = vmatmul.bf16.gmra.mxu0 %v8253
  %v8381 = vpop.f32.mrf.mxu0
  %v8382 = vadd.f32 %v8272, %v8381
  %v8383 = vpop.f32.mrf.mxu0
  %8384 = vdwg.mxu0
  %s8385 = scalar_lea.vmem %s61, 320
  %v8386 = vld [vmem:[%s8385] sm:$0xf]
  %v8387 = vld [vmem:[%s8385 + $0x4] sm:$0xf]
  %v8388 = vld [vmem:[%s8385 + $0x8] sm:$0xf]
  %v8389 = vld [vmem:[%s8385 + $0xc] sm:$0xf]
  %v8390 = vld [vmem:[%s8385 + $0x10] sm:$0xf]
  %v8391 = vld [vmem:[%s8385 + $0x14] sm:$0xf]
  %v8392 = vld [vmem:[%s8385 + $0x18] sm:$0xf]
  %v8393 = vld [vmem:[%s8385 + $0x1c] sm:$0xf]
  %v8394 = vld [vmem:[%s8385 + $0x20] sm:$0xf]
  %v8395 = vld [vmem:[%s8385 + $0x24] sm:$0xf]
  %v8396 = vld [vmem:[%s8385 + $0x28] sm:$0xf]
  %v8397 = vld [vmem:[%s8385 + $0x2c] sm:$0xf]
  %v8398 = vld [vmem:[%s8385 + $0x30] sm:$0xf]
  %v8399 = vld [vmem:[%s8385 + $0x34] sm:$0xf]
  %v8400 = vld [vmem:[%s8385 + $0x38] sm:$0xf]
  %v8401 = vld [vmem:[%s8385 + $0x3c] sm:$0xf]
  %v8402 = vld [vmem:[#allocation6 + $0x1] sm:$0xff]
  %v8403 = vld [vmem:[#allocation6 + $0x9] sm:$0xff]
  %v8404 = vld [vmem:[#allocation6 + $0x11] sm:$0xff]
  %v8405 = vld [vmem:[#allocation6 + $0x19] sm:$0xff]
  %v8406 = vld [vmem:[#allocation6 + $0x21] sm:$0xff]
  %v8407 = vld [vmem:[#allocation6 + $0x29] sm:$0xff]
  %v8408 = vld [vmem:[#allocation6 + $0x31] sm:$0xff]
  %v8409 = vld [vmem:[#allocation6 + $0x39] sm:$0xff]
  %v8410 = vld [vmem:[#allocation6 + $0x41] sm:$0xff]
  %v8411 = vld [vmem:[#allocation6 + $0x49] sm:$0xff]
  %v8412 = vld [vmem:[#allocation6 + $0x51] sm:$0xff]
  %v8413 = vld [vmem:[#allocation6 + $0x59] sm:$0xff]
  %v8414 = vld [vmem:[#allocation6 + $0x61] sm:$0xff]
  %v8415 = vld [vmem:[#allocation6 + $0x69] sm:$0xff]
  %v8416 = vld [vmem:[#allocation6 + $0x71] sm:$0xff]
  %v8417 = vld [vmem:[#allocation6 + $0x79] sm:$0xff]
  %v8418 = vld [vmem:[#allocation6 + $0x81] sm:$0xff]
  %v8419 = vld [vmem:[#allocation6 + $0x89] sm:$0xff]
  %v8420 = vld [vmem:[#allocation6 + $0x91] sm:$0xff]
  %v8421 = vld [vmem:[#allocation6 + $0x99] sm:$0xff]
  %v8422 = vld [vmem:[#allocation6 + $0xa1] sm:$0x3]
  %v8423 = vpack.c.bf16 %v8403, %v8402
  %v8424 = vpack.c.bf16 %v8405, %v8404
  %v8425 = vpack.c.bf16 %v8407, %v8406
  %v8426 = vpack.c.bf16 %v8409, %v8408
  %v8427 = vpack.c.bf16 %v8411, %v8410
  %v8428 = vpack.c.bf16 %v8413, %v8412
  %v8429 = vpack.c.bf16 %v8415, %v8414
  %v8430 = vpack.c.bf16 %v8417, %v8416
  %v8431 = vpack.c.bf16 %v8419, %v8418
  %v8432 = vpack.c.bf16 %v8421, %v8420
  %v8433 = vpack.c.bf16 %v8422, %v8422
  %s8434 = scalar_lea.vmem %s61, 192
  %v8435 = vld [vmem:[%s8434] sm:$0xf]
  %v8436 = vld [vmem:[%s8434 + $0x4] sm:$0xf]
  %v8437 = vld [vmem:[%s8434 + $0x8] sm:$0xf]
  %v8438 = vld [vmem:[%s8434 + $0xc] sm:$0xf]
  %v8439 = vld [vmem:[%s8434 + $0x10] sm:$0xf]
  %v8440 = vld [vmem:[%s8434 + $0x14] sm:$0xf]
  %v8441 = vld [vmem:[%s8434 + $0x18] sm:$0xf]
  %v8442 = vld [vmem:[%s8434 + $0x1c] sm:$0xf]
  %v8443 = vld [vmem:[%s8434 + $0x20] sm:$0xf]
  %v8444 = vld [vmem:[%s8434 + $0x24] sm:$0xf]
  %v8445 = vld [vmem:[%s8434 + $0x28] sm:$0xf]
  %v8446 = vld [vmem:[%s8434 + $0x2c] sm:$0xf]
  %v8447 = vld [vmem:[%s8434 + $0x30] sm:$0xf]
  %v8448 = vld [vmem:[%s8434 + $0x34] sm:$0xf]
  %v8449 = vld [vmem:[%s8434 + $0x38] sm:$0xf]
  %v8450 = vld [vmem:[%s8434 + $0x3c] sm:$0xf]
  %v8467 = vunpack.c.l.b16 %v8435
  %v8468 = vunpack.c.l.b16 %v8436
  %v8469 = vunpack.c.l.b16 %v8437
  %v8470 = vunpack.c.l.b16 %v8438
  %v8471 = vunpack.c.l.b16 %v8439
  %v8472 = vunpack.c.l.b16 %v8440
  %v8473 = vunpack.c.l.b16 %v8441
  %v8474 = vunpack.c.l.b16 %v8442
  %v8475 = vunpack.c.l.b16 %v8443
  %v8476 = vunpack.c.l.b16 %v8444
  %v8477 = vunpack.c.l.b16 %v8445
  %v8478 = vunpack.c.l.b16 %v8446
  %v8479 = vunpack.c.l.b16 %v8447
  %v8480 = vunpack.c.l.b16 %v8448
  %v8481 = vunpack.c.l.b16 %v8449
  %v8482 = vunpack.c.l.b16 %v8450
  %v8483 = vpack.c.b16 %v8468, %v8467
  %v8484 = vpack.c.b16 %v8470, %v8469
  %v8485 = vpack.c.b16 %v8472, %v8471
  %v8486 = vpack.c.b16 %v8474, %v8473
  %v8487 = vpack.c.b16 %v8476, %v8475
  %v8488 = vpack.c.b16 %v8478, %v8477
  %v8489 = vpack.c.b16 %v8480, %v8479
  %v8490 = vpack.c.b16 %v8482, %v8481
  %8499 = vmatpush.bf16.msra.mxu0 %v8490
  %8500 = vmatpush.bf16.msra.mxu0 %v8489
  %8501 = vmatpush.bf16.msra.mxu0 %v8488
  %8502 = vmatpush.bf16.msra.mxu0 %v8487
  %8503 = vmatpush.bf16.msra.mxu0 %v8486
  %8504 = vmatpush.bf16.msra.mxu0 %v8485
  %8505 = vmatpush.bf16.msra.mxu0 %v8484
  %8506 = vmatpush.bf16.msra.mxu0 %v8483
  %8507 = vmatmul.bf16.gmra.mxu0 %v8423
  %v8508 = vpop.f32.mrf.mxu0
  %v8509 = vadd.f32 0.0, %v8508
  %v8510 = vpop.f32.mrf.mxu0
  %v8511 = vadd.f32 0.0, %v8510
  %8512 = vmatmul.bf16.gmra.mxu0 %v8424
  %v8513 = vpop.f32.mrf.mxu0
  %v8514 = vadd.f32 0.0, %v8513
  %v8515 = vpop.f32.mrf.mxu0
  %v8516 = vadd.f32 0.0, %v8515
  %8517 = vmatmul.bf16.gmra.mxu0 %v8425
  %v8518 = vpop.f32.mrf.mxu0
  %v8519 = vadd.f32 0.0, %v8518
  %v8520 = vpop.f32.mrf.mxu0
  %v8521 = vadd.f32 0.0, %v8520
  %8522 = vmatmul.bf16.gmra.mxu0 %v8426
  %v8523 = vpop.f32.mrf.mxu0
  %v8524 = vadd.f32 0.0, %v8523
  %v8525 = vpop.f32.mrf.mxu0
  %v8526 = vadd.f32 0.0, %v8525
  %8527 = vmatmul.bf16.gmra.mxu0 %v8427
  %v8528 = vpop.f32.mrf.mxu0
  %v8529 = vadd.f32 0.0, %v8528
  %v8530 = vpop.f32.mrf.mxu0
  %v8531 = vadd.f32 0.0, %v8530
  %8532 = vmatmul.bf16.gmra.mxu0 %v8428
  %v8533 = vpop.f32.mrf.mxu0
  %v8534 = vadd.f32 0.0, %v8533
  %v8535 = vpop.f32.mrf.mxu0
  %v8536 = vadd.f32 0.0, %v8535
  %8537 = vmatmul.bf16.gmra.mxu0 %v8429
  %v8538 = vpop.f32.mrf.mxu0
  %v8539 = vadd.f32 0.0, %v8538
  %v8540 = vpop.f32.mrf.mxu0
  %v8541 = vadd.f32 0.0, %v8540
  %8542 = vmatmul.bf16.gmra.mxu0 %v8430
  %v8543 = vpop.f32.mrf.mxu0
  %v8544 = vadd.f32 0.0, %v8543
  %v8545 = vpop.f32.mrf.mxu0
  %v8546 = vadd.f32 0.0, %v8545
  %8547 = vmatmul.bf16.gmra.mxu0 %v8431
  %v8548 = vpop.f32.mrf.mxu0
  %v8549 = vadd.f32 0.0, %v8548
  %v8550 = vpop.f32.mrf.mxu0
  %v8551 = vadd.f32 0.0, %v8550
  %8552 = vmatmul.bf16.gmra.mxu0 %v8432
  %v8553 = vpop.f32.mrf.mxu0
  %v8554 = vadd.f32 0.0, %v8553
  %v8555 = vpop.f32.mrf.mxu0
  %v8556 = vadd.f32 0.0, %v8555
  %8557 = vmatmul.bf16.gmra.mxu0 %v8433
  %v8558 = vpop.f32.mrf.mxu0
  %v8559 = vadd.f32 0.0, %v8558
  %v8560 = vpop.f32.mrf.mxu0
  %8561 = vdwg.mxu0
  %v8578 = vunpack.c.l.b16 %v8386
  %v8579 = vunpack.c.l.b16 %v8387
  %v8580 = vunpack.c.l.b16 %v8388
  %v8581 = vunpack.c.l.b16 %v8389
  %v8582 = vunpack.c.l.b16 %v8390
  %v8583 = vunpack.c.l.b16 %v8391
  %v8584 = vunpack.c.l.b16 %v8392
  %v8585 = vunpack.c.l.b16 %v8393
  %v8586 = vunpack.c.l.b16 %v8394
  %v8587 = vunpack.c.l.b16 %v8395
  %v8588 = vunpack.c.l.b16 %v8396
  %v8589 = vunpack.c.l.b16 %v8397
  %v8590 = vunpack.c.l.b16 %v8398
  %v8591 = vunpack.c.l.b16 %v8399
  %v8592 = vunpack.c.l.b16 %v8400
  %v8593 = vunpack.c.l.b16 %v8401
  %v8594 = vpack.c.b16 %v8579, %v8578
  %v8595 = vpack.c.b16 %v8581, %v8580
  %v8596 = vpack.c.b16 %v8583, %v8582
  %v8597 = vpack.c.b16 %v8585, %v8584
  %v8598 = vpack.c.b16 %v8587, %v8586
  %v8599 = vpack.c.b16 %v8589, %v8588
  %v8600 = vpack.c.b16 %v8591, %v8590
  %v8601 = vpack.c.b16 %v8593, %v8592
  %8610 = vmatpush.bf16.msra.mxu0 %v8601
  %8611 = vmatpush.bf16.msra.mxu0 %v8600
  %8612 = vmatpush.bf16.msra.mxu0 %v8599
  %8613 = vmatpush.bf16.msra.mxu0 %v8598
  %8614 = vmatpush.bf16.msra.mxu0 %v8597
  %8615 = vmatpush.bf16.msra.mxu0 %v8596
  %8616 = vmatpush.bf16.msra.mxu0 %v8595
  %8617 = vmatpush.bf16.msra.mxu0 %v8594
  %8618 = vmatmul.bf16.gmra.mxu0 %v8243
  %v8619 = vpop.f32.mrf.mxu0
  %v8620 = vadd.f32 %v8509, %v8619
  %v8621 = vpop.f32.mrf.mxu0
  %v8622 = vadd.f32 %v8511, %v8621
  %8623 = vmatmul.bf16.gmra.mxu0 %v8244
  %v8624 = vpop.f32.mrf.mxu0
  %v8625 = vadd.f32 %v8514, %v8624
  %v8626 = vpop.f32.mrf.mxu0
  %v8627 = vadd.f32 %v8516, %v8626
  %8628 = vmatmul.bf16.gmra.mxu0 %v8245
  %v8629 = vpop.f32.mrf.mxu0
  %v8630 = vadd.f32 %v8519, %v8629
  %v8631 = vpop.f32.mrf.mxu0
  %v8632 = vadd.f32 %v8521, %v8631
  %8633 = vmatmul.bf16.gmra.mxu0 %v8246
  %v8634 = vpop.f32.mrf.mxu0
  %v8635 = vadd.f32 %v8524, %v8634
  %v8636 = vpop.f32.mrf.mxu0
  %v8637 = vadd.f32 %v8526, %v8636
  %8638 = vmatmul.bf16.gmra.mxu0 %v8247
  %v8639 = vpop.f32.mrf.mxu0
  %v8640 = vadd.f32 %v8529, %v8639
  %v8641 = vpop.f32.mrf.mxu0
  %v8642 = vadd.f32 %v8531, %v8641
  %8643 = vmatmul.bf16.gmra.mxu0 %v8248
  %v8644 = vpop.f32.mrf.mxu0
  %v8645 = vadd.f32 %v8534, %v8644
  %v8646 = vpop.f32.mrf.mxu0
  %v8647 = vadd.f32 %v8536, %v8646
  %8648 = vmatmul.bf16.gmra.mxu0 %v8249
  %v8649 = vpop.f32.mrf.mxu0
  %v8650 = vadd.f32 %v8539, %v8649
  %v8651 = vpop.f32.mrf.mxu0
  %v8652 = vadd.f32 %v8541, %v8651
  %8653 = vmatmul.bf16.gmra.mxu0 %v8250
  %v8654 = vpop.f32.mrf.mxu0
  %v8655 = vadd.f32 %v8544, %v8654
  %v8656 = vpop.f32.mrf.mxu0
  %v8657 = vadd.f32 %v8546, %v8656
  %8658 = vmatmul.bf16.gmra.mxu0 %v8251
  %v8659 = vpop.f32.mrf.mxu0
  %v8660 = vadd.f32 %v8549, %v8659
  %v8661 = vpop.f32.mrf.mxu0
  %v8662 = vadd.f32 %v8551, %v8661
  %8663 = vmatmul.bf16.gmra.mxu0 %v8252
  %v8664 = vpop.f32.mrf.mxu0
  %v8665 = vadd.f32 %v8554, %v8664
  %v8666 = vpop.f32.mrf.mxu0
  %v8667 = vadd.f32 %v8556, %v8666
  %8668 = vmatmul.bf16.gmra.mxu0 %v8253
  %v8669 = vpop.f32.mrf.mxu0
  %v8670 = vadd.f32 %v8559, %v8669
  %v8671 = vpop.f32.mrf.mxu0
  %8672 = vdwg.mxu0
  %v8673 = vadd.f32 %v8620, %v8272
  %v8674 = vadd.f32 %v8622, %v8272
  %v8675 = vadd.f32 %v8625, %v8272
  %v8676 = vadd.f32 %v8627, %v8272
  %v8677 = vadd.f32 %v8630, %v8272
  %v8678 = vadd.f32 %v8632, %v8272
  %v8679 = vadd.f32 %v8635, %v8272
  %v8680 = vadd.f32 %v8637, %v8272
  %v8681 = vadd.f32 %v8640, %v8272
  %v8682 = vadd.f32 %v8642, %v8272
  %v8683 = vadd.f32 %v8645, %v8272
  %v8684 = vadd.f32 %v8647, %v8272
  %v8685 = vadd.f32 %v8650, %v8272
  %v8686 = vadd.f32 %v8652, %v8272
  %v8687 = vadd.f32 %v8655, %v8272
  %v8688 = vadd.f32 %v8657, %v8272
  %v8689 = vadd.f32 %v8660, %v8272
  %v8690 = vadd.f32 %v8662, %v8272
  %v8691 = vadd.f32 %v8665, %v8272
  %v8692 = vadd.f32 %v8667, %v8272
  %v8693 = vadd.f32 %v8670, %v8272
  %s8694 = scalar_lea.vmem %s61, 448
  %v8695 = vld [vmem:[%s8694] sm:$0xf]
  %v8696 = vld [vmem:[%s8694 + $0x4] sm:$0xf]
  %v8697 = vld [vmem:[%s8694 + $0x8] sm:$0xf]
  %v8698 = vld [vmem:[%s8694 + $0xc] sm:$0xf]
  %v8699 = vld [vmem:[%s8694 + $0x10] sm:$0xf]
  %v8700 = vld [vmem:[%s8694 + $0x14] sm:$0xf]
  %v8701 = vld [vmem:[%s8694 + $0x18] sm:$0xf]
  %v8702 = vld [vmem:[%s8694 + $0x1c] sm:$0xf]
  %v8703 = vld [vmem:[%s8694 + $0x20] sm:$0xf]
  %v8704 = vld [vmem:[%s8694 + $0x24] sm:$0xf]
  %v8705 = vld [vmem:[%s8694 + $0x28] sm:$0xf]
  %v8706 = vld [vmem:[%s8694 + $0x2c] sm:$0xf]
  %v8707 = vld [vmem:[%s8694 + $0x30] sm:$0xf]
  %v8708 = vld [vmem:[%s8694 + $0x34] sm:$0xf]
  %v8709 = vld [vmem:[%s8694 + $0x38] sm:$0xf]
  %v8710 = vld [vmem:[%s8694 + $0x3c] sm:$0xf]
  %v8711 = vld [vmem:[#allocation6 + $0x9] sm:$0xff]
  %v8712 = vld [vmem:[#allocation6 + $0x11] sm:$0xff]
  %v8713 = vld [vmem:[#allocation6 + $0x19] sm:$0xff]
  %v8714 = vld [vmem:[#allocation6 + $0x21] sm:$0xff]
  %v8715 = vld [vmem:[#allocation6 + $0x29] sm:$0xff]
  %v8716 = vld [vmem:[#allocation6 + $0x31] sm:$0xff]
  %v8717 = vld [vmem:[#allocation6 + $0x39] sm:$0xff]
  %v8718 = vld [vmem:[#allocation6 + $0x41] sm:$0xff]
  %v8719 = vld [vmem:[#allocation6 + $0x49] sm:$0xff]
  %v8720 = vld [vmem:[#allocation6 + $0x51] sm:$0xff]
  %v8721 = vld [vmem:[#allocation6 + $0x59] sm:$0xff]
  %v8722 = vld [vmem:[#allocation6 + $0x61] sm:$0xff]
  %v8723 = vld [vmem:[#allocation6 + $0x69] sm:$0xff]
  %v8724 = vld [vmem:[#allocation6 + $0x71] sm:$0xff]
  %v8725 = vld [vmem:[#allocation6 + $0x79] sm:$0xff]
  %v8726 = vld [vmem:[#allocation6 + $0x81] sm:$0xff]
  %v8727 = vld [vmem:[#allocation6 + $0x89] sm:$0xff]
  %v8728 = vld [vmem:[#allocation6 + $0x91] sm:$0xff]
  %v8729 = vld [vmem:[#allocation6 + $0x99] sm:$0xff]
  %v8730 = vld [vmem:[#allocation6 + $0xa1] sm:$0xff]
  %v8731 = vld [vmem:[#allocation6 + $0xa9] sm:$0x3]
  %v8732 = vpack.c.bf16 %v8712, %v8711
  %v8733 = vpack.c.bf16 %v8714, %v8713
  %v8734 = vpack.c.bf16 %v8716, %v8715
  %v8735 = vpack.c.bf16 %v8718, %v8717
  %v8736 = vpack.c.bf16 %v8720, %v8719
  %v8737 = vpack.c.bf16 %v8722, %v8721
  %v8738 = vpack.c.bf16 %v8724, %v8723
  %v8739 = vpack.c.bf16 %v8726, %v8725
  %v8740 = vpack.c.bf16 %v8728, %v8727
  %v8741 = vpack.c.bf16 %v8730, %v8729
  %v8742 = vpack.c.bf16 %v8731, %v8731
  %s8743 = scalar_lea.vmem %s61, 64
  %v8744 = vld [vmem:[%s8743] sm:$0xf]
  %v8745 = vld [vmem:[%s8743 + $0x4] sm:$0xf]
  %v8746 = vld [vmem:[%s8743 + $0x8] sm:$0xf]
  %v8747 = vld [vmem:[%s8743 + $0xc] sm:$0xf]
  %v8748 = vld [vmem:[%s8743 + $0x10] sm:$0xf]
  %v8749 = vld [vmem:[%s8743 + $0x14] sm:$0xf]
  %v8750 = vld [vmem:[%s8743 + $0x18] sm:$0xf]
  %v8751 = vld [vmem:[%s8743 + $0x1c] sm:$0xf]
  %v8752 = vld [vmem:[%s8743 + $0x20] sm:$0xf]
  %v8753 = vld [vmem:[%s8743 + $0x24] sm:$0xf]
  %v8754 = vld [vmem:[%s8743 + $0x28] sm:$0xf]
  %v8755 = vld [vmem:[%s8743 + $0x2c] sm:$0xf]
  %v8756 = vld [vmem:[%s8743 + $0x30] sm:$0xf]
  %v8757 = vld [vmem:[%s8743 + $0x34] sm:$0xf]
  %v8758 = vld [vmem:[%s8743 + $0x38] sm:$0xf]
  %v8759 = vld [vmem:[%s8743 + $0x3c] sm:$0xf]
  %v8776 = vunpack.c.l.b16 %v8744
  %v8777 = vunpack.c.l.b16 %v8745
  %v8778 = vunpack.c.l.b16 %v8746
  %v8779 = vunpack.c.l.b16 %v8747
  %v8780 = vunpack.c.l.b16 %v8748
  %v8781 = vunpack.c.l.b16 %v8749
  %v8782 = vunpack.c.l.b16 %v8750
  %v8783 = vunpack.c.l.b16 %v8751
  %v8784 = vunpack.c.l.b16 %v8752
  %v8785 = vunpack.c.l.b16 %v8753
  %v8786 = vunpack.c.l.b16 %v8754
  %v8787 = vunpack.c.l.b16 %v8755
  %v8788 = vunpack.c.l.b16 %v8756
  %v8789 = vunpack.c.l.b16 %v8757
  %v8790 = vunpack.c.l.b16 %v8758
  %v8791 = vunpack.c.l.b16 %v8759
  %v8792 = vpack.c.b16 %v8777, %v8776
  %v8793 = vpack.c.b16 %v8779, %v8778
  %v8794 = vpack.c.b16 %v8781, %v8780
  %v8795 = vpack.c.b16 %v8783, %v8782
  %v8796 = vpack.c.b16 %v8785, %v8784
  %v8797 = vpack.c.b16 %v8787, %v8786
  %v8798 = vpack.c.b16 %v8789, %v8788
  %v8799 = vpack.c.b16 %v8791, %v8790
  %8808 = vmatpush.bf16.msra.mxu0 %v8799
  %8809 = vmatpush.bf16.msra.mxu0 %v8798
  %8810 = vmatpush.bf16.msra.mxu0 %v8797
  %8811 = vmatpush.bf16.msra.mxu0 %v8796
  %8812 = vmatpush.bf16.msra.mxu0 %v8795
  %8813 = vmatpush.bf16.msra.mxu0 %v8794
  %8814 = vmatpush.bf16.msra.mxu0 %v8793
  %8815 = vmatpush.bf16.msra.mxu0 %v8792
  %8816 = vmatmul.bf16.gmra.mxu0 %v8732
  %v8817 = vpop.f32.mrf.mxu0
  %v8818 = vadd.f32 0.0, %v8817
  %v8819 = vpop.f32.mrf.mxu0
  %v8820 = vadd.f32 0.0, %v8819
  %8821 = vmatmul.bf16.gmra.mxu0 %v8733
  %v8822 = vpop.f32.mrf.mxu0
  %v8823 = vadd.f32 0.0, %v8822
  %v8824 = vpop.f32.mrf.mxu0
  %v8825 = vadd.f32 0.0, %v8824
  %8826 = vmatmul.bf16.gmra.mxu0 %v8734
  %v8827 = vpop.f32.mrf.mxu0
  %v8828 = vadd.f32 0.0, %v8827
  %v8829 = vpop.f32.mrf.mxu0
  %v8830 = vadd.f32 0.0, %v8829
  %8831 = vmatmul.bf16.gmra.mxu0 %v8735
  %v8832 = vpop.f32.mrf.mxu0
  %v8833 = vadd.f32 0.0, %v8832
  %v8834 = vpop.f32.mrf.mxu0
  %v8835 = vadd.f32 0.0, %v8834
  %8836 = vmatmul.bf16.gmra.mxu0 %v8736
  %v8837 = vpop.f32.mrf.mxu0
  %v8838 = vadd.f32 0.0, %v8837
  %v8839 = vpop.f32.mrf.mxu0
  %v8840 = vadd.f32 0.0, %v8839
  %8841 = vmatmul.bf16.gmra.mxu0 %v8737
  %v8842 = vpop.f32.mrf.mxu0
  %v8843 = vadd.f32 0.0, %v8842
  %v8844 = vpop.f32.mrf.mxu0
  %v8845 = vadd.f32 0.0, %v8844
  %8846 = vmatmul.bf16.gmra.mxu0 %v8738
  %v8847 = vpop.f32.mrf.mxu0
  %v8848 = vadd.f32 0.0, %v8847
  %v8849 = vpop.f32.mrf.mxu0
  %v8850 = vadd.f32 0.0, %v8849
  %8851 = vmatmul.bf16.gmra.mxu0 %v8739
  %v8852 = vpop.f32.mrf.mxu0
  %v8853 = vadd.f32 0.0, %v8852
  %v8854 = vpop.f32.mrf.mxu0
  %v8855 = vadd.f32 0.0, %v8854
  %8856 = vmatmul.bf16.gmra.mxu0 %v8740
  %v8857 = vpop.f32.mrf.mxu0
  %v8858 = vadd.f32 0.0, %v8857
  %v8859 = vpop.f32.mrf.mxu0
  %v8860 = vadd.f32 0.0, %v8859
  %8861 = vmatmul.bf16.gmra.mxu0 %v8741
  %v8862 = vpop.f32.mrf.mxu0
  %v8863 = vadd.f32 0.0, %v8862
  %v8864 = vpop.f32.mrf.mxu0
  %v8865 = vadd.f32 0.0, %v8864
  %8866 = vmatmul.bf16.gmra.mxu0 %v8742
  %v8867 = vpop.f32.mrf.mxu0
  %v8868 = vadd.f32 0.0, %v8867
  %v8869 = vpop.f32.mrf.mxu0
  %8870 = vdwg.mxu0
  %v8887 = vunpack.c.l.b16 %v8695
  %v8888 = vunpack.c.l.b16 %v8696
  %v8889 = vunpack.c.l.b16 %v8697
  %v8890 = vunpack.c.l.b16 %v8698
  %v8891 = vunpack.c.l.b16 %v8699
  %v8892 = vunpack.c.l.b16 %v8700
  %v8893 = vunpack.c.l.b16 %v8701
  %v8894 = vunpack.c.l.b16 %v8702
  %v8895 = vunpack.c.l.b16 %v8703
  %v8896 = vunpack.c.l.b16 %v8704
  %v8897 = vunpack.c.l.b16 %v8705
  %v8898 = vunpack.c.l.b16 %v8706
  %v8899 = vunpack.c.l.b16 %v8707
  %v8900 = vunpack.c.l.b16 %v8708
  %v8901 = vunpack.c.l.b16 %v8709
  %v8902 = vunpack.c.l.b16 %v8710
  %v8903 = vpack.c.b16 %v8888, %v8887
  %v8904 = vpack.c.b16 %v8890, %v8889
  %v8905 = vpack.c.b16 %v8892, %v8891
  %v8906 = vpack.c.b16 %v8894, %v8893
  %v8907 = vpack.c.b16 %v8896, %v8895
  %v8908 = vpack.c.b16 %v8898, %v8897
  %v8909 = vpack.c.b16 %v8900, %v8899
  %v8910 = vpack.c.b16 %v8902, %v8901
  %8919 = vmatpush.bf16.msra.mxu0 %v8910
  %8920 = vmatpush.bf16.msra.mxu0 %v8909
  %8921 = vmatpush.bf16.msra.mxu0 %v8908
  %8922 = vmatpush.bf16.msra.mxu0 %v8907
  %8923 = vmatpush.bf16.msra.mxu0 %v8906
  %8924 = vmatpush.bf16.msra.mxu0 %v8905
  %8925 = vmatpush.bf16.msra.mxu0 %v8904
  %8926 = vmatpush.bf16.msra.mxu0 %v8903
  %8927 = vmatmul.bf16.gmra.mxu0 %v8243
  %v8928 = vpop.f32.mrf.mxu0
  %v8929 = vadd.f32 %v8818, %v8928
  %v8930 = vpop.f32.mrf.mxu0
  %v8931 = vadd.f32 %v8820, %v8930
  %8932 = vmatmul.bf16.gmra.mxu0 %v8244
  %v8933 = vpop.f32.mrf.mxu0
  %v8934 = vadd.f32 %v8823, %v8933
  %v8935 = vpop.f32.mrf.mxu0
  %v8936 = vadd.f32 %v8825, %v8935
  %8937 = vmatmul.bf16.gmra.mxu0 %v8245
  %v8938 = vpop.f32.mrf.mxu0
  %v8939 = vadd.f32 %v8828, %v8938
  %v8940 = vpop.f32.mrf.mxu0
  %v8941 = vadd.f32 %v8830, %v8940
  %8942 = vmatmul.bf16.gmra.mxu0 %v8246
  %v8943 = vpop.f32.mrf.mxu0
  %v8944 = vadd.f32 %v8833, %v8943
  %v8945 = vpop.f32.mrf.mxu0
  %v8946 = vadd.f32 %v8835, %v8945
  %8947 = vmatmul.bf16.gmra.mxu0 %v8247
  %v8948 = vpop.f32.mrf.mxu0
  %v8949 = vadd.f32 %v8838, %v8948
  %v8950 = vpop.f32.mrf.mxu0
  %v8951 = vadd.f32 %v8840, %v8950
  %8952 = vmatmul.bf16.gmra.mxu0 %v8248
  %v8953 = vpop.f32.mrf.mxu0
  %v8954 = vadd.f32 %v8843, %v8953
  %v8955 = vpop.f32.mrf.mxu0
  %v8956 = vadd.f32 %v8845, %v8955
  %8957 = vmatmul.bf16.gmra.mxu0 %v8249
  %v8958 = vpop.f32.mrf.mxu0
  %v8959 = vadd.f32 %v8848, %v8958
  %v8960 = vpop.f32.mrf.mxu0
  %v8961 = vadd.f32 %v8850, %v8960
  %8962 = vmatmul.bf16.gmra.mxu0 %v8250
  %v8963 = vpop.f32.mrf.mxu0
  %v8964 = vadd.f32 %v8853, %v8963
  %v8965 = vpop.f32.mrf.mxu0
  %v8966 = vadd.f32 %v8855, %v8965
  %8967 = vmatmul.bf16.gmra.mxu0 %v8251
  %v8968 = vpop.f32.mrf.mxu0
  %v8969 = vadd.f32 %v8858, %v8968
  %v8970 = vpop.f32.mrf.mxu0
  %v8971 = vadd.f32 %v8860, %v8970
  %8972 = vmatmul.bf16.gmra.mxu0 %v8252
  %v8973 = vpop.f32.mrf.mxu0
  %v8974 = vadd.f32 %v8863, %v8973
  %v8975 = vpop.f32.mrf.mxu0
  %v8976 = vadd.f32 %v8865, %v8975
  %8977 = vmatmul.bf16.gmra.mxu0 %v8253
  %v8978 = vpop.f32.mrf.mxu0
  %v8979 = vadd.f32 %v8868, %v8978
  %v8980 = vpop.f32.mrf.mxu0
  %8981 = vdwg.mxu0
  %v8982 = vadd.f32 %v8929, %v8272
  %v8983 = vadd.f32 %v8931, %v8272
  %v8984 = vadd.f32 %v8934, %v8272
  %v8985 = vadd.f32 %v8936, %v8272
  %v8986 = vadd.f32 %v8939, %v8272
  %v8987 = vadd.f32 %v8941, %v8272
  %v8988 = vadd.f32 %v8944, %v8272
  %v8989 = vadd.f32 %v8946, %v8272
  %v8990 = vadd.f32 %v8949, %v8272
  %v8991 = vadd.f32 %v8951, %v8272
  %v8992 = vadd.f32 %v8954, %v8272
  %v8993 = vadd.f32 %v8956, %v8272
  %v8994 = vadd.f32 %v8959, %v8272
  %v8995 = vadd.f32 %v8961, %v8272
  %v8996 = vadd.f32 %v8964, %v8272
  %v8997 = vadd.f32 %v8966, %v8272
  %v8998 = vadd.f32 %v8969, %v8272
  %v8999 = vadd.f32 %v8971, %v8272
  %v9000 = vadd.f32 %v8974, %v8272
  %v9001 = vadd.f32 %v8976, %v8272
  %v9002 = vadd.f32 %v8979, %v8272
  %s9003 = scalar_lea.vmem %s61, 512
  %v9004 = vld [vmem:[%s9003] sm:$0xf]
  %v9005 = vld [vmem:[%s9003 + $0x4] sm:$0xf]
  %v9006 = vld [vmem:[%s9003 + $0x8] sm:$0xf]
  %v9007 = vld [vmem:[%s9003 + $0xc] sm:$0xf]
  %v9008 = vld [vmem:[%s9003 + $0x10] sm:$0xf]
  %v9009 = vld [vmem:[%s9003 + $0x14] sm:$0xf]
  %v9010 = vld [vmem:[%s9003 + $0x18] sm:$0xf]
  %v9011 = vld [vmem:[%s9003 + $0x1c] sm:$0xf]
  %v9012 = vld [vmem:[%s9003 + $0x20] sm:$0xf]
  %v9013 = vld [vmem:[%s9003 + $0x24] sm:$0xf]
  %v9014 = vld [vmem:[%s9003 + $0x28] sm:$0xf]
  %v9015 = vld [vmem:[%s9003 + $0x2c] sm:$0xf]
  %v9016 = vld [vmem:[%s9003 + $0x30] sm:$0xf]
  %v9017 = vld [vmem:[%s9003 + $0x34] sm:$0xf]
  %v9018 = vld [vmem:[%s9003 + $0x38] sm:$0xf]
  %v9019 = vld [vmem:[%s9003 + $0x3c] sm:$0xf]
  %s9020 = scalar_lea.vmem %s61, 384
  %v9021 = vld [vmem:[%s9020] sm:$0xf]
  %v9022 = vld [vmem:[%s9020 + $0x4] sm:$0xf]
  %v9023 = vld [vmem:[%s9020 + $0x8] sm:$0xf]
  %v9024 = vld [vmem:[%s9020 + $0xc] sm:$0xf]
  %v9025 = vld [vmem:[%s9020 + $0x10] sm:$0xf]
  %v9026 = vld [vmem:[%s9020 + $0x14] sm:$0xf]
  %v9027 = vld [vmem:[%s9020 + $0x18] sm:$0xf]
  %v9028 = vld [vmem:[%s9020 + $0x1c] sm:$0xf]
  %v9029 = vld [vmem:[%s9020 + $0x20] sm:$0xf]
  %v9030 = vld [vmem:[%s9020 + $0x24] sm:$0xf]
  %v9031 = vld [vmem:[%s9020 + $0x28] sm:$0xf]
  %v9032 = vld [vmem:[%s9020 + $0x2c] sm:$0xf]
  %v9033 = vld [vmem:[%s9020 + $0x30] sm:$0xf]
  %v9034 = vld [vmem:[%s9020 + $0x34] sm:$0xf]
  %v9035 = vld [vmem:[%s9020 + $0x38] sm:$0xf]
  %v9036 = vld [vmem:[%s9020 + $0x3c] sm:$0xf]
  %v9053 = vunpack.c.l.b16 %v9021
  %v9054 = vunpack.c.l.b16 %v9022
  %v9055 = vunpack.c.l.b16 %v9023
  %v9056 = vunpack.c.l.b16 %v9024
  %v9057 = vunpack.c.l.b16 %v9025
  %v9058 = vunpack.c.l.b16 %v9026
  %v9059 = vunpack.c.l.b16 %v9027
  %v9060 = vunpack.c.l.b16 %v9028
  %v9061 = vunpack.c.l.b16 %v9029
  %v9062 = vunpack.c.l.b16 %v9030
  %v9063 = vunpack.c.l.b16 %v9031
  %v9064 = vunpack.c.l.b16 %v9032
  %v9065 = vunpack.c.l.b16 %v9033
  %v9066 = vunpack.c.l.b16 %v9034
  %v9067 = vunpack.c.l.b16 %v9035
  %v9068 = vunpack.c.l.b16 %v9036
  %v9069 = vpack.c.b16 %v9054, %v9053
  %v9070 = vpack.c.b16 %v9056, %v9055
  %v9071 = vpack.c.b16 %v9058, %v9057
  %v9072 = vpack.c.b16 %v9060, %v9059
  %v9073 = vpack.c.b16 %v9062, %v9061
  %v9074 = vpack.c.b16 %v9064, %v9063
  %v9075 = vpack.c.b16 %v9066, %v9065
  %v9076 = vpack.c.b16 %v9068, %v9067
  %9085 = vmatpush.bf16.msra.mxu0 %v9076
  %9086 = vmatpush.bf16.msra.mxu0 %v9075
  %9087 = vmatpush.bf16.msra.mxu0 %v9074
  %9088 = vmatpush.bf16.msra.mxu0 %v9073
  %9089 = vmatpush.bf16.msra.mxu0 %v9072
  %9090 = vmatpush.bf16.msra.mxu0 %v9071
  %9091 = vmatpush.bf16.msra.mxu0 %v9070
  %9092 = vmatpush.bf16.msra.mxu0 %v9069
  %9093 = vmatmul.bf16.gmra.mxu0 %v8423
  %v9094 = vpop.f32.mrf.mxu0
  %v9095 = vadd.f32 0.0, %v9094
  %v9096 = vpop.f32.mrf.mxu0
  %v9097 = vadd.f32 0.0, %v9096
  %9098 = vmatmul.bf16.gmra.mxu0 %v8424
  %v9099 = vpop.f32.mrf.mxu0
  %v9100 = vadd.f32 0.0, %v9099
  %v9101 = vpop.f32.mrf.mxu0
  %v9102 = vadd.f32 0.0, %v9101
  %9103 = vmatmul.bf16.gmra.mxu0 %v8425
  %v9104 = vpop.f32.mrf.mxu0
  %v9105 = vadd.f32 0.0, %v9104
  %v9106 = vpop.f32.mrf.mxu0
  %v9107 = vadd.f32 0.0, %v9106
  %9108 = vmatmul.bf16.gmra.mxu0 %v8426
  %v9109 = vpop.f32.mrf.mxu0
  %v9110 = vadd.f32 0.0, %v9109
  %v9111 = vpop.f32.mrf.mxu0
  %v9112 = vadd.f32 0.0, %v9111
  %9113 = vmatmul.bf16.gmra.mxu0 %v8427
  %v9114 = vpop.f32.mrf.mxu0
  %v9115 = vadd.f32 0.0, %v9114
  %v9116 = vpop.f32.mrf.mxu0
  %v9117 = vadd.f32 0.0, %v9116
  %9118 = vmatmul.bf16.gmra.mxu0 %v8428
  %v9119 = vpop.f32.mrf.mxu0
  %v9120 = vadd.f32 0.0, %v9119
  %v9121 = vpop.f32.mrf.mxu0
  %v9122 = vadd.f32 0.0, %v9121
  %9123 = vmatmul.bf16.gmra.mxu0 %v8429
  %v9124 = vpop.f32.mrf.mxu0
  %v9125 = vadd.f32 0.0, %v9124
  %v9126 = vpop.f32.mrf.mxu0
  %v9127 = vadd.f32 0.0, %v9126
  %9128 = vmatmul.bf16.gmra.mxu0 %v8430
  %v9129 = vpop.f32.mrf.mxu0
  %v9130 = vadd.f32 0.0, %v9129
  %v9131 = vpop.f32.mrf.mxu0
  %v9132 = vadd.f32 0.0, %v9131
  %9133 = vmatmul.bf16.gmra.mxu0 %v8431
  %v9134 = vpop.f32.mrf.mxu0
  %v9135 = vadd.f32 0.0, %v9134
  %v9136 = vpop.f32.mrf.mxu0
  %v9137 = vadd.f32 0.0, %v9136
  %9138 = vmatmul.bf16.gmra.mxu0 %v8432
  %v9139 = vpop.f32.mrf.mxu0
  %v9140 = vadd.f32 0.0, %v9139
  %v9141 = vpop.f32.mrf.mxu0
  %v9142 = vadd.f32 0.0, %v9141
  %9143 = vmatmul.bf16.gmra.mxu0 %v8433
  %v9144 = vpop.f32.mrf.mxu0
  %v9145 = vadd.f32 0.0, %v9144
  %v9146 = vpop.f32.mrf.mxu0
  %9147 = vdwg.mxu0
  %v9164 = vunpack.c.l.b16 %v9004
  %v9165 = vunpack.c.l.b16 %v9005
  %v9166 = vunpack.c.l.b16 %v9006
  %v9167 = vunpack.c.l.b16 %v9007
  %v9168 = vunpack.c.l.b16 %v9008
  %v9169 = vunpack.c.l.b16 %v9009
  %v9170 = vunpack.c.l.b16 %v9010
  %v9171 = vunpack.c.l.b16 %v9011
  %v9172 = vunpack.c.l.b16 %v9012
  %v9173 = vunpack.c.l.b16 %v9013
  %v9174 = vunpack.c.l.b16 %v9014
  %v9175 = vunpack.c.l.b16 %v9015
  %v9176 = vunpack.c.l.b16 %v9016
  %v9177 = vunpack.c.l.b16 %v9017
  %v9178 = vunpack.c.l.b16 %v9018
  %v9179 = vunpack.c.l.b16 %v9019
  %v9180 = vpack.c.b16 %v9165, %v9164
  %v9181 = vpack.c.b16 %v9167, %v9166
  %v9182 = vpack.c.b16 %v9169, %v9168
  %v9183 = vpack.c.b16 %v9171, %v9170
  %v9184 = vpack.c.b16 %v9173, %v9172
  %v9185 = vpack.c.b16 %v9175, %v9174
  %v9186 = vpack.c.b16 %v9177, %v9176
  %v9187 = vpack.c.b16 %v9179, %v9178
  %9196 = vmatpush.bf16.msra.mxu0 %v9187
  %9197 = vmatpush.bf16.msra.mxu0 %v9186
  %9198 = vmatpush.bf16.msra.mxu0 %v9185
  %9199 = vmatpush.bf16.msra.mxu0 %v9184
  %9200 = vmatpush.bf16.msra.mxu0 %v9183
  %9201 = vmatpush.bf16.msra.mxu0 %v9182
  %9202 = vmatpush.bf16.msra.mxu0 %v9181
  %9203 = vmatpush.bf16.msra.mxu0 %v9180
  %9204 = vmatmul.bf16.gmra.mxu0 %v8243
  %v9205 = vpop.f32.mrf.mxu0
  %v9206 = vadd.f32 %v9095, %v9205
  %v9207 = vpop.f32.mrf.mxu0
  %v9208 = vadd.f32 %v9097, %v9207
  %9209 = vmatmul.bf16.gmra.mxu0 %v8244
  %v9210 = vpop.f32.mrf.mxu0
  %v9211 = vadd.f32 %v9100, %v9210
  %v9212 = vpop.f32.mrf.mxu0
  %v9213 = vadd.f32 %v9102, %v9212
  %9214 = vmatmul.bf16.gmra.mxu0 %v8245
  %v9215 = vpop.f32.mrf.mxu0
  %v9216 = vadd.f32 %v9105, %v9215
  %v9217 = vpop.f32.mrf.mxu0
  %v9218 = vadd.f32 %v9107, %v9217
  %9219 = vmatmul.bf16.gmra.mxu0 %v8246
  %v9220 = vpop.f32.mrf.mxu0
  %v9221 = vadd.f32 %v9110, %v9220
  %v9222 = vpop.f32.mrf.mxu0
  %v9223 = vadd.f32 %v9112, %v9222
  %9224 = vmatmul.bf16.gmra.mxu0 %v8247
  %v9225 = vpop.f32.mrf.mxu0
  %v9226 = vadd.f32 %v9115, %v9225
  %v9227 = vpop.f32.mrf.mxu0
  %v9228 = vadd.f32 %v9117, %v9227
  %9229 = vmatmul.bf16.gmra.mxu0 %v8248
  %v9230 = vpop.f32.mrf.mxu0
  %v9231 = vadd.f32 %v9120, %v9230
  %v9232 = vpop.f32.mrf.mxu0
  %v9233 = vadd.f32 %v9122, %v9232
  %9234 = vmatmul.bf16.gmra.mxu0 %v8249
  %v9235 = vpop.f32.mrf.mxu0
  %v9236 = vadd.f32 %v9125, %v9235
  %v9237 = vpop.f32.mrf.mxu0
  %v9238 = vadd.f32 %v9127, %v9237
  %9239 = vmatmul.bf16.gmra.mxu0 %v8250
  %v9240 = vpop.f32.mrf.mxu0
  %v9241 = vadd.f32 %v9130, %v9240
  %v9242 = vpop.f32.mrf.mxu0
  %v9243 = vadd.f32 %v9132, %v9242
  %9244 = vmatmul.bf16.gmra.mxu0 %v8251
  %v9245 = vpop.f32.mrf.mxu0
  %v9246 = vadd.f32 %v9135, %v9245
  %v9247 = vpop.f32.mrf.mxu0
  %v9248 = vadd.f32 %v9137, %v9247
  %9249 = vmatmul.bf16.gmra.mxu0 %v8252
  %v9250 = vpop.f32.mrf.mxu0
  %v9251 = vadd.f32 %v9140, %v9250
  %v9252 = vpop.f32.mrf.mxu0
  %v9253 = vadd.f32 %v9142, %v9252
  %9254 = vmatmul.bf16.gmra.mxu0 %v8253
  %v9255 = vpop.f32.mrf.mxu0
  %v9256 = vadd.f32 %v9145, %v9255
  %v9257 = vpop.f32.mrf.mxu0
  %9258 = vdwg.mxu0
  %s9259 = scalar_lea.vmem %s61, 128
  %v9260 = vld [vmem:[%s9259] sm:$0xf]
  %v9261 = vld [vmem:[%s9259 + $0x4] sm:$0xf]
  %v9262 = vld [vmem:[%s9259 + $0x8] sm:$0xf]
  %v9263 = vld [vmem:[%s9259 + $0xc] sm:$0xf]
  %v9264 = vld [vmem:[%s9259 + $0x10] sm:$0xf]
  %v9265 = vld [vmem:[%s9259 + $0x14] sm:$0xf]
  %v9266 = vld [vmem:[%s9259 + $0x18] sm:$0xf]
  %v9267 = vld [vmem:[%s9259 + $0x1c] sm:$0xf]
  %v9268 = vld [vmem:[%s9259 + $0x20] sm:$0xf]
  %v9269 = vld [vmem:[%s9259 + $0x24] sm:$0xf]
  %v9270 = vld [vmem:[%s9259 + $0x28] sm:$0xf]
  %v9271 = vld [vmem:[%s9259 + $0x2c] sm:$0xf]
  %v9272 = vld [vmem:[%s9259 + $0x30] sm:$0xf]
  %v9273 = vld [vmem:[%s9259 + $0x34] sm:$0xf]
  %v9274 = vld [vmem:[%s9259 + $0x38] sm:$0xf]
  %v9275 = vld [vmem:[%s9259 + $0x3c] sm:$0xf]
  %v9292 = vunpack.c.l.b16 %v9260
  %v9293 = vunpack.c.l.b16 %v9261
  %v9294 = vunpack.c.l.b16 %v9262
  %v9295 = vunpack.c.l.b16 %v9263
  %v9296 = vunpack.c.l.b16 %v9264
  %v9297 = vunpack.c.l.b16 %v9265
  %v9298 = vunpack.c.l.b16 %v9266
  %v9299 = vunpack.c.l.b16 %v9267
  %v9300 = vunpack.c.l.b16 %v9268
  %v9301 = vunpack.c.l.b16 %v9269
  %v9302 = vunpack.c.l.b16 %v9270
  %v9303 = vunpack.c.l.b16 %v9271
  %v9304 = vunpack.c.l.b16 %v9272
  %v9305 = vunpack.c.l.b16 %v9273
  %v9306 = vunpack.c.l.b16 %v9274
  %v9307 = vunpack.c.l.b16 %v9275
  %v9308 = vpack.c.b16 %v9293, %v9292
  %v9309 = vpack.c.b16 %v9295, %v9294
  %v9310 = vpack.c.b16 %v9297, %v9296
  %v9311 = vpack.c.b16 %v9299, %v9298
  %v9312 = vpack.c.b16 %v9301, %v9300
  %v9313 = vpack.c.b16 %v9303, %v9302
  %v9314 = vpack.c.b16 %v9305, %v9304
  %v9315 = vpack.c.b16 %v9307, %v9306
  %9324 = vmatpush.bf16.msra.mxu0 %v9315
  %9325 = vmatpush.bf16.msra.mxu0 %v9314
  %9326 = vmatpush.bf16.msra.mxu0 %v9313
  %9327 = vmatpush.bf16.msra.mxu0 %v9312
  %9328 = vmatpush.bf16.msra.mxu0 %v9311
  %9329 = vmatpush.bf16.msra.mxu0 %v9310
  %9330 = vmatpush.bf16.msra.mxu0 %v9309
  %9331 = vmatpush.bf16.msra.mxu0 %v9308
  %9332 = vmatmul.bf16.gmra.mxu0 %v8732
  %v9333 = vpop.f32.mrf.mxu0
  %v9334 = vadd.f32 0.0, %v9333
  %v9335 = vpop.f32.mrf.mxu0
  %v9336 = vadd.f32 0.0, %v9335
  %9337 = vmatmul.bf16.gmra.mxu0 %v8733
  %v9338 = vpop.f32.mrf.mxu0
  %v9339 = vadd.f32 0.0, %v9338
  %v9340 = vpop.f32.mrf.mxu0
  %v9341 = vadd.f32 0.0, %v9340
  %9342 = vmatmul.bf16.gmra.mxu0 %v8734
  %v9343 = vpop.f32.mrf.mxu0
  %v9344 = vadd.f32 0.0, %v9343
  %v9345 = vpop.f32.mrf.mxu0
  %v9346 = vadd.f32 0.0, %v9345
  %9347 = vmatmul.bf16.gmra.mxu0 %v8735
  %v9348 = vpop.f32.mrf.mxu0
  %v9349 = vadd.f32 0.0, %v9348
  %v9350 = vpop.f32.mrf.mxu0
  %v9351 = vadd.f32 0.0, %v9350
  %9352 = vmatmul.bf16.gmra.mxu0 %v8736
  %v9353 = vpop.f32.mrf.mxu0
  %v9354 = vadd.f32 0.0, %v9353
  %v9355 = vpop.f32.mrf.mxu0
  %v9356 = vadd.f32 0.0, %v9355
  %9357 = vmatmul.bf16.gmra.mxu0 %v8737
  %v9358 = vpop.f32.mrf.mxu0
  %v9359 = vadd.f32 0.0, %v9358
  %v9360 = vpop.f32.mrf.mxu0
  %v9361 = vadd.f32 0.0, %v9360
  %9362 = vmatmul.bf16.gmra.mxu0 %v8738
  %v9363 = vpop.f32.mrf.mxu0
  %v9364 = vadd.f32 0.0, %v9363
  %v9365 = vpop.f32.mrf.mxu0
  %v9366 = vadd.f32 0.0, %v9365
  %9367 = vmatmul.bf16.gmra.mxu0 %v8739
  %v9368 = vpop.f32.mrf.mxu0
  %v9369 = vadd.f32 0.0, %v9368
  %v9370 = vpop.f32.mrf.mxu0
  %v9371 = vadd.f32 0.0, %v9370
  %9372 = vmatmul.bf16.gmra.mxu0 %v8740
  %v9373 = vpop.f32.mrf.mxu0
  %v9374 = vadd.f32 0.0, %v9373
  %v9375 = vpop.f32.mrf.mxu0
  %v9376 = vadd.f32 0.0, %v9375
  %9377 = vmatmul.bf16.gmra.mxu0 %v8741
  %v9378 = vpop.f32.mrf.mxu0
  %v9379 = vadd.f32 0.0, %v9378
  %v9380 = vpop.f32.mrf.mxu0
  %v9381 = vadd.f32 0.0, %v9380
  %9382 = vmatmul.bf16.gmra.mxu0 %v8742
  %v9383 = vpop.f32.mrf.mxu0
  %v9384 = vadd.f32 0.0, %v9383
  %v9385 = vpop.f32.mrf.mxu0
  %9386 = vdwg.mxu0
  %v9387 = vadd.f32 %v9206, %v9334
  %v9388 = vadd.f32 %v9208, %v9336
  %v9389 = vadd.f32 %v9211, %v9339
  %v9390 = vadd.f32 %v9213, %v9341
  %v9391 = vadd.f32 %v9216, %v9344
  %v9392 = vadd.f32 %v9218, %v9346
  %v9393 = vadd.f32 %v9221, %v9349
  %v9394 = vadd.f32 %v9223, %v9351
  %v9395 = vadd.f32 %v9226, %v9354
  %v9396 = vadd.f32 %v9228, %v9356
  %v9397 = vadd.f32 %v9231, %v9359
  %v9398 = vadd.f32 %v9233, %v9361
  %v9399 = vadd.f32 %v9236, %v9364
  %v9400 = vadd.f32 %v9238, %v9366
  %v9401 = vadd.f32 %v9241, %v9369
  %v9402 = vadd.f32 %v9243, %v9371
  %v9403 = vadd.f32 %v9246, %v9374
  %v9404 = vadd.f32 %v9248, %v9376
  %v9405 = vadd.f32 %v9251, %v9379
  %v9406 = vadd.f32 %v9253, %v9381
  %v9407 = vadd.f32 %v9256, %v9384
  %v9408 = vld [vmem:[#allocation6 + $0xa] sm:$0xff]
  %v9409 = vld [vmem:[#allocation6 + $0x12] sm:$0xff]
  %v9410 = vld [vmem:[#allocation6 + $0x1a] sm:$0xff]
  %v9411 = vld [vmem:[#allocation6 + $0x22] sm:$0xff]
  %v9412 = vld [vmem:[#allocation6 + $0x2a] sm:$0xff]
  %v9413 = vld [vmem:[#allocation6 + $0x32] sm:$0xff]
  %v9414 = vld [vmem:[#allocation6 + $0x3a] sm:$0xff]
  %v9415 = vld [vmem:[#allocation6 + $0x42] sm:$0xff]
  %v9416 = vld [vmem:[#allocation6 + $0x4a] sm:$0xff]
  %v9417 = vld [vmem:[#allocation6 + $0x52] sm:$0xff]
  %v9418 = vld [vmem:[#allocation6 + $0x5a] sm:$0xff]
  %v9419 = vld [vmem:[#allocation6 + $0x62] sm:$0xff]
  %v9420 = vld [vmem:[#allocation6 + $0x6a] sm:$0xff]
  %v9421 = vld [vmem:[#allocation6 + $0x72] sm:$0xff]
  %v9422 = vld [vmem:[#allocation6 + $0x7a] sm:$0xff]
  %v9423 = vld [vmem:[#allocation6 + $0x82] sm:$0xff]
  %v9424 = vld [vmem:[#allocation6 + $0x8a] sm:$0xff]
  %v9425 = vld [vmem:[#allocation6 + $0x92] sm:$0xff]
  %v9426 = vld [vmem:[#allocation6 + $0x9a] sm:$0xff]
  %v9427 = vld [vmem:[#allocation6 + $0xa2] sm:$0xff]
  %v9428 = vld [vmem:[#allocation6 + $0xaa] sm:$0x3]
  %v9429 = vpack.c.bf16 %v9409, %v9408
  %v9430 = vpack.c.bf16 %v9411, %v9410
  %v9431 = vpack.c.bf16 %v9413, %v9412
  %v9432 = vpack.c.bf16 %v9415, %v9414
  %v9433 = vpack.c.bf16 %v9417, %v9416
  %v9434 = vpack.c.bf16 %v9419, %v9418
  %v9435 = vpack.c.bf16 %v9421, %v9420
  %v9436 = vpack.c.bf16 %v9423, %v9422
  %v9437 = vpack.c.bf16 %v9425, %v9424
  %v9438 = vpack.c.bf16 %v9427, %v9426
  %v9439 = vpack.c.bf16 %v9428, %v9428
  %v9440 = vld [vmem:[%s61] sm:$0xf]
  %v9441 = vld [vmem:[%s61 + $0x4] sm:$0xf]
  %v9442 = vld [vmem:[%s61 + $0x8] sm:$0xf]
  %v9443 = vld [vmem:[%s61 + $0xc] sm:$0xf]
  %v9444 = vld [vmem:[%s61 + $0x10] sm:$0xf]
  %v9445 = vld [vmem:[%s61 + $0x14] sm:$0xf]
  %v9446 = vld [vmem:[%s61 + $0x18] sm:$0xf]
  %v9447 = vld [vmem:[%s61 + $0x1c] sm:$0xf]
  %v9448 = vld [vmem:[%s61 + $0x20] sm:$0xf]
  %v9449 = vld [vmem:[%s61 + $0x24] sm:$0xf]
  %v9450 = vld [vmem:[%s61 + $0x28] sm:$0xf]
  %v9451 = vld [vmem:[%s61 + $0x2c] sm:$0xf]
  %v9452 = vld [vmem:[%s61 + $0x30] sm:$0xf]
  %v9453 = vld [vmem:[%s61 + $0x34] sm:$0xf]
  %v9454 = vld [vmem:[%s61 + $0x38] sm:$0xf]
  %v9455 = vld [vmem:[%s61 + $0x3c] sm:$0xf]
  %v9472 = vunpack.c.l.b16 %v9440
  %v9473 = vunpack.c.l.b16 %v9441
  %v9474 = vunpack.c.l.b16 %v9442
  %v9475 = vunpack.c.l.b16 %v9443
  %v9476 = vunpack.c.l.b16 %v9444
  %v9477 = vunpack.c.l.b16 %v9445
  %v9478 = vunpack.c.l.b16 %v9446
  %v9479 = vunpack.c.l.b16 %v9447
  %v9480 = vunpack.c.l.b16 %v9448
  %v9481 = vunpack.c.l.b16 %v9449
  %v9482 = vunpack.c.l.b16 %v9450
  %v9483 = vunpack.c.l.b16 %v9451
  %v9484 = vunpack.c.l.b16 %v9452
  %v9485 = vunpack.c.l.b16 %v9453
  %v9486 = vunpack.c.l.b16 %v9454
  %v9487 = vunpack.c.l.b16 %v9455
  %v9488 = vpack.c.b16 %v9473, %v9472
  %v9489 = vpack.c.b16 %v9475, %v9474
  %v9490 = vpack.c.b16 %v9477, %v9476
  %v9491 = vpack.c.b16 %v9479, %v9478
  %v9492 = vpack.c.b16 %v9481, %v9480
  %v9493 = vpack.c.b16 %v9483, %v9482
  %v9494 = vpack.c.b16 %v9485, %v9484
  %v9495 = vpack.c.b16 %v9487, %v9486
  %9504 = vmatpush.bf16.msra.mxu0 %v9495
  %9505 = vmatpush.bf16.msra.mxu0 %v9494
  %9506 = vmatpush.bf16.msra.mxu0 %v9493
  %9507 = vmatpush.bf16.msra.mxu0 %v9492
  %9508 = vmatpush.bf16.msra.mxu0 %v9491
  %9509 = vmatpush.bf16.msra.mxu0 %v9490
  %9510 = vmatpush.bf16.msra.mxu0 %v9489
  %9511 = vmatpush.bf16.msra.mxu0 %v9488
  %9512 = vmatmul.bf16.gmra.mxu0 %v9429
  %v9513 = vpop.f32.mrf.mxu0
  %v9514 = vadd.f32 0.0, %v9513
  %v9515 = vpop.f32.mrf.mxu0
  %v9516 = vadd.f32 0.0, %v9515
  %9517 = vmatmul.bf16.gmra.mxu0 %v9430
  %v9518 = vpop.f32.mrf.mxu0
  %v9519 = vadd.f32 0.0, %v9518
  %v9520 = vpop.f32.mrf.mxu0
  %v9521 = vadd.f32 0.0, %v9520
  %9522 = vmatmul.bf16.gmra.mxu0 %v9431
  %v9523 = vpop.f32.mrf.mxu0
  %v9524 = vadd.f32 0.0, %v9523
  %v9525 = vpop.f32.mrf.mxu0
  %v9526 = vadd.f32 0.0, %v9525
  %9527 = vmatmul.bf16.gmra.mxu0 %v9432
  %v9528 = vpop.f32.mrf.mxu0
  %v9529 = vadd.f32 0.0, %v9528
  %v9530 = vpop.f32.mrf.mxu0
  %v9531 = vadd.f32 0.0, %v9530
  %9532 = vmatmul.bf16.gmra.mxu0 %v9433
  %v9533 = vpop.f32.mrf.mxu0
  %v9534 = vadd.f32 0.0, %v9533
  %v9535 = vpop.f32.mrf.mxu0
  %v9536 = vadd.f32 0.0, %v9535
  %9537 = vmatmul.bf16.gmra.mxu0 %v9434
  %v9538 = vpop.f32.mrf.mxu0
  %v9539 = vadd.f32 0.0, %v9538
  %v9540 = vpop.f32.mrf.mxu0
  %v9541 = vadd.f32 0.0, %v9540
  %9542 = vmatmul.bf16.gmra.mxu0 %v9435
  %v9543 = vpop.f32.mrf.mxu0
  %v9544 = vadd.f32 0.0, %v9543
  %v9545 = vpop.f32.mrf.mxu0
  %v9546 = vadd.f32 0.0, %v9545
  %9547 = vmatmul.bf16.gmra.mxu0 %v9436
  %v9548 = vpop.f32.mrf.mxu0
  %v9549 = vadd.f32 0.0, %v9548
  %v9550 = vpop.f32.mrf.mxu0
  %v9551 = vadd.f32 0.0, %v9550
  %9552 = vmatmul.bf16.gmra.mxu0 %v9437
  %v9553 = vpop.f32.mrf.mxu0
  %v9554 = vadd.f32 0.0, %v9553
  %v9555 = vpop.f32.mrf.mxu0
  %v9556 = vadd.f32 0.0, %v9555
  %9557 = vmatmul.bf16.gmra.mxu0 %v9438
  %v9558 = vpop.f32.mrf.mxu0
  %v9559 = vadd.f32 0.0, %v9558
  %v9560 = vpop.f32.mrf.mxu0
  %v9561 = vadd.f32 0.0, %v9560
  %9562 = vmatmul.bf16.gmra.mxu0 %v9439
  %v9563 = vpop.f32.mrf.mxu0
  %v9564 = vadd.f32 0.0, %v9563
  %v9565 = vpop.f32.mrf.mxu0
  %9566 = vdwg.mxu0
  %v9567 = vadd.f32 %v9387, %v9514
  %v9568 = vadd.f32 %v9388, %v9516
  %v9569 = vadd.f32 %v9389, %v9519
  %v9570 = vadd.f32 %v9390, %v9521
  %v9571 = vadd.f32 %v9391, %v9524
  %v9572 = vadd.f32 %v9392, %v9526
  %v9573 = vadd.f32 %v9393, %v9529
  %v9574 = vadd.f32 %v9394, %v9531
  %v9575 = vadd.f32 %v9395, %v9534
  %v9576 = vadd.f32 %v9396, %v9536
  %v9577 = vadd.f32 %v9397, %v9539
  %v9578 = vadd.f32 %v9398, %v9541
  %v9579 = vadd.f32 %v9399, %v9544
  %v9580 = vadd.f32 %v9400, %v9546
  %v9581 = vadd.f32 %v9401, %v9549
  %v9582 = vadd.f32 %v9402, %v9551
  %v9583 = vadd.f32 %v9403, %v9554
  %v9584 = vadd.f32 %v9404, %v9556
  %v9585 = vadd.f32 %v9405, %v9559
  %v9586 = vadd.f32 %v9406, %v9561
  %v9587 = vadd.f32 %v9407, %v9564
  %v9588 = vadd.f32 %v9567, %v8272
  %v9589 = vadd.f32 %v9568, %v8272
  %v9590 = vadd.f32 %v9569, %v8272
  %v9591 = vadd.f32 %v9570, %v8272
  %v9592 = vadd.f32 %v9571, %v8272
  %v9593 = vadd.f32 %v9572, %v8272
  %v9594 = vadd.f32 %v9573, %v8272
  %v9595 = vadd.f32 %v9574, %v8272
  %v9596 = vadd.f32 %v9575, %v8272
  %v9597 = vadd.f32 %v9576, %v8272
  %v9598 = vadd.f32 %v9577, %v8272
  %v9599 = vadd.f32 %v9578, %v8272
  %v9600 = vadd.f32 %v9579, %v8272
  %v9601 = vadd.f32 %v9580, %v8272
  %v9602 = vadd.f32 %v9581, %v8272
  %v9603 = vadd.f32 %v9582, %v8272
  %v9604 = vadd.f32 %v9583, %v8272
  %v9605 = vadd.f32 %v9584, %v8272
  %v9606 = vadd.f32 %v9585, %v8272
  %v9607 = vadd.f32 %v9586, %v8272
  %v9608 = vadd.f32 %v9587, %v8272
  %v9609 = vtanh.pop %v8332
  %v9610 = vtanh.pop %v8334
  %v9611 = vtanh.pop %v8337
  %v9612 = vtanh.pop %v8339
  %v9613 = vtanh.pop %v8342
  %v9614 = vtanh.pop %v8344
  %v9615 = vtanh.pop %v8347
  %v9616 = vtanh.pop %v8349
  %v9617 = vtanh.pop %v8352
  %v9618 = vtanh.pop %v8354
  %v9619 = vtanh.pop %v8357
  %v9620 = vtanh.pop %v8359
  %v9621 = vtanh.pop %v8362
  %v9622 = vtanh.pop %v8364
  %v9623 = vtanh.pop %v8367
  %v9624 = vtanh.pop %v8369
  %v9625 = vtanh.pop %v8372
  %v9626 = vtanh.pop %v8374
  %v9627 = vtanh.pop %v8377
  %v9628 = vtanh.pop %v8379
  %v9629 = vtanh.pop %v8382
  %v9630 = vtanh.pop %v8673
  %v9631 = vtanh.pop %v8674
  %v9632 = vtanh.pop %v8675
  %v9633 = vtanh.pop %v8676
  %v9634 = vtanh.pop %v8677
  %v9635 = vtanh.pop %v8678
  %v9636 = vtanh.pop %v8679
  %v9637 = vtanh.pop %v8680
  %v9638 = vtanh.pop %v8681
  %v9639 = vtanh.pop %v8682
  %v9640 = vtanh.pop %v8683
  %v9641 = vtanh.pop %v8684
  %v9642 = vtanh.pop %v8685
  %v9643 = vtanh.pop %v8686
  %v9644 = vtanh.pop %v8687
  %v9645 = vtanh.pop %v8688
  %v9646 = vtanh.pop %v8689
  %v9647 = vtanh.pop %v8690
  %v9648 = vtanh.pop %v8691
  %v9649 = vtanh.pop %v8692
  %v9650 = vtanh.pop %v8693
  %v9651 = vtanh.pop %v8982
  %v9652 = vtanh.pop %v8983
  %v9653 = vtanh.pop %v8984
  %v9654 = vtanh.pop %v8985
  %v9655 = vtanh.pop %v8986
  %v9656 = vtanh.pop %v8987
  %v9657 = vtanh.pop %v8988
  %v9658 = vtanh.pop %v8989
  %v9659 = vtanh.pop %v8990
  %v9660 = vtanh.pop %v8991
  %v9661 = vtanh.pop %v8992
  %v9662 = vtanh.pop %v8993
  %v9663 = vtanh.pop %v8994
  %v9664 = vtanh.pop %v8995
  %v9665 = vtanh.pop %v8996
  %v9666 = vtanh.pop %v8997
  %v9667 = vtanh.pop %v8998
  %v9668 = vtanh.pop %v8999
  %v9669 = vtanh.pop %v9000
  %v9670 = vtanh.pop %v9001
  %v9671 = vtanh.pop %v9002
  %v9672 = vtanh.pop %v9588
  %v9673 = vtanh.pop %v9589
  %v9674 = vtanh.pop %v9590
  %v9675 = vtanh.pop %v9591
  %v9676 = vtanh.pop %v9592
  %v9677 = vtanh.pop %v9593
  %v9678 = vtanh.pop %v9594
  %v9679 = vtanh.pop %v9595
  %v9680 = vtanh.pop %v9596
  %v9681 = vtanh.pop %v9597
  %v9682 = vtanh.pop %v9598
  %v9683 = vtanh.pop %v9599
  %v9684 = vtanh.pop %v9600
  %v9685 = vtanh.pop %v9601
  %v9686 = vtanh.pop %v9602
  %v9687 = vtanh.pop %v9603
  %v9688 = vtanh.pop %v9604
  %v9689 = vtanh.pop %v9605
  %v9690 = vtanh.pop %v9606
  %v9691 = vtanh.pop %v9607
  %v9692 = vtanh.pop %v9608
  %9693 = vst [vmem:[%s67] sm:$0xff] %v9609
  %9694 = vst [vmem:[%s67 + $0x8] sm:$0xff] %v9610
  %9695 = vst [vmem:[%s67 + $0x10] sm:$0xff] %v9611
  %9696 = vst [vmem:[%s67 + $0x18] sm:$0xff] %v9612
  %9697 = vst [vmem:[%s67 + $0x20] sm:$0xff] %v9613
  %9698 = vst [vmem:[%s67 + $0x28] sm:$0xff] %v9614
  %9699 = vst [vmem:[%s67 + $0x30] sm:$0xff] %v9615
  %9700 = vst [vmem:[%s67 + $0x38] sm:$0xff] %v9616
  %9701 = vst [vmem:[%s67 + $0x40] sm:$0xff] %v9617
  %9702 = vst [vmem:[%s67 + $0x48] sm:$0xff] %v9618
  %9703 = vst [vmem:[%s67 + $0x50] sm:$0xff] %v9619
  %9704 = vst [vmem:[%s67 + $0x58] sm:$0xff] %v9620
  %9705 = vst [vmem:[%s67 + $0x60] sm:$0xff] %v9621
  %9706 = vst [vmem:[%s67 + $0x68] sm:$0xff] %v9622
  %9707 = vst [vmem:[%s67 + $0x70] sm:$0xff] %v9623
  %9708 = vst [vmem:[%s67 + $0x78] sm:$0xff] %v9624
  %9709 = vst [vmem:[%s67 + $0x80] sm:$0xff] %v9625
  %9710 = vst [vmem:[%s67 + $0x88] sm:$0xff] %v9626
  %9711 = vst [vmem:[%s67 + $0x90] sm:$0xff] %v9627
  %9712 = vst [vmem:[%s67 + $0x98] sm:$0xff] %v9628
  %9713 = vst [vmem:[%s67 + $0xa0] sm:$0x3] %v9629
  %9714 = vst [vmem:[%s69] sm:$0xff] %v9630
  %9715 = vst [vmem:[%s69 + $0x8] sm:$0xff] %v9631
  %9716 = vst [vmem:[%s69 + $0x10] sm:$0xff] %v9632
  %9717 = vst [vmem:[%s69 + $0x18] sm:$0xff] %v9633
  %9718 = vst [vmem:[%s69 + $0x20] sm:$0xff] %v9634
  %9719 = vst [vmem:[%s69 + $0x28] sm:$0xff] %v9635
  %9720 = vst [vmem:[%s69 + $0x30] sm:$0xff] %v9636
  %9721 = vst [vmem:[%s69 + $0x38] sm:$0xff] %v9637
  %9722 = vst [vmem:[%s69 + $0x40] sm:$0xff] %v9638
  %9723 = vst [vmem:[%s69 + $0x48] sm:$0xff] %v9639
  %9724 = vst [vmem:[%s69 + $0x50] sm:$0xff] %v9640
  %9725 = vst [vmem:[%s69 + $0x58] sm:$0xff] %v9641
  %9726 = vst [vmem:[%s69 + $0x60] sm:$0xff] %v9642
  %9727 = vst [vmem:[%s69 + $0x68] sm:$0xff] %v9643
  %9728 = vst [vmem:[%s69 + $0x70] sm:$0xff] %v9644
  %9729 = vst [vmem:[%s69 + $0x78] sm:$0xff] %v9645
  %9730 = vst [vmem:[%s69 + $0x80] sm:$0xff] %v9646
  %9731 = vst [vmem:[%s69 + $0x88] sm:$0xff] %v9647
  %9732 = vst [vmem:[%s69 + $0x90] sm:$0xff] %v9648
  %9733 = vst [vmem:[%s69 + $0x98] sm:$0xff] %v9649
  %9734 = vst [vmem:[%s69 + $0xa0] sm:$0x3] %v9650
  %9735 = vst [vmem:[%s71] sm:$0xff] %v9651
  %9736 = vst [vmem:[%s71 + $0x8] sm:$0xff] %v9652
  %9737 = vst [vmem:[%s71 + $0x10] sm:$0xff] %v9653
  %9738 = vst [vmem:[%s71 + $0x18] sm:$0xff] %v9654
  %9739 = vst [vmem:[%s71 + $0x20] sm:$0xff] %v9655
  %9740 = vst [vmem:[%s71 + $0x28] sm:$0xff] %v9656
  %9741 = vst [vmem:[%s71 + $0x30] sm:$0xff] %v9657
  %9742 = vst [vmem:[%s71 + $0x38] sm:$0xff] %v9658
  %9743 = vst [vmem:[%s71 + $0x40] sm:$0xff] %v9659
  %9744 = vst [vmem:[%s71 + $0x48] sm:$0xff] %v9660
  %9745 = vst [vmem:[%s71 + $0x50] sm:$0xff] %v9661
  %9746 = vst [vmem:[%s71 + $0x58] sm:$0xff] %v9662
  %9747 = vst [vmem:[%s71 + $0x60] sm:$0xff] %v9663
  %9748 = vst [vmem:[%s71 + $0x68] sm:$0xff] %v9664
  %9749 = vst [vmem:[%s71 + $0x70] sm:$0xff] %v9665
  %9750 = vst [vmem:[%s71 + $0x78] sm:$0xff] %v9666
  %9751 = vst [vmem:[%s71 + $0x80] sm:$0xff] %v9667
  %9752 = vst [vmem:[%s71 + $0x88] sm:$0xff] %v9668
  %9753 = vst [vmem:[%s71 + $0x90] sm:$0xff] %v9669
  %9754 = vst [vmem:[%s71 + $0x98] sm:$0xff] %v9670
  %9755 = vst [vmem:[%s71 + $0xa0] sm:$0x3] %v9671
  %9756 = vst [vmem:[%s73] sm:$0xff] %v9672
  %9757 = vst [vmem:[%s73 + $0x8] sm:$0xff] %v9673
  %9758 = vst [vmem:[%s73 + $0x10] sm:$0xff] %v9674
  %9759 = vst [vmem:[%s73 + $0x18] sm:$0xff] %v9675
  %9760 = vst [vmem:[%s73 + $0x20] sm:$0xff] %v9676
  %9761 = vst [vmem:[%s73 + $0x28] sm:$0xff] %v9677
  %9762 = vst [vmem:[%s73 + $0x30] sm:$0xff] %v9678
  %9763 = vst [vmem:[%s73 + $0x38] sm:$0xff] %v9679
  %9764 = vst [vmem:[%s73 + $0x40] sm:$0xff] %v9680
  %9765 = vst [vmem:[%s73 + $0x48] sm:$0xff] %v9681
  %9766 = vst [vmem:[%s73 + $0x50] sm:$0xff] %v9682
  %9767 = vst [vmem:[%s73 + $0x58] sm:$0xff] %v9683
  %9768 = vst [vmem:[%s73 + $0x60] sm:$0xff] %v9684
  %9769 = vst [vmem:[%s73 + $0x68] sm:$0xff] %v9685
  %9770 = vst [vmem:[%s73 + $0x70] sm:$0xff] %v9686
  %9771 = vst [vmem:[%s73 + $0x78] sm:$0xff] %v9687
  %9772 = vst [vmem:[%s73 + $0x80] sm:$0xff] %v9688
  %9773 = vst [vmem:[%s73 + $0x88] sm:$0xff] %v9689
  %9774 = vst [vmem:[%s73 + $0x90] sm:$0xff] %v9690
  %9775 = vst [vmem:[%s73 + $0x98] sm:$0xff] %v9691
  %9776 = vst [vmem:[%s73 + $0xa0] sm:$0x3] %v9692
  // Predicated region
  $region134: #{_lambda_.1} parent=0 // pred_check
    _
  $region135: #{_lambda_.1} parent=0 // pred_check_branch
    %9778 = sbr.rel (0) target = $region137
  $region136: #{_lambda_.1} parent=0 // pred_region
    _
  $region137: #{_lambda_.1} parent=0 // pred_fallthru
    _
  // Predicated region
  $region138: #{_lambda_.1} parent=0 // pred_check
    _
  $region139: #{_lambda_.1} parent=0 // pred_check_branch
    %9780 = sbr.rel (0) target = $region141
  $region140: #{_lambda_.1} parent=0 // pred_region
    _
  $region141: #{_lambda_.1} parent=0 // pred_fallthru
    _
  // Predicated region
  $region142: #{_lambda_.1} parent=0 // pred_check
    _
  $region143: #{_lambda_.1} parent=0 // pred_check_branch
    %9782 = sbr.rel (0) target = $region145
  $region144: #{_lambda_.1} parent=0 // pred_region
    _
  $region145: #{_lambda_.1} parent=0 // pred_fallthru
    _
  // Predicated region
  $region146: #{_lambda_.1} parent=0 // pred_check
    _
  $region147: #{_lambda_.1} parent=0 // pred_check_branch
    %9784 = sbr.rel (0) target = $region149
  $region148: #{_lambda_.1} parent=0 // pred_region
    _
  $region149: #{_lambda_.1} parent=0 // pred_fallthru
    _
  // Predicated region
  $region150: #{_lambda_.1} parent=0 // pred_check
    _
  $region151: #{_lambda_.1} parent=0 // pred_check_branch
    %9786 = sbr.rel (0) target = $region153
  $region152: #{_lambda_.1} parent=0 // pred_region
    _
  $region153: #{_lambda_.1} parent=0 // pred_fallthru
    _
  // Predicated region
  $region154: #{_lambda_.1} parent=0 // pred_check
    _
  $region155: #{_lambda_.1} parent=0 // pred_check_branch
    %9788 = sbr.rel (0) target = $region157
  $region156: #{_lambda_.1} parent=0 // pred_region
    _
  $region157: #{_lambda_.1} parent=0 // pred_fallthru
    _
  // Predicated region
  $region158: #{_lambda_.1} parent=0 // pred_check
    _
  $region159: #{_lambda_.1} parent=0 // pred_check_branch
    %9790 = sbr.rel (0) target = $region161
  $region160: #{_lambda_.1} parent=0 // pred_region
    _
  $region161: #{_lambda_.1} parent=0 // pred_fallthru
    _
  // Predicated region
  $region162: #{_lambda_.1} parent=0 // pred_check
    _
  $region163: #{_lambda_.1} parent=0 // pred_check_branch
    %9792 = sbr.rel (0) target = $region165
  $region164: #{_lambda_.1} parent=0 // pred_region
    _
  $region165: #{_lambda_.1} parent=0 // pred_fallthru
    _

</llo_original>
